<compile_context>
chip_gen: v5e
topology: v5e:2x2
jax: 0.10.0
libtpu: 0.0.40
codegen_flags: <defaults>
</compile_context>

<pallas_src>
import jax
import jax.numpy as jnp
import numpy as np
from jax.experimental import pallas as pl
from jax.experimental.pallas import tpu as pltpu

_SQRT3_2 = 0.8660254037844386  # sqrt(3) / 2


def _round_up(x, m):
    return (x + m - 1) // m * m


def _cdiv(a, b):
    return -(-a // b)


def _space2vec_kernel(xT_ref, wfrac_ref, wcos_ref, wsin_ref, b_ref, o_ref):
    # xT_ref:    (8, TN)    points, transposed; rows 0/1 = x/y, rows 2..7 zero
    # wfrac_ref: (3*S, 8)   row j*S+s = a_j * invden_s (cols 2..7 zero)
    # wcos_ref:  (D, 3*S)   nn.Linear weight, cos half (w[:, :3*S])
    # wsin_ref:  (D, 3*S)   nn.Linear weight, sin half (w[:, 3*S:])
    # b_ref:     (D, 1)     nn.Linear bias, column vector
    # o_ref:     (D, TN)    output tile, transposed (lane-dense)
    xT = xT_ref[...]

    # fracT[j*S + s, n] = (a_j . x_n) / denom_s   -- small-K matmul on the MXU.
    fracT = jnp.dot(wfrac_ref[...], xT, preferred_element_type=jnp.float32)

    # Split linear layer: no (6*S, TN) concat temporary; MXU accumulates the
    # two partial products.  cos/sin stay lane-dense for the EUP/VPU.
    outT = jnp.dot(wcos_ref[...], jnp.cos(fracT), preferred_element_type=jnp.float32)
    outT = outT + jnp.dot(wsin_ref[...], jnp.sin(fracT),
                          preferred_element_type=jnp.float32)
    outT = outT + b_ref[...]
    o_ref[...] = jnp.maximum(outT, 0.0).astype(o_ref.dtype)


def space2vec_pallas(x, invden, w, b, *, tile_n=4096):
    """x: (..., 2) -> (..., d_embed).

    invden: (S,) reciprocal denominators 1 / (lambda_min * g**(s/(S-1)));
    w: (d_embed, 6*S) nn.Linear weight; b: (d_embed,) nn.Linear bias.
    """
    lead = x.shape[:-1]
    n = int(np.prod(lead)) if lead else 1
    S = int(invden.shape[-1])
    d_embed = int(w.shape[0])

    # Balanced lane-dense tiling: split the 128-padded problem into `steps`
    # roughly equal tiles instead of padding N up to a whole tile_max.
    n128 = _round_up(max(n, 1), 128)
    tile_max = _round_up(max(int(tile_n), 128), 128)
    steps = _cdiv(n128, tile_max)
    if n128 >= 256 and steps % 2 == 1:
        steps += 1  # even step count -> balanced across v7x's 2 TensorCores
    tile = _round_up(_cdiv(n128, steps), 128)
    n_pad = steps * tile
    grid = (steps,)

    # Points: pad N -> n_pad (zeros -> cos(0)/sin(0), sliced off below) and the
    # coordinate dim 2 -> 8 so the frac matmul contraction is sublane-aligned.
    x2 = x.reshape(n, 2).astype(jnp.float32)
    x8 = jnp.pad(x2, ((0, n_pad - n), (0, 6)))
    xT = x8.T                                                       # (8, n_pad)

    # W_frac[j*S + s, :2] = a_j * invden_s  (row order matches the reference's
    # (..., 3, S) -> (..., 3*S) reshape), zero-padded to 8 columns.
    a = jnp.array([[1.0, 0.0],
                   [-0.5, _SQRT3_2],
                   [-0.5, -_SQRT3_2]], dtype=jnp.float32)           # (3, 2)
    invden_f = invden.astype(jnp.float32).reshape(-1)               # (S,)
    wfrac = (a[:, None, :] * invden_f[None, :, None]).reshape(3 * S, 2)
    wfrac = jnp.pad(wfrac, ((0, 0), (0, 6)))                        # (3*S, 8)

    # Split the linear weight outside the kernel (an in-kernel slice at 3*S
    # would cross a (8,128) lane-tile boundary and materialize a copy).
    w2 = w.astype(jnp.float32)
    w_cos = w2[:, : 3 * S]                                          # (D, 3*S)
    w_sin = w2[:, 3 * S:]                                           # (D, 3*S)
    b_col = b.astype(jnp.float32).reshape(d_embed, 1)               # (D, 1)

    cost = pl.CostEstimate(
        flops=2 * n_pad * (3 * S * 8 + 6 * S * d_embed),
        transcendentals=n_pad * 6 * S,
        bytes_accessed=4 * (n_pad * (8 + d_embed)
                            + 3 * S * 8 + 6 * S * d_embed + d_embed),
    )

    outT = pl.pallas_call(
        _space2vec_kernel,
        out_shape=jax.ShapeDtypeStruct((d_embed, n_pad), jnp.float32),
        grid_spec=pltpu.PrefetchScalarGridSpec(
            num_scalar_prefetch=0,
            grid=grid,
            in_specs=[
                pl.BlockSpec((8, tile), lambda i: (0, i)),
                pl.BlockSpec((3 * S, 8), lambda i: (0, 0)),
                pl.BlockSpec((d_embed, 3 * S), lambda i: (0, 0)),
                pl.BlockSpec((d_embed, 3 * S), lambda i: (0, 0)),
                pl.BlockSpec((d_embed, 1), lambda i: (0, 0)),
            ],
            out_specs=pl.BlockSpec((d_embed, tile), lambda i: (0, i)),
        ),
        compiler_params=pltpu.CompilerParams(
            dimension_semantics=("parallel",),
            vmem_limit_bytes=32 * 1024 * 1024,  # ~11 MB/tile at tile=4096; v7x has 64 MiB/TC
        ),
        cost_estimate=cost,
    )(xT, wfrac, w_cos, w_sin, b_col)

    out = outT.T[:n]                                                # (n, d_embed)
    return out.reshape(*lead, d_embed)


def space2vec_reference(x, a, invden, w, b):
    """Pure-JAX reference mirroring the PyTorch forward."""
    proj = x @ a.T                                   # (..., 3)
    frac = proj[..., :, None] * invden               # (..., 3, S)
    frac = frac.reshape(*frac.shape[:-2], -1)        # (..., 3*S)
    pe = jnp.concatenate([jnp.cos(frac), jnp.sin(frac)], axis=-1)
    return jnp.maximum(pe @ w.T + b, 0.0)


if __name__ == "__main__":
    # Module hyperparameters (synthetic, deterministic).
    d_embed = 32
    num_scales = 64          # S
    lambda_min = 1.0
    lambda_max = 1000.0
    g = lambda_max / lambda_min

    # Buffers from __init__.
    scales = jnp.arange(num_scales, dtype=jnp.float32)
    denom = lambda_min * jnp.power(g, scales / (num_scales - 1))      # (S,)
    invden = (1.0 / denom).astype(jnp.float32)                        # (S,)
    a = jnp.array(
        [[1.0, 0.0],
         [-0.5, jnp.sqrt(3.0) / 2.0],
         [-0.5, -jnp.sqrt(3.0) / 2.0]], dtype=jnp.float32)            # (3, 2)

    # nn.Linear(num_scales*6, d_embed) parameters, deterministic init.
    key = jax.random.PRNGKey(0)
    k_x, k_w, k_b = jax.random.split(key, 3)
    fan_in = num_scales * 6
    bound = 1.0 / np.sqrt(fan_in)
    w = jax.random.uniform(k_w, (d_embed, fan_in), jnp.float32, -bound, bound)
    b = jax.random.uniform(k_b, (d_embed,), jnp.float32, -bound, bound)

    # Example input: batch=2, seq=8, coordinate dim 2  ->  (2, 8, 2)
    x = jax.random.uniform(k_x, (2, 8, 2), jnp.float32, -100.0, 100.0)

    out = space2vec_pallas(x, invden, w, b)
    out = jax.block_until_ready(out)

    # Reference at explicit f32 matmul precision (no bf16 truncation on TPU).
    with jax.default_matmul_precision("highest"):
        ref = jax.block_until_ready(space2vec_reference(x, a, invden, w, b))

    assert out.shape == (2, 8, d_embed)
    # frac arguments reach ~1e2 rad, so f32 sin/cos range reduction leaves thin
    # headroom; keep a small absolute cushion on top of rtol.
    np.testing.assert_allclose(np.asarray(out), np.asarray(ref), rtol=2e-4, atol=3e-4)

    print("KERNEL_OK")
</pallas_src>

<mosaic_0001>
module attributes {stable_mosaic.version = 11 : i64} {
  func.func @_space2vec_kernel(%arg0: i32, %arg1: memref<8x128xf32, #tpu.memory_space<vmem>>, %arg2: memref<192x8xf32, #tpu.memory_space<vmem>>, %arg3: memref<32x192xf32, #tpu.memory_space<vmem>>, %arg4: memref<32x192xf32, #tpu.memory_space<vmem>>, %arg5: memref<32x1xf32, #tpu.memory_space<vmem>>, %arg6: memref<32x128xf32, #tpu.memory_space<vmem>>) attributes {dimension_semantics = [#tpu.dimension_semantics<parallel>], iteration_bounds = array<i64: 1>, scalar_prefetch = 0 : i64, scratch_operands = 0 : i64, tpu.core_type = #tpu.core_type<tc>, window_params = [{transform_indices = @transform_0, window_bounds = array<i64: 8, 128>}, {pipeline_mode = #tpu.pipeline_mode<synchronous>, transform_indices = @transform_1, window_bounds = array<i64: 192, 8>}, {pipeline_mode = #tpu.pipeline_mode<synchronous>, transform_indices = @transform_2, window_bounds = array<i64: 32, 192>}, {pipeline_mode = #tpu.pipeline_mode<synchronous>, transform_indices = @transform_3, window_bounds = array<i64: 32, 192>}, {pipeline_mode = #tpu.pipeline_mode<synchronous>, transform_indices = @transform_4, window_bounds = array<i64: 32, 1>}, {transform_indices = @transform_5, window_bounds = array<i64: 32, 128>}]} {
    %c0 = arith.constant 0 : index
    %c0_0 = arith.constant 0 : index
    %0 = vector.load %arg1[%c0, %c0_0] : memref<8x128xf32, #tpu.memory_space<vmem>>, vector<8x128xf32>
    %c0_1 = arith.constant 0 : index
    %c0_2 = arith.constant 0 : index
    %1 = vector.load %arg2[%c0_1, %c0_2] : memref<192x8xf32, #tpu.memory_space<vmem>>, vector<192x8xf32>
    %cst = arith.constant dense<0.000000e+00> : vector<192x128xf32>
    %2 = tpu.matmul %1, %0, %cst {dimension_numbers = #tpu.dot_dimension_numbers<[1], [0], [0], [1], [0, 0, 1, 1], [], []>} : vector<192x8xf32>, vector<8x128xf32>, vector<192x128xf32> -> vector<192x128xf32>
    %c0_3 = arith.constant 0 : index
    %c0_4 = arith.constant 0 : index
    %3 = vector.load %arg3[%c0_3, %c0_4] : memref<32x192xf32, #tpu.memory_space<vmem>>, vector<32x192xf32>
    %4 = math.cos %2 : vector<192x128xf32>
    %cst_5 = arith.constant dense<0.000000e+00> : vector<32x128xf32>
    %5 = tpu.matmul %3, %4, %cst_5 {dimension_numbers = #tpu.dot_dimension_numbers<[1], [0], [0], [1], [0, 0, 1, 1], [], []>} : vector<32x192xf32>, vector<192x128xf32>, vector<32x128xf32> -> vector<32x128xf32>
    %c0_6 = arith.constant 0 : index
    %c0_7 = arith.constant 0 : index
    %6 = vector.load %arg4[%c0_6, %c0_7] : memref<32x192xf32, #tpu.memory_space<vmem>>, vector<32x192xf32>
    %7 = math.sin %2 : vector<192x128xf32>
    %cst_8 = arith.constant dense<0.000000e+00> : vector<32x128xf32>
    %8 = tpu.matmul %6, %7, %cst_8 {dimension_numbers = #tpu.dot_dimension_numbers<[1], [0], [0], [1], [0, 0, 1, 1], [], []>} : vector<32x192xf32>, vector<192x128xf32>, vector<32x128xf32> -> vector<32x128xf32>
    %9 = arith.addf %5, %8 : vector<32x128xf32>
    %c0_9 = arith.constant 0 : index
    %c0_10 = arith.constant 0 : index
    %10 = vector.load %arg5[%c0_9, %c0_10] : memref<32x1xf32, #tpu.memory_space<vmem>>, vector<32x1xf32>
    %11 = vector.broadcast %10 : vector<32x1xf32> to vector<32x128xf32>
    %12 = arith.addf %9, %11 : vector<32x128xf32>
    %cst_11 = arith.constant 0.000000e+00 : f32
    %13 = vector.broadcast %cst_11 : f32 to vector<32x128xf32>
    %14 = arith.maximumf %12, %13 : vector<32x128xf32>
    %c0_12 = arith.constant 0 : index
    %c0_13 = arith.constant 0 : index
    %15 = vector.load %arg6[%c0_12, %c0_13] : memref<32x128xf32, #tpu.memory_space<vmem>>, vector<32x128xf32>
    tpu.vector_store %arg6[%c0_12, %c0_13], %14 {strides = array<i32>} : memref<32x128xf32, #tpu.memory_space<vmem>>, vector<32x128xf32>,
    return
  }
  func.func @transform_0(%arg0: i32) -> (i32, i32) {
    %c0_i32 = arith.constant 0 : i32
    %c0_i32_0 = arith.constant 0 : i32
    return %c0_i32, %arg0 : i32, i32
  }
  func.func @transform_1(%arg0: i32) -> (i32, i32) {
    %c0_i32 = arith.constant 0 : i32
    %c0_i32_0 = arith.constant 0 : i32
    %c0_i32_1 = arith.constant 0 : i32
    return %c0_i32, %c0_i32_0 : i32, i32
  }
  func.func @transform_2(%arg0: i32) -> (i32, i32) {
    %c0_i32 = arith.constant 0 : i32
    %c0_i32_0 = arith.constant 0 : i32
    %c0_i32_1 = arith.constant 0 : i32
    return %c0_i32, %c0_i32_0 : i32, i32
  }
  func.func @transform_3(%arg0: i32) -> (i32, i32) {
    %c0_i32 = arith.constant 0 : i32
    %c0_i32_0 = arith.constant 0 : i32
    %c0_i32_1 = arith.constant 0 : i32
    return %c0_i32, %c0_i32_0 : i32, i32
  }
  func.func @transform_4(%arg0: i32) -> (i32, i32) {
    %c0_i32 = arith.constant 0 : i32
    %c0_i32_0 = arith.constant 0 : i32
    %c0_i32_1 = arith.constant 0 : i32
    return %c0_i32, %c0_i32_0 : i32, i32
  }
  func.func @transform_5(%arg0: i32) -> (i32, i32) {
    %c0_i32 = arith.constant 0 : i32
    %c0_i32_0 = arith.constant 0 : i32
    return %c0_i32, %arg0 : i32, i32
  }
}

</mosaic_0001>

<llo_original>
// kernel: tpu_custom_call.1
$region0: #{tpu_custom_call.1}
  #allocation0 [shape = 'u32[]', space=smem, size = 0x4, offset = 0x4, fixed_abs, tag = 'smem constant byte address 0x4 - core index']
  #allocation1 [shape = 'u32[72,128]{1,0:T(1,128)}', space=vmem, size = 0x9000, scoped, tag = 'internal scratch']
  %s0 = inlined_call_operand.vmem [shape: f32[8,128], index: 0, kind: input, shape index: {}]
  %s1 = inlined_call_operand.vmem [shape: f32[192,8], index: 1, kind: input, shape index: {}]
  %s2 = inlined_call_operand.vmem [shape: f32[32,192], index: 2, kind: input, shape index: {}]
  %s3 = inlined_call_operand.vmem [shape: f32[32,192], index: 3, kind: input, shape index: {}]
  %s4 = inlined_call_operand.vmem [shape: f32[32,1], index: 4, kind: input, shape index: {}]
  %s5 = inlined_call_operand.hbm [shape: f32[32,128], index: 5, kind: output, shape index: {}]
  %s6 = sld [smem:[#allocation0]]
  $region30: #{tpu_custom_call.1} parent=0
    _
  %s8 = ssub.s32 1, %s6
  %s9 = scalar_select 0, %s8, %s6
  $region1: #{tpu_custom_call.1} parent=0
    #allocation2 [shape = 'u8[16384]{0}', space=vmem, size = 0x4000, scoped, tag = 'output window, operand 0, single buffered']
    #allocation3 [shape = 's32[1]{0}', space=sflag, size = 0x4, scoped, tag = 'scoped memory for tpu_custom_call.1']
    %10 = vsyncpa [#allocation3], 0
    // Predicated region
    $region2: #{tpu_custom_call.1} parent=1 // pred_check
      _
    $region3: #{tpu_custom_call.1} parent=1 // pred_check_branch
      %12 = sbr.rel (0) target = $region5
    $region4: #{tpu_custom_call.1} parent=1 // pred_region
      _
    $region5: #{tpu_custom_call.1} parent=1 // pred_fallthru
      _
    // Predicated region
    $region6: #{tpu_custom_call.1} parent=1 // pred_check
      _
    $region7: #{tpu_custom_call.1} parent=1 // pred_check_branch
      %14 = sbr.rel (0) target = $region9
    $region8: #{tpu_custom_call.1} parent=1 // pred_region
      _
    $region9: #{tpu_custom_call.1} parent=1 // pred_fallthru
      _
    // Predicated region
    $region10: #{tpu_custom_call.1} parent=1 // pred_check
      _
    $region11: #{tpu_custom_call.1} parent=1 // pred_check_branch
      %16 = sbr.rel (0) target = $region13
    $region12: #{tpu_custom_call.1} parent=1 // pred_region
      _
    $region13: #{tpu_custom_call.1} parent=1 // pred_fallthru
      _
    // Predicated region
    $region14: #{tpu_custom_call.1} parent=1 // pred_check
      _
    $region15: #{tpu_custom_call.1} parent=1 // pred_check_branch
      %18 = sbr.rel (0) target = $region17
    $region16: #{tpu_custom_call.1} parent=1 // pred_region
      _
    $region17: #{tpu_custom_call.1} parent=1 // pred_fallthru
      _
    // Predicated region
    $region18: #{tpu_custom_call.1} parent=1 // pred_check
      _
    $region19: #{tpu_custom_call.1} parent=1 // pred_check_branch
      %20 = sbr.rel (0) target = $region21
    $region20: #{tpu_custom_call.1} parent=1 // pred_region
      _
    $region21: #{tpu_custom_call.1} parent=1 // pred_fallthru
      _
    %v21 = vld [vmem:[%s0] sm:$0xff]
    %v22 = vld [vmem:[%s1] sm:$0xff]
    %v23 = vld [vmem:[%s1 + $0x8] sm:$0xff]
    %v24 = vld [vmem:[%s1 + $0x10] sm:$0xff]
    %v25 = vld [vmem:[%s1 + $0x18] sm:$0xff]
    %v26 = vld [vmem:[%s1 + $0x20] sm:$0xff]
    %v27 = vld [vmem:[%s1 + $0x28] sm:$0xff]
    %v28 = vld [vmem:[%s1 + $0x30] sm:$0xff]
    %v29 = vld [vmem:[%s1 + $0x38] sm:$0xff]
    %v30 = vld [vmem:[%s1 + $0x40] sm:$0xff]
    %v31 = vld [vmem:[%s1 + $0x48] sm:$0xff]
    %v32 = vld [vmem:[%s1 + $0x50] sm:$0xff]
    %v33 = vld [vmem:[%s1 + $0x58] sm:$0xff]
    %v34 = vld [vmem:[%s1 + $0x60] sm:$0xff]
    %v35 = vld [vmem:[%s1 + $0x68] sm:$0xff]
    %v36 = vld [vmem:[%s1 + $0x70] sm:$0xff]
    %v37 = vld [vmem:[%s1 + $0x78] sm:$0xff]
    %v38 = vld [vmem:[%s1 + $0x80] sm:$0xff]
    %v39 = vld [vmem:[%s1 + $0x88] sm:$0xff]
    %v40 = vld [vmem:[%s1 + $0x90] sm:$0xff]
    %v41 = vld [vmem:[%s1 + $0x98] sm:$0xff]
    %v42 = vld [vmem:[%s1 + $0xa0] sm:$0xff]
    %v43 = vld [vmem:[%s1 + $0xa8] sm:$0xff]
    %v44 = vld [vmem:[%s1 + $0xb0] sm:$0xff]
    %v45 = vld [vmem:[%s1 + $0xb8] sm:$0xff]
    %vm46 = vcmask 64512
    %v48 = vsel %vm46, %v22, 0
    %v51 = vsel %vm46, %v23, 0
    %v54 = vsel %vm46, %v24, 0
    %v57 = vsel %vm46, %v25, 0
    %v60 = vsel %vm46, %v26, 0
    %v63 = vsel %vm46, %v27, 0
    %v66 = vsel %vm46, %v28, 0
    %v69 = vsel %vm46, %v29, 0
    %v72 = vsel %vm46, %v30, 0
    %v75 = vsel %vm46, %v31, 0
    %v78 = vsel %vm46, %v32, 0
    %v81 = vsel %vm46, %v33, 0
    %v84 = vsel %vm46, %v34, 0
    %v87 = vsel %vm46, %v35, 0
    %v90 = vsel %vm46, %v36, 0
    %v93 = vsel %vm46, %v37, 0
    %v96 = vsel %vm46, %v38, 0
    %v99 = vsel %vm46, %v39, 0
    %v102 = vsel %vm46, %v40, 0
    %v105 = vsel %vm46, %v41, 0
    %v108 = vsel %vm46, %v42, 0
    %v111 = vsel %vm46, %v43, 0
    %v114 = vsel %vm46, %v44, 0
    %v117 = vsel %vm46, %v45, 0
    %119 = vmatpush.msra.mxu0 0.0
    %120 = vmatpush.msra.mxu0 0.0
    %121 = vmatpush.msra.mxu0 0.0
    %122 = vmatpush.msra.mxu0 0.0
    %123 = vmatpush.msra.mxu0 0.0
    %124 = vmatpush.msra.mxu0 0.0
    %125 = vmatpush.msra.mxu0 0.0
    %126 = vmatpush.msra.mxu0 0.0
    %127 = vmatpush.msra.mxu0 0.0
    %128 = vmatpush.msra.mxu0 0.0
    %129 = vmatpush.msra.mxu0 0.0
    %130 = vmatpush.msra.mxu0 0.0
    %131 = vmatpush.msra.mxu0 0.0
    %132 = vmatpush.msra.mxu0 0.0
    %133 = vmatpush.msra.mxu0 0.0
    %134 = vmatpush.msra.mxu0 %v21
    %135 = vmatmul.f32.gmra.mxu0 %v48
    %v136 = vpop.f32.mrf.mxu0
    %v137 = vadd.f32 0.0, %v136
    %138 = vmatmul.f32.gmra.mxu0 %v51
    %v139 = vpop.f32.mrf.mxu0
    %v140 = vadd.f32 0.0, %v139
    %141 = vmatmul.f32.gmra.mxu0 %v54
    %v142 = vpop.f32.mrf.mxu0
    %v143 = vadd.f32 0.0, %v142
    %144 = vmatmul.f32.gmra.mxu0 %v57
    %v145 = vpop.f32.mrf.mxu0
    %v146 = vadd.f32 0.0, %v145
    %147 = vmatmul.f32.gmra.mxu0 %v60
    %v148 = vpop.f32.mrf.mxu0
    %v149 = vadd.f32 0.0, %v148
    %150 = vmatmul.f32.gmra.mxu0 %v63
    %v151 = vpop.f32.mrf.mxu0
    %v152 = vadd.f32 0.0, %v151
    %153 = vmatmul.f32.gmra.mxu0 %v66
    %v154 = vpop.f32.mrf.mxu0
    %v155 = vadd.f32 0.0, %v154
    %156 = vmatmul.f32.gmra.mxu0 %v69
    %v157 = vpop.f32.mrf.mxu0
    %v158 = vadd.f32 0.0, %v157
    %159 = vmatmul.f32.gmra.mxu0 %v72
    %v160 = vpop.f32.mrf.mxu0
    %v161 = vadd.f32 0.0, %v160
    %162 = vmatmul.f32.gmra.mxu0 %v75
    %v163 = vpop.f32.mrf.mxu0
    %v164 = vadd.f32 0.0, %v163
    %165 = vmatmul.f32.gmra.mxu0 %v78
    %v166 = vpop.f32.mrf.mxu0
    %v167 = vadd.f32 0.0, %v166
    %168 = vmatmul.f32.gmra.mxu0 %v81
    %v169 = vpop.f32.mrf.mxu0
    %v170 = vadd.f32 0.0, %v169
    %171 = vmatmul.f32.gmra.mxu0 %v84
    %v172 = vpop.f32.mrf.mxu0
    %v173 = vadd.f32 0.0, %v172
    %174 = vmatmul.f32.gmra.mxu0 %v87
    %v175 = vpop.f32.mrf.mxu0
    %v176 = vadd.f32 0.0, %v175
    %177 = vmatmul.f32.gmra.mxu0 %v90
    %v178 = vpop.f32.mrf.mxu0
    %v179 = vadd.f32 0.0, %v178
    %180 = vmatmul.f32.gmra.mxu0 %v93
    %v181 = vpop.f32.mrf.mxu0
    %v182 = vadd.f32 0.0, %v181
    %183 = vmatmul.f32.gmra.mxu0 %v96
    %v184 = vpop.f32.mrf.mxu0
    %v185 = vadd.f32 0.0, %v184
    %186 = vmatmul.f32.gmra.mxu0 %v99
    %v187 = vpop.f32.mrf.mxu0
    %v188 = vadd.f32 0.0, %v187
    %189 = vmatmul.f32.gmra.mxu0 %v102
    %v190 = vpop.f32.mrf.mxu0
    %v191 = vadd.f32 0.0, %v190
    %192 = vmatmul.f32.gmra.mxu0 %v105
    %v193 = vpop.f32.mrf.mxu0
    %v194 = vadd.f32 0.0, %v193
    %195 = vmatmul.f32.gmra.mxu0 %v108
    %v196 = vpop.f32.mrf.mxu0
    %v197 = vadd.f32 0.0, %v196
    %198 = vmatmul.f32.gmra.mxu0 %v111
    %v199 = vpop.f32.mrf.mxu0
    %v200 = vadd.f32 0.0, %v199
    %201 = vmatmul.f32.gmra.mxu0 %v114
    %v202 = vpop.f32.mrf.mxu0
    %v203 = vadd.f32 0.0, %v202
    %204 = vmatmul.f32.gmra.mxu0 %v117
    %v205 = vpop.f32.mrf.mxu0
    %v206 = vadd.f32 0.0, %v205
    %207 = vdwg.mxu0
    %v208 = vld [vmem:[%s2] sm:$0xff]
    %v209 = vld [vmem:[%s2 + $0x8] sm:$0xff]
    %v210 = vld [vmem:[%s2 + $0x10] sm:$0xff]
    %v211 = vld [vmem:[%s2 + $0x18] sm:$0xff]
    %v212 = vld [vmem:[%s2 + $0x20] sm:$0xff]
    %v213 = vld [vmem:[%s2 + $0x28] sm:$0xff]
    %v214 = vld [vmem:[%s2 + $0x30] sm:$0xff]
    %v215 = vld [vmem:[%s2 + $0x38] sm:$0xff]
    %v216 = vand.u32 2147483647, %v137
    %vm217 = vcmp.le.f32.partialorder %v216, 0.7853982
    %vm218 = vcmp.lt.s32.totalorder %v137, 0
    %v219 = vand.u32 %v137, 2139095040
    %v220 = vshrl.u32 %v219, 23
    %v221 = vsub.s32 %v220, 127
    %v222 = vand.u32 2147483647, %v137
    %v223 = vand.u32 %v222, 8388607
    %v224 = vor.u32 %v223, 8388608
    %v225 = vsub.s32 0, %v224
    %v226 = vadd.s32 %v221, 1
    %vm227 = vcmp.gt.s32.totalorder %v226, 0
    %v228 = vsel %vm227, %v226, 0
    %v229 = vshrl.u32 %v228, 5
    %v230 = vand.u32 %v228, 31
    %v231 = vsub.s32 32, %v230
    %v232 = vshrl.u32 683565275, %v231
    %v233 = vshll.u32 683565275, %v230
    %v234 = vshrl.u32 2475754826, %v231
    %v235 = vor.u32 %v233, %v234
    %v236 = vshll.u32 2475754826, %v230
    %v237 = vshrl.u32 2131351028, %v231
    %v238 = vor.u32 %v236, %v237
    %v239 = vshll.u32 2131351028, %v230
    %v240 = vshrl.u32 2102212464, %v231
    %v241 = vor.u32 %v239, %v240
    %v242 = vshll.u32 2102212464, %v230
    %v243 = vshrl.u32 920167782, %v231
    %v244 = vor.u32 %v242, %v243
    %v245 = vshll.u32 920167782, %v230
    %v246 = vshrl.u32 1326507024, %v231
    %v247 = vor.u32 %v245, %v246
    %vm248 = vcmp.lt.s32.totalorder %v229, 1
    %vm249 = vcmp.lt.s32.totalorder %v229, 2
    %vm250 = vcmp.lt.s32.totalorder %v229, 3
    %vm251 = vcmp.lt.s32.totalorder %v229, 4
    %v252 = vsel %vm248, %v232, %v235
    %v253 = vsel %vm251, %v241, 2102212464
    %v254 = vsel %vm250, %v238, %v253
    %v255 = vsel %vm249, %v252, %v254
    %v256 = vsel %vm248, %v235, %v238
    %v257 = vsel %vm251, %v244, 920167782
    %v258 = vsel %vm250, %v241, %v257
    %v259 = vsel %vm249, %v256, %v258
    %v260 = vsel %vm248, %v238, %v241
    %v261 = vsel %vm251, %v247, 1326507024
    %v262 = vsel %vm250, %v244, %v261
    %v263 = vsel %vm249, %v260, %v262
    %v264 = vshll.u32 %v224, 8
    %v265 = vand.u32 %v264, 65535
    %v266 = vshrl.u32 %v264, 16
    %v267 = vand.u32 %v263, 65535
    %v268 = vshrl.u32 %v263, 16
    %v269 = vmul.u32 %v265, %v267
    %v270 = vmul.u32 %v265, %v268
    %v271 = vmul.u32 %v266, %v267
    %v272 = vmul.u32 %v266, %v268
    %v273 = vshll.u32 %v270, 16
    %v274 = vshrl.u32 %v270, 16
    %v275 = vshll.u32 %v271, 16
    %v276 = vshrl.u32 %v271, 16
    %vm277 = vc.u32 %v269, %v273
    %v278 = vsel %vm277, 1, 0
    %v279 = vadd.s32 %v269, %v273
    %v280 = vadd.s32 %v272, %v278
    %vm281 = vc.u32 %v279, %v275
    %v282 = vsel %vm281, 1, 0
    %v283 = vadd.s32 %v279, %v275
    %v284 = vadd.s32 %v280, %v282
    %v285 = vadd.s32 %v284, %v274
    %v286 = vadd.s32 %v285, %v276
    %v287 = vand.u32 %v264, 65535
    %v288 = vshrl.u32 %v264, 16
    %v289 = vand.u32 %v259, 65535
    %v290 = vshrl.u32 %v259, 16
    %v291 = vmul.u32 %v287, %v289
    %v292 = vmul.u32 %v287, %v290
    %v293 = vmul.u32 %v288, %v289
    %v294 = vmul.u32 %v288, %v290
    %v295 = vshll.u32 %v292, 16
    %v296 = vshrl.u32 %v292, 16
    %v297 = vshll.u32 %v293, 16
    %v298 = vshrl.u32 %v293, 16
    %vm299 = vc.u32 %v291, %v295
    %v300 = vsel %vm299, 1, 0
    %v301 = vadd.s32 %v291, %v295
    %v302 = vadd.s32 %v294, %v300
    %vm303 = vc.u32 %v301, %v297
    %v304 = vsel %vm303, 1, 0
    %v305 = vadd.s32 %v301, %v297
    %v306 = vadd.s32 %v302, %v304
    %v307 = vadd.s32 %v306, %v296
    %v308 = vadd.s32 %v307, %v298
    %v309 = vmul.u32 %v264, %v255
    %v310 = vadd.s32 %v286, %v305
    %vm311 = vc.u32 %v286, %v305
    %v312 = vadd.s32 %v308, 1
    %v313 = vsel %vm311, %v312, %v308
    %v314 = vadd.s32 %v309, %v313
    %v315 = vadd.s32 %v314, 536870912
    %v316 = vshrl.u32 %v315, 30
    %v317 = vshll.u32 %v316, 30
    %v318 = vsub.s32 %v314, %v317
    %vm319 = vcmp.lt.s32.totalorder %v318, 0
    %v320 = vsub.s32 0, %v318
    %v321 = vsel %vm319, %v320, %v318
    %v322 = vclz %v321
    %v323 = vsub.s32 %v322, 2
    %vm324 = vcmp.gt.s32.totalorder 0, %v323
    %v325 = vsel %vm324, 0, %v323
    %v326 = vsub.s32 32, %v325
    %v327 = vshll.u32 %v318, %v325
    %v328 = vshrl.u32 %v310, %v326
    %v329 = vor.u32 %v327, %v328
    %v330 = vsub.s32 4294967266, %v325
    %v331 = vadd.s32 %v330, 127
    %v332 = vshll.u32 %v331, 23
    %v333 = vor.u32 4788187, %v332
    %v334 = vand.u32 2147483647, %v333
    %v336 = vcvt.s32.f32 %v329
    %v337 = vmul.f32 %v336, %v334
    %v338 = vxor.u32 %v337, 2147483648
    %v339 = vsel %vm218, %v338, %v337
    %v340 = vsub.s32 4, %v316
    %v341 = vsel %vm218, %v340, %v316
    %v342 = vsel %vm217, %v137, %v339
    %v343 = vsel %vm217, 0, %v341
    %v344 = vmul.f32 %v342, %v342
    %v345 = vmul.f32 %v344, -0.001358992
    %v346 = vadd.f32 %v345, 0.041655596
    %v347 = vmul.f32 %v344, %v346
    %v348 = vadd.f32 %v347, -0.4999988
    %v349 = vmul.f32 %v344, %v348
    %v350 = vadd.f32 1.0, %v349
    %v351 = vmul.f32 %v342, %v342
    %v352 = vmul.f32 %v351, -0.00019511016
    %v353 = vadd.f32 %v352, 0.008332121
    %v354 = vmul.f32 %v351, %v353
    %v355 = vadd.f32 %v354, -0.16666654
    %v356 = vmul.f32 %v351, %v355
    %v357 = vadd.f32 %v356, 1.0
    %v358 = vmul.f32 %v357, %v342
    %vm359 = vweird.f32 %v137
    %v360 = vand.u32 %v343, 3
    %vm361 = vcmp.lt.s32.totalorder %v360, 2
    %vm362 = vcmp.eq.s32.totalorder %v360, 0
    %v363 = vxor.u32 %v358, 2147483648
    %v364 = vsel %vm362, %v350, %v363
    %vm365 = vcmp.eq.s32.totalorder %v360, 2
    %v366 = vxor.u32 %v350, 2147483648
    %v367 = vsel %vm365, %v366, %v358
    %v368 = vsel %vm361, %v364, %v367
    %v369 = vsel %vm359, nan, %v368
    %v370 = vand.u32 2147483647, %v140
    %vm371 = vcmp.le.f32.partialorder %v370, 0.7853982
    %vm372 = vcmp.lt.s32.totalorder %v140, 0
    %v373 = vand.u32 %v140, 2139095040
    %v374 = vshrl.u32 %v373, 23
    %v375 = vsub.s32 %v374, 127
    %v376 = vand.u32 2147483647, %v140
    %v377 = vand.u32 %v376, 8388607
    %v378 = vor.u32 %v377, 8388608
    %v379 = vsub.s32 0, %v378
    %v380 = vadd.s32 %v375, 1
    %vm381 = vcmp.gt.s32.totalorder %v380, 0
    %v382 = vsel %vm381, %v380, 0
    %v383 = vshrl.u32 %v382, 5
    %v384 = vand.u32 %v382, 31
    %v385 = vsub.s32 32, %v384
    %v386 = vshrl.u32 683565275, %v385
    %v387 = vshll.u32 683565275, %v384
    %v388 = vshrl.u32 2475754826, %v385
    %v389 = vor.u32 %v387, %v388
    %v390 = vshll.u32 2475754826, %v384
    %v391 = vshrl.u32 2131351028, %v385
    %v392 = vor.u32 %v390, %v391
    %v393 = vshll.u32 2131351028, %v384
    %v394 = vshrl.u32 2102212464, %v385
    %v395 = vor.u32 %v393, %v394
    %v396 = vshll.u32 2102212464, %v384
    %v397 = vshrl.u32 920167782, %v385
    %v398 = vor.u32 %v396, %v397
    %v399 = vshll.u32 920167782, %v384
    %v400 = vshrl.u32 1326507024, %v385
    %v401 = vor.u32 %v399, %v400
    %vm402 = vcmp.lt.s32.totalorder %v383, 1
    %vm403 = vcmp.lt.s32.totalorder %v383, 2
    %vm404 = vcmp.lt.s32.totalorder %v383, 3
    %vm405 = vcmp.lt.s32.totalorder %v383, 4
    %v406 = vsel %vm402, %v386, %v389
    %v407 = vsel %vm405, %v395, 2102212464
    %v408 = vsel %vm404, %v392, %v407
    %v409 = vsel %vm403, %v406, %v408
    %v410 = vsel %vm402, %v389, %v392
    %v411 = vsel %vm405, %v398, 920167782
    %v412 = vsel %vm404, %v395, %v411
    %v413 = vsel %vm403, %v410, %v412
    %v414 = vsel %vm402, %v392, %v395
    %v415 = vsel %vm405, %v401, 1326507024
    %v416 = vsel %vm404, %v398, %v415
    %v417 = vsel %vm403, %v414, %v416
    %v418 = vshll.u32 %v378, 8
    %v419 = vand.u32 %v418, 65535
    %v420 = vshrl.u32 %v418, 16
    %v421 = vand.u32 %v417, 65535
    %v422 = vshrl.u32 %v417, 16
    %v423 = vmul.u32 %v419, %v421
    %v424 = vmul.u32 %v419, %v422
    %v425 = vmul.u32 %v420, %v421
    %v426 = vmul.u32 %v420, %v422
    %v427 = vshll.u32 %v424, 16
    %v428 = vshrl.u32 %v424, 16
    %v429 = vshll.u32 %v425, 16
    %v430 = vshrl.u32 %v425, 16
    %vm431 = vc.u32 %v423, %v427
    %v432 = vsel %vm431, 1, 0
    %v433 = vadd.s32 %v423, %v427
    %v434 = vadd.s32 %v426, %v432
    %vm435 = vc.u32 %v433, %v429
    %v436 = vsel %vm435, 1, 0
    %v437 = vadd.s32 %v433, %v429
    %v438 = vadd.s32 %v434, %v436
    %v439 = vadd.s32 %v438, %v428
    %v440 = vadd.s32 %v439, %v430
    %v441 = vand.u32 %v418, 65535
    %v442 = vshrl.u32 %v418, 16
    %v443 = vand.u32 %v413, 65535
    %v444 = vshrl.u32 %v413, 16
    %v445 = vmul.u32 %v441, %v443
    %v446 = vmul.u32 %v441, %v444
    %v447 = vmul.u32 %v442, %v443
    %v448 = vmul.u32 %v442, %v444
    %v449 = vshll.u32 %v446, 16
    %v450 = vshrl.u32 %v446, 16
    %v451 = vshll.u32 %v447, 16
    %v452 = vshrl.u32 %v447, 16
    %vm453 = vc.u32 %v445, %v449
    %v454 = vsel %vm453, 1, 0
    %v455 = vadd.s32 %v445, %v449
    %v456 = vadd.s32 %v448, %v454
    %vm457 = vc.u32 %v455, %v451
    %v458 = vsel %vm457, 1, 0
    %v459 = vadd.s32 %v455, %v451
    %v460 = vadd.s32 %v456, %v458
    %v461 = vadd.s32 %v460, %v450
    %v462 = vadd.s32 %v461, %v452
    %v463 = vmul.u32 %v418, %v409
    %v464 = vadd.s32 %v440, %v459
    %vm465 = vc.u32 %v440, %v459
    %v466 = vadd.s32 %v462, 1
    %v467 = vsel %vm465, %v466, %v462
    %v468 = vadd.s32 %v463, %v467
    %v469 = vadd.s32 %v468, 536870912
    %v470 = vshrl.u32 %v469, 30
    %v471 = vshll.u32 %v470, 30
    %v472 = vsub.s32 %v468, %v471
    %vm473 = vcmp.lt.s32.totalorder %v472, 0
    %v474 = vsub.s32 0, %v472
    %v475 = vsel %vm473, %v474, %v472
    %v476 = vclz %v475
    %v477 = vsub.s32 %v476, 2
    %vm478 = vcmp.gt.s32.totalorder 0, %v477
    %v479 = vsel %vm478, 0, %v477
    %v480 = vsub.s32 32, %v479
    %v481 = vshll.u32 %v472, %v479
    %v482 = vshrl.u32 %v464, %v480
    %v483 = vor.u32 %v481, %v482
    %v484 = vsub.s32 4294967266, %v479
    %v485 = vadd.s32 %v484, 127
    %v486 = vshll.u32 %v485, 23
    %v487 = vor.u32 4788187, %v486
    %v488 = vand.u32 2147483647, %v487
    %v490 = vcvt.s32.f32 %v483
    %v491 = vmul.f32 %v490, %v488
    %v492 = vxor.u32 %v491, 2147483648
    %v493 = vsel %vm372, %v492, %v491
    %v494 = vsub.s32 4, %v470
    %v495 = vsel %vm372, %v494, %v470
    %v496 = vsel %vm371, %v140, %v493
    %v497 = vsel %vm371, 0, %v495
    %v498 = vmul.f32 %v496, %v496
    %v499 = vmul.f32 %v498, -0.001358992
    %v500 = vadd.f32 %v499, 0.041655596
    %v501 = vmul.f32 %v498, %v500
    %v502 = vadd.f32 %v501, -0.4999988
    %v503 = vmul.f32 %v498, %v502
    %v504 = vadd.f32 1.0, %v503
    %v505 = vmul.f32 %v496, %v496
    %v506 = vmul.f32 %v505, -0.00019511016
    %v507 = vadd.f32 %v506, 0.008332121
    %v508 = vmul.f32 %v505, %v507
    %v509 = vadd.f32 %v508, -0.16666654
    %v510 = vmul.f32 %v505, %v509
    %v511 = vadd.f32 %v510, 1.0
    %v512 = vmul.f32 %v511, %v496
    %vm513 = vweird.f32 %v140
    %v514 = vand.u32 %v497, 3
    %vm515 = vcmp.lt.s32.totalorder %v514, 2
    %vm516 = vcmp.eq.s32.totalorder %v514, 0
    %v517 = vxor.u32 %v512, 2147483648
    %v518 = vsel %vm516, %v504, %v517
    %vm519 = vcmp.eq.s32.totalorder %v514, 2
    %v520 = vxor.u32 %v504, 2147483648
    %v521 = vsel %vm519, %v520, %v512
    %v522 = vsel %vm515, %v518, %v521
    %v523 = vsel %vm513, nan, %v522
    %v524 = vand.u32 2147483647, %v143
    %vm525 = vcmp.le.f32.partialorder %v524, 0.7853982
    %vm526 = vcmp.lt.s32.totalorder %v143, 0
    %v527 = vand.u32 %v143, 2139095040
    %v528 = vshrl.u32 %v527, 23
    %v529 = vsub.s32 %v528, 127
    %v530 = vand.u32 2147483647, %v143
    %v531 = vand.u32 %v530, 8388607
    %v532 = vor.u32 %v531, 8388608
    %v533 = vsub.s32 0, %v532
    %v534 = vadd.s32 %v529, 1
    %vm535 = vcmp.gt.s32.totalorder %v534, 0
    %v536 = vsel %vm535, %v534, 0
    %v537 = vshrl.u32 %v536, 5
    %v538 = vand.u32 %v536, 31
    %v539 = vsub.s32 32, %v538
    %v540 = vshrl.u32 683565275, %v539
    %v541 = vshll.u32 683565275, %v538
    %v542 = vshrl.u32 2475754826, %v539
    %v543 = vor.u32 %v541, %v542
    %v544 = vshll.u32 2475754826, %v538
    %v545 = vshrl.u32 2131351028, %v539
    %v546 = vor.u32 %v544, %v545
    %v547 = vshll.u32 2131351028, %v538
    %v548 = vshrl.u32 2102212464, %v539
    %v549 = vor.u32 %v547, %v548
    %v550 = vshll.u32 2102212464, %v538
    %v551 = vshrl.u32 920167782, %v539
    %v552 = vor.u32 %v550, %v551
    %v553 = vshll.u32 920167782, %v538
    %v554 = vshrl.u32 1326507024, %v539
    %v555 = vor.u32 %v553, %v554
    %vm556 = vcmp.lt.s32.totalorder %v537, 1
    %vm557 = vcmp.lt.s32.totalorder %v537, 2
    %vm558 = vcmp.lt.s32.totalorder %v537, 3
    %vm559 = vcmp.lt.s32.totalorder %v537, 4
    %v560 = vsel %vm556, %v540, %v543
    %v561 = vsel %vm559, %v549, 2102212464
    %v562 = vsel %vm558, %v546, %v561
    %v563 = vsel %vm557, %v560, %v562
    %v564 = vsel %vm556, %v543, %v546
    %v565 = vsel %vm559, %v552, 920167782
    %v566 = vsel %vm558, %v549, %v565
    %v567 = vsel %vm557, %v564, %v566
    %v568 = vsel %vm556, %v546, %v549
    %v569 = vsel %vm559, %v555, 1326507024
    %v570 = vsel %vm558, %v552, %v569
    %v571 = vsel %vm557, %v568, %v570
    %v572 = vshll.u32 %v532, 8
    %v573 = vand.u32 %v572, 65535
    %v574 = vshrl.u32 %v572, 16
    %v575 = vand.u32 %v571, 65535
    %v576 = vshrl.u32 %v571, 16
    %v577 = vmul.u32 %v573, %v575
    %v578 = vmul.u32 %v573, %v576
    %v579 = vmul.u32 %v574, %v575
    %v580 = vmul.u32 %v574, %v576
    %v581 = vshll.u32 %v578, 16
    %v582 = vshrl.u32 %v578, 16
    %v583 = vshll.u32 %v579, 16
    %v584 = vshrl.u32 %v579, 16
    %vm585 = vc.u32 %v577, %v581
    %v586 = vsel %vm585, 1, 0
    %v587 = vadd.s32 %v577, %v581
    %v588 = vadd.s32 %v580, %v586
    %vm589 = vc.u32 %v587, %v583
    %v590 = vsel %vm589, 1, 0
    %v591 = vadd.s32 %v587, %v583
    %v592 = vadd.s32 %v588, %v590
    %v593 = vadd.s32 %v592, %v582
    %v594 = vadd.s32 %v593, %v584
    %v595 = vand.u32 %v572, 65535
    %v596 = vshrl.u32 %v572, 16
    %v597 = vand.u32 %v567, 65535
    %v598 = vshrl.u32 %v567, 16
    %v599 = vmul.u32 %v595, %v597
    %v600 = vmul.u32 %v595, %v598
    %v601 = vmul.u32 %v596, %v597
    %v602 = vmul.u32 %v596, %v598
    %v603 = vshll.u32 %v600, 16
    %v604 = vshrl.u32 %v600, 16
    %v605 = vshll.u32 %v601, 16
    %v606 = vshrl.u32 %v601, 16
    %vm607 = vc.u32 %v599, %v603
    %v608 = vsel %vm607, 1, 0
    %v609 = vadd.s32 %v599, %v603
    %v610 = vadd.s32 %v602, %v608
    %vm611 = vc.u32 %v609, %v605
    %v612 = vsel %vm611, 1, 0
    %v613 = vadd.s32 %v609, %v605
    %v614 = vadd.s32 %v610, %v612
    %v615 = vadd.s32 %v614, %v604
    %v616 = vadd.s32 %v615, %v606
    %v617 = vmul.u32 %v572, %v563
    %v618 = vadd.s32 %v594, %v613
    %vm619 = vc.u32 %v594, %v613
    %v620 = vadd.s32 %v616, 1
    %v621 = vsel %vm619, %v620, %v616
    %v622 = vadd.s32 %v617, %v621
    %v623 = vadd.s32 %v622, 536870912
    %v624 = vshrl.u32 %v623, 30
    %v625 = vshll.u32 %v624, 30
    %v626 = vsub.s32 %v622, %v625
    %vm627 = vcmp.lt.s32.totalorder %v626, 0
    %v628 = vsub.s32 0, %v626
    %v629 = vsel %vm627, %v628, %v626
    %v630 = vclz %v629
    %v631 = vsub.s32 %v630, 2
    %vm632 = vcmp.gt.s32.totalorder 0, %v631
    %v633 = vsel %vm632, 0, %v631
    %v634 = vsub.s32 32, %v633
    %v635 = vshll.u32 %v626, %v633
    %v636 = vshrl.u32 %v618, %v634
    %v637 = vor.u32 %v635, %v636
    %v638 = vsub.s32 4294967266, %v633
    %v639 = vadd.s32 %v638, 127
    %v640 = vshll.u32 %v639, 23
    %v641 = vor.u32 4788187, %v640
    %v642 = vand.u32 2147483647, %v641
    %v644 = vcvt.s32.f32 %v637
    %v645 = vmul.f32 %v644, %v642
    %v646 = vxor.u32 %v645, 2147483648
    %v647 = vsel %vm526, %v646, %v645
    %v648 = vsub.s32 4, %v624
    %v649 = vsel %vm526, %v648, %v624
    %v650 = vsel %vm525, %v143, %v647
    %v651 = vsel %vm525, 0, %v649
    %v652 = vmul.f32 %v650, %v650
    %v653 = vmul.f32 %v652, -0.001358992
    %v654 = vadd.f32 %v653, 0.041655596
    %v655 = vmul.f32 %v652, %v654
    %v656 = vadd.f32 %v655, -0.4999988
    %v657 = vmul.f32 %v652, %v656
    %v658 = vadd.f32 1.0, %v657
    %v659 = vmul.f32 %v650, %v650
    %v660 = vmul.f32 %v659, -0.00019511016
    %v661 = vadd.f32 %v660, 0.008332121
    %v662 = vmul.f32 %v659, %v661
    %v663 = vadd.f32 %v662, -0.16666654
    %v664 = vmul.f32 %v659, %v663
    %v665 = vadd.f32 %v664, 1.0
    %v666 = vmul.f32 %v665, %v650
    %vm667 = vweird.f32 %v143
    %v668 = vand.u32 %v651, 3
    %vm669 = vcmp.lt.s32.totalorder %v668, 2
    %vm670 = vcmp.eq.s32.totalorder %v668, 0
    %v671 = vxor.u32 %v666, 2147483648
    %v672 = vsel %vm670, %v658, %v671
    %vm673 = vcmp.eq.s32.totalorder %v668, 2
    %v674 = vxor.u32 %v658, 2147483648
    %v675 = vsel %vm673, %v674, %v666
    %v676 = vsel %vm669, %v672, %v675
    %v677 = vsel %vm667, nan, %v676
    %v678 = vand.u32 2147483647, %v146
    %vm679 = vcmp.le.f32.partialorder %v678, 0.7853982
    %vm680 = vcmp.lt.s32.totalorder %v146, 0
    %v681 = vand.u32 %v146, 2139095040
    %v682 = vshrl.u32 %v681, 23
    %v683 = vsub.s32 %v682, 127
    %v684 = vand.u32 2147483647, %v146
    %v685 = vand.u32 %v684, 8388607
    %v686 = vor.u32 %v685, 8388608
    %v687 = vsub.s32 0, %v686
    %v688 = vadd.s32 %v683, 1
    %vm689 = vcmp.gt.s32.totalorder %v688, 0
    %v690 = vsel %vm689, %v688, 0
    %v691 = vshrl.u32 %v690, 5
    %v692 = vand.u32 %v690, 31
    %v693 = vsub.s32 32, %v692
    %v694 = vshrl.u32 683565275, %v693
    %v695 = vshll.u32 683565275, %v692
    %v696 = vshrl.u32 2475754826, %v693
    %v697 = vor.u32 %v695, %v696
    %v698 = vshll.u32 2475754826, %v692
    %v699 = vshrl.u32 2131351028, %v693
    %v700 = vor.u32 %v698, %v699
    %v701 = vshll.u32 2131351028, %v692
    %v702 = vshrl.u32 2102212464, %v693
    %v703 = vor.u32 %v701, %v702
    %v704 = vshll.u32 2102212464, %v692
    %v705 = vshrl.u32 920167782, %v693
    %v706 = vor.u32 %v704, %v705
    %v707 = vshll.u32 920167782, %v692
    %v708 = vshrl.u32 1326507024, %v693
    %v709 = vor.u32 %v707, %v708
    %vm710 = vcmp.lt.s32.totalorder %v691, 1
    %vm711 = vcmp.lt.s32.totalorder %v691, 2
    %vm712 = vcmp.lt.s32.totalorder %v691, 3
    %vm713 = vcmp.lt.s32.totalorder %v691, 4
    %v714 = vsel %vm710, %v694, %v697
    %v715 = vsel %vm713, %v703, 2102212464
    %v716 = vsel %vm712, %v700, %v715
    %v717 = vsel %vm711, %v714, %v716
    %v718 = vsel %vm710, %v697, %v700
    %v719 = vsel %vm713, %v706, 920167782
    %v720 = vsel %vm712, %v703, %v719
    %v721 = vsel %vm711, %v718, %v720
    %v722 = vsel %vm710, %v700, %v703
    %v723 = vsel %vm713, %v709, 1326507024
    %v724 = vsel %vm712, %v706, %v723
    %v725 = vsel %vm711, %v722, %v724
    %v726 = vshll.u32 %v686, 8
    %v727 = vand.u32 %v726, 65535
    %v728 = vshrl.u32 %v726, 16
    %v729 = vand.u32 %v725, 65535
    %v730 = vshrl.u32 %v725, 16
    %v731 = vmul.u32 %v727, %v729
    %v732 = vmul.u32 %v727, %v730
    %v733 = vmul.u32 %v728, %v729
    %v734 = vmul.u32 %v728, %v730
    %v735 = vshll.u32 %v732, 16
    %v736 = vshrl.u32 %v732, 16
    %v737 = vshll.u32 %v733, 16
    %v738 = vshrl.u32 %v733, 16
    %vm739 = vc.u32 %v731, %v735
    %v740 = vsel %vm739, 1, 0
    %v741 = vadd.s32 %v731, %v735
    %v742 = vadd.s32 %v734, %v740
    %vm743 = vc.u32 %v741, %v737
    %v744 = vsel %vm743, 1, 0
    %v745 = vadd.s32 %v741, %v737
    %v746 = vadd.s32 %v742, %v744
    %v747 = vadd.s32 %v746, %v736
    %v748 = vadd.s32 %v747, %v738
    %v749 = vand.u32 %v726, 65535
    %v750 = vshrl.u32 %v726, 16
    %v751 = vand.u32 %v721, 65535
    %v752 = vshrl.u32 %v721, 16
    %v753 = vmul.u32 %v749, %v751
    %v754 = vmul.u32 %v749, %v752
    %v755 = vmul.u32 %v750, %v751
    %v756 = vmul.u32 %v750, %v752
    %v757 = vshll.u32 %v754, 16
    %v758 = vshrl.u32 %v754, 16
    %v759 = vshll.u32 %v755, 16
    %v760 = vshrl.u32 %v755, 16
    %vm761 = vc.u32 %v753, %v757
    %v762 = vsel %vm761, 1, 0
    %v763 = vadd.s32 %v753, %v757
    %v764 = vadd.s32 %v756, %v762
    %vm765 = vc.u32 %v763, %v759
    %v766 = vsel %vm765, 1, 0
    %v767 = vadd.s32 %v763, %v759
    %v768 = vadd.s32 %v764, %v766
    %v769 = vadd.s32 %v768, %v758
    %v770 = vadd.s32 %v769, %v760
    %v771 = vmul.u32 %v726, %v717
    %v772 = vadd.s32 %v748, %v767
    %vm773 = vc.u32 %v748, %v767
    %v774 = vadd.s32 %v770, 1
    %v775 = vsel %vm773, %v774, %v770
    %v776 = vadd.s32 %v771, %v775
    %v777 = vadd.s32 %v776, 536870912
    %v778 = vshrl.u32 %v777, 30
    %v779 = vshll.u32 %v778, 30
    %v780 = vsub.s32 %v776, %v779
    %vm781 = vcmp.lt.s32.totalorder %v780, 0
    %v782 = vsub.s32 0, %v780
    %v783 = vsel %vm781, %v782, %v780
    %v784 = vclz %v783
    %v785 = vsub.s32 %v784, 2
    %vm786 = vcmp.gt.s32.totalorder 0, %v785
    %v787 = vsel %vm786, 0, %v785
    %v788 = vsub.s32 32, %v787
    %v789 = vshll.u32 %v780, %v787
    %v790 = vshrl.u32 %v772, %v788
    %v791 = vor.u32 %v789, %v790
    %v792 = vsub.s32 4294967266, %v787
    %v793 = vadd.s32 %v792, 127
    %v794 = vshll.u32 %v793, 23
    %v795 = vor.u32 4788187, %v794
    %v796 = vand.u32 2147483647, %v795
    %v798 = vcvt.s32.f32 %v791
    %v799 = vmul.f32 %v798, %v796
    %v800 = vxor.u32 %v799, 2147483648
    %v801 = vsel %vm680, %v800, %v799
    %v802 = vsub.s32 4, %v778
    %v803 = vsel %vm680, %v802, %v778
    %v804 = vsel %vm679, %v146, %v801
    %v805 = vsel %vm679, 0, %v803
    %v806 = vmul.f32 %v804, %v804
    %v807 = vmul.f32 %v806, -0.001358992
    %v808 = vadd.f32 %v807, 0.041655596
    %v809 = vmul.f32 %v806, %v808
    %v810 = vadd.f32 %v809, -0.4999988
    %v811 = vmul.f32 %v806, %v810
    %v812 = vadd.f32 1.0, %v811
    %v813 = vmul.f32 %v804, %v804
    %v814 = vmul.f32 %v813, -0.00019511016
    %v815 = vadd.f32 %v814, 0.008332121
    %v816 = vmul.f32 %v813, %v815
    %v817 = vadd.f32 %v816, -0.16666654
    %v818 = vmul.f32 %v813, %v817
    %v819 = vadd.f32 %v818, 1.0
    %v820 = vmul.f32 %v819, %v804
    %vm821 = vweird.f32 %v146
    %v822 = vand.u32 %v805, 3
    %vm823 = vcmp.lt.s32.totalorder %v822, 2
    %vm824 = vcmp.eq.s32.totalorder %v822, 0
    %v825 = vxor.u32 %v820, 2147483648
    %v826 = vsel %vm824, %v812, %v825
    %vm827 = vcmp.eq.s32.totalorder %v822, 2
    %v828 = vxor.u32 %v812, 2147483648
    %v829 = vsel %vm827, %v828, %v820
    %v830 = vsel %vm823, %v826, %v829
    %v831 = vsel %vm821, nan, %v830
    %v832 = vand.u32 2147483647, %v149
    %vm833 = vcmp.le.f32.partialorder %v832, 0.7853982
    %vm834 = vcmp.lt.s32.totalorder %v149, 0
    %v835 = vand.u32 %v149, 2139095040
    %v836 = vshrl.u32 %v835, 23
    %v837 = vsub.s32 %v836, 127
    %v838 = vand.u32 2147483647, %v149
    %v839 = vand.u32 %v838, 8388607
    %v840 = vor.u32 %v839, 8388608
    %v841 = vsub.s32 0, %v840
    %v842 = vadd.s32 %v837, 1
    %vm843 = vcmp.gt.s32.totalorder %v842, 0
    %v844 = vsel %vm843, %v842, 0
    %v845 = vshrl.u32 %v844, 5
    %v846 = vand.u32 %v844, 31
    %v847 = vsub.s32 32, %v846
    %v848 = vshrl.u32 683565275, %v847
    %v849 = vshll.u32 683565275, %v846
    %v850 = vshrl.u32 2475754826, %v847
    %v851 = vor.u32 %v849, %v850
    %v852 = vshll.u32 2475754826, %v846
    %v853 = vshrl.u32 2131351028, %v847
    %v854 = vor.u32 %v852, %v853
    %v855 = vshll.u32 2131351028, %v846
    %v856 = vshrl.u32 2102212464, %v847
    %v857 = vor.u32 %v855, %v856
    %v858 = vshll.u32 2102212464, %v846
    %v859 = vshrl.u32 920167782, %v847
    %v860 = vor.u32 %v858, %v859
    %v861 = vshll.u32 920167782, %v846
    %v862 = vshrl.u32 1326507024, %v847
    %v863 = vor.u32 %v861, %v862
    %vm864 = vcmp.lt.s32.totalorder %v845, 1
    %vm865 = vcmp.lt.s32.totalorder %v845, 2
    %vm866 = vcmp.lt.s32.totalorder %v845, 3
    %vm867 = vcmp.lt.s32.totalorder %v845, 4
    %v868 = vsel %vm864, %v848, %v851
    %v869 = vsel %vm867, %v857, 2102212464
    %v870 = vsel %vm866, %v854, %v869
    %v871 = vsel %vm865, %v868, %v870
    %v872 = vsel %vm864, %v851, %v854
    %v873 = vsel %vm867, %v860, 920167782
    %v874 = vsel %vm866, %v857, %v873
    %v875 = vsel %vm865, %v872, %v874
    %v876 = vsel %vm864, %v854, %v857
    %v877 = vsel %vm867, %v863, 1326507024
    %v878 = vsel %vm866, %v860, %v877
    %v879 = vsel %vm865, %v876, %v878
    %v880 = vshll.u32 %v840, 8
    %v881 = vand.u32 %v880, 65535
    %v882 = vshrl.u32 %v880, 16
    %v883 = vand.u32 %v879, 65535
    %v884 = vshrl.u32 %v879, 16
    %v885 = vmul.u32 %v881, %v883
    %v886 = vmul.u32 %v881, %v884
    %v887 = vmul.u32 %v882, %v883
    %v888 = vmul.u32 %v882, %v884
    %v889 = vshll.u32 %v886, 16
    %v890 = vshrl.u32 %v886, 16
    %v891 = vshll.u32 %v887, 16
    %v892 = vshrl.u32 %v887, 16
    %vm893 = vc.u32 %v885, %v889
    %v894 = vsel %vm893, 1, 0
    %v895 = vadd.s32 %v885, %v889
    %v896 = vadd.s32 %v888, %v894
    %vm897 = vc.u32 %v895, %v891
    %v898 = vsel %vm897, 1, 0
    %v899 = vadd.s32 %v895, %v891
    %v900 = vadd.s32 %v896, %v898
    %v901 = vadd.s32 %v900, %v890
    %v902 = vadd.s32 %v901, %v892
    %v903 = vand.u32 %v880, 65535
    %v904 = vshrl.u32 %v880, 16
    %v905 = vand.u32 %v875, 65535
    %v906 = vshrl.u32 %v875, 16
    %v907 = vmul.u32 %v903, %v905
    %v908 = vmul.u32 %v903, %v906
    %v909 = vmul.u32 %v904, %v905
    %v910 = vmul.u32 %v904, %v906
    %v911 = vshll.u32 %v908, 16
    %v912 = vshrl.u32 %v908, 16
    %v913 = vshll.u32 %v909, 16
    %v914 = vshrl.u32 %v909, 16
    %vm915 = vc.u32 %v907, %v911
    %v916 = vsel %vm915, 1, 0
    %v917 = vadd.s32 %v907, %v911
    %v918 = vadd.s32 %v910, %v916
    %vm919 = vc.u32 %v917, %v913
    %v920 = vsel %vm919, 1, 0
    %v921 = vadd.s32 %v917, %v913
    %v922 = vadd.s32 %v918, %v920
    %v923 = vadd.s32 %v922, %v912
    %v924 = vadd.s32 %v923, %v914
    %v925 = vmul.u32 %v880, %v871
    %v926 = vadd.s32 %v902, %v921
    %vm927 = vc.u32 %v902, %v921
    %v928 = vadd.s32 %v924, 1
    %v929 = vsel %vm927, %v928, %v924
    %v930 = vadd.s32 %v925, %v929
    %v931 = vadd.s32 %v930, 536870912
    %v932 = vshrl.u32 %v931, 30
    %v933 = vshll.u32 %v932, 30
    %v934 = vsub.s32 %v930, %v933
    %vm935 = vcmp.lt.s32.totalorder %v934, 0
    %v936 = vsub.s32 0, %v934
    %v937 = vsel %vm935, %v936, %v934
    %v938 = vclz %v937
    %v939 = vsub.s32 %v938, 2
    %vm940 = vcmp.gt.s32.totalorder 0, %v939
    %v941 = vsel %vm940, 0, %v939
    %v942 = vsub.s32 32, %v941
    %v943 = vshll.u32 %v934, %v941
    %v944 = vshrl.u32 %v926, %v942
    %v945 = vor.u32 %v943, %v944
    %v946 = vsub.s32 4294967266, %v941
    %v947 = vadd.s32 %v946, 127
    %v948 = vshll.u32 %v947, 23
    %v949 = vor.u32 4788187, %v948
    %v950 = vand.u32 2147483647, %v949
    %v952 = vcvt.s32.f32 %v945
    %v953 = vmul.f32 %v952, %v950
    %v954 = vxor.u32 %v953, 2147483648
    %v955 = vsel %vm834, %v954, %v953
    %v956 = vsub.s32 4, %v932
    %v957 = vsel %vm834, %v956, %v932
    %v958 = vsel %vm833, %v149, %v955
    %v959 = vsel %vm833, 0, %v957
    %v960 = vmul.f32 %v958, %v958
    %v961 = vmul.f32 %v960, -0.001358992
    %v962 = vadd.f32 %v961, 0.041655596
    %v963 = vmul.f32 %v960, %v962
    %v964 = vadd.f32 %v963, -0.4999988
    %v965 = vmul.f32 %v960, %v964
    %v966 = vadd.f32 1.0, %v965
    %v967 = vmul.f32 %v958, %v958
    %v968 = vmul.f32 %v967, -0.00019511016
    %v969 = vadd.f32 %v968, 0.008332121
    %v970 = vmul.f32 %v967, %v969
    %v971 = vadd.f32 %v970, -0.16666654
    %v972 = vmul.f32 %v967, %v971
    %v973 = vadd.f32 %v972, 1.0
    %v974 = vmul.f32 %v973, %v958
    %vm975 = vweird.f32 %v149
    %v976 = vand.u32 %v959, 3
    %vm977 = vcmp.lt.s32.totalorder %v976, 2
    %vm978 = vcmp.eq.s32.totalorder %v976, 0
    %v979 = vxor.u32 %v974, 2147483648
    %v980 = vsel %vm978, %v966, %v979
    %vm981 = vcmp.eq.s32.totalorder %v976, 2
    %v982 = vxor.u32 %v966, 2147483648
    %v983 = vsel %vm981, %v982, %v974
    %v984 = vsel %vm977, %v980, %v983
    %v985 = vsel %vm975, nan, %v984
    %v986 = vand.u32 2147483647, %v152
    %vm987 = vcmp.le.f32.partialorder %v986, 0.7853982
    %vm988 = vcmp.lt.s32.totalorder %v152, 0
    %v989 = vand.u32 %v152, 2139095040
    %v990 = vshrl.u32 %v989, 23
    %v991 = vsub.s32 %v990, 127
    %v992 = vand.u32 2147483647, %v152
    %v993 = vand.u32 %v992, 8388607
    %v994 = vor.u32 %v993, 8388608
    %v995 = vsub.s32 0, %v994
    %v996 = vadd.s32 %v991, 1
    %vm997 = vcmp.gt.s32.totalorder %v996, 0
    %v998 = vsel %vm997, %v996, 0
    %v999 = vshrl.u32 %v998, 5
    %v1000 = vand.u32 %v998, 31
    %v1001 = vsub.s32 32, %v1000
    %v1002 = vshrl.u32 683565275, %v1001
    %v1003 = vshll.u32 683565275, %v1000
    %v1004 = vshrl.u32 2475754826, %v1001
    %v1005 = vor.u32 %v1003, %v1004
    %v1006 = vshll.u32 2475754826, %v1000
    %v1007 = vshrl.u32 2131351028, %v1001
    %v1008 = vor.u32 %v1006, %v1007
    %v1009 = vshll.u32 2131351028, %v1000
    %v1010 = vshrl.u32 2102212464, %v1001
    %v1011 = vor.u32 %v1009, %v1010
    %v1012 = vshll.u32 2102212464, %v1000
    %v1013 = vshrl.u32 920167782, %v1001
    %v1014 = vor.u32 %v1012, %v1013
    %v1015 = vshll.u32 920167782, %v1000
    %v1016 = vshrl.u32 1326507024, %v1001
    %v1017 = vor.u32 %v1015, %v1016
    %vm1018 = vcmp.lt.s32.totalorder %v999, 1
    %vm1019 = vcmp.lt.s32.totalorder %v999, 2
    %vm1020 = vcmp.lt.s32.totalorder %v999, 3
    %vm1021 = vcmp.lt.s32.totalorder %v999, 4
    %v1022 = vsel %vm1018, %v1002, %v1005
    %v1023 = vsel %vm1021, %v1011, 2102212464
    %v1024 = vsel %vm1020, %v1008, %v1023
    %v1025 = vsel %vm1019, %v1022, %v1024
    %v1026 = vsel %vm1018, %v1005, %v1008
    %v1027 = vsel %vm1021, %v1014, 920167782
    %v1028 = vsel %vm1020, %v1011, %v1027
    %v1029 = vsel %vm1019, %v1026, %v1028
    %v1030 = vsel %vm1018, %v1008, %v1011
    %v1031 = vsel %vm1021, %v1017, 1326507024
    %v1032 = vsel %vm1020, %v1014, %v1031
    %v1033 = vsel %vm1019, %v1030, %v1032
    %v1034 = vshll.u32 %v994, 8
    %v1035 = vand.u32 %v1034, 65535
    %v1036 = vshrl.u32 %v1034, 16
    %v1037 = vand.u32 %v1033, 65535
    %v1038 = vshrl.u32 %v1033, 16
    %v1039 = vmul.u32 %v1035, %v1037
    %v1040 = vmul.u32 %v1035, %v1038
    %v1041 = vmul.u32 %v1036, %v1037
    %v1042 = vmul.u32 %v1036, %v1038
    %v1043 = vshll.u32 %v1040, 16
    %v1044 = vshrl.u32 %v1040, 16
    %v1045 = vshll.u32 %v1041, 16
    %v1046 = vshrl.u32 %v1041, 16
    %vm1047 = vc.u32 %v1039, %v1043
    %v1048 = vsel %vm1047, 1, 0
    %v1049 = vadd.s32 %v1039, %v1043
    %v1050 = vadd.s32 %v1042, %v1048
    %vm1051 = vc.u32 %v1049, %v1045
    %v1052 = vsel %vm1051, 1, 0
    %v1053 = vadd.s32 %v1049, %v1045
    %v1054 = vadd.s32 %v1050, %v1052
    %v1055 = vadd.s32 %v1054, %v1044
    %v1056 = vadd.s32 %v1055, %v1046
    %v1057 = vand.u32 %v1034, 65535
    %v1058 = vshrl.u32 %v1034, 16
    %v1059 = vand.u32 %v1029, 65535
    %v1060 = vshrl.u32 %v1029, 16
    %v1061 = vmul.u32 %v1057, %v1059
    %v1062 = vmul.u32 %v1057, %v1060
    %v1063 = vmul.u32 %v1058, %v1059
    %v1064 = vmul.u32 %v1058, %v1060
    %v1065 = vshll.u32 %v1062, 16
    %v1066 = vshrl.u32 %v1062, 16
    %v1067 = vshll.u32 %v1063, 16
    %v1068 = vshrl.u32 %v1063, 16
    %vm1069 = vc.u32 %v1061, %v1065
    %v1070 = vsel %vm1069, 1, 0
    %v1071 = vadd.s32 %v1061, %v1065
    %v1072 = vadd.s32 %v1064, %v1070
    %vm1073 = vc.u32 %v1071, %v1067
    %v1074 = vsel %vm1073, 1, 0
    %v1075 = vadd.s32 %v1071, %v1067
    %v1076 = vadd.s32 %v1072, %v1074
    %v1077 = vadd.s32 %v1076, %v1066
    %v1078 = vadd.s32 %v1077, %v1068
    %v1079 = vmul.u32 %v1034, %v1025
    %v1080 = vadd.s32 %v1056, %v1075
    %vm1081 = vc.u32 %v1056, %v1075
    %v1082 = vadd.s32 %v1078, 1
    %v1083 = vsel %vm1081, %v1082, %v1078
    %v1084 = vadd.s32 %v1079, %v1083
    %v1085 = vadd.s32 %v1084, 536870912
    %v1086 = vshrl.u32 %v1085, 30
    %v1087 = vshll.u32 %v1086, 30
    %v1088 = vsub.s32 %v1084, %v1087
    %vm1089 = vcmp.lt.s32.totalorder %v1088, 0
    %v1090 = vsub.s32 0, %v1088
    %v1091 = vsel %vm1089, %v1090, %v1088
    %v1092 = vclz %v1091
    %v1093 = vsub.s32 %v1092, 2
    %vm1094 = vcmp.gt.s32.totalorder 0, %v1093
    %v1095 = vsel %vm1094, 0, %v1093
    %v1096 = vsub.s32 32, %v1095
    %v1097 = vshll.u32 %v1088, %v1095
    %v1098 = vshrl.u32 %v1080, %v1096
    %v1099 = vor.u32 %v1097, %v1098
    %v1100 = vsub.s32 4294967266, %v1095
    %v1101 = vadd.s32 %v1100, 127
    %v1102 = vshll.u32 %v1101, 23
    %v1103 = vor.u32 4788187, %v1102
    %v1104 = vand.u32 2147483647, %v1103
    %v1106 = vcvt.s32.f32 %v1099
    %v1107 = vmul.f32 %v1106, %v1104
    %v1108 = vxor.u32 %v1107, 2147483648
    %v1109 = vsel %vm988, %v1108, %v1107
    %v1110 = vsub.s32 4, %v1086
    %v1111 = vsel %vm988, %v1110, %v1086
    %v1112 = vsel %vm987, %v152, %v1109
    %v1113 = vsel %vm987, 0, %v1111
    %v1114 = vmul.f32 %v1112, %v1112
    %v1115 = vmul.f32 %v1114, -0.001358992
    %v1116 = vadd.f32 %v1115, 0.041655596
    %v1117 = vmul.f32 %v1114, %v1116
    %v1118 = vadd.f32 %v1117, -0.4999988
    %v1119 = vmul.f32 %v1114, %v1118
    %v1120 = vadd.f32 1.0, %v1119
    %v1121 = vmul.f32 %v1112, %v1112
    %v1122 = vmul.f32 %v1121, -0.00019511016
    %v1123 = vadd.f32 %v1122, 0.008332121
    %v1124 = vmul.f32 %v1121, %v1123
    %v1125 = vadd.f32 %v1124, -0.16666654
    %v1126 = vmul.f32 %v1121, %v1125
    %v1127 = vadd.f32 %v1126, 1.0
    %v1128 = vmul.f32 %v1127, %v1112
    %vm1129 = vweird.f32 %v152
    %v1130 = vand.u32 %v1113, 3
    %vm1131 = vcmp.lt.s32.totalorder %v1130, 2
    %vm1132 = vcmp.eq.s32.totalorder %v1130, 0
    %v1133 = vxor.u32 %v1128, 2147483648
    %v1134 = vsel %vm1132, %v1120, %v1133
    %vm1135 = vcmp.eq.s32.totalorder %v1130, 2
    %v1136 = vxor.u32 %v1120, 2147483648
    %v1137 = vsel %vm1135, %v1136, %v1128
    %v1138 = vsel %vm1131, %v1134, %v1137
    %v1139 = vsel %vm1129, nan, %v1138
    %v1140 = vand.u32 2147483647, %v155
    %vm1141 = vcmp.le.f32.partialorder %v1140, 0.7853982
    %vm1142 = vcmp.lt.s32.totalorder %v155, 0
    %v1143 = vand.u32 %v155, 2139095040
    %v1144 = vshrl.u32 %v1143, 23
    %v1145 = vsub.s32 %v1144, 127
    %v1146 = vand.u32 2147483647, %v155
    %v1147 = vand.u32 %v1146, 8388607
    %v1148 = vor.u32 %v1147, 8388608
    %v1149 = vsub.s32 0, %v1148
    %v1150 = vadd.s32 %v1145, 1
    %vm1151 = vcmp.gt.s32.totalorder %v1150, 0
    %v1152 = vsel %vm1151, %v1150, 0
    %v1153 = vshrl.u32 %v1152, 5
    %v1154 = vand.u32 %v1152, 31
    %v1155 = vsub.s32 32, %v1154
    %v1156 = vshrl.u32 683565275, %v1155
    %v1157 = vshll.u32 683565275, %v1154
    %v1158 = vshrl.u32 2475754826, %v1155
    %v1159 = vor.u32 %v1157, %v1158
    %v1160 = vshll.u32 2475754826, %v1154
    %v1161 = vshrl.u32 2131351028, %v1155
    %v1162 = vor.u32 %v1160, %v1161
    %v1163 = vshll.u32 2131351028, %v1154
    %v1164 = vshrl.u32 2102212464, %v1155
    %v1165 = vor.u32 %v1163, %v1164
    %v1166 = vshll.u32 2102212464, %v1154
    %v1167 = vshrl.u32 920167782, %v1155
    %v1168 = vor.u32 %v1166, %v1167
    %v1169 = vshll.u32 920167782, %v1154
    %v1170 = vshrl.u32 1326507024, %v1155
    %v1171 = vor.u32 %v1169, %v1170
    %vm1172 = vcmp.lt.s32.totalorder %v1153, 1
    %vm1173 = vcmp.lt.s32.totalorder %v1153, 2
    %vm1174 = vcmp.lt.s32.totalorder %v1153, 3
    %vm1175 = vcmp.lt.s32.totalorder %v1153, 4
    %v1176 = vsel %vm1172, %v1156, %v1159
    %v1177 = vsel %vm1175, %v1165, 2102212464
    %v1178 = vsel %vm1174, %v1162, %v1177
    %v1179 = vsel %vm1173, %v1176, %v1178
    %v1180 = vsel %vm1172, %v1159, %v1162
    %v1181 = vsel %vm1175, %v1168, 920167782
    %v1182 = vsel %vm1174, %v1165, %v1181
    %v1183 = vsel %vm1173, %v1180, %v1182
    %v1184 = vsel %vm1172, %v1162, %v1165
    %v1185 = vsel %vm1175, %v1171, 1326507024
    %v1186 = vsel %vm1174, %v1168, %v1185
    %v1187 = vsel %vm1173, %v1184, %v1186
    %v1188 = vshll.u32 %v1148, 8
    %v1189 = vand.u32 %v1188, 65535
    %v1190 = vshrl.u32 %v1188, 16
    %v1191 = vand.u32 %v1187, 65535
    %v1192 = vshrl.u32 %v1187, 16
    %v1193 = vmul.u32 %v1189, %v1191
    %v1194 = vmul.u32 %v1189, %v1192
    %v1195 = vmul.u32 %v1190, %v1191
    %v1196 = vmul.u32 %v1190, %v1192
    %v1197 = vshll.u32 %v1194, 16
    %v1198 = vshrl.u32 %v1194, 16
    %v1199 = vshll.u32 %v1195, 16
    %v1200 = vshrl.u32 %v1195, 16
    %vm1201 = vc.u32 %v1193, %v1197
    %v1202 = vsel %vm1201, 1, 0
    %v1203 = vadd.s32 %v1193, %v1197
    %v1204 = vadd.s32 %v1196, %v1202
    %vm1205 = vc.u32 %v1203, %v1199
    %v1206 = vsel %vm1205, 1, 0
    %v1207 = vadd.s32 %v1203, %v1199
    %v1208 = vadd.s32 %v1204, %v1206
    %v1209 = vadd.s32 %v1208, %v1198
    %v1210 = vadd.s32 %v1209, %v1200
    %v1211 = vand.u32 %v1188, 65535
    %v1212 = vshrl.u32 %v1188, 16
    %v1213 = vand.u32 %v1183, 65535
    %v1214 = vshrl.u32 %v1183, 16
    %v1215 = vmul.u32 %v1211, %v1213
    %v1216 = vmul.u32 %v1211, %v1214
    %v1217 = vmul.u32 %v1212, %v1213
    %v1218 = vmul.u32 %v1212, %v1214
    %v1219 = vshll.u32 %v1216, 16
    %v1220 = vshrl.u32 %v1216, 16
    %v1221 = vshll.u32 %v1217, 16
    %v1222 = vshrl.u32 %v1217, 16
    %vm1223 = vc.u32 %v1215, %v1219
    %v1224 = vsel %vm1223, 1, 0
    %v1225 = vadd.s32 %v1215, %v1219
    %v1226 = vadd.s32 %v1218, %v1224
    %vm1227 = vc.u32 %v1225, %v1221
    %v1228 = vsel %vm1227, 1, 0
    %v1229 = vadd.s32 %v1225, %v1221
    %v1230 = vadd.s32 %v1226, %v1228
    %v1231 = vadd.s32 %v1230, %v1220
    %v1232 = vadd.s32 %v1231, %v1222
    %v1233 = vmul.u32 %v1188, %v1179
    %v1234 = vadd.s32 %v1210, %v1229
    %vm1235 = vc.u32 %v1210, %v1229
    %v1236 = vadd.s32 %v1232, 1
    %v1237 = vsel %vm1235, %v1236, %v1232
    %v1238 = vadd.s32 %v1233, %v1237
    %v1239 = vadd.s32 %v1238, 536870912
    %v1240 = vshrl.u32 %v1239, 30
    %v1241 = vshll.u32 %v1240, 30
    %v1242 = vsub.s32 %v1238, %v1241
    %vm1243 = vcmp.lt.s32.totalorder %v1242, 0
    %v1244 = vsub.s32 0, %v1242
    %v1245 = vsel %vm1243, %v1244, %v1242
    %v1246 = vclz %v1245
    %v1247 = vsub.s32 %v1246, 2
    %vm1248 = vcmp.gt.s32.totalorder 0, %v1247
    %v1249 = vsel %vm1248, 0, %v1247
    %v1250 = vsub.s32 32, %v1249
    %v1251 = vshll.u32 %v1242, %v1249
    %v1252 = vshrl.u32 %v1234, %v1250
    %v1253 = vor.u32 %v1251, %v1252
    %v1254 = vsub.s32 4294967266, %v1249
    %v1255 = vadd.s32 %v1254, 127
    %v1256 = vshll.u32 %v1255, 23
    %v1257 = vor.u32 4788187, %v1256
    %v1258 = vand.u32 2147483647, %v1257
    %v1260 = vcvt.s32.f32 %v1253
    %v1261 = vmul.f32 %v1260, %v1258
    %v1262 = vxor.u32 %v1261, 2147483648
    %v1263 = vsel %vm1142, %v1262, %v1261
    %v1264 = vsub.s32 4, %v1240
    %v1265 = vsel %vm1142, %v1264, %v1240
    %v1266 = vsel %vm1141, %v155, %v1263
    %v1267 = vsel %vm1141, 0, %v1265
    %v1268 = vmul.f32 %v1266, %v1266
    %v1269 = vmul.f32 %v1268, -0.001358992
    %v1270 = vadd.f32 %v1269, 0.041655596
    %v1271 = vmul.f32 %v1268, %v1270
    %v1272 = vadd.f32 %v1271, -0.4999988
    %v1273 = vmul.f32 %v1268, %v1272
    %v1274 = vadd.f32 1.0, %v1273
    %v1275 = vmul.f32 %v1266, %v1266
    %v1276 = vmul.f32 %v1275, -0.00019511016
    %v1277 = vadd.f32 %v1276, 0.008332121
    %v1278 = vmul.f32 %v1275, %v1277
    %v1279 = vadd.f32 %v1278, -0.16666654
    %v1280 = vmul.f32 %v1275, %v1279
    %v1281 = vadd.f32 %v1280, 1.0
    %v1282 = vmul.f32 %v1281, %v1266
    %vm1283 = vweird.f32 %v155
    %v1284 = vand.u32 %v1267, 3
    %vm1285 = vcmp.lt.s32.totalorder %v1284, 2
    %vm1286 = vcmp.eq.s32.totalorder %v1284, 0
    %v1287 = vxor.u32 %v1282, 2147483648
    %v1288 = vsel %vm1286, %v1274, %v1287
    %vm1289 = vcmp.eq.s32.totalorder %v1284, 2
    %v1290 = vxor.u32 %v1274, 2147483648
    %v1291 = vsel %vm1289, %v1290, %v1282
    %v1292 = vsel %vm1285, %v1288, %v1291
    %v1293 = vsel %vm1283, nan, %v1292
    %v1294 = vand.u32 2147483647, %v158
    %vm1295 = vcmp.le.f32.partialorder %v1294, 0.7853982
    %vm1296 = vcmp.lt.s32.totalorder %v158, 0
    %v1297 = vand.u32 %v158, 2139095040
    %v1298 = vshrl.u32 %v1297, 23
    %v1299 = vsub.s32 %v1298, 127
    %v1300 = vand.u32 2147483647, %v158
    %v1301 = vand.u32 %v1300, 8388607
    %v1302 = vor.u32 %v1301, 8388608
    %v1303 = vsub.s32 0, %v1302
    %v1304 = vadd.s32 %v1299, 1
    %vm1305 = vcmp.gt.s32.totalorder %v1304, 0
    %v1306 = vsel %vm1305, %v1304, 0
    %v1307 = vshrl.u32 %v1306, 5
    %v1308 = vand.u32 %v1306, 31
    %v1309 = vsub.s32 32, %v1308
    %v1310 = vshrl.u32 683565275, %v1309
    %v1311 = vshll.u32 683565275, %v1308
    %v1312 = vshrl.u32 2475754826, %v1309
    %v1313 = vor.u32 %v1311, %v1312
    %v1314 = vshll.u32 2475754826, %v1308
    %v1315 = vshrl.u32 2131351028, %v1309
    %v1316 = vor.u32 %v1314, %v1315
    %v1317 = vshll.u32 2131351028, %v1308
    %v1318 = vshrl.u32 2102212464, %v1309
    %v1319 = vor.u32 %v1317, %v1318
    %v1320 = vshll.u32 2102212464, %v1308
    %v1321 = vshrl.u32 920167782, %v1309
    %v1322 = vor.u32 %v1320, %v1321
    %v1323 = vshll.u32 920167782, %v1308
    %v1324 = vshrl.u32 1326507024, %v1309
    %v1325 = vor.u32 %v1323, %v1324
    %vm1326 = vcmp.lt.s32.totalorder %v1307, 1
    %vm1327 = vcmp.lt.s32.totalorder %v1307, 2
    %vm1328 = vcmp.lt.s32.totalorder %v1307, 3
    %vm1329 = vcmp.lt.s32.totalorder %v1307, 4
    %v1330 = vsel %vm1326, %v1310, %v1313
    %v1331 = vsel %vm1329, %v1319, 2102212464
    %v1332 = vsel %vm1328, %v1316, %v1331
    %v1333 = vsel %vm1327, %v1330, %v1332
    %v1334 = vsel %vm1326, %v1313, %v1316
    %v1335 = vsel %vm1329, %v1322, 920167782
    %v1336 = vsel %vm1328, %v1319, %v1335
    %v1337 = vsel %vm1327, %v1334, %v1336
    %v1338 = vsel %vm1326, %v1316, %v1319
    %v1339 = vsel %vm1329, %v1325, 1326507024
    %v1340 = vsel %vm1328, %v1322, %v1339
    %v1341 = vsel %vm1327, %v1338, %v1340
    %v1342 = vshll.u32 %v1302, 8
    %v1343 = vand.u32 %v1342, 65535
    %v1344 = vshrl.u32 %v1342, 16
    %v1345 = vand.u32 %v1341, 65535
    %v1346 = vshrl.u32 %v1341, 16
    %v1347 = vmul.u32 %v1343, %v1345
    %v1348 = vmul.u32 %v1343, %v1346
    %v1349 = vmul.u32 %v1344, %v1345
    %v1350 = vmul.u32 %v1344, %v1346
    %v1351 = vshll.u32 %v1348, 16
    %v1352 = vshrl.u32 %v1348, 16
    %v1353 = vshll.u32 %v1349, 16
    %v1354 = vshrl.u32 %v1349, 16
    %vm1355 = vc.u32 %v1347, %v1351
    %v1356 = vsel %vm1355, 1, 0
    %v1357 = vadd.s32 %v1347, %v1351
    %v1358 = vadd.s32 %v1350, %v1356
    %vm1359 = vc.u32 %v1357, %v1353
    %v1360 = vsel %vm1359, 1, 0
    %v1361 = vadd.s32 %v1357, %v1353
    %v1362 = vadd.s32 %v1358, %v1360
    %v1363 = vadd.s32 %v1362, %v1352
    %v1364 = vadd.s32 %v1363, %v1354
    %v1365 = vand.u32 %v1342, 65535
    %v1366 = vshrl.u32 %v1342, 16
    %v1367 = vand.u32 %v1337, 65535
    %v1368 = vshrl.u32 %v1337, 16
    %v1369 = vmul.u32 %v1365, %v1367
    %v1370 = vmul.u32 %v1365, %v1368
    %v1371 = vmul.u32 %v1366, %v1367
    %v1372 = vmul.u32 %v1366, %v1368
    %v1373 = vshll.u32 %v1370, 16
    %v1374 = vshrl.u32 %v1370, 16
    %v1375 = vshll.u32 %v1371, 16
    %v1376 = vshrl.u32 %v1371, 16
    %vm1377 = vc.u32 %v1369, %v1373
    %v1378 = vsel %vm1377, 1, 0
    %v1379 = vadd.s32 %v1369, %v1373
    %v1380 = vadd.s32 %v1372, %v1378
    %vm1381 = vc.u32 %v1379, %v1375
    %v1382 = vsel %vm1381, 1, 0
    %v1383 = vadd.s32 %v1379, %v1375
    %v1384 = vadd.s32 %v1380, %v1382
    %v1385 = vadd.s32 %v1384, %v1374
    %v1386 = vadd.s32 %v1385, %v1376
    %v1387 = vmul.u32 %v1342, %v1333
    %v1388 = vadd.s32 %v1364, %v1383
    %vm1389 = vc.u32 %v1364, %v1383
    %v1390 = vadd.s32 %v1386, 1
    %v1391 = vsel %vm1389, %v1390, %v1386
    %v1392 = vadd.s32 %v1387, %v1391
    %v1393 = vadd.s32 %v1392, 536870912
    %v1394 = vshrl.u32 %v1393, 30
    %v1395 = vshll.u32 %v1394, 30
    %v1396 = vsub.s32 %v1392, %v1395
    %vm1397 = vcmp.lt.s32.totalorder %v1396, 0
    %v1398 = vsub.s32 0, %v1396
    %v1399 = vsel %vm1397, %v1398, %v1396
    %v1400 = vclz %v1399
    %v1401 = vsub.s32 %v1400, 2
    %vm1402 = vcmp.gt.s32.totalorder 0, %v1401
    %v1403 = vsel %vm1402, 0, %v1401
    %v1404 = vsub.s32 32, %v1403
    %v1405 = vshll.u32 %v1396, %v1403
    %v1406 = vshrl.u32 %v1388, %v1404
    %v1407 = vor.u32 %v1405, %v1406
    %v1408 = vsub.s32 4294967266, %v1403
    %v1409 = vadd.s32 %v1408, 127
    %v1410 = vshll.u32 %v1409, 23
    %v1411 = vor.u32 4788187, %v1410
    %v1412 = vand.u32 2147483647, %v1411
    %v1414 = vcvt.s32.f32 %v1407
    %v1415 = vmul.f32 %v1414, %v1412
    %v1416 = vxor.u32 %v1415, 2147483648
    %v1417 = vsel %vm1296, %v1416, %v1415
    %v1418 = vsub.s32 4, %v1394
    %v1419 = vsel %vm1296, %v1418, %v1394
    %v1420 = vsel %vm1295, %v158, %v1417
    %v1421 = vsel %vm1295, 0, %v1419
    %v1422 = vmul.f32 %v1420, %v1420
    %v1423 = vmul.f32 %v1422, -0.001358992
    %v1424 = vadd.f32 %v1423, 0.041655596
    %v1425 = vmul.f32 %v1422, %v1424
    %v1426 = vadd.f32 %v1425, -0.4999988
    %v1427 = vmul.f32 %v1422, %v1426
    %v1428 = vadd.f32 1.0, %v1427
    %v1429 = vmul.f32 %v1420, %v1420
    %v1430 = vmul.f32 %v1429, -0.00019511016
    %v1431 = vadd.f32 %v1430, 0.008332121
    %v1432 = vmul.f32 %v1429, %v1431
    %v1433 = vadd.f32 %v1432, -0.16666654
    %v1434 = vmul.f32 %v1429, %v1433
    %v1435 = vadd.f32 %v1434, 1.0
    %v1436 = vmul.f32 %v1435, %v1420
    %vm1437 = vweird.f32 %v158
    %v1438 = vand.u32 %v1421, 3
    %vm1439 = vcmp.lt.s32.totalorder %v1438, 2
    %vm1440 = vcmp.eq.s32.totalorder %v1438, 0
    %v1441 = vxor.u32 %v1436, 2147483648
    %v1442 = vsel %vm1440, %v1428, %v1441
    %vm1443 = vcmp.eq.s32.totalorder %v1438, 2
    %v1444 = vxor.u32 %v1428, 2147483648
    %v1445 = vsel %vm1443, %v1444, %v1436
    %v1446 = vsel %vm1439, %v1442, %v1445
    %v1447 = vsel %vm1437, nan, %v1446
    %v1448 = vand.u32 2147483647, %v161
    %vm1449 = vcmp.le.f32.partialorder %v1448, 0.7853982
    %vm1450 = vcmp.lt.s32.totalorder %v161, 0
    %v1451 = vand.u32 %v161, 2139095040
    %v1452 = vshrl.u32 %v1451, 23
    %v1453 = vsub.s32 %v1452, 127
    %v1454 = vand.u32 2147483647, %v161
    %v1455 = vand.u32 %v1454, 8388607
    %v1456 = vor.u32 %v1455, 8388608
    %v1457 = vsub.s32 0, %v1456
    %v1458 = vadd.s32 %v1453, 1
    %vm1459 = vcmp.gt.s32.totalorder %v1458, 0
    %v1460 = vsel %vm1459, %v1458, 0
    %v1461 = vshrl.u32 %v1460, 5
    %v1462 = vand.u32 %v1460, 31
    %v1463 = vsub.s32 32, %v1462
    %v1464 = vshrl.u32 683565275, %v1463
    %v1465 = vshll.u32 683565275, %v1462
    %v1466 = vshrl.u32 2475754826, %v1463
    %v1467 = vor.u32 %v1465, %v1466
    %v1468 = vshll.u32 2475754826, %v1462
    %v1469 = vshrl.u32 2131351028, %v1463
    %v1470 = vor.u32 %v1468, %v1469
    %v1471 = vshll.u32 2131351028, %v1462
    %v1472 = vshrl.u32 2102212464, %v1463
    %v1473 = vor.u32 %v1471, %v1472
    %v1474 = vshll.u32 2102212464, %v1462
    %v1475 = vshrl.u32 920167782, %v1463
    %v1476 = vor.u32 %v1474, %v1475
    %v1477 = vshll.u32 920167782, %v1462
    %v1478 = vshrl.u32 1326507024, %v1463
    %v1479 = vor.u32 %v1477, %v1478
    %vm1480 = vcmp.lt.s32.totalorder %v1461, 1
    %vm1481 = vcmp.lt.s32.totalorder %v1461, 2
    %vm1482 = vcmp.lt.s32.totalorder %v1461, 3
    %vm1483 = vcmp.lt.s32.totalorder %v1461, 4
    %v1484 = vsel %vm1480, %v1464, %v1467
    %v1485 = vsel %vm1483, %v1473, 2102212464
    %v1486 = vsel %vm1482, %v1470, %v1485
    %v1487 = vsel %vm1481, %v1484, %v1486
    %v1488 = vsel %vm1480, %v1467, %v1470
    %v1489 = vsel %vm1483, %v1476, 920167782
    %v1490 = vsel %vm1482, %v1473, %v1489
    %v1491 = vsel %vm1481, %v1488, %v1490
    %v1492 = vsel %vm1480, %v1470, %v1473
    %v1493 = vsel %vm1483, %v1479, 1326507024
    %v1494 = vsel %vm1482, %v1476, %v1493
    %v1495 = vsel %vm1481, %v1492, %v1494
    %v1496 = vshll.u32 %v1456, 8
    %v1497 = vand.u32 %v1496, 65535
    %v1498 = vshrl.u32 %v1496, 16
    %v1499 = vand.u32 %v1495, 65535
    %v1500 = vshrl.u32 %v1495, 16
    %v1501 = vmul.u32 %v1497, %v1499
    %v1502 = vmul.u32 %v1497, %v1500
    %v1503 = vmul.u32 %v1498, %v1499
    %v1504 = vmul.u32 %v1498, %v1500
    %v1505 = vshll.u32 %v1502, 16
    %v1506 = vshrl.u32 %v1502, 16
    %v1507 = vshll.u32 %v1503, 16
    %v1508 = vshrl.u32 %v1503, 16
    %vm1509 = vc.u32 %v1501, %v1505
    %v1510 = vsel %vm1509, 1, 0
    %v1511 = vadd.s32 %v1501, %v1505
    %v1512 = vadd.s32 %v1504, %v1510
    %vm1513 = vc.u32 %v1511, %v1507
    %v1514 = vsel %vm1513, 1, 0
    %v1515 = vadd.s32 %v1511, %v1507
    %v1516 = vadd.s32 %v1512, %v1514
    %v1517 = vadd.s32 %v1516, %v1506
    %v1518 = vadd.s32 %v1517, %v1508
    %v1519 = vand.u32 %v1496, 65535
    %v1520 = vshrl.u32 %v1496, 16
    %v1521 = vand.u32 %v1491, 65535
    %v1522 = vshrl.u32 %v1491, 16
    %v1523 = vmul.u32 %v1519, %v1521
    %v1524 = vmul.u32 %v1519, %v1522
    %v1525 = vmul.u32 %v1520, %v1521
    %v1526 = vmul.u32 %v1520, %v1522
    %v1527 = vshll.u32 %v1524, 16
    %v1528 = vshrl.u32 %v1524, 16
    %v1529 = vshll.u32 %v1525, 16
    %v1530 = vshrl.u32 %v1525, 16
    %vm1531 = vc.u32 %v1523, %v1527
    %v1532 = vsel %vm1531, 1, 0
    %v1533 = vadd.s32 %v1523, %v1527
    %v1534 = vadd.s32 %v1526, %v1532
    %vm1535 = vc.u32 %v1533, %v1529
    %v1536 = vsel %vm1535, 1, 0
    %v1537 = vadd.s32 %v1533, %v1529
    %v1538 = vadd.s32 %v1534, %v1536
    %v1539 = vadd.s32 %v1538, %v1528
    %v1540 = vadd.s32 %v1539, %v1530
    %v1541 = vmul.u32 %v1496, %v1487
    %v1542 = vadd.s32 %v1518, %v1537
    %vm1543 = vc.u32 %v1518, %v1537
    %v1544 = vadd.s32 %v1540, 1
    %v1545 = vsel %vm1543, %v1544, %v1540
    %v1546 = vadd.s32 %v1541, %v1545
    %v1547 = vadd.s32 %v1546, 536870912
    %v1548 = vshrl.u32 %v1547, 30
    %v1549 = vshll.u32 %v1548, 30
    %v1550 = vsub.s32 %v1546, %v1549
    %vm1551 = vcmp.lt.s32.totalorder %v1550, 0
    %v1552 = vsub.s32 0, %v1550
    %v1553 = vsel %vm1551, %v1552, %v1550
    %v1554 = vclz %v1553
    %v1555 = vsub.s32 %v1554, 2
    %vm1556 = vcmp.gt.s32.totalorder 0, %v1555
    %v1557 = vsel %vm1556, 0, %v1555
    %v1558 = vsub.s32 32, %v1557
    %v1559 = vshll.u32 %v1550, %v1557
    %v1560 = vshrl.u32 %v1542, %v1558
    %v1561 = vor.u32 %v1559, %v1560
    %v1562 = vsub.s32 4294967266, %v1557
    %v1563 = vadd.s32 %v1562, 127
    %v1564 = vshll.u32 %v1563, 23
    %v1565 = vor.u32 4788187, %v1564
    %v1566 = vand.u32 2147483647, %v1565
    %v1568 = vcvt.s32.f32 %v1561
    %v1569 = vmul.f32 %v1568, %v1566
    %v1570 = vxor.u32 %v1569, 2147483648
    %v1571 = vsel %vm1450, %v1570, %v1569
    %v1572 = vsub.s32 4, %v1548
    %v1573 = vsel %vm1450, %v1572, %v1548
    %v1574 = vsel %vm1449, %v161, %v1571
    %v1575 = vsel %vm1449, 0, %v1573
    %v1576 = vmul.f32 %v1574, %v1574
    %v1577 = vmul.f32 %v1576, -0.001358992
    %v1578 = vadd.f32 %v1577, 0.041655596
    %v1579 = vmul.f32 %v1576, %v1578
    %v1580 = vadd.f32 %v1579, -0.4999988
    %v1581 = vmul.f32 %v1576, %v1580
    %v1582 = vadd.f32 1.0, %v1581
    %v1583 = vmul.f32 %v1574, %v1574
    %v1584 = vmul.f32 %v1583, -0.00019511016
    %v1585 = vadd.f32 %v1584, 0.008332121
    %v1586 = vmul.f32 %v1583, %v1585
    %v1587 = vadd.f32 %v1586, -0.16666654
    %v1588 = vmul.f32 %v1583, %v1587
    %v1589 = vadd.f32 %v1588, 1.0
    %v1590 = vmul.f32 %v1589, %v1574
    %vm1591 = vweird.f32 %v161
    %v1592 = vand.u32 %v1575, 3
    %vm1593 = vcmp.lt.s32.totalorder %v1592, 2
    %vm1594 = vcmp.eq.s32.totalorder %v1592, 0
    %v1595 = vxor.u32 %v1590, 2147483648
    %v1596 = vsel %vm1594, %v1582, %v1595
    %vm1597 = vcmp.eq.s32.totalorder %v1592, 2
    %v1598 = vxor.u32 %v1582, 2147483648
    %v1599 = vsel %vm1597, %v1598, %v1590
    %v1600 = vsel %vm1593, %v1596, %v1599
    %v1601 = vsel %vm1591, nan, %v1600
    %v1602 = vand.u32 2147483647, %v164
    %vm1603 = vcmp.le.f32.partialorder %v1602, 0.7853982
    %vm1604 = vcmp.lt.s32.totalorder %v164, 0
    %v1605 = vand.u32 %v164, 2139095040
    %v1606 = vshrl.u32 %v1605, 23
    %v1607 = vsub.s32 %v1606, 127
    %v1608 = vand.u32 2147483647, %v164
    %v1609 = vand.u32 %v1608, 8388607
    %v1610 = vor.u32 %v1609, 8388608
    %v1611 = vsub.s32 0, %v1610
    %v1612 = vadd.s32 %v1607, 1
    %vm1613 = vcmp.gt.s32.totalorder %v1612, 0
    %v1614 = vsel %vm1613, %v1612, 0
    %v1615 = vshrl.u32 %v1614, 5
    %v1616 = vand.u32 %v1614, 31
    %v1617 = vsub.s32 32, %v1616
    %v1618 = vshrl.u32 683565275, %v1617
    %v1619 = vshll.u32 683565275, %v1616
    %v1620 = vshrl.u32 2475754826, %v1617
    %v1621 = vor.u32 %v1619, %v1620
    %v1622 = vshll.u32 2475754826, %v1616
    %v1623 = vshrl.u32 2131351028, %v1617
    %v1624 = vor.u32 %v1622, %v1623
    %v1625 = vshll.u32 2131351028, %v1616
    %v1626 = vshrl.u32 2102212464, %v1617
    %v1627 = vor.u32 %v1625, %v1626
    %v1628 = vshll.u32 2102212464, %v1616
    %v1629 = vshrl.u32 920167782, %v1617
    %v1630 = vor.u32 %v1628, %v1629
    %v1631 = vshll.u32 920167782, %v1616
    %v1632 = vshrl.u32 1326507024, %v1617
    %v1633 = vor.u32 %v1631, %v1632
    %vm1634 = vcmp.lt.s32.totalorder %v1615, 1
    %vm1635 = vcmp.lt.s32.totalorder %v1615, 2
    %vm1636 = vcmp.lt.s32.totalorder %v1615, 3
    %vm1637 = vcmp.lt.s32.totalorder %v1615, 4
    %v1638 = vsel %vm1634, %v1618, %v1621
    %v1639 = vsel %vm1637, %v1627, 2102212464
    %v1640 = vsel %vm1636, %v1624, %v1639
    %v1641 = vsel %vm1635, %v1638, %v1640
    %v1642 = vsel %vm1634, %v1621, %v1624
    %v1643 = vsel %vm1637, %v1630, 920167782
    %v1644 = vsel %vm1636, %v1627, %v1643
    %v1645 = vsel %vm1635, %v1642, %v1644
    %v1646 = vsel %vm1634, %v1624, %v1627
    %v1647 = vsel %vm1637, %v1633, 1326507024
    %v1648 = vsel %vm1636, %v1630, %v1647
    %v1649 = vsel %vm1635, %v1646, %v1648
    %v1650 = vshll.u32 %v1610, 8
    %v1651 = vand.u32 %v1650, 65535
    %v1652 = vshrl.u32 %v1650, 16
    %v1653 = vand.u32 %v1649, 65535
    %v1654 = vshrl.u32 %v1649, 16
    %v1655 = vmul.u32 %v1651, %v1653
    %v1656 = vmul.u32 %v1651, %v1654
    %v1657 = vmul.u32 %v1652, %v1653
    %v1658 = vmul.u32 %v1652, %v1654
    %v1659 = vshll.u32 %v1656, 16
    %v1660 = vshrl.u32 %v1656, 16
    %v1661 = vshll.u32 %v1657, 16
    %v1662 = vshrl.u32 %v1657, 16
    %vm1663 = vc.u32 %v1655, %v1659
    %v1664 = vsel %vm1663, 1, 0
    %v1665 = vadd.s32 %v1655, %v1659
    %v1666 = vadd.s32 %v1658, %v1664
    %vm1667 = vc.u32 %v1665, %v1661
    %v1668 = vsel %vm1667, 1, 0
    %v1669 = vadd.s32 %v1665, %v1661
    %v1670 = vadd.s32 %v1666, %v1668
    %v1671 = vadd.s32 %v1670, %v1660
    %v1672 = vadd.s32 %v1671, %v1662
    %v1673 = vand.u32 %v1650, 65535
    %v1674 = vshrl.u32 %v1650, 16
    %v1675 = vand.u32 %v1645, 65535
    %v1676 = vshrl.u32 %v1645, 16
    %v1677 = vmul.u32 %v1673, %v1675
    %v1678 = vmul.u32 %v1673, %v1676
    %v1679 = vmul.u32 %v1674, %v1675
    %v1680 = vmul.u32 %v1674, %v1676
    %v1681 = vshll.u32 %v1678, 16
    %v1682 = vshrl.u32 %v1678, 16
    %v1683 = vshll.u32 %v1679, 16
    %v1684 = vshrl.u32 %v1679, 16
    %vm1685 = vc.u32 %v1677, %v1681
    %v1686 = vsel %vm1685, 1, 0
    %v1687 = vadd.s32 %v1677, %v1681
    %v1688 = vadd.s32 %v1680, %v1686
    %vm1689 = vc.u32 %v1687, %v1683
    %v1690 = vsel %vm1689, 1, 0
    %v1691 = vadd.s32 %v1687, %v1683
    %v1692 = vadd.s32 %v1688, %v1690
    %v1693 = vadd.s32 %v1692, %v1682
    %v1694 = vadd.s32 %v1693, %v1684
    %v1695 = vmul.u32 %v1650, %v1641
    %v1696 = vadd.s32 %v1672, %v1691
    %vm1697 = vc.u32 %v1672, %v1691
    %v1698 = vadd.s32 %v1694, 1
    %v1699 = vsel %vm1697, %v1698, %v1694
    %v1700 = vadd.s32 %v1695, %v1699
    %v1701 = vadd.s32 %v1700, 536870912
    %v1702 = vshrl.u32 %v1701, 30
    %v1703 = vshll.u32 %v1702, 30
    %v1704 = vsub.s32 %v1700, %v1703
    %vm1705 = vcmp.lt.s32.totalorder %v1704, 0
    %v1706 = vsub.s32 0, %v1704
    %v1707 = vsel %vm1705, %v1706, %v1704
    %v1708 = vclz %v1707
    %v1709 = vsub.s32 %v1708, 2
    %vm1710 = vcmp.gt.s32.totalorder 0, %v1709
    %v1711 = vsel %vm1710, 0, %v1709
    %v1712 = vsub.s32 32, %v1711
    %v1713 = vshll.u32 %v1704, %v1711
    %v1714 = vshrl.u32 %v1696, %v1712
    %v1715 = vor.u32 %v1713, %v1714
    %v1716 = vsub.s32 4294967266, %v1711
    %v1717 = vadd.s32 %v1716, 127
    %v1718 = vshll.u32 %v1717, 23
    %v1719 = vor.u32 4788187, %v1718
    %v1720 = vand.u32 2147483647, %v1719
    %v1722 = vcvt.s32.f32 %v1715
    %v1723 = vmul.f32 %v1722, %v1720
    %v1724 = vxor.u32 %v1723, 2147483648
    %v1725 = vsel %vm1604, %v1724, %v1723
    %v1726 = vsub.s32 4, %v1702
    %v1727 = vsel %vm1604, %v1726, %v1702
    %v1728 = vsel %vm1603, %v164, %v1725
    %v1729 = vsel %vm1603, 0, %v1727
    %v1730 = vmul.f32 %v1728, %v1728
    %v1731 = vmul.f32 %v1730, -0.001358992
    %v1732 = vadd.f32 %v1731, 0.041655596
    %v1733 = vmul.f32 %v1730, %v1732
    %v1734 = vadd.f32 %v1733, -0.4999988
    %v1735 = vmul.f32 %v1730, %v1734
    %v1736 = vadd.f32 1.0, %v1735
    %v1737 = vmul.f32 %v1728, %v1728
    %v1738 = vmul.f32 %v1737, -0.00019511016
    %v1739 = vadd.f32 %v1738, 0.008332121
    %v1740 = vmul.f32 %v1737, %v1739
    %v1741 = vadd.f32 %v1740, -0.16666654
    %v1742 = vmul.f32 %v1737, %v1741
    %v1743 = vadd.f32 %v1742, 1.0
    %v1744 = vmul.f32 %v1743, %v1728
    %vm1745 = vweird.f32 %v164
    %v1746 = vand.u32 %v1729, 3
    %vm1747 = vcmp.lt.s32.totalorder %v1746, 2
    %vm1748 = vcmp.eq.s32.totalorder %v1746, 0
    %v1749 = vxor.u32 %v1744, 2147483648
    %v1750 = vsel %vm1748, %v1736, %v1749
    %vm1751 = vcmp.eq.s32.totalorder %v1746, 2
    %v1752 = vxor.u32 %v1736, 2147483648
    %v1753 = vsel %vm1751, %v1752, %v1744
    %v1754 = vsel %vm1747, %v1750, %v1753
    %v1755 = vsel %vm1745, nan, %v1754
    %v1756 = vand.u32 2147483647, %v167
    %vm1757 = vcmp.le.f32.partialorder %v1756, 0.7853982
    %vm1758 = vcmp.lt.s32.totalorder %v167, 0
    %v1759 = vand.u32 %v167, 2139095040
    %v1760 = vshrl.u32 %v1759, 23
    %v1761 = vsub.s32 %v1760, 127
    %v1762 = vand.u32 2147483647, %v167
    %v1763 = vand.u32 %v1762, 8388607
    %v1764 = vor.u32 %v1763, 8388608
    %v1765 = vsub.s32 0, %v1764
    %v1766 = vadd.s32 %v1761, 1
    %vm1767 = vcmp.gt.s32.totalorder %v1766, 0
    %v1768 = vsel %vm1767, %v1766, 0
    %v1769 = vshrl.u32 %v1768, 5
    %v1770 = vand.u32 %v1768, 31
    %v1771 = vsub.s32 32, %v1770
    %v1772 = vshrl.u32 683565275, %v1771
    %v1773 = vshll.u32 683565275, %v1770
    %v1774 = vshrl.u32 2475754826, %v1771
    %v1775 = vor.u32 %v1773, %v1774
    %v1776 = vshll.u32 2475754826, %v1770
    %v1777 = vshrl.u32 2131351028, %v1771
    %v1778 = vor.u32 %v1776, %v1777
    %v1779 = vshll.u32 2131351028, %v1770
    %v1780 = vshrl.u32 2102212464, %v1771
    %v1781 = vor.u32 %v1779, %v1780
    %v1782 = vshll.u32 2102212464, %v1770
    %v1783 = vshrl.u32 920167782, %v1771
    %v1784 = vor.u32 %v1782, %v1783
    %v1785 = vshll.u32 920167782, %v1770
    %v1786 = vshrl.u32 1326507024, %v1771
    %v1787 = vor.u32 %v1785, %v1786
    %vm1788 = vcmp.lt.s32.totalorder %v1769, 1
    %vm1789 = vcmp.lt.s32.totalorder %v1769, 2
    %vm1790 = vcmp.lt.s32.totalorder %v1769, 3
    %vm1791 = vcmp.lt.s32.totalorder %v1769, 4
    %v1792 = vsel %vm1788, %v1772, %v1775
    %v1793 = vsel %vm1791, %v1781, 2102212464
    %v1794 = vsel %vm1790, %v1778, %v1793
    %v1795 = vsel %vm1789, %v1792, %v1794
    %v1796 = vsel %vm1788, %v1775, %v1778
    %v1797 = vsel %vm1791, %v1784, 920167782
    %v1798 = vsel %vm1790, %v1781, %v1797
    %v1799 = vsel %vm1789, %v1796, %v1798
    %v1800 = vsel %vm1788, %v1778, %v1781
    %v1801 = vsel %vm1791, %v1787, 1326507024
    %v1802 = vsel %vm1790, %v1784, %v1801
    %v1803 = vsel %vm1789, %v1800, %v1802
    %v1804 = vshll.u32 %v1764, 8
    %v1805 = vand.u32 %v1804, 65535
    %v1806 = vshrl.u32 %v1804, 16
    %v1807 = vand.u32 %v1803, 65535
    %v1808 = vshrl.u32 %v1803, 16
    %v1809 = vmul.u32 %v1805, %v1807
    %v1810 = vmul.u32 %v1805, %v1808
    %v1811 = vmul.u32 %v1806, %v1807
    %v1812 = vmul.u32 %v1806, %v1808
    %v1813 = vshll.u32 %v1810, 16
    %v1814 = vshrl.u32 %v1810, 16
    %v1815 = vshll.u32 %v1811, 16
    %v1816 = vshrl.u32 %v1811, 16
    %vm1817 = vc.u32 %v1809, %v1813
    %v1818 = vsel %vm1817, 1, 0
    %v1819 = vadd.s32 %v1809, %v1813
    %v1820 = vadd.s32 %v1812, %v1818
    %vm1821 = vc.u32 %v1819, %v1815
    %v1822 = vsel %vm1821, 1, 0
    %v1823 = vadd.s32 %v1819, %v1815
    %v1824 = vadd.s32 %v1820, %v1822
    %v1825 = vadd.s32 %v1824, %v1814
    %v1826 = vadd.s32 %v1825, %v1816
    %v1827 = vand.u32 %v1804, 65535
    %v1828 = vshrl.u32 %v1804, 16
    %v1829 = vand.u32 %v1799, 65535
    %v1830 = vshrl.u32 %v1799, 16
    %v1831 = vmul.u32 %v1827, %v1829
    %v1832 = vmul.u32 %v1827, %v1830
    %v1833 = vmul.u32 %v1828, %v1829
    %v1834 = vmul.u32 %v1828, %v1830
    %v1835 = vshll.u32 %v1832, 16
    %v1836 = vshrl.u32 %v1832, 16
    %v1837 = vshll.u32 %v1833, 16
    %v1838 = vshrl.u32 %v1833, 16
    %vm1839 = vc.u32 %v1831, %v1835
    %v1840 = vsel %vm1839, 1, 0
    %v1841 = vadd.s32 %v1831, %v1835
    %v1842 = vadd.s32 %v1834, %v1840
    %vm1843 = vc.u32 %v1841, %v1837
    %v1844 = vsel %vm1843, 1, 0
    %v1845 = vadd.s32 %v1841, %v1837
    %v1846 = vadd.s32 %v1842, %v1844
    %v1847 = vadd.s32 %v1846, %v1836
    %v1848 = vadd.s32 %v1847, %v1838
    %v1849 = vmul.u32 %v1804, %v1795
    %v1850 = vadd.s32 %v1826, %v1845
    %vm1851 = vc.u32 %v1826, %v1845
    %v1852 = vadd.s32 %v1848, 1
    %v1853 = vsel %vm1851, %v1852, %v1848
    %v1854 = vadd.s32 %v1849, %v1853
    %v1855 = vadd.s32 %v1854, 536870912
    %v1856 = vshrl.u32 %v1855, 30
    %v1857 = vshll.u32 %v1856, 30
    %v1858 = vsub.s32 %v1854, %v1857
    %vm1859 = vcmp.lt.s32.totalorder %v1858, 0
    %v1860 = vsub.s32 0, %v1858
    %v1861 = vsel %vm1859, %v1860, %v1858
    %v1862 = vclz %v1861
    %v1863 = vsub.s32 %v1862, 2
    %vm1864 = vcmp.gt.s32.totalorder 0, %v1863
    %v1865 = vsel %vm1864, 0, %v1863
    %v1866 = vsub.s32 32, %v1865
    %v1867 = vshll.u32 %v1858, %v1865
    %v1868 = vshrl.u32 %v1850, %v1866
    %v1869 = vor.u32 %v1867, %v1868
    %v1870 = vsub.s32 4294967266, %v1865
    %v1871 = vadd.s32 %v1870, 127
    %v1872 = vshll.u32 %v1871, 23
    %v1873 = vor.u32 4788187, %v1872
    %v1874 = vand.u32 2147483647, %v1873
    %v1876 = vcvt.s32.f32 %v1869
    %v1877 = vmul.f32 %v1876, %v1874
    %v1878 = vxor.u32 %v1877, 2147483648
    %v1879 = vsel %vm1758, %v1878, %v1877
    %v1880 = vsub.s32 4, %v1856
    %v1881 = vsel %vm1758, %v1880, %v1856
    %v1882 = vsel %vm1757, %v167, %v1879
    %v1883 = vsel %vm1757, 0, %v1881
    %v1884 = vmul.f32 %v1882, %v1882
    %v1885 = vmul.f32 %v1884, -0.001358992
    %v1886 = vadd.f32 %v1885, 0.041655596
    %v1887 = vmul.f32 %v1884, %v1886
    %v1888 = vadd.f32 %v1887, -0.4999988
    %v1889 = vmul.f32 %v1884, %v1888
    %v1890 = vadd.f32 1.0, %v1889
    %v1891 = vmul.f32 %v1882, %v1882
    %v1892 = vmul.f32 %v1891, -0.00019511016
    %v1893 = vadd.f32 %v1892, 0.008332121
    %v1894 = vmul.f32 %v1891, %v1893
    %v1895 = vadd.f32 %v1894, -0.16666654
    %v1896 = vmul.f32 %v1891, %v1895
    %v1897 = vadd.f32 %v1896, 1.0
    %v1898 = vmul.f32 %v1897, %v1882
    %vm1899 = vweird.f32 %v167
    %v1900 = vand.u32 %v1883, 3
    %vm1901 = vcmp.lt.s32.totalorder %v1900, 2
    %vm1902 = vcmp.eq.s32.totalorder %v1900, 0
    %v1903 = vxor.u32 %v1898, 2147483648
    %v1904 = vsel %vm1902, %v1890, %v1903
    %vm1905 = vcmp.eq.s32.totalorder %v1900, 2
    %v1906 = vxor.u32 %v1890, 2147483648
    %v1907 = vsel %vm1905, %v1906, %v1898
    %v1908 = vsel %vm1901, %v1904, %v1907
    %v1909 = vsel %vm1899, nan, %v1908
    %v1910 = vand.u32 2147483647, %v170
    %vm1911 = vcmp.le.f32.partialorder %v1910, 0.7853982
    %vm1912 = vcmp.lt.s32.totalorder %v170, 0
    %v1913 = vand.u32 %v170, 2139095040
    %v1914 = vshrl.u32 %v1913, 23
    %v1915 = vsub.s32 %v1914, 127
    %v1916 = vand.u32 2147483647, %v170
    %v1917 = vand.u32 %v1916, 8388607
    %v1918 = vor.u32 %v1917, 8388608
    %v1919 = vsub.s32 0, %v1918
    %v1920 = vadd.s32 %v1915, 1
    %vm1921 = vcmp.gt.s32.totalorder %v1920, 0
    %v1922 = vsel %vm1921, %v1920, 0
    %v1923 = vshrl.u32 %v1922, 5
    %v1924 = vand.u32 %v1922, 31
    %v1925 = vsub.s32 32, %v1924
    %v1926 = vshrl.u32 683565275, %v1925
    %v1927 = vshll.u32 683565275, %v1924
    %v1928 = vshrl.u32 2475754826, %v1925
    %v1929 = vor.u32 %v1927, %v1928
    %v1930 = vshll.u32 2475754826, %v1924
    %v1931 = vshrl.u32 2131351028, %v1925
    %v1932 = vor.u32 %v1930, %v1931
    %v1933 = vshll.u32 2131351028, %v1924
    %v1934 = vshrl.u32 2102212464, %v1925
    %v1935 = vor.u32 %v1933, %v1934
    %v1936 = vshll.u32 2102212464, %v1924
    %v1937 = vshrl.u32 920167782, %v1925
    %v1938 = vor.u32 %v1936, %v1937
    %v1939 = vshll.u32 920167782, %v1924
    %v1940 = vshrl.u32 1326507024, %v1925
    %v1941 = vor.u32 %v1939, %v1940
    %vm1942 = vcmp.lt.s32.totalorder %v1923, 1
    %vm1943 = vcmp.lt.s32.totalorder %v1923, 2
    %vm1944 = vcmp.lt.s32.totalorder %v1923, 3
    %vm1945 = vcmp.lt.s32.totalorder %v1923, 4
    %v1946 = vsel %vm1942, %v1926, %v1929
    %v1947 = vsel %vm1945, %v1935, 2102212464
    %v1948 = vsel %vm1944, %v1932, %v1947
    %v1949 = vsel %vm1943, %v1946, %v1948
    %v1950 = vsel %vm1942, %v1929, %v1932
    %v1951 = vsel %vm1945, %v1938, 920167782
    %v1952 = vsel %vm1944, %v1935, %v1951
    %v1953 = vsel %vm1943, %v1950, %v1952
    %v1954 = vsel %vm1942, %v1932, %v1935
    %v1955 = vsel %vm1945, %v1941, 1326507024
    %v1956 = vsel %vm1944, %v1938, %v1955
    %v1957 = vsel %vm1943, %v1954, %v1956
    %v1958 = vshll.u32 %v1918, 8
    %v1959 = vand.u32 %v1958, 65535
    %v1960 = vshrl.u32 %v1958, 16
    %v1961 = vand.u32 %v1957, 65535
    %v1962 = vshrl.u32 %v1957, 16
    %v1963 = vmul.u32 %v1959, %v1961
    %v1964 = vmul.u32 %v1959, %v1962
    %v1965 = vmul.u32 %v1960, %v1961
    %v1966 = vmul.u32 %v1960, %v1962
    %v1967 = vshll.u32 %v1964, 16
    %v1968 = vshrl.u32 %v1964, 16
    %v1969 = vshll.u32 %v1965, 16
    %v1970 = vshrl.u32 %v1965, 16
    %vm1971 = vc.u32 %v1963, %v1967
    %v1972 = vsel %vm1971, 1, 0
    %v1973 = vadd.s32 %v1963, %v1967
    %v1974 = vadd.s32 %v1966, %v1972
    %vm1975 = vc.u32 %v1973, %v1969
    %v1976 = vsel %vm1975, 1, 0
    %v1977 = vadd.s32 %v1973, %v1969
    %v1978 = vadd.s32 %v1974, %v1976
    %v1979 = vadd.s32 %v1978, %v1968
    %v1980 = vadd.s32 %v1979, %v1970
    %v1981 = vand.u32 %v1958, 65535
    %v1982 = vshrl.u32 %v1958, 16
    %v1983 = vand.u32 %v1953, 65535
    %v1984 = vshrl.u32 %v1953, 16
    %v1985 = vmul.u32 %v1981, %v1983
    %v1986 = vmul.u32 %v1981, %v1984
    %v1987 = vmul.u32 %v1982, %v1983
    %v1988 = vmul.u32 %v1982, %v1984
    %v1989 = vshll.u32 %v1986, 16
    %v1990 = vshrl.u32 %v1986, 16
    %v1991 = vshll.u32 %v1987, 16
    %v1992 = vshrl.u32 %v1987, 16
    %vm1993 = vc.u32 %v1985, %v1989
    %v1994 = vsel %vm1993, 1, 0
    %v1995 = vadd.s32 %v1985, %v1989
    %v1996 = vadd.s32 %v1988, %v1994
    %vm1997 = vc.u32 %v1995, %v1991
    %v1998 = vsel %vm1997, 1, 0
    %v1999 = vadd.s32 %v1995, %v1991
    %v2000 = vadd.s32 %v1996, %v1998
    %v2001 = vadd.s32 %v2000, %v1990
    %v2002 = vadd.s32 %v2001, %v1992
    %v2003 = vmul.u32 %v1958, %v1949
    %v2004 = vadd.s32 %v1980, %v1999
    %vm2005 = vc.u32 %v1980, %v1999
    %v2006 = vadd.s32 %v2002, 1
    %v2007 = vsel %vm2005, %v2006, %v2002
    %v2008 = vadd.s32 %v2003, %v2007
    %v2009 = vadd.s32 %v2008, 536870912
    %v2010 = vshrl.u32 %v2009, 30
    %v2011 = vshll.u32 %v2010, 30
    %v2012 = vsub.s32 %v2008, %v2011
    %vm2013 = vcmp.lt.s32.totalorder %v2012, 0
    %v2014 = vsub.s32 0, %v2012
    %v2015 = vsel %vm2013, %v2014, %v2012
    %v2016 = vclz %v2015
    %v2017 = vsub.s32 %v2016, 2
    %vm2018 = vcmp.gt.s32.totalorder 0, %v2017
    %v2019 = vsel %vm2018, 0, %v2017
    %v2020 = vsub.s32 32, %v2019
    %v2021 = vshll.u32 %v2012, %v2019
    %v2022 = vshrl.u32 %v2004, %v2020
    %v2023 = vor.u32 %v2021, %v2022
    %v2024 = vsub.s32 4294967266, %v2019
    %v2025 = vadd.s32 %v2024, 127
    %v2026 = vshll.u32 %v2025, 23
    %v2027 = vor.u32 4788187, %v2026
    %v2028 = vand.u32 2147483647, %v2027
    %v2030 = vcvt.s32.f32 %v2023
    %v2031 = vmul.f32 %v2030, %v2028
    %v2032 = vxor.u32 %v2031, 2147483648
    %v2033 = vsel %vm1912, %v2032, %v2031
    %v2034 = vsub.s32 4, %v2010
    %v2035 = vsel %vm1912, %v2034, %v2010
    %v2036 = vsel %vm1911, %v170, %v2033
    %v2037 = vsel %vm1911, 0, %v2035
    %v2038 = vmul.f32 %v2036, %v2036
    %v2039 = vmul.f32 %v2038, -0.001358992
    %v2040 = vadd.f32 %v2039, 0.041655596
    %v2041 = vmul.f32 %v2038, %v2040
    %v2042 = vadd.f32 %v2041, -0.4999988
    %v2043 = vmul.f32 %v2038, %v2042
    %v2044 = vadd.f32 1.0, %v2043
    %v2045 = vmul.f32 %v2036, %v2036
    %v2046 = vmul.f32 %v2045, -0.00019511016
    %v2047 = vadd.f32 %v2046, 0.008332121
    %v2048 = vmul.f32 %v2045, %v2047
    %v2049 = vadd.f32 %v2048, -0.16666654
    %v2050 = vmul.f32 %v2045, %v2049
    %v2051 = vadd.f32 %v2050, 1.0
    %v2052 = vmul.f32 %v2051, %v2036
    %vm2053 = vweird.f32 %v170
    %v2054 = vand.u32 %v2037, 3
    %vm2055 = vcmp.lt.s32.totalorder %v2054, 2
    %vm2056 = vcmp.eq.s32.totalorder %v2054, 0
    %v2057 = vxor.u32 %v2052, 2147483648
    %v2058 = vsel %vm2056, %v2044, %v2057
    %vm2059 = vcmp.eq.s32.totalorder %v2054, 2
    %v2060 = vxor.u32 %v2044, 2147483648
    %v2061 = vsel %vm2059, %v2060, %v2052
    %v2062 = vsel %vm2055, %v2058, %v2061
    %v2063 = vsel %vm2053, nan, %v2062
    %v2064 = vand.u32 2147483647, %v173
    %vm2065 = vcmp.le.f32.partialorder %v2064, 0.7853982
    %vm2066 = vcmp.lt.s32.totalorder %v173, 0
    %v2067 = vand.u32 %v173, 2139095040
    %v2068 = vshrl.u32 %v2067, 23
    %v2069 = vsub.s32 %v2068, 127
    %v2070 = vand.u32 2147483647, %v173
    %v2071 = vand.u32 %v2070, 8388607
    %v2072 = vor.u32 %v2071, 8388608
    %v2073 = vsub.s32 0, %v2072
    %v2074 = vadd.s32 %v2069, 1
    %vm2075 = vcmp.gt.s32.totalorder %v2074, 0
    %v2076 = vsel %vm2075, %v2074, 0
    %v2077 = vshrl.u32 %v2076, 5
    %v2078 = vand.u32 %v2076, 31
    %v2079 = vsub.s32 32, %v2078
    %v2080 = vshrl.u32 683565275, %v2079
    %v2081 = vshll.u32 683565275, %v2078
    %v2082 = vshrl.u32 2475754826, %v2079
    %v2083 = vor.u32 %v2081, %v2082
    %v2084 = vshll.u32 2475754826, %v2078
    %v2085 = vshrl.u32 2131351028, %v2079
    %v2086 = vor.u32 %v2084, %v2085
    %v2087 = vshll.u32 2131351028, %v2078
    %v2088 = vshrl.u32 2102212464, %v2079
    %v2089 = vor.u32 %v2087, %v2088
    %v2090 = vshll.u32 2102212464, %v2078
    %v2091 = vshrl.u32 920167782, %v2079
    %v2092 = vor.u32 %v2090, %v2091
    %v2093 = vshll.u32 920167782, %v2078
    %v2094 = vshrl.u32 1326507024, %v2079
    %v2095 = vor.u32 %v2093, %v2094
    %vm2096 = vcmp.lt.s32.totalorder %v2077, 1
    %vm2097 = vcmp.lt.s32.totalorder %v2077, 2
    %vm2098 = vcmp.lt.s32.totalorder %v2077, 3
    %vm2099 = vcmp.lt.s32.totalorder %v2077, 4
    %v2100 = vsel %vm2096, %v2080, %v2083
    %v2101 = vsel %vm2099, %v2089, 2102212464
    %v2102 = vsel %vm2098, %v2086, %v2101
    %v2103 = vsel %vm2097, %v2100, %v2102
    %v2104 = vsel %vm2096, %v2083, %v2086
    %v2105 = vsel %vm2099, %v2092, 920167782
    %v2106 = vsel %vm2098, %v2089, %v2105
    %v2107 = vsel %vm2097, %v2104, %v2106
    %v2108 = vsel %vm2096, %v2086, %v2089
    %v2109 = vsel %vm2099, %v2095, 1326507024
    %v2110 = vsel %vm2098, %v2092, %v2109
    %v2111 = vsel %vm2097, %v2108, %v2110
    %v2112 = vshll.u32 %v2072, 8
    %v2113 = vand.u32 %v2112, 65535
    %v2114 = vshrl.u32 %v2112, 16
    %v2115 = vand.u32 %v2111, 65535
    %v2116 = vshrl.u32 %v2111, 16
    %v2117 = vmul.u32 %v2113, %v2115
    %v2118 = vmul.u32 %v2113, %v2116
    %v2119 = vmul.u32 %v2114, %v2115
    %v2120 = vmul.u32 %v2114, %v2116
    %v2121 = vshll.u32 %v2118, 16
    %v2122 = vshrl.u32 %v2118, 16
    %v2123 = vshll.u32 %v2119, 16
    %v2124 = vshrl.u32 %v2119, 16
    %vm2125 = vc.u32 %v2117, %v2121
    %v2126 = vsel %vm2125, 1, 0
    %v2127 = vadd.s32 %v2117, %v2121
    %v2128 = vadd.s32 %v2120, %v2126
    %vm2129 = vc.u32 %v2127, %v2123
    %v2130 = vsel %vm2129, 1, 0
    %v2131 = vadd.s32 %v2127, %v2123
    %v2132 = vadd.s32 %v2128, %v2130
    %v2133 = vadd.s32 %v2132, %v2122
    %v2134 = vadd.s32 %v2133, %v2124
    %v2135 = vand.u32 %v2112, 65535
    %v2136 = vshrl.u32 %v2112, 16
    %v2137 = vand.u32 %v2107, 65535
    %v2138 = vshrl.u32 %v2107, 16
    %v2139 = vmul.u32 %v2135, %v2137
    %v2140 = vmul.u32 %v2135, %v2138
    %v2141 = vmul.u32 %v2136, %v2137
    %v2142 = vmul.u32 %v2136, %v2138
    %v2143 = vshll.u32 %v2140, 16
    %v2144 = vshrl.u32 %v2140, 16
    %v2145 = vshll.u32 %v2141, 16
    %v2146 = vshrl.u32 %v2141, 16
    %vm2147 = vc.u32 %v2139, %v2143
    %v2148 = vsel %vm2147, 1, 0
    %v2149 = vadd.s32 %v2139, %v2143
    %v2150 = vadd.s32 %v2142, %v2148
    %vm2151 = vc.u32 %v2149, %v2145
    %v2152 = vsel %vm2151, 1, 0
    %v2153 = vadd.s32 %v2149, %v2145
    %v2154 = vadd.s32 %v2150, %v2152
    %v2155 = vadd.s32 %v2154, %v2144
    %v2156 = vadd.s32 %v2155, %v2146
    %v2157 = vmul.u32 %v2112, %v2103
    %v2158 = vadd.s32 %v2134, %v2153
    %vm2159 = vc.u32 %v2134, %v2153
    %v2160 = vadd.s32 %v2156, 1
    %v2161 = vsel %vm2159, %v2160, %v2156
    %v2162 = vadd.s32 %v2157, %v2161
    %v2163 = vadd.s32 %v2162, 536870912
    %v2164 = vshrl.u32 %v2163, 30
    %v2165 = vshll.u32 %v2164, 30
    %v2166 = vsub.s32 %v2162, %v2165
    %vm2167 = vcmp.lt.s32.totalorder %v2166, 0
    %v2168 = vsub.s32 0, %v2166
    %v2169 = vsel %vm2167, %v2168, %v2166
    %v2170 = vclz %v2169
    %v2171 = vsub.s32 %v2170, 2
    %vm2172 = vcmp.gt.s32.totalorder 0, %v2171
    %v2173 = vsel %vm2172, 0, %v2171
    %v2174 = vsub.s32 32, %v2173
    %v2175 = vshll.u32 %v2166, %v2173
    %v2176 = vshrl.u32 %v2158, %v2174
    %v2177 = vor.u32 %v2175, %v2176
    %v2178 = vsub.s32 4294967266, %v2173
    %v2179 = vadd.s32 %v2178, 127
    %v2180 = vshll.u32 %v2179, 23
    %v2181 = vor.u32 4788187, %v2180
    %v2182 = vand.u32 2147483647, %v2181
    %v2184 = vcvt.s32.f32 %v2177
    %v2185 = vmul.f32 %v2184, %v2182
    %v2186 = vxor.u32 %v2185, 2147483648
    %v2187 = vsel %vm2066, %v2186, %v2185
    %v2188 = vsub.s32 4, %v2164
    %v2189 = vsel %vm2066, %v2188, %v2164
    %v2190 = vsel %vm2065, %v173, %v2187
    %v2191 = vsel %vm2065, 0, %v2189
    %v2192 = vmul.f32 %v2190, %v2190
    %v2193 = vmul.f32 %v2192, -0.001358992
    %v2194 = vadd.f32 %v2193, 0.041655596
    %v2195 = vmul.f32 %v2192, %v2194
    %v2196 = vadd.f32 %v2195, -0.4999988
    %v2197 = vmul.f32 %v2192, %v2196
    %v2198 = vadd.f32 1.0, %v2197
    %v2199 = vmul.f32 %v2190, %v2190
    %v2200 = vmul.f32 %v2199, -0.00019511016
    %v2201 = vadd.f32 %v2200, 0.008332121
    %v2202 = vmul.f32 %v2199, %v2201
    %v2203 = vadd.f32 %v2202, -0.16666654
    %v2204 = vmul.f32 %v2199, %v2203
    %v2205 = vadd.f32 %v2204, 1.0
    %v2206 = vmul.f32 %v2205, %v2190
    %vm2207 = vweird.f32 %v173
    %v2208 = vand.u32 %v2191, 3
    %vm2209 = vcmp.lt.s32.totalorder %v2208, 2
    %vm2210 = vcmp.eq.s32.totalorder %v2208, 0
    %v2211 = vxor.u32 %v2206, 2147483648
    %v2212 = vsel %vm2210, %v2198, %v2211
    %vm2213 = vcmp.eq.s32.totalorder %v2208, 2
    %v2214 = vxor.u32 %v2198, 2147483648
    %v2215 = vsel %vm2213, %v2214, %v2206
    %v2216 = vsel %vm2209, %v2212, %v2215
    %v2217 = vsel %vm2207, nan, %v2216
    %v2218 = vand.u32 2147483647, %v176
    %vm2219 = vcmp.le.f32.partialorder %v2218, 0.7853982
    %vm2220 = vcmp.lt.s32.totalorder %v176, 0
    %v2221 = vand.u32 %v176, 2139095040
    %v2222 = vshrl.u32 %v2221, 23
    %v2223 = vsub.s32 %v2222, 127
    %v2224 = vand.u32 2147483647, %v176
    %v2225 = vand.u32 %v2224, 8388607
    %v2226 = vor.u32 %v2225, 8388608
    %v2227 = vsub.s32 0, %v2226
    %v2228 = vadd.s32 %v2223, 1
    %vm2229 = vcmp.gt.s32.totalorder %v2228, 0
    %v2230 = vsel %vm2229, %v2228, 0
    %v2231 = vshrl.u32 %v2230, 5
    %v2232 = vand.u32 %v2230, 31
    %v2233 = vsub.s32 32, %v2232
    %v2234 = vshrl.u32 683565275, %v2233
    %v2235 = vshll.u32 683565275, %v2232
    %v2236 = vshrl.u32 2475754826, %v2233
    %v2237 = vor.u32 %v2235, %v2236
    %v2238 = vshll.u32 2475754826, %v2232
    %v2239 = vshrl.u32 2131351028, %v2233
    %v2240 = vor.u32 %v2238, %v2239
    %v2241 = vshll.u32 2131351028, %v2232
    %v2242 = vshrl.u32 2102212464, %v2233
    %v2243 = vor.u32 %v2241, %v2242
    %v2244 = vshll.u32 2102212464, %v2232
    %v2245 = vshrl.u32 920167782, %v2233
    %v2246 = vor.u32 %v2244, %v2245
    %v2247 = vshll.u32 920167782, %v2232
    %v2248 = vshrl.u32 1326507024, %v2233
    %v2249 = vor.u32 %v2247, %v2248
    %vm2250 = vcmp.lt.s32.totalorder %v2231, 1
    %vm2251 = vcmp.lt.s32.totalorder %v2231, 2
    %vm2252 = vcmp.lt.s32.totalorder %v2231, 3
    %vm2253 = vcmp.lt.s32.totalorder %v2231, 4
    %v2254 = vsel %vm2250, %v2234, %v2237
    %v2255 = vsel %vm2253, %v2243, 2102212464
    %v2256 = vsel %vm2252, %v2240, %v2255
    %v2257 = vsel %vm2251, %v2254, %v2256
    %v2258 = vsel %vm2250, %v2237, %v2240
    %v2259 = vsel %vm2253, %v2246, 920167782
    %v2260 = vsel %vm2252, %v2243, %v2259
    %v2261 = vsel %vm2251, %v2258, %v2260
    %v2262 = vsel %vm2250, %v2240, %v2243
    %v2263 = vsel %vm2253, %v2249, 1326507024
    %v2264 = vsel %vm2252, %v2246, %v2263
    %v2265 = vsel %vm2251, %v2262, %v2264
    %v2266 = vshll.u32 %v2226, 8
    %v2267 = vand.u32 %v2266, 65535
    %v2268 = vshrl.u32 %v2266, 16
    %v2269 = vand.u32 %v2265, 65535
    %v2270 = vshrl.u32 %v2265, 16
    %v2271 = vmul.u32 %v2267, %v2269
    %v2272 = vmul.u32 %v2267, %v2270
    %v2273 = vmul.u32 %v2268, %v2269
    %v2274 = vmul.u32 %v2268, %v2270
    %v2275 = vshll.u32 %v2272, 16
    %v2276 = vshrl.u32 %v2272, 16
    %v2277 = vshll.u32 %v2273, 16
    %v2278 = vshrl.u32 %v2273, 16
    %vm2279 = vc.u32 %v2271, %v2275
    %v2280 = vsel %vm2279, 1, 0
    %v2281 = vadd.s32 %v2271, %v2275
    %v2282 = vadd.s32 %v2274, %v2280
    %vm2283 = vc.u32 %v2281, %v2277
    %v2284 = vsel %vm2283, 1, 0
    %v2285 = vadd.s32 %v2281, %v2277
    %v2286 = vadd.s32 %v2282, %v2284
    %v2287 = vadd.s32 %v2286, %v2276
    %v2288 = vadd.s32 %v2287, %v2278
    %v2289 = vand.u32 %v2266, 65535
    %v2290 = vshrl.u32 %v2266, 16
    %v2291 = vand.u32 %v2261, 65535
    %v2292 = vshrl.u32 %v2261, 16
    %v2293 = vmul.u32 %v2289, %v2291
    %v2294 = vmul.u32 %v2289, %v2292
    %v2295 = vmul.u32 %v2290, %v2291
    %v2296 = vmul.u32 %v2290, %v2292
    %v2297 = vshll.u32 %v2294, 16
    %v2298 = vshrl.u32 %v2294, 16
    %v2299 = vshll.u32 %v2295, 16
    %v2300 = vshrl.u32 %v2295, 16
    %vm2301 = vc.u32 %v2293, %v2297
    %v2302 = vsel %vm2301, 1, 0
    %v2303 = vadd.s32 %v2293, %v2297
    %v2304 = vadd.s32 %v2296, %v2302
    %vm2305 = vc.u32 %v2303, %v2299
    %v2306 = vsel %vm2305, 1, 0
    %v2307 = vadd.s32 %v2303, %v2299
    %v2308 = vadd.s32 %v2304, %v2306
    %v2309 = vadd.s32 %v2308, %v2298
    %v2310 = vadd.s32 %v2309, %v2300
    %v2311 = vmul.u32 %v2266, %v2257
    %v2312 = vadd.s32 %v2288, %v2307
    %vm2313 = vc.u32 %v2288, %v2307
    %v2314 = vadd.s32 %v2310, 1
    %v2315 = vsel %vm2313, %v2314, %v2310
    %v2316 = vadd.s32 %v2311, %v2315
    %v2317 = vadd.s32 %v2316, 536870912
    %v2318 = vshrl.u32 %v2317, 30
    %v2319 = vshll.u32 %v2318, 30
    %v2320 = vsub.s32 %v2316, %v2319
    %vm2321 = vcmp.lt.s32.totalorder %v2320, 0
    %v2322 = vsub.s32 0, %v2320
    %v2323 = vsel %vm2321, %v2322, %v2320
    %v2324 = vclz %v2323
    %v2325 = vsub.s32 %v2324, 2
    %vm2326 = vcmp.gt.s32.totalorder 0, %v2325
    %v2327 = vsel %vm2326, 0, %v2325
    %v2328 = vsub.s32 32, %v2327
    %v2329 = vshll.u32 %v2320, %v2327
    %v2330 = vshrl.u32 %v2312, %v2328
    %v2331 = vor.u32 %v2329, %v2330
    %v2332 = vsub.s32 4294967266, %v2327
    %v2333 = vadd.s32 %v2332, 127
    %v2334 = vshll.u32 %v2333, 23
    %v2335 = vor.u32 4788187, %v2334
    %v2336 = vand.u32 2147483647, %v2335
    %v2338 = vcvt.s32.f32 %v2331
    %v2339 = vmul.f32 %v2338, %v2336
    %v2340 = vxor.u32 %v2339, 2147483648
    %v2341 = vsel %vm2220, %v2340, %v2339
    %v2342 = vsub.s32 4, %v2318
    %v2343 = vsel %vm2220, %v2342, %v2318
    %v2344 = vsel %vm2219, %v176, %v2341
    %v2345 = vsel %vm2219, 0, %v2343
    %v2346 = vmul.f32 %v2344, %v2344
    %v2347 = vmul.f32 %v2346, -0.001358992
    %v2348 = vadd.f32 %v2347, 0.041655596
    %v2349 = vmul.f32 %v2346, %v2348
    %v2350 = vadd.f32 %v2349, -0.4999988
    %v2351 = vmul.f32 %v2346, %v2350
    %v2352 = vadd.f32 1.0, %v2351
    %v2353 = vmul.f32 %v2344, %v2344
    %v2354 = vmul.f32 %v2353, -0.00019511016
    %v2355 = vadd.f32 %v2354, 0.008332121
    %v2356 = vmul.f32 %v2353, %v2355
    %v2357 = vadd.f32 %v2356, -0.16666654
    %v2358 = vmul.f32 %v2353, %v2357
    %v2359 = vadd.f32 %v2358, 1.0
    %v2360 = vmul.f32 %v2359, %v2344
    %vm2361 = vweird.f32 %v176
    %v2362 = vand.u32 %v2345, 3
    %vm2363 = vcmp.lt.s32.totalorder %v2362, 2
    %vm2364 = vcmp.eq.s32.totalorder %v2362, 0
    %v2365 = vxor.u32 %v2360, 2147483648
    %v2366 = vsel %vm2364, %v2352, %v2365
    %vm2367 = vcmp.eq.s32.totalorder %v2362, 2
    %v2368 = vxor.u32 %v2352, 2147483648
    %v2369 = vsel %vm2367, %v2368, %v2360
    %v2370 = vsel %vm2363, %v2366, %v2369
    %v2371 = vsel %vm2361, nan, %v2370
    %v2372 = vand.u32 2147483647, %v179
    %vm2373 = vcmp.le.f32.partialorder %v2372, 0.7853982
    %vm2374 = vcmp.lt.s32.totalorder %v179, 0
    %v2375 = vand.u32 %v179, 2139095040
    %v2376 = vshrl.u32 %v2375, 23
    %v2377 = vsub.s32 %v2376, 127
    %v2378 = vand.u32 2147483647, %v179
    %v2379 = vand.u32 %v2378, 8388607
    %v2380 = vor.u32 %v2379, 8388608
    %v2381 = vsub.s32 0, %v2380
    %v2382 = vadd.s32 %v2377, 1
    %vm2383 = vcmp.gt.s32.totalorder %v2382, 0
    %v2384 = vsel %vm2383, %v2382, 0
    %v2385 = vshrl.u32 %v2384, 5
    %v2386 = vand.u32 %v2384, 31
    %v2387 = vsub.s32 32, %v2386
    %v2388 = vshrl.u32 683565275, %v2387
    %v2389 = vshll.u32 683565275, %v2386
    %v2390 = vshrl.u32 2475754826, %v2387
    %v2391 = vor.u32 %v2389, %v2390
    %v2392 = vshll.u32 2475754826, %v2386
    %v2393 = vshrl.u32 2131351028, %v2387
    %v2394 = vor.u32 %v2392, %v2393
    %v2395 = vshll.u32 2131351028, %v2386
    %v2396 = vshrl.u32 2102212464, %v2387
    %v2397 = vor.u32 %v2395, %v2396
    %v2398 = vshll.u32 2102212464, %v2386
    %v2399 = vshrl.u32 920167782, %v2387
    %v2400 = vor.u32 %v2398, %v2399
    %v2401 = vshll.u32 920167782, %v2386
    %v2402 = vshrl.u32 1326507024, %v2387
    %v2403 = vor.u32 %v2401, %v2402
    %vm2404 = vcmp.lt.s32.totalorder %v2385, 1
    %vm2405 = vcmp.lt.s32.totalorder %v2385, 2
    %vm2406 = vcmp.lt.s32.totalorder %v2385, 3
    %vm2407 = vcmp.lt.s32.totalorder %v2385, 4
    %v2408 = vsel %vm2404, %v2388, %v2391
    %v2409 = vsel %vm2407, %v2397, 2102212464
    %v2410 = vsel %vm2406, %v2394, %v2409
    %v2411 = vsel %vm2405, %v2408, %v2410
    %v2412 = vsel %vm2404, %v2391, %v2394
    %v2413 = vsel %vm2407, %v2400, 920167782
    %v2414 = vsel %vm2406, %v2397, %v2413
    %v2415 = vsel %vm2405, %v2412, %v2414
    %v2416 = vsel %vm2404, %v2394, %v2397
    %v2417 = vsel %vm2407, %v2403, 1326507024
    %v2418 = vsel %vm2406, %v2400, %v2417
    %v2419 = vsel %vm2405, %v2416, %v2418
    %v2420 = vshll.u32 %v2380, 8
    %v2421 = vand.u32 %v2420, 65535
    %v2422 = vshrl.u32 %v2420, 16
    %v2423 = vand.u32 %v2419, 65535
    %v2424 = vshrl.u32 %v2419, 16
    %v2425 = vmul.u32 %v2421, %v2423
    %v2426 = vmul.u32 %v2421, %v2424
    %v2427 = vmul.u32 %v2422, %v2423
    %v2428 = vmul.u32 %v2422, %v2424
    %v2429 = vshll.u32 %v2426, 16
    %v2430 = vshrl.u32 %v2426, 16
    %v2431 = vshll.u32 %v2427, 16
    %v2432 = vshrl.u32 %v2427, 16
    %vm2433 = vc.u32 %v2425, %v2429
    %v2434 = vsel %vm2433, 1, 0
    %v2435 = vadd.s32 %v2425, %v2429
    %v2436 = vadd.s32 %v2428, %v2434
    %vm2437 = vc.u32 %v2435, %v2431
    %v2438 = vsel %vm2437, 1, 0
    %v2439 = vadd.s32 %v2435, %v2431
    %v2440 = vadd.s32 %v2436, %v2438
    %v2441 = vadd.s32 %v2440, %v2430
    %v2442 = vadd.s32 %v2441, %v2432
    %v2443 = vand.u32 %v2420, 65535
    %v2444 = vshrl.u32 %v2420, 16
    %v2445 = vand.u32 %v2415, 65535
    %v2446 = vshrl.u32 %v2415, 16
    %v2447 = vmul.u32 %v2443, %v2445
    %v2448 = vmul.u32 %v2443, %v2446
    %v2449 = vmul.u32 %v2444, %v2445
    %v2450 = vmul.u32 %v2444, %v2446
    %v2451 = vshll.u32 %v2448, 16
    %v2452 = vshrl.u32 %v2448, 16
    %v2453 = vshll.u32 %v2449, 16
    %v2454 = vshrl.u32 %v2449, 16
    %vm2455 = vc.u32 %v2447, %v2451
    %v2456 = vsel %vm2455, 1, 0
    %v2457 = vadd.s32 %v2447, %v2451
    %v2458 = vadd.s32 %v2450, %v2456
    %vm2459 = vc.u32 %v2457, %v2453
    %v2460 = vsel %vm2459, 1, 0
    %v2461 = vadd.s32 %v2457, %v2453
    %v2462 = vadd.s32 %v2458, %v2460
    %v2463 = vadd.s32 %v2462, %v2452
    %v2464 = vadd.s32 %v2463, %v2454
    %v2465 = vmul.u32 %v2420, %v2411
    %v2466 = vadd.s32 %v2442, %v2461
    %vm2467 = vc.u32 %v2442, %v2461
    %v2468 = vadd.s32 %v2464, 1
    %v2469 = vsel %vm2467, %v2468, %v2464
    %v2470 = vadd.s32 %v2465, %v2469
    %v2471 = vadd.s32 %v2470, 536870912
    %v2472 = vshrl.u32 %v2471, 30
    %v2473 = vshll.u32 %v2472, 30
    %v2474 = vsub.s32 %v2470, %v2473
    %vm2475 = vcmp.lt.s32.totalorder %v2474, 0
    %v2476 = vsub.s32 0, %v2474
    %v2477 = vsel %vm2475, %v2476, %v2474
    %v2478 = vclz %v2477
    %v2479 = vsub.s32 %v2478, 2
    %vm2480 = vcmp.gt.s32.totalorder 0, %v2479
    %v2481 = vsel %vm2480, 0, %v2479
    %v2482 = vsub.s32 32, %v2481
    %v2483 = vshll.u32 %v2474, %v2481
    %v2484 = vshrl.u32 %v2466, %v2482
    %v2485 = vor.u32 %v2483, %v2484
    %v2486 = vsub.s32 4294967266, %v2481
    %v2487 = vadd.s32 %v2486, 127
    %v2488 = vshll.u32 %v2487, 23
    %v2489 = vor.u32 4788187, %v2488
    %v2490 = vand.u32 2147483647, %v2489
    %v2492 = vcvt.s32.f32 %v2485
    %v2493 = vmul.f32 %v2492, %v2490
    %v2494 = vxor.u32 %v2493, 2147483648
    %v2495 = vsel %vm2374, %v2494, %v2493
    %v2496 = vsub.s32 4, %v2472
    %v2497 = vsel %vm2374, %v2496, %v2472
    %v2498 = vsel %vm2373, %v179, %v2495
    %v2499 = vsel %vm2373, 0, %v2497
    %v2500 = vmul.f32 %v2498, %v2498
    %v2501 = vmul.f32 %v2500, -0.001358992
    %v2502 = vadd.f32 %v2501, 0.041655596
    %v2503 = vmul.f32 %v2500, %v2502
    %v2504 = vadd.f32 %v2503, -0.4999988
    %v2505 = vmul.f32 %v2500, %v2504
    %v2506 = vadd.f32 1.0, %v2505
    %v2507 = vmul.f32 %v2498, %v2498
    %v2508 = vmul.f32 %v2507, -0.00019511016
    %v2509 = vadd.f32 %v2508, 0.008332121
    %v2510 = vmul.f32 %v2507, %v2509
    %v2511 = vadd.f32 %v2510, -0.16666654
    %v2512 = vmul.f32 %v2507, %v2511
    %v2513 = vadd.f32 %v2512, 1.0
    %v2514 = vmul.f32 %v2513, %v2498
    %vm2515 = vweird.f32 %v179
    %v2516 = vand.u32 %v2499, 3
    %vm2517 = vcmp.lt.s32.totalorder %v2516, 2
    %vm2518 = vcmp.eq.s32.totalorder %v2516, 0
    %v2519 = vxor.u32 %v2514, 2147483648
    %v2520 = vsel %vm2518, %v2506, %v2519
    %vm2521 = vcmp.eq.s32.totalorder %v2516, 2
    %v2522 = vxor.u32 %v2506, 2147483648
    %v2523 = vsel %vm2521, %v2522, %v2514
    %v2524 = vsel %vm2517, %v2520, %v2523
    %v2525 = vsel %vm2515, nan, %v2524
    %v2526 = vand.u32 2147483647, %v182
    %vm2527 = vcmp.le.f32.partialorder %v2526, 0.7853982
    %vm2528 = vcmp.lt.s32.totalorder %v182, 0
    %v2529 = vand.u32 %v182, 2139095040
    %v2530 = vshrl.u32 %v2529, 23
    %v2531 = vsub.s32 %v2530, 127
    %v2532 = vand.u32 2147483647, %v182
    %v2533 = vand.u32 %v2532, 8388607
    %v2534 = vor.u32 %v2533, 8388608
    %v2535 = vsub.s32 0, %v2534
    %v2536 = vadd.s32 %v2531, 1
    %vm2537 = vcmp.gt.s32.totalorder %v2536, 0
    %v2538 = vsel %vm2537, %v2536, 0
    %v2539 = vshrl.u32 %v2538, 5
    %v2540 = vand.u32 %v2538, 31
    %v2541 = vsub.s32 32, %v2540
    %v2542 = vshrl.u32 683565275, %v2541
    %v2543 = vshll.u32 683565275, %v2540
    %v2544 = vshrl.u32 2475754826, %v2541
    %v2545 = vor.u32 %v2543, %v2544
    %v2546 = vshll.u32 2475754826, %v2540
    %v2547 = vshrl.u32 2131351028, %v2541
    %v2548 = vor.u32 %v2546, %v2547
    %v2549 = vshll.u32 2131351028, %v2540
    %v2550 = vshrl.u32 2102212464, %v2541
    %v2551 = vor.u32 %v2549, %v2550
    %v2552 = vshll.u32 2102212464, %v2540
    %v2553 = vshrl.u32 920167782, %v2541
    %v2554 = vor.u32 %v2552, %v2553
    %v2555 = vshll.u32 920167782, %v2540
    %v2556 = vshrl.u32 1326507024, %v2541
    %v2557 = vor.u32 %v2555, %v2556
    %vm2558 = vcmp.lt.s32.totalorder %v2539, 1
    %vm2559 = vcmp.lt.s32.totalorder %v2539, 2
    %vm2560 = vcmp.lt.s32.totalorder %v2539, 3
    %vm2561 = vcmp.lt.s32.totalorder %v2539, 4
    %v2562 = vsel %vm2558, %v2542, %v2545
    %v2563 = vsel %vm2561, %v2551, 2102212464
    %v2564 = vsel %vm2560, %v2548, %v2563
    %v2565 = vsel %vm2559, %v2562, %v2564
    %v2566 = vsel %vm2558, %v2545, %v2548
    %v2567 = vsel %vm2561, %v2554, 920167782
    %v2568 = vsel %vm2560, %v2551, %v2567
    %v2569 = vsel %vm2559, %v2566, %v2568
    %v2570 = vsel %vm2558, %v2548, %v2551
    %v2571 = vsel %vm2561, %v2557, 1326507024
    %v2572 = vsel %vm2560, %v2554, %v2571
    %v2573 = vsel %vm2559, %v2570, %v2572
    %v2574 = vshll.u32 %v2534, 8
    %v2575 = vand.u32 %v2574, 65535
    %v2576 = vshrl.u32 %v2574, 16
    %v2577 = vand.u32 %v2573, 65535
    %v2578 = vshrl.u32 %v2573, 16
    %v2579 = vmul.u32 %v2575, %v2577
    %v2580 = vmul.u32 %v2575, %v2578
    %v2581 = vmul.u32 %v2576, %v2577
    %v2582 = vmul.u32 %v2576, %v2578
    %v2583 = vshll.u32 %v2580, 16
    %v2584 = vshrl.u32 %v2580, 16
    %v2585 = vshll.u32 %v2581, 16
    %v2586 = vshrl.u32 %v2581, 16
    %vm2587 = vc.u32 %v2579, %v2583
    %v2588 = vsel %vm2587, 1, 0
    %v2589 = vadd.s32 %v2579, %v2583
    %v2590 = vadd.s32 %v2582, %v2588
    %vm2591 = vc.u32 %v2589, %v2585
    %v2592 = vsel %vm2591, 1, 0
    %v2593 = vadd.s32 %v2589, %v2585
    %v2594 = vadd.s32 %v2590, %v2592
    %v2595 = vadd.s32 %v2594, %v2584
    %v2596 = vadd.s32 %v2595, %v2586
    %v2597 = vand.u32 %v2574, 65535
    %v2598 = vshrl.u32 %v2574, 16
    %v2599 = vand.u32 %v2569, 65535
    %v2600 = vshrl.u32 %v2569, 16
    %v2601 = vmul.u32 %v2597, %v2599
    %v2602 = vmul.u32 %v2597, %v2600
    %v2603 = vmul.u32 %v2598, %v2599
    %v2604 = vmul.u32 %v2598, %v2600
    %v2605 = vshll.u32 %v2602, 16
    %v2606 = vshrl.u32 %v2602, 16
    %v2607 = vshll.u32 %v2603, 16
    %v2608 = vshrl.u32 %v2603, 16
    %vm2609 = vc.u32 %v2601, %v2605
    %v2610 = vsel %vm2609, 1, 0
    %v2611 = vadd.s32 %v2601, %v2605
    %v2612 = vadd.s32 %v2604, %v2610
    %vm2613 = vc.u32 %v2611, %v2607
    %v2614 = vsel %vm2613, 1, 0
    %v2615 = vadd.s32 %v2611, %v2607
    %v2616 = vadd.s32 %v2612, %v2614
    %v2617 = vadd.s32 %v2616, %v2606
    %v2618 = vadd.s32 %v2617, %v2608
    %v2619 = vmul.u32 %v2574, %v2565
    %v2620 = vadd.s32 %v2596, %v2615
    %vm2621 = vc.u32 %v2596, %v2615
    %v2622 = vadd.s32 %v2618, 1
    %v2623 = vsel %vm2621, %v2622, %v2618
    %v2624 = vadd.s32 %v2619, %v2623
    %v2625 = vadd.s32 %v2624, 536870912
    %v2626 = vshrl.u32 %v2625, 30
    %v2627 = vshll.u32 %v2626, 30
    %v2628 = vsub.s32 %v2624, %v2627
    %vm2629 = vcmp.lt.s32.totalorder %v2628, 0
    %v2630 = vsub.s32 0, %v2628
    %v2631 = vsel %vm2629, %v2630, %v2628
    %v2632 = vclz %v2631
    %v2633 = vsub.s32 %v2632, 2
    %vm2634 = vcmp.gt.s32.totalorder 0, %v2633
    %v2635 = vsel %vm2634, 0, %v2633
    %v2636 = vsub.s32 32, %v2635
    %v2637 = vshll.u32 %v2628, %v2635
    %v2638 = vshrl.u32 %v2620, %v2636
    %v2639 = vor.u32 %v2637, %v2638
    %v2640 = vsub.s32 4294967266, %v2635
    %v2641 = vadd.s32 %v2640, 127
    %v2642 = vshll.u32 %v2641, 23
    %v2643 = vor.u32 4788187, %v2642
    %v2644 = vand.u32 2147483647, %v2643
    %v2646 = vcvt.s32.f32 %v2639
    %v2647 = vmul.f32 %v2646, %v2644
    %v2648 = vxor.u32 %v2647, 2147483648
    %v2649 = vsel %vm2528, %v2648, %v2647
    %v2650 = vsub.s32 4, %v2626
    %v2651 = vsel %vm2528, %v2650, %v2626
    %v2652 = vsel %vm2527, %v182, %v2649
    %v2653 = vsel %vm2527, 0, %v2651
    %v2654 = vmul.f32 %v2652, %v2652
    %v2655 = vmul.f32 %v2654, -0.001358992
    %v2656 = vadd.f32 %v2655, 0.041655596
    %v2657 = vmul.f32 %v2654, %v2656
    %v2658 = vadd.f32 %v2657, -0.4999988
    %v2659 = vmul.f32 %v2654, %v2658
    %v2660 = vadd.f32 1.0, %v2659
    %v2661 = vmul.f32 %v2652, %v2652
    %v2662 = vmul.f32 %v2661, -0.00019511016
    %v2663 = vadd.f32 %v2662, 0.008332121
    %v2664 = vmul.f32 %v2661, %v2663
    %v2665 = vadd.f32 %v2664, -0.16666654
    %v2666 = vmul.f32 %v2661, %v2665
    %v2667 = vadd.f32 %v2666, 1.0
    %v2668 = vmul.f32 %v2667, %v2652
    %vm2669 = vweird.f32 %v182
    %v2670 = vand.u32 %v2653, 3
    %vm2671 = vcmp.lt.s32.totalorder %v2670, 2
    %vm2672 = vcmp.eq.s32.totalorder %v2670, 0
    %v2673 = vxor.u32 %v2668, 2147483648
    %v2674 = vsel %vm2672, %v2660, %v2673
    %vm2675 = vcmp.eq.s32.totalorder %v2670, 2
    %v2676 = vxor.u32 %v2660, 2147483648
    %v2677 = vsel %vm2675, %v2676, %v2668
    %v2678 = vsel %vm2671, %v2674, %v2677
    %v2679 = vsel %vm2669, nan, %v2678
    %v2680 = vand.u32 2147483647, %v185
    %vm2681 = vcmp.le.f32.partialorder %v2680, 0.7853982
    %vm2682 = vcmp.lt.s32.totalorder %v185, 0
    %v2683 = vand.u32 %v185, 2139095040
    %v2684 = vshrl.u32 %v2683, 23
    %v2685 = vsub.s32 %v2684, 127
    %v2686 = vand.u32 2147483647, %v185
    %v2687 = vand.u32 %v2686, 8388607
    %v2688 = vor.u32 %v2687, 8388608
    %v2689 = vsub.s32 0, %v2688
    %v2690 = vadd.s32 %v2685, 1
    %vm2691 = vcmp.gt.s32.totalorder %v2690, 0
    %v2692 = vsel %vm2691, %v2690, 0
    %v2693 = vshrl.u32 %v2692, 5
    %v2694 = vand.u32 %v2692, 31
    %v2695 = vsub.s32 32, %v2694
    %v2696 = vshrl.u32 683565275, %v2695
    %v2697 = vshll.u32 683565275, %v2694
    %v2698 = vshrl.u32 2475754826, %v2695
    %v2699 = vor.u32 %v2697, %v2698
    %v2700 = vshll.u32 2475754826, %v2694
    %v2701 = vshrl.u32 2131351028, %v2695
    %v2702 = vor.u32 %v2700, %v2701
    %v2703 = vshll.u32 2131351028, %v2694
    %v2704 = vshrl.u32 2102212464, %v2695
    %v2705 = vor.u32 %v2703, %v2704
    %v2706 = vshll.u32 2102212464, %v2694
    %v2707 = vshrl.u32 920167782, %v2695
    %v2708 = vor.u32 %v2706, %v2707
    %v2709 = vshll.u32 920167782, %v2694
    %v2710 = vshrl.u32 1326507024, %v2695
    %v2711 = vor.u32 %v2709, %v2710
    %vm2712 = vcmp.lt.s32.totalorder %v2693, 1
    %vm2713 = vcmp.lt.s32.totalorder %v2693, 2
    %vm2714 = vcmp.lt.s32.totalorder %v2693, 3
    %vm2715 = vcmp.lt.s32.totalorder %v2693, 4
    %v2716 = vsel %vm2712, %v2696, %v2699
    %v2717 = vsel %vm2715, %v2705, 2102212464
    %v2718 = vsel %vm2714, %v2702, %v2717
    %v2719 = vsel %vm2713, %v2716, %v2718
    %v2720 = vsel %vm2712, %v2699, %v2702
    %v2721 = vsel %vm2715, %v2708, 920167782
    %v2722 = vsel %vm2714, %v2705, %v2721
    %v2723 = vsel %vm2713, %v2720, %v2722
    %v2724 = vsel %vm2712, %v2702, %v2705
    %v2725 = vsel %vm2715, %v2711, 1326507024
    %v2726 = vsel %vm2714, %v2708, %v2725
    %v2727 = vsel %vm2713, %v2724, %v2726
    %v2728 = vshll.u32 %v2688, 8
    %v2729 = vand.u32 %v2728, 65535
    %v2730 = vshrl.u32 %v2728, 16
    %v2731 = vand.u32 %v2727, 65535
    %v2732 = vshrl.u32 %v2727, 16
    %v2733 = vmul.u32 %v2729, %v2731
    %v2734 = vmul.u32 %v2729, %v2732
    %v2735 = vmul.u32 %v2730, %v2731
    %v2736 = vmul.u32 %v2730, %v2732
    %v2737 = vshll.u32 %v2734, 16
    %v2738 = vshrl.u32 %v2734, 16
    %v2739 = vshll.u32 %v2735, 16
    %v2740 = vshrl.u32 %v2735, 16
    %vm2741 = vc.u32 %v2733, %v2737
    %v2742 = vsel %vm2741, 1, 0
    %v2743 = vadd.s32 %v2733, %v2737
    %v2744 = vadd.s32 %v2736, %v2742
    %vm2745 = vc.u32 %v2743, %v2739
    %v2746 = vsel %vm2745, 1, 0
    %v2747 = vadd.s32 %v2743, %v2739
    %v2748 = vadd.s32 %v2744, %v2746
    %v2749 = vadd.s32 %v2748, %v2738
    %v2750 = vadd.s32 %v2749, %v2740
    %v2751 = vand.u32 %v2728, 65535
    %v2752 = vshrl.u32 %v2728, 16
    %v2753 = vand.u32 %v2723, 65535
    %v2754 = vshrl.u32 %v2723, 16
    %v2755 = vmul.u32 %v2751, %v2753
    %v2756 = vmul.u32 %v2751, %v2754
    %v2757 = vmul.u32 %v2752, %v2753
    %v2758 = vmul.u32 %v2752, %v2754
    %v2759 = vshll.u32 %v2756, 16
    %v2760 = vshrl.u32 %v2756, 16
    %v2761 = vshll.u32 %v2757, 16
    %v2762 = vshrl.u32 %v2757, 16
    %vm2763 = vc.u32 %v2755, %v2759
    %v2764 = vsel %vm2763, 1, 0
    %v2765 = vadd.s32 %v2755, %v2759
    %v2766 = vadd.s32 %v2758, %v2764
    %vm2767 = vc.u32 %v2765, %v2761
    %v2768 = vsel %vm2767, 1, 0
    %v2769 = vadd.s32 %v2765, %v2761
    %v2770 = vadd.s32 %v2766, %v2768
    %v2771 = vadd.s32 %v2770, %v2760
    %v2772 = vadd.s32 %v2771, %v2762
    %v2773 = vmul.u32 %v2728, %v2719
    %v2774 = vadd.s32 %v2750, %v2769
    %vm2775 = vc.u32 %v2750, %v2769
    %v2776 = vadd.s32 %v2772, 1
    %v2777 = vsel %vm2775, %v2776, %v2772
    %v2778 = vadd.s32 %v2773, %v2777
    %v2779 = vadd.s32 %v2778, 536870912
    %v2780 = vshrl.u32 %v2779, 30
    %v2781 = vshll.u32 %v2780, 30
    %v2782 = vsub.s32 %v2778, %v2781
    %vm2783 = vcmp.lt.s32.totalorder %v2782, 0
    %v2784 = vsub.s32 0, %v2782
    %v2785 = vsel %vm2783, %v2784, %v2782
    %v2786 = vclz %v2785
    %v2787 = vsub.s32 %v2786, 2
    %vm2788 = vcmp.gt.s32.totalorder 0, %v2787
    %v2789 = vsel %vm2788, 0, %v2787
    %v2790 = vsub.s32 32, %v2789
    %v2791 = vshll.u32 %v2782, %v2789
    %v2792 = vshrl.u32 %v2774, %v2790
    %v2793 = vor.u32 %v2791, %v2792
    %v2794 = vsub.s32 4294967266, %v2789
    %v2795 = vadd.s32 %v2794, 127
    %v2796 = vshll.u32 %v2795, 23
    %v2797 = vor.u32 4788187, %v2796
    %v2798 = vand.u32 2147483647, %v2797
    %v2800 = vcvt.s32.f32 %v2793
    %v2801 = vmul.f32 %v2800, %v2798
    %v2802 = vxor.u32 %v2801, 2147483648
    %v2803 = vsel %vm2682, %v2802, %v2801
    %v2804 = vsub.s32 4, %v2780
    %v2805 = vsel %vm2682, %v2804, %v2780
    %v2806 = vsel %vm2681, %v185, %v2803
    %v2807 = vsel %vm2681, 0, %v2805
    %v2808 = vmul.f32 %v2806, %v2806
    %v2809 = vmul.f32 %v2808, -0.001358992
    %v2810 = vadd.f32 %v2809, 0.041655596
    %v2811 = vmul.f32 %v2808, %v2810
    %v2812 = vadd.f32 %v2811, -0.4999988
    %v2813 = vmul.f32 %v2808, %v2812
    %v2814 = vadd.f32 1.0, %v2813
    %v2815 = vmul.f32 %v2806, %v2806
    %v2816 = vmul.f32 %v2815, -0.00019511016
    %v2817 = vadd.f32 %v2816, 0.008332121
    %v2818 = vmul.f32 %v2815, %v2817
    %v2819 = vadd.f32 %v2818, -0.16666654
    %v2820 = vmul.f32 %v2815, %v2819
    %v2821 = vadd.f32 %v2820, 1.0
    %v2822 = vmul.f32 %v2821, %v2806
    %vm2823 = vweird.f32 %v185
    %v2824 = vand.u32 %v2807, 3
    %vm2825 = vcmp.lt.s32.totalorder %v2824, 2
    %vm2826 = vcmp.eq.s32.totalorder %v2824, 0
    %v2827 = vxor.u32 %v2822, 2147483648
    %v2828 = vsel %vm2826, %v2814, %v2827
    %vm2829 = vcmp.eq.s32.totalorder %v2824, 2
    %v2830 = vxor.u32 %v2814, 2147483648
    %v2831 = vsel %vm2829, %v2830, %v2822
    %v2832 = vsel %vm2825, %v2828, %v2831
    %v2833 = vsel %vm2823, nan, %v2832
    %v2834 = vand.u32 2147483647, %v188
    %vm2835 = vcmp.le.f32.partialorder %v2834, 0.7853982
    %vm2836 = vcmp.lt.s32.totalorder %v188, 0
    %v2837 = vand.u32 %v188, 2139095040
    %v2838 = vshrl.u32 %v2837, 23
    %v2839 = vsub.s32 %v2838, 127
    %v2840 = vand.u32 2147483647, %v188
    %v2841 = vand.u32 %v2840, 8388607
    %v2842 = vor.u32 %v2841, 8388608
    %v2843 = vsub.s32 0, %v2842
    %v2844 = vadd.s32 %v2839, 1
    %vm2845 = vcmp.gt.s32.totalorder %v2844, 0
    %v2846 = vsel %vm2845, %v2844, 0
    %v2847 = vshrl.u32 %v2846, 5
    %v2848 = vand.u32 %v2846, 31
    %v2849 = vsub.s32 32, %v2848
    %v2850 = vshrl.u32 683565275, %v2849
    %v2851 = vshll.u32 683565275, %v2848
    %v2852 = vshrl.u32 2475754826, %v2849
    %v2853 = vor.u32 %v2851, %v2852
    %v2854 = vshll.u32 2475754826, %v2848
    %v2855 = vshrl.u32 2131351028, %v2849
    %v2856 = vor.u32 %v2854, %v2855
    %v2857 = vshll.u32 2131351028, %v2848
    %v2858 = vshrl.u32 2102212464, %v2849
    %v2859 = vor.u32 %v2857, %v2858
    %v2860 = vshll.u32 2102212464, %v2848
    %v2861 = vshrl.u32 920167782, %v2849
    %v2862 = vor.u32 %v2860, %v2861
    %v2863 = vshll.u32 920167782, %v2848
    %v2864 = vshrl.u32 1326507024, %v2849
    %v2865 = vor.u32 %v2863, %v2864
    %vm2866 = vcmp.lt.s32.totalorder %v2847, 1
    %vm2867 = vcmp.lt.s32.totalorder %v2847, 2
    %vm2868 = vcmp.lt.s32.totalorder %v2847, 3
    %vm2869 = vcmp.lt.s32.totalorder %v2847, 4
    %v2870 = vsel %vm2866, %v2850, %v2853
    %v2871 = vsel %vm2869, %v2859, 2102212464
    %v2872 = vsel %vm2868, %v2856, %v2871
    %v2873 = vsel %vm2867, %v2870, %v2872
    %v2874 = vsel %vm2866, %v2853, %v2856
    %v2875 = vsel %vm2869, %v2862, 920167782
    %v2876 = vsel %vm2868, %v2859, %v2875
    %v2877 = vsel %vm2867, %v2874, %v2876
    %v2878 = vsel %vm2866, %v2856, %v2859
    %v2879 = vsel %vm2869, %v2865, 1326507024
    %v2880 = vsel %vm2868, %v2862, %v2879
    %v2881 = vsel %vm2867, %v2878, %v2880
    %v2882 = vshll.u32 %v2842, 8
    %v2883 = vand.u32 %v2882, 65535
    %v2884 = vshrl.u32 %v2882, 16
    %v2885 = vand.u32 %v2881, 65535
    %v2886 = vshrl.u32 %v2881, 16
    %v2887 = vmul.u32 %v2883, %v2885
    %v2888 = vmul.u32 %v2883, %v2886
    %v2889 = vmul.u32 %v2884, %v2885
    %v2890 = vmul.u32 %v2884, %v2886
    %v2891 = vshll.u32 %v2888, 16
    %v2892 = vshrl.u32 %v2888, 16
    %v2893 = vshll.u32 %v2889, 16
    %v2894 = vshrl.u32 %v2889, 16
    %vm2895 = vc.u32 %v2887, %v2891
    %v2896 = vsel %vm2895, 1, 0
    %v2897 = vadd.s32 %v2887, %v2891
    %v2898 = vadd.s32 %v2890, %v2896
    %vm2899 = vc.u32 %v2897, %v2893
    %v2900 = vsel %vm2899, 1, 0
    %v2901 = vadd.s32 %v2897, %v2893
    %v2902 = vadd.s32 %v2898, %v2900
    %v2903 = vadd.s32 %v2902, %v2892
    %v2904 = vadd.s32 %v2903, %v2894
    %v2905 = vand.u32 %v2882, 65535
    %v2906 = vshrl.u32 %v2882, 16
    %v2907 = vand.u32 %v2877, 65535
    %v2908 = vshrl.u32 %v2877, 16
    %v2909 = vmul.u32 %v2905, %v2907
    %v2910 = vmul.u32 %v2905, %v2908
    %v2911 = vmul.u32 %v2906, %v2907
    %v2912 = vmul.u32 %v2906, %v2908
    %v2913 = vshll.u32 %v2910, 16
    %v2914 = vshrl.u32 %v2910, 16
    %v2915 = vshll.u32 %v2911, 16
    %v2916 = vshrl.u32 %v2911, 16
    %vm2917 = vc.u32 %v2909, %v2913
    %v2918 = vsel %vm2917, 1, 0
    %v2919 = vadd.s32 %v2909, %v2913
    %v2920 = vadd.s32 %v2912, %v2918
    %vm2921 = vc.u32 %v2919, %v2915
    %v2922 = vsel %vm2921, 1, 0
    %v2923 = vadd.s32 %v2919, %v2915
    %v2924 = vadd.s32 %v2920, %v2922
    %v2925 = vadd.s32 %v2924, %v2914
    %v2926 = vadd.s32 %v2925, %v2916
    %v2927 = vmul.u32 %v2882, %v2873
    %v2928 = vadd.s32 %v2904, %v2923
    %vm2929 = vc.u32 %v2904, %v2923
    %v2930 = vadd.s32 %v2926, 1
    %v2931 = vsel %vm2929, %v2930, %v2926
    %v2932 = vadd.s32 %v2927, %v2931
    %v2933 = vadd.s32 %v2932, 536870912
    %v2934 = vshrl.u32 %v2933, 30
    %v2935 = vshll.u32 %v2934, 30
    %v2936 = vsub.s32 %v2932, %v2935
    %vm2937 = vcmp.lt.s32.totalorder %v2936, 0
    %v2938 = vsub.s32 0, %v2936
    %v2939 = vsel %vm2937, %v2938, %v2936
    %v2940 = vclz %v2939
    %v2941 = vsub.s32 %v2940, 2
    %vm2942 = vcmp.gt.s32.totalorder 0, %v2941
    %v2943 = vsel %vm2942, 0, %v2941
    %v2944 = vsub.s32 32, %v2943
    %v2945 = vshll.u32 %v2936, %v2943
    %v2946 = vshrl.u32 %v2928, %v2944
    %v2947 = vor.u32 %v2945, %v2946
    %v2948 = vsub.s32 4294967266, %v2943
    %v2949 = vadd.s32 %v2948, 127
    %v2950 = vshll.u32 %v2949, 23
    %v2951 = vor.u32 4788187, %v2950
    %v2952 = vand.u32 2147483647, %v2951
    %v2954 = vcvt.s32.f32 %v2947
    %v2955 = vmul.f32 %v2954, %v2952
    %v2956 = vxor.u32 %v2955, 2147483648
    %v2957 = vsel %vm2836, %v2956, %v2955
    %v2958 = vsub.s32 4, %v2934
    %v2959 = vsel %vm2836, %v2958, %v2934
    %v2960 = vsel %vm2835, %v188, %v2957
    %v2961 = vsel %vm2835, 0, %v2959
    %v2962 = vmul.f32 %v2960, %v2960
    %v2963 = vmul.f32 %v2962, -0.001358992
    %v2964 = vadd.f32 %v2963, 0.041655596
    %v2965 = vmul.f32 %v2962, %v2964
    %v2966 = vadd.f32 %v2965, -0.4999988
    %v2967 = vmul.f32 %v2962, %v2966
    %v2968 = vadd.f32 1.0, %v2967
    %v2969 = vmul.f32 %v2960, %v2960
    %v2970 = vmul.f32 %v2969, -0.00019511016
    %v2971 = vadd.f32 %v2970, 0.008332121
    %v2972 = vmul.f32 %v2969, %v2971
    %v2973 = vadd.f32 %v2972, -0.16666654
    %v2974 = vmul.f32 %v2969, %v2973
    %v2975 = vadd.f32 %v2974, 1.0
    %v2976 = vmul.f32 %v2975, %v2960
    %vm2977 = vweird.f32 %v188
    %v2978 = vand.u32 %v2961, 3
    %vm2979 = vcmp.lt.s32.totalorder %v2978, 2
    %vm2980 = vcmp.eq.s32.totalorder %v2978, 0
    %v2981 = vxor.u32 %v2976, 2147483648
    %v2982 = vsel %vm2980, %v2968, %v2981
    %vm2983 = vcmp.eq.s32.totalorder %v2978, 2
    %v2984 = vxor.u32 %v2968, 2147483648
    %v2985 = vsel %vm2983, %v2984, %v2976
    %v2986 = vsel %vm2979, %v2982, %v2985
    %v2987 = vsel %vm2977, nan, %v2986
    %v2988 = vand.u32 2147483647, %v191
    %vm2989 = vcmp.le.f32.partialorder %v2988, 0.7853982
    %vm2990 = vcmp.lt.s32.totalorder %v191, 0
    %v2991 = vand.u32 %v191, 2139095040
    %v2992 = vshrl.u32 %v2991, 23
    %v2993 = vsub.s32 %v2992, 127
    %v2994 = vand.u32 2147483647, %v191
    %v2995 = vand.u32 %v2994, 8388607
    %v2996 = vor.u32 %v2995, 8388608
    %v2997 = vsub.s32 0, %v2996
    %v2998 = vadd.s32 %v2993, 1
    %vm2999 = vcmp.gt.s32.totalorder %v2998, 0
    %v3000 = vsel %vm2999, %v2998, 0
    %v3001 = vshrl.u32 %v3000, 5
    %v3002 = vand.u32 %v3000, 31
    %v3003 = vsub.s32 32, %v3002
    %v3004 = vshrl.u32 683565275, %v3003
    %v3005 = vshll.u32 683565275, %v3002
    %v3006 = vshrl.u32 2475754826, %v3003
    %v3007 = vor.u32 %v3005, %v3006
    %v3008 = vshll.u32 2475754826, %v3002
    %v3009 = vshrl.u32 2131351028, %v3003
    %v3010 = vor.u32 %v3008, %v3009
    %v3011 = vshll.u32 2131351028, %v3002
    %v3012 = vshrl.u32 2102212464, %v3003
    %v3013 = vor.u32 %v3011, %v3012
    %v3014 = vshll.u32 2102212464, %v3002
    %v3015 = vshrl.u32 920167782, %v3003
    %v3016 = vor.u32 %v3014, %v3015
    %v3017 = vshll.u32 920167782, %v3002
    %v3018 = vshrl.u32 1326507024, %v3003
    %v3019 = vor.u32 %v3017, %v3018
    %vm3020 = vcmp.lt.s32.totalorder %v3001, 1
    %vm3021 = vcmp.lt.s32.totalorder %v3001, 2
    %vm3022 = vcmp.lt.s32.totalorder %v3001, 3
    %vm3023 = vcmp.lt.s32.totalorder %v3001, 4
    %v3024 = vsel %vm3020, %v3004, %v3007
    %v3025 = vsel %vm3023, %v3013, 2102212464
    %v3026 = vsel %vm3022, %v3010, %v3025
    %v3027 = vsel %vm3021, %v3024, %v3026
    %v3028 = vsel %vm3020, %v3007, %v3010
    %v3029 = vsel %vm3023, %v3016, 920167782
    %v3030 = vsel %vm3022, %v3013, %v3029
    %v3031 = vsel %vm3021, %v3028, %v3030
    %v3032 = vsel %vm3020, %v3010, %v3013
    %v3033 = vsel %vm3023, %v3019, 1326507024
    %v3034 = vsel %vm3022, %v3016, %v3033
    %v3035 = vsel %vm3021, %v3032, %v3034
    %v3036 = vshll.u32 %v2996, 8
    %v3037 = vand.u32 %v3036, 65535
    %v3038 = vshrl.u32 %v3036, 16
    %v3039 = vand.u32 %v3035, 65535
    %v3040 = vshrl.u32 %v3035, 16
    %v3041 = vmul.u32 %v3037, %v3039
    %v3042 = vmul.u32 %v3037, %v3040
    %v3043 = vmul.u32 %v3038, %v3039
    %v3044 = vmul.u32 %v3038, %v3040
    %v3045 = vshll.u32 %v3042, 16
    %v3046 = vshrl.u32 %v3042, 16
    %v3047 = vshll.u32 %v3043, 16
    %v3048 = vshrl.u32 %v3043, 16
    %vm3049 = vc.u32 %v3041, %v3045
    %v3050 = vsel %vm3049, 1, 0
    %v3051 = vadd.s32 %v3041, %v3045
    %v3052 = vadd.s32 %v3044, %v3050
    %vm3053 = vc.u32 %v3051, %v3047
    %v3054 = vsel %vm3053, 1, 0
    %v3055 = vadd.s32 %v3051, %v3047
    %v3056 = vadd.s32 %v3052, %v3054
    %v3057 = vadd.s32 %v3056, %v3046
    %v3058 = vadd.s32 %v3057, %v3048
    %v3059 = vand.u32 %v3036, 65535
    %v3060 = vshrl.u32 %v3036, 16
    %v3061 = vand.u32 %v3031, 65535
    %v3062 = vshrl.u32 %v3031, 16
    %v3063 = vmul.u32 %v3059, %v3061
    %v3064 = vmul.u32 %v3059, %v3062
    %v3065 = vmul.u32 %v3060, %v3061
    %v3066 = vmul.u32 %v3060, %v3062
    %v3067 = vshll.u32 %v3064, 16
    %v3068 = vshrl.u32 %v3064, 16
    %v3069 = vshll.u32 %v3065, 16
    %v3070 = vshrl.u32 %v3065, 16
    %vm3071 = vc.u32 %v3063, %v3067
    %v3072 = vsel %vm3071, 1, 0
    %v3073 = vadd.s32 %v3063, %v3067
    %v3074 = vadd.s32 %v3066, %v3072
    %vm3075 = vc.u32 %v3073, %v3069
    %v3076 = vsel %vm3075, 1, 0
    %v3077 = vadd.s32 %v3073, %v3069
    %v3078 = vadd.s32 %v3074, %v3076
    %v3079 = vadd.s32 %v3078, %v3068
    %v3080 = vadd.s32 %v3079, %v3070
    %v3081 = vmul.u32 %v3036, %v3027
    %v3082 = vadd.s32 %v3058, %v3077
    %vm3083 = vc.u32 %v3058, %v3077
    %v3084 = vadd.s32 %v3080, 1
    %v3085 = vsel %vm3083, %v3084, %v3080
    %v3086 = vadd.s32 %v3081, %v3085
    %v3087 = vadd.s32 %v3086, 536870912
    %v3088 = vshrl.u32 %v3087, 30
    %v3089 = vshll.u32 %v3088, 30
    %v3090 = vsub.s32 %v3086, %v3089
    %vm3091 = vcmp.lt.s32.totalorder %v3090, 0
    %v3092 = vsub.s32 0, %v3090
    %v3093 = vsel %vm3091, %v3092, %v3090
    %v3094 = vclz %v3093
    %v3095 = vsub.s32 %v3094, 2
    %vm3096 = vcmp.gt.s32.totalorder 0, %v3095
    %v3097 = vsel %vm3096, 0, %v3095
    %v3098 = vsub.s32 32, %v3097
    %v3099 = vshll.u32 %v3090, %v3097
    %v3100 = vshrl.u32 %v3082, %v3098
    %v3101 = vor.u32 %v3099, %v3100
    %v3102 = vsub.s32 4294967266, %v3097
    %v3103 = vadd.s32 %v3102, 127
    %v3104 = vshll.u32 %v3103, 23
    %v3105 = vor.u32 4788187, %v3104
    %v3106 = vand.u32 2147483647, %v3105
    %v3108 = vcvt.s32.f32 %v3101
    %v3109 = vmul.f32 %v3108, %v3106
    %v3110 = vxor.u32 %v3109, 2147483648
    %v3111 = vsel %vm2990, %v3110, %v3109
    %v3112 = vsub.s32 4, %v3088
    %v3113 = vsel %vm2990, %v3112, %v3088
    %v3114 = vsel %vm2989, %v191, %v3111
    %v3115 = vsel %vm2989, 0, %v3113
    %v3116 = vmul.f32 %v3114, %v3114
    %v3117 = vmul.f32 %v3116, -0.001358992
    %v3118 = vadd.f32 %v3117, 0.041655596
    %v3119 = vmul.f32 %v3116, %v3118
    %v3120 = vadd.f32 %v3119, -0.4999988
    %v3121 = vmul.f32 %v3116, %v3120
    %v3122 = vadd.f32 1.0, %v3121
    %v3123 = vmul.f32 %v3114, %v3114
    %v3124 = vmul.f32 %v3123, -0.00019511016
    %v3125 = vadd.f32 %v3124, 0.008332121
    %v3126 = vmul.f32 %v3123, %v3125
    %v3127 = vadd.f32 %v3126, -0.16666654
    %v3128 = vmul.f32 %v3123, %v3127
    %v3129 = vadd.f32 %v3128, 1.0
    %v3130 = vmul.f32 %v3129, %v3114
    %vm3131 = vweird.f32 %v191
    %v3132 = vand.u32 %v3115, 3
    %vm3133 = vcmp.lt.s32.totalorder %v3132, 2
    %vm3134 = vcmp.eq.s32.totalorder %v3132, 0
    %v3135 = vxor.u32 %v3130, 2147483648
    %v3136 = vsel %vm3134, %v3122, %v3135
    %vm3137 = vcmp.eq.s32.totalorder %v3132, 2
    %v3138 = vxor.u32 %v3122, 2147483648
    %v3139 = vsel %vm3137, %v3138, %v3130
    %v3140 = vsel %vm3133, %v3136, %v3139
    %v3141 = vsel %vm3131, nan, %v3140
    %v3142 = vand.u32 2147483647, %v194
    %vm3143 = vcmp.le.f32.partialorder %v3142, 0.7853982
    %vm3144 = vcmp.lt.s32.totalorder %v194, 0
    %v3145 = vand.u32 %v194, 2139095040
    %v3146 = vshrl.u32 %v3145, 23
    %v3147 = vsub.s32 %v3146, 127
    %v3148 = vand.u32 2147483647, %v194
    %v3149 = vand.u32 %v3148, 8388607
    %v3150 = vor.u32 %v3149, 8388608
    %v3151 = vsub.s32 0, %v3150
    %v3152 = vadd.s32 %v3147, 1
    %vm3153 = vcmp.gt.s32.totalorder %v3152, 0
    %v3154 = vsel %vm3153, %v3152, 0
    %v3155 = vshrl.u32 %v3154, 5
    %v3156 = vand.u32 %v3154, 31
    %v3157 = vsub.s32 32, %v3156
    %v3158 = vshrl.u32 683565275, %v3157
    %v3159 = vshll.u32 683565275, %v3156
    %v3160 = vshrl.u32 2475754826, %v3157
    %v3161 = vor.u32 %v3159, %v3160
    %v3162 = vshll.u32 2475754826, %v3156
    %v3163 = vshrl.u32 2131351028, %v3157
    %v3164 = vor.u32 %v3162, %v3163
    %v3165 = vshll.u32 2131351028, %v3156
    %v3166 = vshrl.u32 2102212464, %v3157
    %v3167 = vor.u32 %v3165, %v3166
    %v3168 = vshll.u32 2102212464, %v3156
    %v3169 = vshrl.u32 920167782, %v3157
    %v3170 = vor.u32 %v3168, %v3169
    %v3171 = vshll.u32 920167782, %v3156
    %v3172 = vshrl.u32 1326507024, %v3157
    %v3173 = vor.u32 %v3171, %v3172
    %vm3174 = vcmp.lt.s32.totalorder %v3155, 1
    %vm3175 = vcmp.lt.s32.totalorder %v3155, 2
    %vm3176 = vcmp.lt.s32.totalorder %v3155, 3
    %vm3177 = vcmp.lt.s32.totalorder %v3155, 4
    %v3178 = vsel %vm3174, %v3158, %v3161
    %v3179 = vsel %vm3177, %v3167, 2102212464
    %v3180 = vsel %vm3176, %v3164, %v3179
    %v3181 = vsel %vm3175, %v3178, %v3180
    %v3182 = vsel %vm3174, %v3161, %v3164
    %v3183 = vsel %vm3177, %v3170, 920167782
    %v3184 = vsel %vm3176, %v3167, %v3183
    %v3185 = vsel %vm3175, %v3182, %v3184
    %v3186 = vsel %vm3174, %v3164, %v3167
    %v3187 = vsel %vm3177, %v3173, 1326507024
    %v3188 = vsel %vm3176, %v3170, %v3187
    %v3189 = vsel %vm3175, %v3186, %v3188
    %v3190 = vshll.u32 %v3150, 8
    %v3191 = vand.u32 %v3190, 65535
    %v3192 = vshrl.u32 %v3190, 16
    %v3193 = vand.u32 %v3189, 65535
    %v3194 = vshrl.u32 %v3189, 16
    %v3195 = vmul.u32 %v3191, %v3193
    %v3196 = vmul.u32 %v3191, %v3194
    %v3197 = vmul.u32 %v3192, %v3193
    %v3198 = vmul.u32 %v3192, %v3194
    %v3199 = vshll.u32 %v3196, 16
    %v3200 = vshrl.u32 %v3196, 16
    %v3201 = vshll.u32 %v3197, 16
    %v3202 = vshrl.u32 %v3197, 16
    %vm3203 = vc.u32 %v3195, %v3199
    %v3204 = vsel %vm3203, 1, 0
    %v3205 = vadd.s32 %v3195, %v3199
    %v3206 = vadd.s32 %v3198, %v3204
    %vm3207 = vc.u32 %v3205, %v3201
    %v3208 = vsel %vm3207, 1, 0
    %v3209 = vadd.s32 %v3205, %v3201
    %v3210 = vadd.s32 %v3206, %v3208
    %v3211 = vadd.s32 %v3210, %v3200
    %v3212 = vadd.s32 %v3211, %v3202
    %v3213 = vand.u32 %v3190, 65535
    %v3214 = vshrl.u32 %v3190, 16
    %v3215 = vand.u32 %v3185, 65535
    %v3216 = vshrl.u32 %v3185, 16
    %v3217 = vmul.u32 %v3213, %v3215
    %v3218 = vmul.u32 %v3213, %v3216
    %v3219 = vmul.u32 %v3214, %v3215
    %v3220 = vmul.u32 %v3214, %v3216
    %v3221 = vshll.u32 %v3218, 16
    %v3222 = vshrl.u32 %v3218, 16
    %v3223 = vshll.u32 %v3219, 16
    %v3224 = vshrl.u32 %v3219, 16
    %vm3225 = vc.u32 %v3217, %v3221
    %v3226 = vsel %vm3225, 1, 0
    %v3227 = vadd.s32 %v3217, %v3221
    %v3228 = vadd.s32 %v3220, %v3226
    %vm3229 = vc.u32 %v3227, %v3223
    %v3230 = vsel %vm3229, 1, 0
    %v3231 = vadd.s32 %v3227, %v3223
    %v3232 = vadd.s32 %v3228, %v3230
    %v3233 = vadd.s32 %v3232, %v3222
    %v3234 = vadd.s32 %v3233, %v3224
    %v3235 = vmul.u32 %v3190, %v3181
    %v3236 = vadd.s32 %v3212, %v3231
    %vm3237 = vc.u32 %v3212, %v3231
    %v3238 = vadd.s32 %v3234, 1
    %v3239 = vsel %vm3237, %v3238, %v3234
    %v3240 = vadd.s32 %v3235, %v3239
    %v3241 = vadd.s32 %v3240, 536870912
    %v3242 = vshrl.u32 %v3241, 30
    %v3243 = vshll.u32 %v3242, 30
    %v3244 = vsub.s32 %v3240, %v3243
    %vm3245 = vcmp.lt.s32.totalorder %v3244, 0
    %v3246 = vsub.s32 0, %v3244
    %v3247 = vsel %vm3245, %v3246, %v3244
    %v3248 = vclz %v3247
    %v3249 = vsub.s32 %v3248, 2
    %vm3250 = vcmp.gt.s32.totalorder 0, %v3249
    %v3251 = vsel %vm3250, 0, %v3249
    %v3252 = vsub.s32 32, %v3251
    %v3253 = vshll.u32 %v3244, %v3251
    %v3254 = vshrl.u32 %v3236, %v3252
    %v3255 = vor.u32 %v3253, %v3254
    %v3256 = vsub.s32 4294967266, %v3251
    %v3257 = vadd.s32 %v3256, 127
    %v3258 = vshll.u32 %v3257, 23
    %v3259 = vor.u32 4788187, %v3258
    %v3260 = vand.u32 2147483647, %v3259
    %v3262 = vcvt.s32.f32 %v3255
    %v3263 = vmul.f32 %v3262, %v3260
    %v3264 = vxor.u32 %v3263, 2147483648
    %v3265 = vsel %vm3144, %v3264, %v3263
    %v3266 = vsub.s32 4, %v3242
    %v3267 = vsel %vm3144, %v3266, %v3242
    %v3268 = vsel %vm3143, %v194, %v3265
    %v3269 = vsel %vm3143, 0, %v3267
    %v3270 = vmul.f32 %v3268, %v3268
    %v3271 = vmul.f32 %v3270, -0.001358992
    %v3272 = vadd.f32 %v3271, 0.041655596
    %v3273 = vmul.f32 %v3270, %v3272
    %v3274 = vadd.f32 %v3273, -0.4999988
    %v3275 = vmul.f32 %v3270, %v3274
    %v3276 = vadd.f32 1.0, %v3275
    %v3277 = vmul.f32 %v3268, %v3268
    %v3278 = vmul.f32 %v3277, -0.00019511016
    %v3279 = vadd.f32 %v3278, 0.008332121
    %v3280 = vmul.f32 %v3277, %v3279
    %v3281 = vadd.f32 %v3280, -0.16666654
    %v3282 = vmul.f32 %v3277, %v3281
    %v3283 = vadd.f32 %v3282, 1.0
    %v3284 = vmul.f32 %v3283, %v3268
    %vm3285 = vweird.f32 %v194
    %v3286 = vand.u32 %v3269, 3
    %vm3287 = vcmp.lt.s32.totalorder %v3286, 2
    %vm3288 = vcmp.eq.s32.totalorder %v3286, 0
    %v3289 = vxor.u32 %v3284, 2147483648
    %v3290 = vsel %vm3288, %v3276, %v3289
    %vm3291 = vcmp.eq.s32.totalorder %v3286, 2
    %v3292 = vxor.u32 %v3276, 2147483648
    %v3293 = vsel %vm3291, %v3292, %v3284
    %v3294 = vsel %vm3287, %v3290, %v3293
    %v3295 = vsel %vm3285, nan, %v3294
    %v3296 = vand.u32 2147483647, %v197
    %vm3297 = vcmp.le.f32.partialorder %v3296, 0.7853982
    %vm3298 = vcmp.lt.s32.totalorder %v197, 0
    %v3299 = vand.u32 %v197, 2139095040
    %v3300 = vshrl.u32 %v3299, 23
    %v3301 = vsub.s32 %v3300, 127
    %v3302 = vand.u32 2147483647, %v197
    %v3303 = vand.u32 %v3302, 8388607
    %v3304 = vor.u32 %v3303, 8388608
    %v3305 = vsub.s32 0, %v3304
    %v3306 = vadd.s32 %v3301, 1
    %vm3307 = vcmp.gt.s32.totalorder %v3306, 0
    %v3308 = vsel %vm3307, %v3306, 0
    %v3309 = vshrl.u32 %v3308, 5
    %v3310 = vand.u32 %v3308, 31
    %v3311 = vsub.s32 32, %v3310
    %v3312 = vshrl.u32 683565275, %v3311
    %v3313 = vshll.u32 683565275, %v3310
    %v3314 = vshrl.u32 2475754826, %v3311
    %v3315 = vor.u32 %v3313, %v3314
    %v3316 = vshll.u32 2475754826, %v3310
    %v3317 = vshrl.u32 2131351028, %v3311
    %v3318 = vor.u32 %v3316, %v3317
    %v3319 = vshll.u32 2131351028, %v3310
    %v3320 = vshrl.u32 2102212464, %v3311
    %v3321 = vor.u32 %v3319, %v3320
    %v3322 = vshll.u32 2102212464, %v3310
    %v3323 = vshrl.u32 920167782, %v3311
    %v3324 = vor.u32 %v3322, %v3323
    %v3325 = vshll.u32 920167782, %v3310
    %v3326 = vshrl.u32 1326507024, %v3311
    %v3327 = vor.u32 %v3325, %v3326
    %vm3328 = vcmp.lt.s32.totalorder %v3309, 1
    %vm3329 = vcmp.lt.s32.totalorder %v3309, 2
    %vm3330 = vcmp.lt.s32.totalorder %v3309, 3
    %vm3331 = vcmp.lt.s32.totalorder %v3309, 4
    %v3332 = vsel %vm3328, %v3312, %v3315
    %v3333 = vsel %vm3331, %v3321, 2102212464
    %v3334 = vsel %vm3330, %v3318, %v3333
    %v3335 = vsel %vm3329, %v3332, %v3334
    %v3336 = vsel %vm3328, %v3315, %v3318
    %v3337 = vsel %vm3331, %v3324, 920167782
    %v3338 = vsel %vm3330, %v3321, %v3337
    %v3339 = vsel %vm3329, %v3336, %v3338
    %v3340 = vsel %vm3328, %v3318, %v3321
    %v3341 = vsel %vm3331, %v3327, 1326507024
    %v3342 = vsel %vm3330, %v3324, %v3341
    %v3343 = vsel %vm3329, %v3340, %v3342
    %v3344 = vshll.u32 %v3304, 8
    %v3345 = vand.u32 %v3344, 65535
    %v3346 = vshrl.u32 %v3344, 16
    %v3347 = vand.u32 %v3343, 65535
    %v3348 = vshrl.u32 %v3343, 16
    %v3349 = vmul.u32 %v3345, %v3347
    %v3350 = vmul.u32 %v3345, %v3348
    %v3351 = vmul.u32 %v3346, %v3347
    %v3352 = vmul.u32 %v3346, %v3348
    %v3353 = vshll.u32 %v3350, 16
    %v3354 = vshrl.u32 %v3350, 16
    %v3355 = vshll.u32 %v3351, 16
    %v3356 = vshrl.u32 %v3351, 16
    %vm3357 = vc.u32 %v3349, %v3353
    %v3358 = vsel %vm3357, 1, 0
    %v3359 = vadd.s32 %v3349, %v3353
    %v3360 = vadd.s32 %v3352, %v3358
    %vm3361 = vc.u32 %v3359, %v3355
    %v3362 = vsel %vm3361, 1, 0
    %v3363 = vadd.s32 %v3359, %v3355
    %v3364 = vadd.s32 %v3360, %v3362
    %v3365 = vadd.s32 %v3364, %v3354
    %v3366 = vadd.s32 %v3365, %v3356
    %v3367 = vand.u32 %v3344, 65535
    %v3368 = vshrl.u32 %v3344, 16
    %v3369 = vand.u32 %v3339, 65535
    %v3370 = vshrl.u32 %v3339, 16
    %v3371 = vmul.u32 %v3367, %v3369
    %v3372 = vmul.u32 %v3367, %v3370
    %v3373 = vmul.u32 %v3368, %v3369
    %v3374 = vmul.u32 %v3368, %v3370
    %v3375 = vshll.u32 %v3372, 16
    %v3376 = vshrl.u32 %v3372, 16
    %v3377 = vshll.u32 %v3373, 16
    %v3378 = vshrl.u32 %v3373, 16
    %vm3379 = vc.u32 %v3371, %v3375
    %v3380 = vsel %vm3379, 1, 0
    %v3381 = vadd.s32 %v3371, %v3375
    %v3382 = vadd.s32 %v3374, %v3380
    %vm3383 = vc.u32 %v3381, %v3377
    %v3384 = vsel %vm3383, 1, 0
    %v3385 = vadd.s32 %v3381, %v3377
    %v3386 = vadd.s32 %v3382, %v3384
    %v3387 = vadd.s32 %v3386, %v3376
    %v3388 = vadd.s32 %v3387, %v3378
    %v3389 = vmul.u32 %v3344, %v3335
    %v3390 = vadd.s32 %v3366, %v3385
    %vm3391 = vc.u32 %v3366, %v3385
    %v3392 = vadd.s32 %v3388, 1
    %v3393 = vsel %vm3391, %v3392, %v3388
    %v3394 = vadd.s32 %v3389, %v3393
    %v3395 = vadd.s32 %v3394, 536870912
    %v3396 = vshrl.u32 %v3395, 30
    %v3397 = vshll.u32 %v3396, 30
    %v3398 = vsub.s32 %v3394, %v3397
    %vm3399 = vcmp.lt.s32.totalorder %v3398, 0
    %v3400 = vsub.s32 0, %v3398
    %v3401 = vsel %vm3399, %v3400, %v3398
    %v3402 = vclz %v3401
    %v3403 = vsub.s32 %v3402, 2
    %vm3404 = vcmp.gt.s32.totalorder 0, %v3403
    %v3405 = vsel %vm3404, 0, %v3403
    %v3406 = vsub.s32 32, %v3405
    %v3407 = vshll.u32 %v3398, %v3405
    %v3408 = vshrl.u32 %v3390, %v3406
    %v3409 = vor.u32 %v3407, %v3408
    %v3410 = vsub.s32 4294967266, %v3405
    %v3411 = vadd.s32 %v3410, 127
    %v3412 = vshll.u32 %v3411, 23
    %v3413 = vor.u32 4788187, %v3412
    %v3414 = vand.u32 2147483647, %v3413
    %v3416 = vcvt.s32.f32 %v3409
    %v3417 = vmul.f32 %v3416, %v3414
    %v3418 = vxor.u32 %v3417, 2147483648
    %v3419 = vsel %vm3298, %v3418, %v3417
    %v3420 = vsub.s32 4, %v3396
    %v3421 = vsel %vm3298, %v3420, %v3396
    %v3422 = vsel %vm3297, %v197, %v3419
    %v3423 = vsel %vm3297, 0, %v3421
    %v3424 = vmul.f32 %v3422, %v3422
    %v3425 = vmul.f32 %v3424, -0.001358992
    %v3426 = vadd.f32 %v3425, 0.041655596
    %v3427 = vmul.f32 %v3424, %v3426
    %v3428 = vadd.f32 %v3427, -0.4999988
    %v3429 = vmul.f32 %v3424, %v3428
    %v3430 = vadd.f32 1.0, %v3429
    %v3431 = vmul.f32 %v3422, %v3422
    %v3432 = vmul.f32 %v3431, -0.00019511016
    %v3433 = vadd.f32 %v3432, 0.008332121
    %v3434 = vmul.f32 %v3431, %v3433
    %v3435 = vadd.f32 %v3434, -0.16666654
    %v3436 = vmul.f32 %v3431, %v3435
    %v3437 = vadd.f32 %v3436, 1.0
    %v3438 = vmul.f32 %v3437, %v3422
    %vm3439 = vweird.f32 %v197
    %v3440 = vand.u32 %v3423, 3
    %vm3441 = vcmp.lt.s32.totalorder %v3440, 2
    %vm3442 = vcmp.eq.s32.totalorder %v3440, 0
    %v3443 = vxor.u32 %v3438, 2147483648
    %v3444 = vsel %vm3442, %v3430, %v3443
    %vm3445 = vcmp.eq.s32.totalorder %v3440, 2
    %v3446 = vxor.u32 %v3430, 2147483648
    %v3447 = vsel %vm3445, %v3446, %v3438
    %v3448 = vsel %vm3441, %v3444, %v3447
    %v3449 = vsel %vm3439, nan, %v3448
    %v3450 = vand.u32 2147483647, %v200
    %vm3451 = vcmp.le.f32.partialorder %v3450, 0.7853982
    %vm3452 = vcmp.lt.s32.totalorder %v200, 0
    %v3453 = vand.u32 %v200, 2139095040
    %v3454 = vshrl.u32 %v3453, 23
    %v3455 = vsub.s32 %v3454, 127
    %v3456 = vand.u32 2147483647, %v200
    %v3457 = vand.u32 %v3456, 8388607
    %v3458 = vor.u32 %v3457, 8388608
    %v3459 = vsub.s32 0, %v3458
    %v3460 = vadd.s32 %v3455, 1
    %vm3461 = vcmp.gt.s32.totalorder %v3460, 0
    %v3462 = vsel %vm3461, %v3460, 0
    %v3463 = vshrl.u32 %v3462, 5
    %v3464 = vand.u32 %v3462, 31
    %v3465 = vsub.s32 32, %v3464
    %v3466 = vshrl.u32 683565275, %v3465
    %v3467 = vshll.u32 683565275, %v3464
    %v3468 = vshrl.u32 2475754826, %v3465
    %v3469 = vor.u32 %v3467, %v3468
    %v3470 = vshll.u32 2475754826, %v3464
    %v3471 = vshrl.u32 2131351028, %v3465
    %v3472 = vor.u32 %v3470, %v3471
    %v3473 = vshll.u32 2131351028, %v3464
    %v3474 = vshrl.u32 2102212464, %v3465
    %v3475 = vor.u32 %v3473, %v3474
    %v3476 = vshll.u32 2102212464, %v3464
    %v3477 = vshrl.u32 920167782, %v3465
    %v3478 = vor.u32 %v3476, %v3477
    %v3479 = vshll.u32 920167782, %v3464
    %v3480 = vshrl.u32 1326507024, %v3465
    %v3481 = vor.u32 %v3479, %v3480
    %vm3482 = vcmp.lt.s32.totalorder %v3463, 1
    %vm3483 = vcmp.lt.s32.totalorder %v3463, 2
    %vm3484 = vcmp.lt.s32.totalorder %v3463, 3
    %vm3485 = vcmp.lt.s32.totalorder %v3463, 4
    %v3486 = vsel %vm3482, %v3466, %v3469
    %v3487 = vsel %vm3485, %v3475, 2102212464
    %v3488 = vsel %vm3484, %v3472, %v3487
    %v3489 = vsel %vm3483, %v3486, %v3488
    %v3490 = vsel %vm3482, %v3469, %v3472
    %v3491 = vsel %vm3485, %v3478, 920167782
    %v3492 = vsel %vm3484, %v3475, %v3491
    %v3493 = vsel %vm3483, %v3490, %v3492
    %v3494 = vsel %vm3482, %v3472, %v3475
    %v3495 = vsel %vm3485, %v3481, 1326507024
    %v3496 = vsel %vm3484, %v3478, %v3495
    %v3497 = vsel %vm3483, %v3494, %v3496
    %v3498 = vshll.u32 %v3458, 8
    %v3499 = vand.u32 %v3498, 65535
    %v3500 = vshrl.u32 %v3498, 16
    %v3501 = vand.u32 %v3497, 65535
    %v3502 = vshrl.u32 %v3497, 16
    %v3503 = vmul.u32 %v3499, %v3501
    %v3504 = vmul.u32 %v3499, %v3502
    %v3505 = vmul.u32 %v3500, %v3501
    %v3506 = vmul.u32 %v3500, %v3502
    %v3507 = vshll.u32 %v3504, 16
    %v3508 = vshrl.u32 %v3504, 16
    %v3509 = vshll.u32 %v3505, 16
    %v3510 = vshrl.u32 %v3505, 16
    %vm3511 = vc.u32 %v3503, %v3507
    %v3512 = vsel %vm3511, 1, 0
    %v3513 = vadd.s32 %v3503, %v3507
    %v3514 = vadd.s32 %v3506, %v3512
    %vm3515 = vc.u32 %v3513, %v3509
    %v3516 = vsel %vm3515, 1, 0
    %v3517 = vadd.s32 %v3513, %v3509
    %v3518 = vadd.s32 %v3514, %v3516
    %v3519 = vadd.s32 %v3518, %v3508
    %v3520 = vadd.s32 %v3519, %v3510
    %v3521 = vand.u32 %v3498, 65535
    %v3522 = vshrl.u32 %v3498, 16
    %v3523 = vand.u32 %v3493, 65535
    %v3524 = vshrl.u32 %v3493, 16
    %v3525 = vmul.u32 %v3521, %v3523
    %v3526 = vmul.u32 %v3521, %v3524
    %v3527 = vmul.u32 %v3522, %v3523
    %v3528 = vmul.u32 %v3522, %v3524
    %v3529 = vshll.u32 %v3526, 16
    %v3530 = vshrl.u32 %v3526, 16
    %v3531 = vshll.u32 %v3527, 16
    %v3532 = vshrl.u32 %v3527, 16
    %vm3533 = vc.u32 %v3525, %v3529
    %v3534 = vsel %vm3533, 1, 0
    %v3535 = vadd.s32 %v3525, %v3529
    %v3536 = vadd.s32 %v3528, %v3534
    %vm3537 = vc.u32 %v3535, %v3531
    %v3538 = vsel %vm3537, 1, 0
    %v3539 = vadd.s32 %v3535, %v3531
    %v3540 = vadd.s32 %v3536, %v3538
    %v3541 = vadd.s32 %v3540, %v3530
    %v3542 = vadd.s32 %v3541, %v3532
    %v3543 = vmul.u32 %v3498, %v3489
    %v3544 = vadd.s32 %v3520, %v3539
    %vm3545 = vc.u32 %v3520, %v3539
    %v3546 = vadd.s32 %v3542, 1
    %v3547 = vsel %vm3545, %v3546, %v3542
    %v3548 = vadd.s32 %v3543, %v3547
    %v3549 = vadd.s32 %v3548, 536870912
    %v3550 = vshrl.u32 %v3549, 30
    %v3551 = vshll.u32 %v3550, 30
    %v3552 = vsub.s32 %v3548, %v3551
    %vm3553 = vcmp.lt.s32.totalorder %v3552, 0
    %v3554 = vsub.s32 0, %v3552
    %v3555 = vsel %vm3553, %v3554, %v3552
    %v3556 = vclz %v3555
    %v3557 = vsub.s32 %v3556, 2
    %vm3558 = vcmp.gt.s32.totalorder 0, %v3557
    %v3559 = vsel %vm3558, 0, %v3557
    %v3560 = vsub.s32 32, %v3559
    %v3561 = vshll.u32 %v3552, %v3559
    %v3562 = vshrl.u32 %v3544, %v3560
    %v3563 = vor.u32 %v3561, %v3562
    %v3564 = vsub.s32 4294967266, %v3559
    %v3565 = vadd.s32 %v3564, 127
    %v3566 = vshll.u32 %v3565, 23
    %v3567 = vor.u32 4788187, %v3566
    %v3568 = vand.u32 2147483647, %v3567
    %v3570 = vcvt.s32.f32 %v3563
    %v3571 = vmul.f32 %v3570, %v3568
    %v3572 = vxor.u32 %v3571, 2147483648
    %v3573 = vsel %vm3452, %v3572, %v3571
    %v3574 = vsub.s32 4, %v3550
    %v3575 = vsel %vm3452, %v3574, %v3550
    %v3576 = vsel %vm3451, %v200, %v3573
    %v3577 = vsel %vm3451, 0, %v3575
    %v3578 = vmul.f32 %v3576, %v3576
    %v3579 = vmul.f32 %v3578, -0.001358992
    %v3580 = vadd.f32 %v3579, 0.041655596
    %v3581 = vmul.f32 %v3578, %v3580
    %v3582 = vadd.f32 %v3581, -0.4999988
    %v3583 = vmul.f32 %v3578, %v3582
    %v3584 = vadd.f32 1.0, %v3583
    %v3585 = vmul.f32 %v3576, %v3576
    %v3586 = vmul.f32 %v3585, -0.00019511016
    %v3587 = vadd.f32 %v3586, 0.008332121
    %v3588 = vmul.f32 %v3585, %v3587
    %v3589 = vadd.f32 %v3588, -0.16666654
    %v3590 = vmul.f32 %v3585, %v3589
    %v3591 = vadd.f32 %v3590, 1.0
    %v3592 = vmul.f32 %v3591, %v3576
    %vm3593 = vweird.f32 %v200
    %v3594 = vand.u32 %v3577, 3
    %vm3595 = vcmp.lt.s32.totalorder %v3594, 2
    %vm3596 = vcmp.eq.s32.totalorder %v3594, 0
    %v3597 = vxor.u32 %v3592, 2147483648
    %v3598 = vsel %vm3596, %v3584, %v3597
    %vm3599 = vcmp.eq.s32.totalorder %v3594, 2
    %v3600 = vxor.u32 %v3584, 2147483648
    %v3601 = vsel %vm3599, %v3600, %v3592
    %v3602 = vsel %vm3595, %v3598, %v3601
    %v3603 = vsel %vm3593, nan, %v3602
    %v3604 = vand.u32 2147483647, %v203
    %vm3605 = vcmp.le.f32.partialorder %v3604, 0.7853982
    %vm3606 = vcmp.lt.s32.totalorder %v203, 0
    %v3607 = vand.u32 %v203, 2139095040
    %v3608 = vshrl.u32 %v3607, 23
    %v3609 = vsub.s32 %v3608, 127
    %v3610 = vand.u32 2147483647, %v203
    %v3611 = vand.u32 %v3610, 8388607
    %v3612 = vor.u32 %v3611, 8388608
    %v3613 = vsub.s32 0, %v3612
    %v3614 = vadd.s32 %v3609, 1
    %vm3615 = vcmp.gt.s32.totalorder %v3614, 0
    %v3616 = vsel %vm3615, %v3614, 0
    %v3617 = vshrl.u32 %v3616, 5
    %v3618 = vand.u32 %v3616, 31
    %v3619 = vsub.s32 32, %v3618
    %v3620 = vshrl.u32 683565275, %v3619
    %v3621 = vshll.u32 683565275, %v3618
    %v3622 = vshrl.u32 2475754826, %v3619
    %v3623 = vor.u32 %v3621, %v3622
    %v3624 = vshll.u32 2475754826, %v3618
    %v3625 = vshrl.u32 2131351028, %v3619
    %v3626 = vor.u32 %v3624, %v3625
    %v3627 = vshll.u32 2131351028, %v3618
    %v3628 = vshrl.u32 2102212464, %v3619
    %v3629 = vor.u32 %v3627, %v3628
    %v3630 = vshll.u32 2102212464, %v3618
    %v3631 = vshrl.u32 920167782, %v3619
    %v3632 = vor.u32 %v3630, %v3631
    %v3633 = vshll.u32 920167782, %v3618
    %v3634 = vshrl.u32 1326507024, %v3619
    %v3635 = vor.u32 %v3633, %v3634
    %vm3636 = vcmp.lt.s32.totalorder %v3617, 1
    %vm3637 = vcmp.lt.s32.totalorder %v3617, 2
    %vm3638 = vcmp.lt.s32.totalorder %v3617, 3
    %vm3639 = vcmp.lt.s32.totalorder %v3617, 4
    %v3640 = vsel %vm3636, %v3620, %v3623
    %v3641 = vsel %vm3639, %v3629, 2102212464
    %v3642 = vsel %vm3638, %v3626, %v3641
    %v3643 = vsel %vm3637, %v3640, %v3642
    %v3644 = vsel %vm3636, %v3623, %v3626
    %v3645 = vsel %vm3639, %v3632, 920167782
    %v3646 = vsel %vm3638, %v3629, %v3645
    %v3647 = vsel %vm3637, %v3644, %v3646
    %v3648 = vsel %vm3636, %v3626, %v3629
    %v3649 = vsel %vm3639, %v3635, 1326507024
    %v3650 = vsel %vm3638, %v3632, %v3649
    %v3651 = vsel %vm3637, %v3648, %v3650
    %v3652 = vshll.u32 %v3612, 8
    %v3653 = vand.u32 %v3652, 65535
    %v3654 = vshrl.u32 %v3652, 16
    %v3655 = vand.u32 %v3651, 65535
    %v3656 = vshrl.u32 %v3651, 16
    %v3657 = vmul.u32 %v3653, %v3655
    %v3658 = vmul.u32 %v3653, %v3656
    %v3659 = vmul.u32 %v3654, %v3655
    %v3660 = vmul.u32 %v3654, %v3656
    %v3661 = vshll.u32 %v3658, 16
    %v3662 = vshrl.u32 %v3658, 16
    %v3663 = vshll.u32 %v3659, 16
    %v3664 = vshrl.u32 %v3659, 16
    %vm3665 = vc.u32 %v3657, %v3661
    %v3666 = vsel %vm3665, 1, 0
    %v3667 = vadd.s32 %v3657, %v3661
    %v3668 = vadd.s32 %v3660, %v3666
    %vm3669 = vc.u32 %v3667, %v3663
    %v3670 = vsel %vm3669, 1, 0
    %v3671 = vadd.s32 %v3667, %v3663
    %v3672 = vadd.s32 %v3668, %v3670
    %v3673 = vadd.s32 %v3672, %v3662
    %v3674 = vadd.s32 %v3673, %v3664
    %v3675 = vand.u32 %v3652, 65535
    %v3676 = vshrl.u32 %v3652, 16
    %v3677 = vand.u32 %v3647, 65535
    %v3678 = vshrl.u32 %v3647, 16
    %v3679 = vmul.u32 %v3675, %v3677
    %v3680 = vmul.u32 %v3675, %v3678
    %v3681 = vmul.u32 %v3676, %v3677
    %v3682 = vmul.u32 %v3676, %v3678
    %v3683 = vshll.u32 %v3680, 16
    %v3684 = vshrl.u32 %v3680, 16
    %v3685 = vshll.u32 %v3681, 16
    %v3686 = vshrl.u32 %v3681, 16
    %vm3687 = vc.u32 %v3679, %v3683
    %v3688 = vsel %vm3687, 1, 0
    %v3689 = vadd.s32 %v3679, %v3683
    %v3690 = vadd.s32 %v3682, %v3688
    %vm3691 = vc.u32 %v3689, %v3685
    %v3692 = vsel %vm3691, 1, 0
    %v3693 = vadd.s32 %v3689, %v3685
    %v3694 = vadd.s32 %v3690, %v3692
    %v3695 = vadd.s32 %v3694, %v3684
    %v3696 = vadd.s32 %v3695, %v3686
    %v3697 = vmul.u32 %v3652, %v3643
    %v3698 = vadd.s32 %v3674, %v3693
    %vm3699 = vc.u32 %v3674, %v3693
    %v3700 = vadd.s32 %v3696, 1
    %v3701 = vsel %vm3699, %v3700, %v3696
    %v3702 = vadd.s32 %v3697, %v3701
    %v3703 = vadd.s32 %v3702, 536870912
    %v3704 = vshrl.u32 %v3703, 30
    %v3705 = vshll.u32 %v3704, 30
    %v3706 = vsub.s32 %v3702, %v3705
    %vm3707 = vcmp.lt.s32.totalorder %v3706, 0
    %v3708 = vsub.s32 0, %v3706
    %v3709 = vsel %vm3707, %v3708, %v3706
    %v3710 = vclz %v3709
    %v3711 = vsub.s32 %v3710, 2
    %vm3712 = vcmp.gt.s32.totalorder 0, %v3711
    %v3713 = vsel %vm3712, 0, %v3711
    %v3714 = vsub.s32 32, %v3713
    %v3715 = vshll.u32 %v3706, %v3713
    %v3716 = vshrl.u32 %v3698, %v3714
    %v3717 = vor.u32 %v3715, %v3716
    %v3718 = vsub.s32 4294967266, %v3713
    %v3719 = vadd.s32 %v3718, 127
    %v3720 = vshll.u32 %v3719, 23
    %v3721 = vor.u32 4788187, %v3720
    %v3722 = vand.u32 2147483647, %v3721
    %v3724 = vcvt.s32.f32 %v3717
    %v3725 = vmul.f32 %v3724, %v3722
    %v3726 = vxor.u32 %v3725, 2147483648
    %v3727 = vsel %vm3606, %v3726, %v3725
    %v3728 = vsub.s32 4, %v3704
    %v3729 = vsel %vm3606, %v3728, %v3704
    %v3730 = vsel %vm3605, %v203, %v3727
    %v3731 = vsel %vm3605, 0, %v3729
    %v3732 = vmul.f32 %v3730, %v3730
    %v3733 = vmul.f32 %v3732, -0.001358992
    %v3734 = vadd.f32 %v3733, 0.041655596
    %v3735 = vmul.f32 %v3732, %v3734
    %v3736 = vadd.f32 %v3735, -0.4999988
    %v3737 = vmul.f32 %v3732, %v3736
    %v3738 = vadd.f32 1.0, %v3737
    %v3739 = vmul.f32 %v3730, %v3730
    %v3740 = vmul.f32 %v3739, -0.00019511016
    %v3741 = vadd.f32 %v3740, 0.008332121
    %v3742 = vmul.f32 %v3739, %v3741
    %v3743 = vadd.f32 %v3742, -0.16666654
    %v3744 = vmul.f32 %v3739, %v3743
    %v3745 = vadd.f32 %v3744, 1.0
    %v3746 = vmul.f32 %v3745, %v3730
    %vm3747 = vweird.f32 %v203
    %v3748 = vand.u32 %v3731, 3
    %vm3749 = vcmp.lt.s32.totalorder %v3748, 2
    %vm3750 = vcmp.eq.s32.totalorder %v3748, 0
    %v3751 = vxor.u32 %v3746, 2147483648
    %v3752 = vsel %vm3750, %v3738, %v3751
    %vm3753 = vcmp.eq.s32.totalorder %v3748, 2
    %v3754 = vxor.u32 %v3738, 2147483648
    %v3755 = vsel %vm3753, %v3754, %v3746
    %v3756 = vsel %vm3749, %v3752, %v3755
    %v3757 = vsel %vm3747, nan, %v3756
    %v3758 = vand.u32 2147483647, %v206
    %vm3759 = vcmp.le.f32.partialorder %v3758, 0.7853982
    %vm3760 = vcmp.lt.s32.totalorder %v206, 0
    %v3761 = vand.u32 %v206, 2139095040
    %v3762 = vshrl.u32 %v3761, 23
    %v3763 = vsub.s32 %v3762, 127
    %v3764 = vand.u32 2147483647, %v206
    %v3765 = vand.u32 %v3764, 8388607
    %v3766 = vor.u32 %v3765, 8388608
    %v3767 = vsub.s32 0, %v3766
    %v3768 = vadd.s32 %v3763, 1
    %vm3769 = vcmp.gt.s32.totalorder %v3768, 0
    %v3770 = vsel %vm3769, %v3768, 0
    %v3771 = vshrl.u32 %v3770, 5
    %v3772 = vand.u32 %v3770, 31
    %v3773 = vsub.s32 32, %v3772
    %v3774 = vshrl.u32 683565275, %v3773
    %v3775 = vshll.u32 683565275, %v3772
    %v3776 = vshrl.u32 2475754826, %v3773
    %v3777 = vor.u32 %v3775, %v3776
    %v3778 = vshll.u32 2475754826, %v3772
    %v3779 = vshrl.u32 2131351028, %v3773
    %v3780 = vor.u32 %v3778, %v3779
    %v3781 = vshll.u32 2131351028, %v3772
    %v3782 = vshrl.u32 2102212464, %v3773
    %v3783 = vor.u32 %v3781, %v3782
    %v3784 = vshll.u32 2102212464, %v3772
    %v3785 = vshrl.u32 920167782, %v3773
    %v3786 = vor.u32 %v3784, %v3785
    %v3787 = vshll.u32 920167782, %v3772
    %v3788 = vshrl.u32 1326507024, %v3773
    %v3789 = vor.u32 %v3787, %v3788
    %vm3790 = vcmp.lt.s32.totalorder %v3771, 1
    %vm3791 = vcmp.lt.s32.totalorder %v3771, 2
    %vm3792 = vcmp.lt.s32.totalorder %v3771, 3
    %vm3793 = vcmp.lt.s32.totalorder %v3771, 4
    %v3794 = vsel %vm3790, %v3774, %v3777
    %v3795 = vsel %vm3793, %v3783, 2102212464
    %v3796 = vsel %vm3792, %v3780, %v3795
    %v3797 = vsel %vm3791, %v3794, %v3796
    %v3798 = vsel %vm3790, %v3777, %v3780
    %v3799 = vsel %vm3793, %v3786, 920167782
    %v3800 = vsel %vm3792, %v3783, %v3799
    %v3801 = vsel %vm3791, %v3798, %v3800
    %v3802 = vsel %vm3790, %v3780, %v3783
    %v3803 = vsel %vm3793, %v3789, 1326507024
    %v3804 = vsel %vm3792, %v3786, %v3803
    %v3805 = vsel %vm3791, %v3802, %v3804
    %v3806 = vshll.u32 %v3766, 8
    %v3807 = vand.u32 %v3806, 65535
    %v3808 = vshrl.u32 %v3806, 16
    %v3809 = vand.u32 %v3805, 65535
    %v3810 = vshrl.u32 %v3805, 16
    %v3811 = vmul.u32 %v3807, %v3809
    %v3812 = vmul.u32 %v3807, %v3810
    %v3813 = vmul.u32 %v3808, %v3809
    %v3814 = vmul.u32 %v3808, %v3810
    %v3815 = vshll.u32 %v3812, 16
    %v3816 = vshrl.u32 %v3812, 16
    %v3817 = vshll.u32 %v3813, 16
    %v3818 = vshrl.u32 %v3813, 16
    %vm3819 = vc.u32 %v3811, %v3815
    %v3820 = vsel %vm3819, 1, 0
    %v3821 = vadd.s32 %v3811, %v3815
    %v3822 = vadd.s32 %v3814, %v3820
    %vm3823 = vc.u32 %v3821, %v3817
    %v3824 = vsel %vm3823, 1, 0
    %v3825 = vadd.s32 %v3821, %v3817
    %v3826 = vadd.s32 %v3822, %v3824
    %v3827 = vadd.s32 %v3826, %v3816
    %v3828 = vadd.s32 %v3827, %v3818
    %v3829 = vand.u32 %v3806, 65535
    %v3830 = vshrl.u32 %v3806, 16
    %v3831 = vand.u32 %v3801, 65535
    %v3832 = vshrl.u32 %v3801, 16
    %v3833 = vmul.u32 %v3829, %v3831
    %v3834 = vmul.u32 %v3829, %v3832
    %v3835 = vmul.u32 %v3830, %v3831
    %v3836 = vmul.u32 %v3830, %v3832
    %v3837 = vshll.u32 %v3834, 16
    %v3838 = vshrl.u32 %v3834, 16
    %v3839 = vshll.u32 %v3835, 16
    %v3840 = vshrl.u32 %v3835, 16
    %vm3841 = vc.u32 %v3833, %v3837
    %v3842 = vsel %vm3841, 1, 0
    %v3843 = vadd.s32 %v3833, %v3837
    %v3844 = vadd.s32 %v3836, %v3842
    %vm3845 = vc.u32 %v3843, %v3839
    %v3846 = vsel %vm3845, 1, 0
    %v3847 = vadd.s32 %v3843, %v3839
    %v3848 = vadd.s32 %v3844, %v3846
    %v3849 = vadd.s32 %v3848, %v3838
    %v3850 = vadd.s32 %v3849, %v3840
    %v3851 = vmul.u32 %v3806, %v3797
    %v3852 = vadd.s32 %v3828, %v3847
    %vm3853 = vc.u32 %v3828, %v3847
    %v3854 = vadd.s32 %v3850, 1
    %v3855 = vsel %vm3853, %v3854, %v3850
    %v3856 = vadd.s32 %v3851, %v3855
    %v3857 = vadd.s32 %v3856, 536870912
    %v3858 = vshrl.u32 %v3857, 30
    %v3859 = vshll.u32 %v3858, 30
    %v3860 = vsub.s32 %v3856, %v3859
    %vm3861 = vcmp.lt.s32.totalorder %v3860, 0
    %v3862 = vsub.s32 0, %v3860
    %v3863 = vsel %vm3861, %v3862, %v3860
    %v3864 = vclz %v3863
    %v3865 = vsub.s32 %v3864, 2
    %vm3866 = vcmp.gt.s32.totalorder 0, %v3865
    %v3867 = vsel %vm3866, 0, %v3865
    %v3868 = vsub.s32 32, %v3867
    %v3869 = vshll.u32 %v3860, %v3867
    %v3870 = vshrl.u32 %v3852, %v3868
    %v3871 = vor.u32 %v3869, %v3870
    %v3872 = vsub.s32 4294967266, %v3867
    %v3873 = vadd.s32 %v3872, 127
    %v3874 = vshll.u32 %v3873, 23
    %v3875 = vor.u32 4788187, %v3874
    %v3876 = vand.u32 2147483647, %v3875
    %v3878 = vcvt.s32.f32 %v3871
    %v3879 = vmul.f32 %v3878, %v3876
    %v3880 = vxor.u32 %v3879, 2147483648
    %v3881 = vsel %vm3760, %v3880, %v3879
    %v3882 = vsub.s32 4, %v3858
    %v3883 = vsel %vm3760, %v3882, %v3858
    %v3884 = vsel %vm3759, %v206, %v3881
    %v3885 = vsel %vm3759, 0, %v3883
    %v3886 = vmul.f32 %v3884, %v3884
    %v3887 = vmul.f32 %v3886, -0.001358992
    %v3888 = vadd.f32 %v3887, 0.041655596
    %v3889 = vmul.f32 %v3886, %v3888
    %v3890 = vadd.f32 %v3889, -0.4999988
    %v3891 = vmul.f32 %v3886, %v3890
    %v3892 = vadd.f32 1.0, %v3891
    %v3893 = vmul.f32 %v3884, %v3884
    %v3894 = vmul.f32 %v3893, -0.00019511016
    %v3895 = vadd.f32 %v3894, 0.008332121
    %v3896 = vmul.f32 %v3893, %v3895
    %v3897 = vadd.f32 %v3896, -0.16666654
    %v3898 = vmul.f32 %v3893, %v3897
    %v3899 = vadd.f32 %v3898, 1.0
    %v3900 = vmul.f32 %v3899, %v3884
    %vm3901 = vweird.f32 %v206
    %v3902 = vand.u32 %v3885, 3
    %vm3903 = vcmp.lt.s32.totalorder %v3902, 2
    %vm3904 = vcmp.eq.s32.totalorder %v3902, 0
    %v3905 = vxor.u32 %v3900, 2147483648
    %v3906 = vsel %vm3904, %v3892, %v3905
    %vm3907 = vcmp.eq.s32.totalorder %v3902, 2
    %v3908 = vxor.u32 %v3892, 2147483648
    %v3909 = vsel %vm3907, %v3908, %v3900
    %v3910 = vsel %vm3903, %v3906, %v3909
    %v3911 = vsel %vm3901, nan, %v3910
    %v3912 = vld [vmem:[%s3] sm:$0xff]
    %v3913 = vld [vmem:[%s3 + $0x8] sm:$0xff]
    %v3914 = vld [vmem:[%s3 + $0x10] sm:$0xff]
    %v3915 = vld [vmem:[%s3 + $0x18] sm:$0xff]
    %v3916 = vld [vmem:[%s3 + $0x20] sm:$0xff]
    %v3917 = vld [vmem:[%s3 + $0x28] sm:$0xff]
    %v3918 = vld [vmem:[%s3 + $0x30] sm:$0xff]
    %v3919 = vld [vmem:[%s3 + $0x38] sm:$0xff]
    %v3920 = vand.u32 2147483647, %v137
    %vm3921 = vcmp.le.f32.partialorder %v3920, 0.7853982
    %vm3922 = vcmp.lt.s32.totalorder %v137, 0
    %v3923 = vand.u32 %v137, 2139095040
    %v3924 = vshrl.u32 %v3923, 23
    %v3925 = vsub.s32 %v3924, 127
    %v3926 = vand.u32 2147483647, %v137
    %v3927 = vand.u32 %v3926, 8388607
    %v3928 = vor.u32 %v3927, 8388608
    %v3929 = vsub.s32 0, %v3928
    %v3930 = vadd.s32 %v3925, 1
    %vm3931 = vcmp.gt.s32.totalorder %v3930, 0
    %v3932 = vsel %vm3931, %v3930, 0
    %v3933 = vshrl.u32 %v3932, 5
    %v3934 = vand.u32 %v3932, 31
    %v3935 = vsub.s32 32, %v3934
    %v3936 = vshrl.u32 683565275, %v3935
    %v3937 = vshll.u32 683565275, %v3934
    %v3938 = vshrl.u32 2475754826, %v3935
    %v3939 = vor.u32 %v3937, %v3938
    %v3940 = vshll.u32 2475754826, %v3934
    %v3941 = vshrl.u32 2131351028, %v3935
    %v3942 = vor.u32 %v3940, %v3941
    %v3943 = vshll.u32 2131351028, %v3934
    %v3944 = vshrl.u32 2102212464, %v3935
    %v3945 = vor.u32 %v3943, %v3944
    %v3946 = vshll.u32 2102212464, %v3934
    %v3947 = vshrl.u32 920167782, %v3935
    %v3948 = vor.u32 %v3946, %v3947
    %v3949 = vshll.u32 920167782, %v3934
    %v3950 = vshrl.u32 1326507024, %v3935
    %v3951 = vor.u32 %v3949, %v3950
    %vm3952 = vcmp.lt.s32.totalorder %v3933, 1
    %vm3953 = vcmp.lt.s32.totalorder %v3933, 2
    %vm3954 = vcmp.lt.s32.totalorder %v3933, 3
    %vm3955 = vcmp.lt.s32.totalorder %v3933, 4
    %v3956 = vsel %vm3952, %v3936, %v3939
    %v3957 = vsel %vm3955, %v3945, 2102212464
    %v3958 = vsel %vm3954, %v3942, %v3957
    %v3959 = vsel %vm3953, %v3956, %v3958
    %v3960 = vsel %vm3952, %v3939, %v3942
    %v3961 = vsel %vm3955, %v3948, 920167782
    %v3962 = vsel %vm3954, %v3945, %v3961
    %v3963 = vsel %vm3953, %v3960, %v3962
    %v3964 = vsel %vm3952, %v3942, %v3945
    %v3965 = vsel %vm3955, %v3951, 1326507024
    %v3966 = vsel %vm3954, %v3948, %v3965
    %v3967 = vsel %vm3953, %v3964, %v3966
    %v3968 = vshll.u32 %v3928, 8
    %v3969 = vand.u32 %v3968, 65535
    %v3970 = vshrl.u32 %v3968, 16
    %v3971 = vand.u32 %v3967, 65535
    %v3972 = vshrl.u32 %v3967, 16
    %v3973 = vmul.u32 %v3969, %v3971
    %v3974 = vmul.u32 %v3969, %v3972
    %v3975 = vmul.u32 %v3970, %v3971
    %v3976 = vmul.u32 %v3970, %v3972
    %v3977 = vshll.u32 %v3974, 16
    %v3978 = vshrl.u32 %v3974, 16
    %v3979 = vshll.u32 %v3975, 16
    %v3980 = vshrl.u32 %v3975, 16
    %vm3981 = vc.u32 %v3973, %v3977
    %v3982 = vsel %vm3981, 1, 0
    %v3983 = vadd.s32 %v3973, %v3977
    %v3984 = vadd.s32 %v3976, %v3982
    %vm3985 = vc.u32 %v3983, %v3979
    %v3986 = vsel %vm3985, 1, 0
    %v3987 = vadd.s32 %v3983, %v3979
    %v3988 = vadd.s32 %v3984, %v3986
    %v3989 = vadd.s32 %v3988, %v3978
    %v3990 = vadd.s32 %v3989, %v3980
    %v3991 = vand.u32 %v3968, 65535
    %v3992 = vshrl.u32 %v3968, 16
    %v3993 = vand.u32 %v3963, 65535
    %v3994 = vshrl.u32 %v3963, 16
    %v3995 = vmul.u32 %v3991, %v3993
    %v3996 = vmul.u32 %v3991, %v3994
    %v3997 = vmul.u32 %v3992, %v3993
    %v3998 = vmul.u32 %v3992, %v3994
    %v3999 = vshll.u32 %v3996, 16
    %v4000 = vshrl.u32 %v3996, 16
    %v4001 = vshll.u32 %v3997, 16
    %v4002 = vshrl.u32 %v3997, 16
    %vm4003 = vc.u32 %v3995, %v3999
    %v4004 = vsel %vm4003, 1, 0
    %v4005 = vadd.s32 %v3995, %v3999
    %v4006 = vadd.s32 %v3998, %v4004
    %vm4007 = vc.u32 %v4005, %v4001
    %v4008 = vsel %vm4007, 1, 0
    %v4009 = vadd.s32 %v4005, %v4001
    %v4010 = vadd.s32 %v4006, %v4008
    %v4011 = vadd.s32 %v4010, %v4000
    %v4012 = vadd.s32 %v4011, %v4002
    %v4013 = vmul.u32 %v3968, %v3959
    %v4014 = vadd.s32 %v3990, %v4009
    %vm4015 = vc.u32 %v3990, %v4009
    %v4016 = vadd.s32 %v4012, 1
    %v4017 = vsel %vm4015, %v4016, %v4012
    %v4018 = vadd.s32 %v4013, %v4017
    %v4019 = vadd.s32 %v4018, 536870912
    %v4020 = vshrl.u32 %v4019, 30
    %v4021 = vshll.u32 %v4020, 30
    %v4022 = vsub.s32 %v4018, %v4021
    %vm4023 = vcmp.lt.s32.totalorder %v4022, 0
    %v4024 = vsub.s32 0, %v4022
    %v4025 = vsel %vm4023, %v4024, %v4022
    %v4026 = vclz %v4025
    %v4027 = vsub.s32 %v4026, 2
    %vm4028 = vcmp.gt.s32.totalorder 0, %v4027
    %v4029 = vsel %vm4028, 0, %v4027
    %v4030 = vsub.s32 32, %v4029
    %v4031 = vshll.u32 %v4022, %v4029
    %v4032 = vshrl.u32 %v4014, %v4030
    %v4033 = vor.u32 %v4031, %v4032
    %v4034 = vsub.s32 4294967266, %v4029
    %v4035 = vadd.s32 %v4034, 127
    %v4036 = vshll.u32 %v4035, 23
    %v4037 = vor.u32 4788187, %v4036
    %v4038 = vand.u32 2147483647, %v4037
    %v4040 = vcvt.s32.f32 %v4033
    %v4041 = vmul.f32 %v4040, %v4038
    %v4042 = vxor.u32 %v4041, 2147483648
    %v4043 = vsel %vm3922, %v4042, %v4041
    %v4044 = vsub.s32 4, %v4020
    %v4045 = vsel %vm3922, %v4044, %v4020
    %v4046 = vsel %vm3921, %v137, %v4043
    %v4047 = vsel %vm3921, 0, %v4045
    %v4048 = vmul.f32 %v4046, %v4046
    %v4049 = vmul.f32 %v4048, -0.001358992
    %v4050 = vadd.f32 %v4049, 0.041655596
    %v4051 = vmul.f32 %v4048, %v4050
    %v4052 = vadd.f32 %v4051, -0.4999988
    %v4053 = vmul.f32 %v4048, %v4052
    %v4054 = vadd.f32 1.0, %v4053
    %v4055 = vmul.f32 %v4046, %v4046
    %v4056 = vmul.f32 %v4055, -0.00019511016
    %v4057 = vadd.f32 %v4056, 0.008332121
    %v4058 = vmul.f32 %v4055, %v4057
    %v4059 = vadd.f32 %v4058, -0.16666654
    %v4060 = vmul.f32 %v4055, %v4059
    %v4061 = vadd.f32 %v4060, 1.0
    %v4062 = vmul.f32 %v4061, %v4046
    %vm4063 = vweird.f32 %v137
    %v4064 = vadd.s32 %v4047, 3
    %v4065 = vand.u32 %v4064, 3
    %vm4066 = vcmp.lt.s32.totalorder %v4065, 2
    %vm4067 = vcmp.eq.s32.totalorder %v4065, 0
    %v4068 = vxor.u32 %v4062, 2147483648
    %v4069 = vsel %vm4067, %v4054, %v4068
    %vm4070 = vcmp.eq.s32.totalorder %v4065, 2
    %v4071 = vxor.u32 %v4054, 2147483648
    %v4072 = vsel %vm4070, %v4071, %v4062
    %v4073 = vsel %vm4066, %v4069, %v4072
    %v4074 = vsel %vm4063, nan, %v4073
    %v4075 = vand.u32 2147483647, %v140
    %vm4076 = vcmp.le.f32.partialorder %v4075, 0.7853982
    %vm4077 = vcmp.lt.s32.totalorder %v140, 0
    %v4078 = vand.u32 %v140, 2139095040
    %v4079 = vshrl.u32 %v4078, 23
    %v4080 = vsub.s32 %v4079, 127
    %v4081 = vand.u32 2147483647, %v140
    %v4082 = vand.u32 %v4081, 8388607
    %v4083 = vor.u32 %v4082, 8388608
    %v4084 = vsub.s32 0, %v4083
    %v4085 = vadd.s32 %v4080, 1
    %vm4086 = vcmp.gt.s32.totalorder %v4085, 0
    %v4087 = vsel %vm4086, %v4085, 0
    %v4088 = vshrl.u32 %v4087, 5
    %v4089 = vand.u32 %v4087, 31
    %v4090 = vsub.s32 32, %v4089
    %v4091 = vshrl.u32 683565275, %v4090
    %v4092 = vshll.u32 683565275, %v4089
    %v4093 = vshrl.u32 2475754826, %v4090
    %v4094 = vor.u32 %v4092, %v4093
    %v4095 = vshll.u32 2475754826, %v4089
    %v4096 = vshrl.u32 2131351028, %v4090
    %v4097 = vor.u32 %v4095, %v4096
    %v4098 = vshll.u32 2131351028, %v4089
    %v4099 = vshrl.u32 2102212464, %v4090
    %v4100 = vor.u32 %v4098, %v4099
    %v4101 = vshll.u32 2102212464, %v4089
    %v4102 = vshrl.u32 920167782, %v4090
    %v4103 = vor.u32 %v4101, %v4102
    %v4104 = vshll.u32 920167782, %v4089
    %v4105 = vshrl.u32 1326507024, %v4090
    %v4106 = vor.u32 %v4104, %v4105
    %vm4107 = vcmp.lt.s32.totalorder %v4088, 1
    %vm4108 = vcmp.lt.s32.totalorder %v4088, 2
    %vm4109 = vcmp.lt.s32.totalorder %v4088, 3
    %vm4110 = vcmp.lt.s32.totalorder %v4088, 4
    %v4111 = vsel %vm4107, %v4091, %v4094
    %v4112 = vsel %vm4110, %v4100, 2102212464
    %v4113 = vsel %vm4109, %v4097, %v4112
    %v4114 = vsel %vm4108, %v4111, %v4113
    %v4115 = vsel %vm4107, %v4094, %v4097
    %v4116 = vsel %vm4110, %v4103, 920167782
    %v4117 = vsel %vm4109, %v4100, %v4116
    %v4118 = vsel %vm4108, %v4115, %v4117
    %v4119 = vsel %vm4107, %v4097, %v4100
    %v4120 = vsel %vm4110, %v4106, 1326507024
    %v4121 = vsel %vm4109, %v4103, %v4120
    %v4122 = vsel %vm4108, %v4119, %v4121
    %v4123 = vshll.u32 %v4083, 8
    %v4124 = vand.u32 %v4123, 65535
    %v4125 = vshrl.u32 %v4123, 16
    %v4126 = vand.u32 %v4122, 65535
    %v4127 = vshrl.u32 %v4122, 16
    %v4128 = vmul.u32 %v4124, %v4126
    %v4129 = vmul.u32 %v4124, %v4127
    %v4130 = vmul.u32 %v4125, %v4126
    %v4131 = vmul.u32 %v4125, %v4127
    %v4132 = vshll.u32 %v4129, 16
    %v4133 = vshrl.u32 %v4129, 16
    %v4134 = vshll.u32 %v4130, 16
    %v4135 = vshrl.u32 %v4130, 16
    %vm4136 = vc.u32 %v4128, %v4132
    %v4137 = vsel %vm4136, 1, 0
    %v4138 = vadd.s32 %v4128, %v4132
    %v4139 = vadd.s32 %v4131, %v4137
    %vm4140 = vc.u32 %v4138, %v4134
    %v4141 = vsel %vm4140, 1, 0
    %v4142 = vadd.s32 %v4138, %v4134
    %v4143 = vadd.s32 %v4139, %v4141
    %v4144 = vadd.s32 %v4143, %v4133
    %v4145 = vadd.s32 %v4144, %v4135
    %v4146 = vand.u32 %v4123, 65535
    %v4147 = vshrl.u32 %v4123, 16
    %v4148 = vand.u32 %v4118, 65535
    %v4149 = vshrl.u32 %v4118, 16
    %v4150 = vmul.u32 %v4146, %v4148
    %v4151 = vmul.u32 %v4146, %v4149
    %v4152 = vmul.u32 %v4147, %v4148
    %v4153 = vmul.u32 %v4147, %v4149
    %v4154 = vshll.u32 %v4151, 16
    %v4155 = vshrl.u32 %v4151, 16
    %v4156 = vshll.u32 %v4152, 16
    %v4157 = vshrl.u32 %v4152, 16
    %vm4158 = vc.u32 %v4150, %v4154
    %v4159 = vsel %vm4158, 1, 0
    %v4160 = vadd.s32 %v4150, %v4154
    %v4161 = vadd.s32 %v4153, %v4159
    %vm4162 = vc.u32 %v4160, %v4156
    %v4163 = vsel %vm4162, 1, 0
    %v4164 = vadd.s32 %v4160, %v4156
    %v4165 = vadd.s32 %v4161, %v4163
    %v4166 = vadd.s32 %v4165, %v4155
    %v4167 = vadd.s32 %v4166, %v4157
    %v4168 = vmul.u32 %v4123, %v4114
    %v4169 = vadd.s32 %v4145, %v4164
    %vm4170 = vc.u32 %v4145, %v4164
    %v4171 = vadd.s32 %v4167, 1
    %v4172 = vsel %vm4170, %v4171, %v4167
    %v4173 = vadd.s32 %v4168, %v4172
    %v4174 = vadd.s32 %v4173, 536870912
    %v4175 = vshrl.u32 %v4174, 30
    %v4176 = vshll.u32 %v4175, 30
    %v4177 = vsub.s32 %v4173, %v4176
    %vm4178 = vcmp.lt.s32.totalorder %v4177, 0
    %v4179 = vsub.s32 0, %v4177
    %v4180 = vsel %vm4178, %v4179, %v4177
    %v4181 = vclz %v4180
    %v4182 = vsub.s32 %v4181, 2
    %vm4183 = vcmp.gt.s32.totalorder 0, %v4182
    %v4184 = vsel %vm4183, 0, %v4182
    %v4185 = vsub.s32 32, %v4184
    %v4186 = vshll.u32 %v4177, %v4184
    %v4187 = vshrl.u32 %v4169, %v4185
    %v4188 = vor.u32 %v4186, %v4187
    %v4189 = vsub.s32 4294967266, %v4184
    %v4190 = vadd.s32 %v4189, 127
    %v4191 = vshll.u32 %v4190, 23
    %v4192 = vor.u32 4788187, %v4191
    %v4193 = vand.u32 2147483647, %v4192
    %v4195 = vcvt.s32.f32 %v4188
    %v4196 = vmul.f32 %v4195, %v4193
    %v4197 = vxor.u32 %v4196, 2147483648
    %v4198 = vsel %vm4077, %v4197, %v4196
    %v4199 = vsub.s32 4, %v4175
    %v4200 = vsel %vm4077, %v4199, %v4175
    %v4201 = vsel %vm4076, %v140, %v4198
    %v4202 = vsel %vm4076, 0, %v4200
    %v4203 = vmul.f32 %v4201, %v4201
    %v4204 = vmul.f32 %v4203, -0.001358992
    %v4205 = vadd.f32 %v4204, 0.041655596
    %v4206 = vmul.f32 %v4203, %v4205
    %v4207 = vadd.f32 %v4206, -0.4999988
    %v4208 = vmul.f32 %v4203, %v4207
    %v4209 = vadd.f32 1.0, %v4208
    %v4210 = vmul.f32 %v4201, %v4201
    %v4211 = vmul.f32 %v4210, -0.00019511016
    %v4212 = vadd.f32 %v4211, 0.008332121
    %v4213 = vmul.f32 %v4210, %v4212
    %v4214 = vadd.f32 %v4213, -0.16666654
    %v4215 = vmul.f32 %v4210, %v4214
    %v4216 = vadd.f32 %v4215, 1.0
    %v4217 = vmul.f32 %v4216, %v4201
    %vm4218 = vweird.f32 %v140
    %v4219 = vadd.s32 %v4202, 3
    %v4220 = vand.u32 %v4219, 3
    %vm4221 = vcmp.lt.s32.totalorder %v4220, 2
    %vm4222 = vcmp.eq.s32.totalorder %v4220, 0
    %v4223 = vxor.u32 %v4217, 2147483648
    %v4224 = vsel %vm4222, %v4209, %v4223
    %vm4225 = vcmp.eq.s32.totalorder %v4220, 2
    %v4226 = vxor.u32 %v4209, 2147483648
    %v4227 = vsel %vm4225, %v4226, %v4217
    %v4228 = vsel %vm4221, %v4224, %v4227
    %v4229 = vsel %vm4218, nan, %v4228
    %v4230 = vand.u32 2147483647, %v143
    %vm4231 = vcmp.le.f32.partialorder %v4230, 0.7853982
    %vm4232 = vcmp.lt.s32.totalorder %v143, 0
    %v4233 = vand.u32 %v143, 2139095040
    %v4234 = vshrl.u32 %v4233, 23
    %v4235 = vsub.s32 %v4234, 127
    %v4236 = vand.u32 2147483647, %v143
    %v4237 = vand.u32 %v4236, 8388607
    %v4238 = vor.u32 %v4237, 8388608
    %v4239 = vsub.s32 0, %v4238
    %v4240 = vadd.s32 %v4235, 1
    %vm4241 = vcmp.gt.s32.totalorder %v4240, 0
    %v4242 = vsel %vm4241, %v4240, 0
    %v4243 = vshrl.u32 %v4242, 5
    %v4244 = vand.u32 %v4242, 31
    %v4245 = vsub.s32 32, %v4244
    %v4246 = vshrl.u32 683565275, %v4245
    %v4247 = vshll.u32 683565275, %v4244
    %v4248 = vshrl.u32 2475754826, %v4245
    %v4249 = vor.u32 %v4247, %v4248
    %v4250 = vshll.u32 2475754826, %v4244
    %v4251 = vshrl.u32 2131351028, %v4245
    %v4252 = vor.u32 %v4250, %v4251
    %v4253 = vshll.u32 2131351028, %v4244
    %v4254 = vshrl.u32 2102212464, %v4245
    %v4255 = vor.u32 %v4253, %v4254
    %v4256 = vshll.u32 2102212464, %v4244
    %v4257 = vshrl.u32 920167782, %v4245
    %v4258 = vor.u32 %v4256, %v4257
    %v4259 = vshll.u32 920167782, %v4244
    %v4260 = vshrl.u32 1326507024, %v4245
    %v4261 = vor.u32 %v4259, %v4260
    %vm4262 = vcmp.lt.s32.totalorder %v4243, 1
    %vm4263 = vcmp.lt.s32.totalorder %v4243, 2
    %vm4264 = vcmp.lt.s32.totalorder %v4243, 3
    %vm4265 = vcmp.lt.s32.totalorder %v4243, 4
    %v4266 = vsel %vm4262, %v4246, %v4249
    %v4267 = vsel %vm4265, %v4255, 2102212464
    %v4268 = vsel %vm4264, %v4252, %v4267
    %v4269 = vsel %vm4263, %v4266, %v4268
    %v4270 = vsel %vm4262, %v4249, %v4252
    %v4271 = vsel %vm4265, %v4258, 920167782
    %v4272 = vsel %vm4264, %v4255, %v4271
    %v4273 = vsel %vm4263, %v4270, %v4272
    %v4274 = vsel %vm4262, %v4252, %v4255
    %v4275 = vsel %vm4265, %v4261, 1326507024
    %v4276 = vsel %vm4264, %v4258, %v4275
    %v4277 = vsel %vm4263, %v4274, %v4276
    %v4278 = vshll.u32 %v4238, 8
    %v4279 = vand.u32 %v4278, 65535
    %v4280 = vshrl.u32 %v4278, 16
    %v4281 = vand.u32 %v4277, 65535
    %v4282 = vshrl.u32 %v4277, 16
    %v4283 = vmul.u32 %v4279, %v4281
    %v4284 = vmul.u32 %v4279, %v4282
    %v4285 = vmul.u32 %v4280, %v4281
    %v4286 = vmul.u32 %v4280, %v4282
    %v4287 = vshll.u32 %v4284, 16
    %v4288 = vshrl.u32 %v4284, 16
    %v4289 = vshll.u32 %v4285, 16
    %v4290 = vshrl.u32 %v4285, 16
    %vm4291 = vc.u32 %v4283, %v4287
    %v4292 = vsel %vm4291, 1, 0
    %v4293 = vadd.s32 %v4283, %v4287
    %v4294 = vadd.s32 %v4286, %v4292
    %vm4295 = vc.u32 %v4293, %v4289
    %v4296 = vsel %vm4295, 1, 0
    %v4297 = vadd.s32 %v4293, %v4289
    %v4298 = vadd.s32 %v4294, %v4296
    %v4299 = vadd.s32 %v4298, %v4288
    %v4300 = vadd.s32 %v4299, %v4290
    %v4301 = vand.u32 %v4278, 65535
    %v4302 = vshrl.u32 %v4278, 16
    %v4303 = vand.u32 %v4273, 65535
    %v4304 = vshrl.u32 %v4273, 16
    %v4305 = vmul.u32 %v4301, %v4303
    %v4306 = vmul.u32 %v4301, %v4304
    %v4307 = vmul.u32 %v4302, %v4303
    %v4308 = vmul.u32 %v4302, %v4304
    %v4309 = vshll.u32 %v4306, 16
    %v4310 = vshrl.u32 %v4306, 16
    %v4311 = vshll.u32 %v4307, 16
    %v4312 = vshrl.u32 %v4307, 16
    %vm4313 = vc.u32 %v4305, %v4309
    %v4314 = vsel %vm4313, 1, 0
    %v4315 = vadd.s32 %v4305, %v4309
    %v4316 = vadd.s32 %v4308, %v4314
    %vm4317 = vc.u32 %v4315, %v4311
    %v4318 = vsel %vm4317, 1, 0
    %v4319 = vadd.s32 %v4315, %v4311
    %v4320 = vadd.s32 %v4316, %v4318
    %v4321 = vadd.s32 %v4320, %v4310
    %v4322 = vadd.s32 %v4321, %v4312
    %v4323 = vmul.u32 %v4278, %v4269
    %v4324 = vadd.s32 %v4300, %v4319
    %vm4325 = vc.u32 %v4300, %v4319
    %v4326 = vadd.s32 %v4322, 1
    %v4327 = vsel %vm4325, %v4326, %v4322
    %v4328 = vadd.s32 %v4323, %v4327
    %v4329 = vadd.s32 %v4328, 536870912
    %v4330 = vshrl.u32 %v4329, 30
    %v4331 = vshll.u32 %v4330, 30
    %v4332 = vsub.s32 %v4328, %v4331
    %vm4333 = vcmp.lt.s32.totalorder %v4332, 0
    %v4334 = vsub.s32 0, %v4332
    %v4335 = vsel %vm4333, %v4334, %v4332
    %v4336 = vclz %v4335
    %v4337 = vsub.s32 %v4336, 2
    %vm4338 = vcmp.gt.s32.totalorder 0, %v4337
    %v4339 = vsel %vm4338, 0, %v4337
    %v4340 = vsub.s32 32, %v4339
    %v4341 = vshll.u32 %v4332, %v4339
    %v4342 = vshrl.u32 %v4324, %v4340
    %v4343 = vor.u32 %v4341, %v4342
    %v4344 = vsub.s32 4294967266, %v4339
    %v4345 = vadd.s32 %v4344, 127
    %v4346 = vshll.u32 %v4345, 23
    %v4347 = vor.u32 4788187, %v4346
    %v4348 = vand.u32 2147483647, %v4347
    %v4350 = vcvt.s32.f32 %v4343
    %v4351 = vmul.f32 %v4350, %v4348
    %v4352 = vxor.u32 %v4351, 2147483648
    %v4353 = vsel %vm4232, %v4352, %v4351
    %v4354 = vsub.s32 4, %v4330
    %v4355 = vsel %vm4232, %v4354, %v4330
    %v4356 = vsel %vm4231, %v143, %v4353
    %v4357 = vsel %vm4231, 0, %v4355
    %v4358 = vmul.f32 %v4356, %v4356
    %v4359 = vmul.f32 %v4358, -0.001358992
    %v4360 = vadd.f32 %v4359, 0.041655596
    %v4361 = vmul.f32 %v4358, %v4360
    %v4362 = vadd.f32 %v4361, -0.4999988
    %v4363 = vmul.f32 %v4358, %v4362
    %v4364 = vadd.f32 1.0, %v4363
    %v4365 = vmul.f32 %v4356, %v4356
    %v4366 = vmul.f32 %v4365, -0.00019511016
    %v4367 = vadd.f32 %v4366, 0.008332121
    %v4368 = vmul.f32 %v4365, %v4367
    %v4369 = vadd.f32 %v4368, -0.16666654
    %v4370 = vmul.f32 %v4365, %v4369
    %v4371 = vadd.f32 %v4370, 1.0
    %v4372 = vmul.f32 %v4371, %v4356
    %vm4373 = vweird.f32 %v143
    %v4374 = vadd.s32 %v4357, 3
    %v4375 = vand.u32 %v4374, 3
    %vm4376 = vcmp.lt.s32.totalorder %v4375, 2
    %vm4377 = vcmp.eq.s32.totalorder %v4375, 0
    %v4378 = vxor.u32 %v4372, 2147483648
    %v4379 = vsel %vm4377, %v4364, %v4378
    %vm4380 = vcmp.eq.s32.totalorder %v4375, 2
    %v4381 = vxor.u32 %v4364, 2147483648
    %v4382 = vsel %vm4380, %v4381, %v4372
    %v4383 = vsel %vm4376, %v4379, %v4382
    %v4384 = vsel %vm4373, nan, %v4383
    %v4385 = vand.u32 2147483647, %v146
    %vm4386 = vcmp.le.f32.partialorder %v4385, 0.7853982
    %vm4387 = vcmp.lt.s32.totalorder %v146, 0
    %v4388 = vand.u32 %v146, 2139095040
    %v4389 = vshrl.u32 %v4388, 23
    %v4390 = vsub.s32 %v4389, 127
    %v4391 = vand.u32 2147483647, %v146
    %v4392 = vand.u32 %v4391, 8388607
    %v4393 = vor.u32 %v4392, 8388608
    %v4394 = vsub.s32 0, %v4393
    %v4395 = vadd.s32 %v4390, 1
    %vm4396 = vcmp.gt.s32.totalorder %v4395, 0
    %v4397 = vsel %vm4396, %v4395, 0
    %v4398 = vshrl.u32 %v4397, 5
    %v4399 = vand.u32 %v4397, 31
    %v4400 = vsub.s32 32, %v4399
    %v4401 = vshrl.u32 683565275, %v4400
    %v4402 = vshll.u32 683565275, %v4399
    %v4403 = vshrl.u32 2475754826, %v4400
    %v4404 = vor.u32 %v4402, %v4403
    %v4405 = vshll.u32 2475754826, %v4399
    %v4406 = vshrl.u32 2131351028, %v4400
    %v4407 = vor.u32 %v4405, %v4406
    %v4408 = vshll.u32 2131351028, %v4399
    %v4409 = vshrl.u32 2102212464, %v4400
    %v4410 = vor.u32 %v4408, %v4409
    %v4411 = vshll.u32 2102212464, %v4399
    %v4412 = vshrl.u32 920167782, %v4400
    %v4413 = vor.u32 %v4411, %v4412
    %v4414 = vshll.u32 920167782, %v4399
    %v4415 = vshrl.u32 1326507024, %v4400
    %v4416 = vor.u32 %v4414, %v4415
    %vm4417 = vcmp.lt.s32.totalorder %v4398, 1
    %vm4418 = vcmp.lt.s32.totalorder %v4398, 2
    %vm4419 = vcmp.lt.s32.totalorder %v4398, 3
    %vm4420 = vcmp.lt.s32.totalorder %v4398, 4
    %v4421 = vsel %vm4417, %v4401, %v4404
    %v4422 = vsel %vm4420, %v4410, 2102212464
    %v4423 = vsel %vm4419, %v4407, %v4422
    %v4424 = vsel %vm4418, %v4421, %v4423
    %v4425 = vsel %vm4417, %v4404, %v4407
    %v4426 = vsel %vm4420, %v4413, 920167782
    %v4427 = vsel %vm4419, %v4410, %v4426
    %v4428 = vsel %vm4418, %v4425, %v4427
    %v4429 = vsel %vm4417, %v4407, %v4410
    %v4430 = vsel %vm4420, %v4416, 1326507024
    %v4431 = vsel %vm4419, %v4413, %v4430
    %v4432 = vsel %vm4418, %v4429, %v4431
    %v4433 = vshll.u32 %v4393, 8
    %v4434 = vand.u32 %v4433, 65535
    %v4435 = vshrl.u32 %v4433, 16
    %v4436 = vand.u32 %v4432, 65535
    %v4437 = vshrl.u32 %v4432, 16
    %v4438 = vmul.u32 %v4434, %v4436
    %v4439 = vmul.u32 %v4434, %v4437
    %v4440 = vmul.u32 %v4435, %v4436
    %v4441 = vmul.u32 %v4435, %v4437
    %v4442 = vshll.u32 %v4439, 16
    %v4443 = vshrl.u32 %v4439, 16
    %v4444 = vshll.u32 %v4440, 16
    %v4445 = vshrl.u32 %v4440, 16
    %vm4446 = vc.u32 %v4438, %v4442
    %v4447 = vsel %vm4446, 1, 0
    %v4448 = vadd.s32 %v4438, %v4442
    %v4449 = vadd.s32 %v4441, %v4447
    %vm4450 = vc.u32 %v4448, %v4444
    %v4451 = vsel %vm4450, 1, 0
    %v4452 = vadd.s32 %v4448, %v4444
    %v4453 = vadd.s32 %v4449, %v4451
    %v4454 = vadd.s32 %v4453, %v4443
    %v4455 = vadd.s32 %v4454, %v4445
    %v4456 = vand.u32 %v4433, 65535
    %v4457 = vshrl.u32 %v4433, 16
    %v4458 = vand.u32 %v4428, 65535
    %v4459 = vshrl.u32 %v4428, 16
    %v4460 = vmul.u32 %v4456, %v4458
    %v4461 = vmul.u32 %v4456, %v4459
    %v4462 = vmul.u32 %v4457, %v4458
    %v4463 = vmul.u32 %v4457, %v4459
    %v4464 = vshll.u32 %v4461, 16
    %v4465 = vshrl.u32 %v4461, 16
    %v4466 = vshll.u32 %v4462, 16
    %v4467 = vshrl.u32 %v4462, 16
    %vm4468 = vc.u32 %v4460, %v4464
    %v4469 = vsel %vm4468, 1, 0
    %v4470 = vadd.s32 %v4460, %v4464
    %v4471 = vadd.s32 %v4463, %v4469
    %vm4472 = vc.u32 %v4470, %v4466
    %v4473 = vsel %vm4472, 1, 0
    %v4474 = vadd.s32 %v4470, %v4466
    %v4475 = vadd.s32 %v4471, %v4473
    %v4476 = vadd.s32 %v4475, %v4465
    %v4477 = vadd.s32 %v4476, %v4467
    %v4478 = vmul.u32 %v4433, %v4424
    %v4479 = vadd.s32 %v4455, %v4474
    %vm4480 = vc.u32 %v4455, %v4474
    %v4481 = vadd.s32 %v4477, 1
    %v4482 = vsel %vm4480, %v4481, %v4477
    %v4483 = vadd.s32 %v4478, %v4482
    %v4484 = vadd.s32 %v4483, 536870912
    %v4485 = vshrl.u32 %v4484, 30
    %v4486 = vshll.u32 %v4485, 30
    %v4487 = vsub.s32 %v4483, %v4486
    %vm4488 = vcmp.lt.s32.totalorder %v4487, 0
    %v4489 = vsub.s32 0, %v4487
    %v4490 = vsel %vm4488, %v4489, %v4487
    %v4491 = vclz %v4490
    %v4492 = vsub.s32 %v4491, 2
    %vm4493 = vcmp.gt.s32.totalorder 0, %v4492
    %v4494 = vsel %vm4493, 0, %v4492
    %v4495 = vsub.s32 32, %v4494
    %v4496 = vshll.u32 %v4487, %v4494
    %v4497 = vshrl.u32 %v4479, %v4495
    %v4498 = vor.u32 %v4496, %v4497
    %v4499 = vsub.s32 4294967266, %v4494
    %v4500 = vadd.s32 %v4499, 127
    %v4501 = vshll.u32 %v4500, 23
    %v4502 = vor.u32 4788187, %v4501
    %v4503 = vand.u32 2147483647, %v4502
    %v4505 = vcvt.s32.f32 %v4498
    %v4506 = vmul.f32 %v4505, %v4503
    %v4507 = vxor.u32 %v4506, 2147483648
    %v4508 = vsel %vm4387, %v4507, %v4506
    %v4509 = vsub.s32 4, %v4485
    %v4510 = vsel %vm4387, %v4509, %v4485
    %v4511 = vsel %vm4386, %v146, %v4508
    %v4512 = vsel %vm4386, 0, %v4510
    %v4513 = vmul.f32 %v4511, %v4511
    %v4514 = vmul.f32 %v4513, -0.001358992
    %v4515 = vadd.f32 %v4514, 0.041655596
    %v4516 = vmul.f32 %v4513, %v4515
    %v4517 = vadd.f32 %v4516, -0.4999988
    %v4518 = vmul.f32 %v4513, %v4517
    %v4519 = vadd.f32 1.0, %v4518
    %v4520 = vmul.f32 %v4511, %v4511
    %v4521 = vmul.f32 %v4520, -0.00019511016
    %v4522 = vadd.f32 %v4521, 0.008332121
    %v4523 = vmul.f32 %v4520, %v4522
    %v4524 = vadd.f32 %v4523, -0.16666654
    %v4525 = vmul.f32 %v4520, %v4524
    %v4526 = vadd.f32 %v4525, 1.0
    %v4527 = vmul.f32 %v4526, %v4511
    %vm4528 = vweird.f32 %v146
    %v4529 = vadd.s32 %v4512, 3
    %v4530 = vand.u32 %v4529, 3
    %vm4531 = vcmp.lt.s32.totalorder %v4530, 2
    %vm4532 = vcmp.eq.s32.totalorder %v4530, 0
    %v4533 = vxor.u32 %v4527, 2147483648
    %v4534 = vsel %vm4532, %v4519, %v4533
    %vm4535 = vcmp.eq.s32.totalorder %v4530, 2
    %v4536 = vxor.u32 %v4519, 2147483648
    %v4537 = vsel %vm4535, %v4536, %v4527
    %v4538 = vsel %vm4531, %v4534, %v4537
    %v4539 = vsel %vm4528, nan, %v4538
    %v4540 = vand.u32 2147483647, %v149
    %vm4541 = vcmp.le.f32.partialorder %v4540, 0.7853982
    %vm4542 = vcmp.lt.s32.totalorder %v149, 0
    %v4543 = vand.u32 %v149, 2139095040
    %v4544 = vshrl.u32 %v4543, 23
    %v4545 = vsub.s32 %v4544, 127
    %v4546 = vand.u32 2147483647, %v149
    %v4547 = vand.u32 %v4546, 8388607
    %v4548 = vor.u32 %v4547, 8388608
    %v4549 = vsub.s32 0, %v4548
    %v4550 = vadd.s32 %v4545, 1
    %vm4551 = vcmp.gt.s32.totalorder %v4550, 0
    %v4552 = vsel %vm4551, %v4550, 0
    %v4553 = vshrl.u32 %v4552, 5
    %v4554 = vand.u32 %v4552, 31
    %v4555 = vsub.s32 32, %v4554
    %v4556 = vshrl.u32 683565275, %v4555
    %v4557 = vshll.u32 683565275, %v4554
    %v4558 = vshrl.u32 2475754826, %v4555
    %v4559 = vor.u32 %v4557, %v4558
    %v4560 = vshll.u32 2475754826, %v4554
    %v4561 = vshrl.u32 2131351028, %v4555
    %v4562 = vor.u32 %v4560, %v4561
    %v4563 = vshll.u32 2131351028, %v4554
    %v4564 = vshrl.u32 2102212464, %v4555
    %v4565 = vor.u32 %v4563, %v4564
    %v4566 = vshll.u32 2102212464, %v4554
    %v4567 = vshrl.u32 920167782, %v4555
    %v4568 = vor.u32 %v4566, %v4567
    %v4569 = vshll.u32 920167782, %v4554
    %v4570 = vshrl.u32 1326507024, %v4555
    %v4571 = vor.u32 %v4569, %v4570
    %vm4572 = vcmp.lt.s32.totalorder %v4553, 1
    %vm4573 = vcmp.lt.s32.totalorder %v4553, 2
    %vm4574 = vcmp.lt.s32.totalorder %v4553, 3
    %vm4575 = vcmp.lt.s32.totalorder %v4553, 4
    %v4576 = vsel %vm4572, %v4556, %v4559
    %v4577 = vsel %vm4575, %v4565, 2102212464
    %v4578 = vsel %vm4574, %v4562, %v4577
    %v4579 = vsel %vm4573, %v4576, %v4578
    %v4580 = vsel %vm4572, %v4559, %v4562
    %v4581 = vsel %vm4575, %v4568, 920167782
    %v4582 = vsel %vm4574, %v4565, %v4581
    %v4583 = vsel %vm4573, %v4580, %v4582
    %v4584 = vsel %vm4572, %v4562, %v4565
    %v4585 = vsel %vm4575, %v4571, 1326507024
    %v4586 = vsel %vm4574, %v4568, %v4585
    %v4587 = vsel %vm4573, %v4584, %v4586
    %v4588 = vshll.u32 %v4548, 8
    %v4589 = vand.u32 %v4588, 65535
    %v4590 = vshrl.u32 %v4588, 16
    %v4591 = vand.u32 %v4587, 65535
    %v4592 = vshrl.u32 %v4587, 16
    %v4593 = vmul.u32 %v4589, %v4591
    %v4594 = vmul.u32 %v4589, %v4592
    %v4595 = vmul.u32 %v4590, %v4591
    %v4596 = vmul.u32 %v4590, %v4592
    %v4597 = vshll.u32 %v4594, 16
    %v4598 = vshrl.u32 %v4594, 16
    %v4599 = vshll.u32 %v4595, 16
    %v4600 = vshrl.u32 %v4595, 16
    %vm4601 = vc.u32 %v4593, %v4597
    %v4602 = vsel %vm4601, 1, 0
    %v4603 = vadd.s32 %v4593, %v4597
    %v4604 = vadd.s32 %v4596, %v4602
    %vm4605 = vc.u32 %v4603, %v4599
    %v4606 = vsel %vm4605, 1, 0
    %v4607 = vadd.s32 %v4603, %v4599
    %v4608 = vadd.s32 %v4604, %v4606
    %v4609 = vadd.s32 %v4608, %v4598
    %v4610 = vadd.s32 %v4609, %v4600
    %v4611 = vand.u32 %v4588, 65535
    %v4612 = vshrl.u32 %v4588, 16
    %v4613 = vand.u32 %v4583, 65535
    %v4614 = vshrl.u32 %v4583, 16
    %v4615 = vmul.u32 %v4611, %v4613
    %v4616 = vmul.u32 %v4611, %v4614
    %v4617 = vmul.u32 %v4612, %v4613
    %v4618 = vmul.u32 %v4612, %v4614
    %v4619 = vshll.u32 %v4616, 16
    %v4620 = vshrl.u32 %v4616, 16
    %v4621 = vshll.u32 %v4617, 16
    %v4622 = vshrl.u32 %v4617, 16
    %vm4623 = vc.u32 %v4615, %v4619
    %v4624 = vsel %vm4623, 1, 0
    %v4625 = vadd.s32 %v4615, %v4619
    %v4626 = vadd.s32 %v4618, %v4624
    %vm4627 = vc.u32 %v4625, %v4621
    %v4628 = vsel %vm4627, 1, 0
    %v4629 = vadd.s32 %v4625, %v4621
    %v4630 = vadd.s32 %v4626, %v4628
    %v4631 = vadd.s32 %v4630, %v4620
    %v4632 = vadd.s32 %v4631, %v4622
    %v4633 = vmul.u32 %v4588, %v4579
    %v4634 = vadd.s32 %v4610, %v4629
    %vm4635 = vc.u32 %v4610, %v4629
    %v4636 = vadd.s32 %v4632, 1
    %v4637 = vsel %vm4635, %v4636, %v4632
    %v4638 = vadd.s32 %v4633, %v4637
    %v4639 = vadd.s32 %v4638, 536870912
    %v4640 = vshrl.u32 %v4639, 30
    %v4641 = vshll.u32 %v4640, 30
    %v4642 = vsub.s32 %v4638, %v4641
    %vm4643 = vcmp.lt.s32.totalorder %v4642, 0
    %v4644 = vsub.s32 0, %v4642
    %v4645 = vsel %vm4643, %v4644, %v4642
    %v4646 = vclz %v4645
    %v4647 = vsub.s32 %v4646, 2
    %vm4648 = vcmp.gt.s32.totalorder 0, %v4647
    %v4649 = vsel %vm4648, 0, %v4647
    %v4650 = vsub.s32 32, %v4649
    %v4651 = vshll.u32 %v4642, %v4649
    %v4652 = vshrl.u32 %v4634, %v4650
    %v4653 = vor.u32 %v4651, %v4652
    %v4654 = vsub.s32 4294967266, %v4649
    %v4655 = vadd.s32 %v4654, 127
    %v4656 = vshll.u32 %v4655, 23
    %v4657 = vor.u32 4788187, %v4656
    %v4658 = vand.u32 2147483647, %v4657
    %v4660 = vcvt.s32.f32 %v4653
    %v4661 = vmul.f32 %v4660, %v4658
    %v4662 = vxor.u32 %v4661, 2147483648
    %v4663 = vsel %vm4542, %v4662, %v4661
    %v4664 = vsub.s32 4, %v4640
    %v4665 = vsel %vm4542, %v4664, %v4640
    %v4666 = vsel %vm4541, %v149, %v4663
    %v4667 = vsel %vm4541, 0, %v4665
    %v4668 = vmul.f32 %v4666, %v4666
    %v4669 = vmul.f32 %v4668, -0.001358992
    %v4670 = vadd.f32 %v4669, 0.041655596
    %v4671 = vmul.f32 %v4668, %v4670
    %v4672 = vadd.f32 %v4671, -0.4999988
    %v4673 = vmul.f32 %v4668, %v4672
    %v4674 = vadd.f32 1.0, %v4673
    %v4675 = vmul.f32 %v4666, %v4666
    %v4676 = vmul.f32 %v4675, -0.00019511016
    %v4677 = vadd.f32 %v4676, 0.008332121
    %v4678 = vmul.f32 %v4675, %v4677
    %v4679 = vadd.f32 %v4678, -0.16666654
    %v4680 = vmul.f32 %v4675, %v4679
    %v4681 = vadd.f32 %v4680, 1.0
    %v4682 = vmul.f32 %v4681, %v4666
    %vm4683 = vweird.f32 %v149
    %v4684 = vadd.s32 %v4667, 3
    %v4685 = vand.u32 %v4684, 3
    %vm4686 = vcmp.lt.s32.totalorder %v4685, 2
    %vm4687 = vcmp.eq.s32.totalorder %v4685, 0
    %v4688 = vxor.u32 %v4682, 2147483648
    %v4689 = vsel %vm4687, %v4674, %v4688
    %vm4690 = vcmp.eq.s32.totalorder %v4685, 2
    %v4691 = vxor.u32 %v4674, 2147483648
    %v4692 = vsel %vm4690, %v4691, %v4682
    %v4693 = vsel %vm4686, %v4689, %v4692
    %v4694 = vsel %vm4683, nan, %v4693
    %v4695 = vand.u32 2147483647, %v152
    %vm4696 = vcmp.le.f32.partialorder %v4695, 0.7853982
    %vm4697 = vcmp.lt.s32.totalorder %v152, 0
    %v4698 = vand.u32 %v152, 2139095040
    %v4699 = vshrl.u32 %v4698, 23
    %v4700 = vsub.s32 %v4699, 127
    %v4701 = vand.u32 2147483647, %v152
    %v4702 = vand.u32 %v4701, 8388607
    %v4703 = vor.u32 %v4702, 8388608
    %v4704 = vsub.s32 0, %v4703
    %v4705 = vadd.s32 %v4700, 1
    %vm4706 = vcmp.gt.s32.totalorder %v4705, 0
    %v4707 = vsel %vm4706, %v4705, 0
    %v4708 = vshrl.u32 %v4707, 5
    %v4709 = vand.u32 %v4707, 31
    %v4710 = vsub.s32 32, %v4709
    %v4711 = vshrl.u32 683565275, %v4710
    %v4712 = vshll.u32 683565275, %v4709
    %v4713 = vshrl.u32 2475754826, %v4710
    %v4714 = vor.u32 %v4712, %v4713
    %v4715 = vshll.u32 2475754826, %v4709
    %v4716 = vshrl.u32 2131351028, %v4710
    %v4717 = vor.u32 %v4715, %v4716
    %v4718 = vshll.u32 2131351028, %v4709
    %v4719 = vshrl.u32 2102212464, %v4710
    %v4720 = vor.u32 %v4718, %v4719
    %v4721 = vshll.u32 2102212464, %v4709
    %v4722 = vshrl.u32 920167782, %v4710
    %v4723 = vor.u32 %v4721, %v4722
    %v4724 = vshll.u32 920167782, %v4709
    %v4725 = vshrl.u32 1326507024, %v4710
    %v4726 = vor.u32 %v4724, %v4725
    %vm4727 = vcmp.lt.s32.totalorder %v4708, 1
    %vm4728 = vcmp.lt.s32.totalorder %v4708, 2
    %vm4729 = vcmp.lt.s32.totalorder %v4708, 3
    %vm4730 = vcmp.lt.s32.totalorder %v4708, 4
    %v4731 = vsel %vm4727, %v4711, %v4714
    %v4732 = vsel %vm4730, %v4720, 2102212464
    %v4733 = vsel %vm4729, %v4717, %v4732
    %v4734 = vsel %vm4728, %v4731, %v4733
    %v4735 = vsel %vm4727, %v4714, %v4717
    %v4736 = vsel %vm4730, %v4723, 920167782
    %v4737 = vsel %vm4729, %v4720, %v4736
    %v4738 = vsel %vm4728, %v4735, %v4737
    %v4739 = vsel %vm4727, %v4717, %v4720
    %v4740 = vsel %vm4730, %v4726, 1326507024
    %v4741 = vsel %vm4729, %v4723, %v4740
    %v4742 = vsel %vm4728, %v4739, %v4741
    %v4743 = vshll.u32 %v4703, 8
    %v4744 = vand.u32 %v4743, 65535
    %v4745 = vshrl.u32 %v4743, 16
    %v4746 = vand.u32 %v4742, 65535
    %v4747 = vshrl.u32 %v4742, 16
    %v4748 = vmul.u32 %v4744, %v4746
    %v4749 = vmul.u32 %v4744, %v4747
    %v4750 = vmul.u32 %v4745, %v4746
    %v4751 = vmul.u32 %v4745, %v4747
    %v4752 = vshll.u32 %v4749, 16
    %v4753 = vshrl.u32 %v4749, 16
    %v4754 = vshll.u32 %v4750, 16
    %v4755 = vshrl.u32 %v4750, 16
    %vm4756 = vc.u32 %v4748, %v4752
    %v4757 = vsel %vm4756, 1, 0
    %v4758 = vadd.s32 %v4748, %v4752
    %v4759 = vadd.s32 %v4751, %v4757
    %vm4760 = vc.u32 %v4758, %v4754
    %v4761 = vsel %vm4760, 1, 0
    %v4762 = vadd.s32 %v4758, %v4754
    %v4763 = vadd.s32 %v4759, %v4761
    %v4764 = vadd.s32 %v4763, %v4753
    %v4765 = vadd.s32 %v4764, %v4755
    %v4766 = vand.u32 %v4743, 65535
    %v4767 = vshrl.u32 %v4743, 16
    %v4768 = vand.u32 %v4738, 65535
    %v4769 = vshrl.u32 %v4738, 16
    %v4770 = vmul.u32 %v4766, %v4768
    %v4771 = vmul.u32 %v4766, %v4769
    %v4772 = vmul.u32 %v4767, %v4768
    %v4773 = vmul.u32 %v4767, %v4769
    %v4774 = vshll.u32 %v4771, 16
    %v4775 = vshrl.u32 %v4771, 16
    %v4776 = vshll.u32 %v4772, 16
    %v4777 = vshrl.u32 %v4772, 16
    %vm4778 = vc.u32 %v4770, %v4774
    %v4779 = vsel %vm4778, 1, 0
    %v4780 = vadd.s32 %v4770, %v4774
    %v4781 = vadd.s32 %v4773, %v4779
    %vm4782 = vc.u32 %v4780, %v4776
    %v4783 = vsel %vm4782, 1, 0
    %v4784 = vadd.s32 %v4780, %v4776
    %v4785 = vadd.s32 %v4781, %v4783
    %v4786 = vadd.s32 %v4785, %v4775
    %v4787 = vadd.s32 %v4786, %v4777
    %v4788 = vmul.u32 %v4743, %v4734
    %v4789 = vadd.s32 %v4765, %v4784
    %vm4790 = vc.u32 %v4765, %v4784
    %v4791 = vadd.s32 %v4787, 1
    %v4792 = vsel %vm4790, %v4791, %v4787
    %v4793 = vadd.s32 %v4788, %v4792
    %v4794 = vadd.s32 %v4793, 536870912
    %v4795 = vshrl.u32 %v4794, 30
    %v4796 = vshll.u32 %v4795, 30
    %v4797 = vsub.s32 %v4793, %v4796
    %vm4798 = vcmp.lt.s32.totalorder %v4797, 0
    %v4799 = vsub.s32 0, %v4797
    %v4800 = vsel %vm4798, %v4799, %v4797
    %v4801 = vclz %v4800
    %v4802 = vsub.s32 %v4801, 2
    %vm4803 = vcmp.gt.s32.totalorder 0, %v4802
    %v4804 = vsel %vm4803, 0, %v4802
    %v4805 = vsub.s32 32, %v4804
    %v4806 = vshll.u32 %v4797, %v4804
    %v4807 = vshrl.u32 %v4789, %v4805
    %v4808 = vor.u32 %v4806, %v4807
    %v4809 = vsub.s32 4294967266, %v4804
    %v4810 = vadd.s32 %v4809, 127
    %v4811 = vshll.u32 %v4810, 23
    %v4812 = vor.u32 4788187, %v4811
    %v4813 = vand.u32 2147483647, %v4812
    %v4815 = vcvt.s32.f32 %v4808
    %v4816 = vmul.f32 %v4815, %v4813
    %v4817 = vxor.u32 %v4816, 2147483648
    %v4818 = vsel %vm4697, %v4817, %v4816
    %v4819 = vsub.s32 4, %v4795
    %v4820 = vsel %vm4697, %v4819, %v4795
    %v4821 = vsel %vm4696, %v152, %v4818
    %v4822 = vsel %vm4696, 0, %v4820
    %v4823 = vmul.f32 %v4821, %v4821
    %v4824 = vmul.f32 %v4823, -0.001358992
    %v4825 = vadd.f32 %v4824, 0.041655596
    %v4826 = vmul.f32 %v4823, %v4825
    %v4827 = vadd.f32 %v4826, -0.4999988
    %v4828 = vmul.f32 %v4823, %v4827
    %v4829 = vadd.f32 1.0, %v4828
    %v4830 = vmul.f32 %v4821, %v4821
    %v4831 = vmul.f32 %v4830, -0.00019511016
    %v4832 = vadd.f32 %v4831, 0.008332121
    %v4833 = vmul.f32 %v4830, %v4832
    %v4834 = vadd.f32 %v4833, -0.16666654
    %v4835 = vmul.f32 %v4830, %v4834
    %v4836 = vadd.f32 %v4835, 1.0
    %v4837 = vmul.f32 %v4836, %v4821
    %vm4838 = vweird.f32 %v152
    %v4839 = vadd.s32 %v4822, 3
    %v4840 = vand.u32 %v4839, 3
    %vm4841 = vcmp.lt.s32.totalorder %v4840, 2
    %vm4842 = vcmp.eq.s32.totalorder %v4840, 0
    %v4843 = vxor.u32 %v4837, 2147483648
    %v4844 = vsel %vm4842, %v4829, %v4843
    %vm4845 = vcmp.eq.s32.totalorder %v4840, 2
    %v4846 = vxor.u32 %v4829, 2147483648
    %v4847 = vsel %vm4845, %v4846, %v4837
    %v4848 = vsel %vm4841, %v4844, %v4847
    %v4849 = vsel %vm4838, nan, %v4848
    %v4850 = vand.u32 2147483647, %v155
    %vm4851 = vcmp.le.f32.partialorder %v4850, 0.7853982
    %vm4852 = vcmp.lt.s32.totalorder %v155, 0
    %v4853 = vand.u32 %v155, 2139095040
    %v4854 = vshrl.u32 %v4853, 23
    %v4855 = vsub.s32 %v4854, 127
    %v4856 = vand.u32 2147483647, %v155
    %v4857 = vand.u32 %v4856, 8388607
    %v4858 = vor.u32 %v4857, 8388608
    %v4859 = vsub.s32 0, %v4858
    %v4860 = vadd.s32 %v4855, 1
    %vm4861 = vcmp.gt.s32.totalorder %v4860, 0
    %v4862 = vsel %vm4861, %v4860, 0
    %v4863 = vshrl.u32 %v4862, 5
    %v4864 = vand.u32 %v4862, 31
    %v4865 = vsub.s32 32, %v4864
    %v4866 = vshrl.u32 683565275, %v4865
    %v4867 = vshll.u32 683565275, %v4864
    %v4868 = vshrl.u32 2475754826, %v4865
    %v4869 = vor.u32 %v4867, %v4868
    %v4870 = vshll.u32 2475754826, %v4864
    %v4871 = vshrl.u32 2131351028, %v4865
    %v4872 = vor.u32 %v4870, %v4871
    %v4873 = vshll.u32 2131351028, %v4864
    %v4874 = vshrl.u32 2102212464, %v4865
    %v4875 = vor.u32 %v4873, %v4874
    %v4876 = vshll.u32 2102212464, %v4864
    %v4877 = vshrl.u32 920167782, %v4865
    %v4878 = vor.u32 %v4876, %v4877
    %v4879 = vshll.u32 920167782, %v4864
    %v4880 = vshrl.u32 1326507024, %v4865
    %v4881 = vor.u32 %v4879, %v4880
    %vm4882 = vcmp.lt.s32.totalorder %v4863, 1
    %vm4883 = vcmp.lt.s32.totalorder %v4863, 2
    %vm4884 = vcmp.lt.s32.totalorder %v4863, 3
    %vm4885 = vcmp.lt.s32.totalorder %v4863, 4
    %v4886 = vsel %vm4882, %v4866, %v4869
    %v4887 = vsel %vm4885, %v4875, 2102212464
    %v4888 = vsel %vm4884, %v4872, %v4887
    %v4889 = vsel %vm4883, %v4886, %v4888
    %v4890 = vsel %vm4882, %v4869, %v4872
    %v4891 = vsel %vm4885, %v4878, 920167782
    %v4892 = vsel %vm4884, %v4875, %v4891
    %v4893 = vsel %vm4883, %v4890, %v4892
    %v4894 = vsel %vm4882, %v4872, %v4875
    %v4895 = vsel %vm4885, %v4881, 1326507024
    %v4896 = vsel %vm4884, %v4878, %v4895
    %v4897 = vsel %vm4883, %v4894, %v4896
    %v4898 = vshll.u32 %v4858, 8
    %v4899 = vand.u32 %v4898, 65535
    %v4900 = vshrl.u32 %v4898, 16
    %v4901 = vand.u32 %v4897, 65535
    %v4902 = vshrl.u32 %v4897, 16
    %v4903 = vmul.u32 %v4899, %v4901
    %v4904 = vmul.u32 %v4899, %v4902
    %v4905 = vmul.u32 %v4900, %v4901
    %v4906 = vmul.u32 %v4900, %v4902
    %v4907 = vshll.u32 %v4904, 16
    %v4908 = vshrl.u32 %v4904, 16
    %v4909 = vshll.u32 %v4905, 16
    %v4910 = vshrl.u32 %v4905, 16
    %vm4911 = vc.u32 %v4903, %v4907
    %v4912 = vsel %vm4911, 1, 0
    %v4913 = vadd.s32 %v4903, %v4907
    %v4914 = vadd.s32 %v4906, %v4912
    %vm4915 = vc.u32 %v4913, %v4909
    %v4916 = vsel %vm4915, 1, 0
    %v4917 = vadd.s32 %v4913, %v4909
    %v4918 = vadd.s32 %v4914, %v4916
    %v4919 = vadd.s32 %v4918, %v4908
    %v4920 = vadd.s32 %v4919, %v4910
    %v4921 = vand.u32 %v4898, 65535
    %v4922 = vshrl.u32 %v4898, 16
    %v4923 = vand.u32 %v4893, 65535
    %v4924 = vshrl.u32 %v4893, 16
    %v4925 = vmul.u32 %v4921, %v4923
    %v4926 = vmul.u32 %v4921, %v4924
    %v4927 = vmul.u32 %v4922, %v4923
    %v4928 = vmul.u32 %v4922, %v4924
    %v4929 = vshll.u32 %v4926, 16
    %v4930 = vshrl.u32 %v4926, 16
    %v4931 = vshll.u32 %v4927, 16
    %v4932 = vshrl.u32 %v4927, 16
    %vm4933 = vc.u32 %v4925, %v4929
    %v4934 = vsel %vm4933, 1, 0
    %v4935 = vadd.s32 %v4925, %v4929
    %v4936 = vadd.s32 %v4928, %v4934
    %vm4937 = vc.u32 %v4935, %v4931
    %v4938 = vsel %vm4937, 1, 0
    %v4939 = vadd.s32 %v4935, %v4931
    %v4940 = vadd.s32 %v4936, %v4938
    %v4941 = vadd.s32 %v4940, %v4930
    %v4942 = vadd.s32 %v4941, %v4932
    %v4943 = vmul.u32 %v4898, %v4889
    %v4944 = vadd.s32 %v4920, %v4939
    %vm4945 = vc.u32 %v4920, %v4939
    %v4946 = vadd.s32 %v4942, 1
    %v4947 = vsel %vm4945, %v4946, %v4942
    %v4948 = vadd.s32 %v4943, %v4947
    %v4949 = vadd.s32 %v4948, 536870912
    %v4950 = vshrl.u32 %v4949, 30
    %v4951 = vshll.u32 %v4950, 30
    %v4952 = vsub.s32 %v4948, %v4951
    %vm4953 = vcmp.lt.s32.totalorder %v4952, 0
    %v4954 = vsub.s32 0, %v4952
    %v4955 = vsel %vm4953, %v4954, %v4952
    %v4956 = vclz %v4955
    %v4957 = vsub.s32 %v4956, 2
    %vm4958 = vcmp.gt.s32.totalorder 0, %v4957
    %v4959 = vsel %vm4958, 0, %v4957
    %v4960 = vsub.s32 32, %v4959
    %v4961 = vshll.u32 %v4952, %v4959
    %v4962 = vshrl.u32 %v4944, %v4960
    %v4963 = vor.u32 %v4961, %v4962
    %v4964 = vsub.s32 4294967266, %v4959
    %v4965 = vadd.s32 %v4964, 127
    %v4966 = vshll.u32 %v4965, 23
    %v4967 = vor.u32 4788187, %v4966
    %v4968 = vand.u32 2147483647, %v4967
    %v4970 = vcvt.s32.f32 %v4963
    %v4971 = vmul.f32 %v4970, %v4968
    %v4972 = vxor.u32 %v4971, 2147483648
    %v4973 = vsel %vm4852, %v4972, %v4971
    %v4974 = vsub.s32 4, %v4950
    %v4975 = vsel %vm4852, %v4974, %v4950
    %v4976 = vsel %vm4851, %v155, %v4973
    %v4977 = vsel %vm4851, 0, %v4975
    %v4978 = vmul.f32 %v4976, %v4976
    %v4979 = vmul.f32 %v4978, -0.001358992
    %v4980 = vadd.f32 %v4979, 0.041655596
    %v4981 = vmul.f32 %v4978, %v4980
    %v4982 = vadd.f32 %v4981, -0.4999988
    %v4983 = vmul.f32 %v4978, %v4982
    %v4984 = vadd.f32 1.0, %v4983
    %v4985 = vmul.f32 %v4976, %v4976
    %v4986 = vmul.f32 %v4985, -0.00019511016
    %v4987 = vadd.f32 %v4986, 0.008332121
    %v4988 = vmul.f32 %v4985, %v4987
    %v4989 = vadd.f32 %v4988, -0.16666654
    %v4990 = vmul.f32 %v4985, %v4989
    %v4991 = vadd.f32 %v4990, 1.0
    %v4992 = vmul.f32 %v4991, %v4976
    %vm4993 = vweird.f32 %v155
    %v4994 = vadd.s32 %v4977, 3
    %v4995 = vand.u32 %v4994, 3
    %vm4996 = vcmp.lt.s32.totalorder %v4995, 2
    %vm4997 = vcmp.eq.s32.totalorder %v4995, 0
    %v4998 = vxor.u32 %v4992, 2147483648
    %v4999 = vsel %vm4997, %v4984, %v4998
    %vm5000 = vcmp.eq.s32.totalorder %v4995, 2
    %v5001 = vxor.u32 %v4984, 2147483648
    %v5002 = vsel %vm5000, %v5001, %v4992
    %v5003 = vsel %vm4996, %v4999, %v5002
    %v5004 = vsel %vm4993, nan, %v5003
    %v5005 = vand.u32 2147483647, %v158
    %vm5006 = vcmp.le.f32.partialorder %v5005, 0.7853982
    %vm5007 = vcmp.lt.s32.totalorder %v158, 0
    %v5008 = vand.u32 %v158, 2139095040
    %v5009 = vshrl.u32 %v5008, 23
    %v5010 = vsub.s32 %v5009, 127
    %v5011 = vand.u32 2147483647, %v158
    %v5012 = vand.u32 %v5011, 8388607
    %v5013 = vor.u32 %v5012, 8388608
    %v5014 = vsub.s32 0, %v5013
    %v5015 = vadd.s32 %v5010, 1
    %vm5016 = vcmp.gt.s32.totalorder %v5015, 0
    %v5017 = vsel %vm5016, %v5015, 0
    %v5018 = vshrl.u32 %v5017, 5
    %v5019 = vand.u32 %v5017, 31
    %v5020 = vsub.s32 32, %v5019
    %v5021 = vshrl.u32 683565275, %v5020
    %v5022 = vshll.u32 683565275, %v5019
    %v5023 = vshrl.u32 2475754826, %v5020
    %v5024 = vor.u32 %v5022, %v5023
    %v5025 = vshll.u32 2475754826, %v5019
    %v5026 = vshrl.u32 2131351028, %v5020
    %v5027 = vor.u32 %v5025, %v5026
    %v5028 = vshll.u32 2131351028, %v5019
    %v5029 = vshrl.u32 2102212464, %v5020
    %v5030 = vor.u32 %v5028, %v5029
    %v5031 = vshll.u32 2102212464, %v5019
    %v5032 = vshrl.u32 920167782, %v5020
    %v5033 = vor.u32 %v5031, %v5032
    %v5034 = vshll.u32 920167782, %v5019
    %v5035 = vshrl.u32 1326507024, %v5020
    %v5036 = vor.u32 %v5034, %v5035
    %vm5037 = vcmp.lt.s32.totalorder %v5018, 1
    %vm5038 = vcmp.lt.s32.totalorder %v5018, 2
    %vm5039 = vcmp.lt.s32.totalorder %v5018, 3
    %vm5040 = vcmp.lt.s32.totalorder %v5018, 4
    %v5041 = vsel %vm5037, %v5021, %v5024
    %v5042 = vsel %vm5040, %v5030, 2102212464
    %v5043 = vsel %vm5039, %v5027, %v5042
    %v5044 = vsel %vm5038, %v5041, %v5043
    %v5045 = vsel %vm5037, %v5024, %v5027
    %v5046 = vsel %vm5040, %v5033, 920167782
    %v5047 = vsel %vm5039, %v5030, %v5046
    %v5048 = vsel %vm5038, %v5045, %v5047
    %v5049 = vsel %vm5037, %v5027, %v5030
    %v5050 = vsel %vm5040, %v5036, 1326507024
    %v5051 = vsel %vm5039, %v5033, %v5050
    %v5052 = vsel %vm5038, %v5049, %v5051
    %v5053 = vshll.u32 %v5013, 8
    %v5054 = vand.u32 %v5053, 65535
    %v5055 = vshrl.u32 %v5053, 16
    %v5056 = vand.u32 %v5052, 65535
    %v5057 = vshrl.u32 %v5052, 16
    %v5058 = vmul.u32 %v5054, %v5056
    %v5059 = vmul.u32 %v5054, %v5057
    %v5060 = vmul.u32 %v5055, %v5056
    %v5061 = vmul.u32 %v5055, %v5057
    %v5062 = vshll.u32 %v5059, 16
    %v5063 = vshrl.u32 %v5059, 16
    %v5064 = vshll.u32 %v5060, 16
    %v5065 = vshrl.u32 %v5060, 16
    %vm5066 = vc.u32 %v5058, %v5062
    %v5067 = vsel %vm5066, 1, 0
    %v5068 = vadd.s32 %v5058, %v5062
    %v5069 = vadd.s32 %v5061, %v5067
    %vm5070 = vc.u32 %v5068, %v5064
    %v5071 = vsel %vm5070, 1, 0
    %v5072 = vadd.s32 %v5068, %v5064
    %v5073 = vadd.s32 %v5069, %v5071
    %v5074 = vadd.s32 %v5073, %v5063
    %v5075 = vadd.s32 %v5074, %v5065
    %v5076 = vand.u32 %v5053, 65535
    %v5077 = vshrl.u32 %v5053, 16
    %v5078 = vand.u32 %v5048, 65535
    %v5079 = vshrl.u32 %v5048, 16
    %v5080 = vmul.u32 %v5076, %v5078
    %v5081 = vmul.u32 %v5076, %v5079
    %v5082 = vmul.u32 %v5077, %v5078
    %v5083 = vmul.u32 %v5077, %v5079
    %v5084 = vshll.u32 %v5081, 16
    %v5085 = vshrl.u32 %v5081, 16
    %v5086 = vshll.u32 %v5082, 16
    %v5087 = vshrl.u32 %v5082, 16
    %vm5088 = vc.u32 %v5080, %v5084
    %v5089 = vsel %vm5088, 1, 0
    %v5090 = vadd.s32 %v5080, %v5084
    %v5091 = vadd.s32 %v5083, %v5089
    %vm5092 = vc.u32 %v5090, %v5086
    %v5093 = vsel %vm5092, 1, 0
    %v5094 = vadd.s32 %v5090, %v5086
    %v5095 = vadd.s32 %v5091, %v5093
    %v5096 = vadd.s32 %v5095, %v5085
    %v5097 = vadd.s32 %v5096, %v5087
    %v5098 = vmul.u32 %v5053, %v5044
    %v5099 = vadd.s32 %v5075, %v5094
    %vm5100 = vc.u32 %v5075, %v5094
    %v5101 = vadd.s32 %v5097, 1
    %v5102 = vsel %vm5100, %v5101, %v5097
    %v5103 = vadd.s32 %v5098, %v5102
    %v5104 = vadd.s32 %v5103, 536870912
    %v5105 = vshrl.u32 %v5104, 30
    %v5106 = vshll.u32 %v5105, 30
    %v5107 = vsub.s32 %v5103, %v5106
    %vm5108 = vcmp.lt.s32.totalorder %v5107, 0
    %v5109 = vsub.s32 0, %v5107
    %v5110 = vsel %vm5108, %v5109, %v5107
    %v5111 = vclz %v5110
    %v5112 = vsub.s32 %v5111, 2
    %vm5113 = vcmp.gt.s32.totalorder 0, %v5112
    %v5114 = vsel %vm5113, 0, %v5112
    %v5115 = vsub.s32 32, %v5114
    %v5116 = vshll.u32 %v5107, %v5114
    %v5117 = vshrl.u32 %v5099, %v5115
    %v5118 = vor.u32 %v5116, %v5117
    %v5119 = vsub.s32 4294967266, %v5114
    %v5120 = vadd.s32 %v5119, 127
    %v5121 = vshll.u32 %v5120, 23
    %v5122 = vor.u32 4788187, %v5121
    %v5123 = vand.u32 2147483647, %v5122
    %v5125 = vcvt.s32.f32 %v5118
    %v5126 = vmul.f32 %v5125, %v5123
    %v5127 = vxor.u32 %v5126, 2147483648
    %v5128 = vsel %vm5007, %v5127, %v5126
    %v5129 = vsub.s32 4, %v5105
    %v5130 = vsel %vm5007, %v5129, %v5105
    %v5131 = vsel %vm5006, %v158, %v5128
    %v5132 = vsel %vm5006, 0, %v5130
    %v5133 = vmul.f32 %v5131, %v5131
    %v5134 = vmul.f32 %v5133, -0.001358992
    %v5135 = vadd.f32 %v5134, 0.041655596
    %v5136 = vmul.f32 %v5133, %v5135
    %v5137 = vadd.f32 %v5136, -0.4999988
    %v5138 = vmul.f32 %v5133, %v5137
    %v5139 = vadd.f32 1.0, %v5138
    %v5140 = vmul.f32 %v5131, %v5131
    %v5141 = vmul.f32 %v5140, -0.00019511016
    %v5142 = vadd.f32 %v5141, 0.008332121
    %v5143 = vmul.f32 %v5140, %v5142
    %v5144 = vadd.f32 %v5143, -0.16666654
    %v5145 = vmul.f32 %v5140, %v5144
    %v5146 = vadd.f32 %v5145, 1.0
    %v5147 = vmul.f32 %v5146, %v5131
    %vm5148 = vweird.f32 %v158
    %v5149 = vadd.s32 %v5132, 3
    %v5150 = vand.u32 %v5149, 3
    %vm5151 = vcmp.lt.s32.totalorder %v5150, 2
    %vm5152 = vcmp.eq.s32.totalorder %v5150, 0
    %v5153 = vxor.u32 %v5147, 2147483648
    %v5154 = vsel %vm5152, %v5139, %v5153
    %vm5155 = vcmp.eq.s32.totalorder %v5150, 2
    %v5156 = vxor.u32 %v5139, 2147483648
    %v5157 = vsel %vm5155, %v5156, %v5147
    %v5158 = vsel %vm5151, %v5154, %v5157
    %v5159 = vsel %vm5148, nan, %v5158
    %v5160 = vand.u32 2147483647, %v161
    %vm5161 = vcmp.le.f32.partialorder %v5160, 0.7853982
    %vm5162 = vcmp.lt.s32.totalorder %v161, 0
    %v5163 = vand.u32 %v161, 2139095040
    %v5164 = vshrl.u32 %v5163, 23
    %v5165 = vsub.s32 %v5164, 127
    %v5166 = vand.u32 2147483647, %v161
    %v5167 = vand.u32 %v5166, 8388607
    %v5168 = vor.u32 %v5167, 8388608
    %v5169 = vsub.s32 0, %v5168
    %v5170 = vadd.s32 %v5165, 1
    %vm5171 = vcmp.gt.s32.totalorder %v5170, 0
    %v5172 = vsel %vm5171, %v5170, 0
    %v5173 = vshrl.u32 %v5172, 5
    %v5174 = vand.u32 %v5172, 31
    %v5175 = vsub.s32 32, %v5174
    %v5176 = vshrl.u32 683565275, %v5175
    %v5177 = vshll.u32 683565275, %v5174
    %v5178 = vshrl.u32 2475754826, %v5175
    %v5179 = vor.u32 %v5177, %v5178
    %v5180 = vshll.u32 2475754826, %v5174
    %v5181 = vshrl.u32 2131351028, %v5175
    %v5182 = vor.u32 %v5180, %v5181
    %v5183 = vshll.u32 2131351028, %v5174
    %v5184 = vshrl.u32 2102212464, %v5175
    %v5185 = vor.u32 %v5183, %v5184
    %v5186 = vshll.u32 2102212464, %v5174
    %v5187 = vshrl.u32 920167782, %v5175
    %v5188 = vor.u32 %v5186, %v5187
    %v5189 = vshll.u32 920167782, %v5174
    %v5190 = vshrl.u32 1326507024, %v5175
    %v5191 = vor.u32 %v5189, %v5190
    %vm5192 = vcmp.lt.s32.totalorder %v5173, 1
    %vm5193 = vcmp.lt.s32.totalorder %v5173, 2
    %vm5194 = vcmp.lt.s32.totalorder %v5173, 3
    %vm5195 = vcmp.lt.s32.totalorder %v5173, 4
    %v5196 = vsel %vm5192, %v5176, %v5179
    %v5197 = vsel %vm5195, %v5185, 2102212464
    %v5198 = vsel %vm5194, %v5182, %v5197
    %v5199 = vsel %vm5193, %v5196, %v5198
    %v5200 = vsel %vm5192, %v5179, %v5182
    %v5201 = vsel %vm5195, %v5188, 920167782
    %v5202 = vsel %vm5194, %v5185, %v5201
    %v5203 = vsel %vm5193, %v5200, %v5202
    %v5204 = vsel %vm5192, %v5182, %v5185
    %v5205 = vsel %vm5195, %v5191, 1326507024
    %v5206 = vsel %vm5194, %v5188, %v5205
    %v5207 = vsel %vm5193, %v5204, %v5206
    %v5208 = vshll.u32 %v5168, 8
    %v5209 = vand.u32 %v5208, 65535
    %v5210 = vshrl.u32 %v5208, 16
    %v5211 = vand.u32 %v5207, 65535
    %v5212 = vshrl.u32 %v5207, 16
    %v5213 = vmul.u32 %v5209, %v5211
    %v5214 = vmul.u32 %v5209, %v5212
    %v5215 = vmul.u32 %v5210, %v5211
    %v5216 = vmul.u32 %v5210, %v5212
    %v5217 = vshll.u32 %v5214, 16
    %v5218 = vshrl.u32 %v5214, 16
    %v5219 = vshll.u32 %v5215, 16
    %v5220 = vshrl.u32 %v5215, 16
    %vm5221 = vc.u32 %v5213, %v5217
    %v5222 = vsel %vm5221, 1, 0
    %v5223 = vadd.s32 %v5213, %v5217
    %v5224 = vadd.s32 %v5216, %v5222
    %vm5225 = vc.u32 %v5223, %v5219
    %v5226 = vsel %vm5225, 1, 0
    %v5227 = vadd.s32 %v5223, %v5219
    %v5228 = vadd.s32 %v5224, %v5226
    %v5229 = vadd.s32 %v5228, %v5218
    %v5230 = vadd.s32 %v5229, %v5220
    %v5231 = vand.u32 %v5208, 65535
    %v5232 = vshrl.u32 %v5208, 16
    %v5233 = vand.u32 %v5203, 65535
    %v5234 = vshrl.u32 %v5203, 16
    %v5235 = vmul.u32 %v5231, %v5233
    %v5236 = vmul.u32 %v5231, %v5234
    %v5237 = vmul.u32 %v5232, %v5233
    %v5238 = vmul.u32 %v5232, %v5234
    %v5239 = vshll.u32 %v5236, 16
    %v5240 = vshrl.u32 %v5236, 16
    %v5241 = vshll.u32 %v5237, 16
    %v5242 = vshrl.u32 %v5237, 16
    %vm5243 = vc.u32 %v5235, %v5239
    %v5244 = vsel %vm5243, 1, 0
    %v5245 = vadd.s32 %v5235, %v5239
    %v5246 = vadd.s32 %v5238, %v5244
    %vm5247 = vc.u32 %v5245, %v5241
    %v5248 = vsel %vm5247, 1, 0
    %v5249 = vadd.s32 %v5245, %v5241
    %v5250 = vadd.s32 %v5246, %v5248
    %v5251 = vadd.s32 %v5250, %v5240
    %v5252 = vadd.s32 %v5251, %v5242
    %v5253 = vmul.u32 %v5208, %v5199
    %v5254 = vadd.s32 %v5230, %v5249
    %vm5255 = vc.u32 %v5230, %v5249
    %v5256 = vadd.s32 %v5252, 1
    %v5257 = vsel %vm5255, %v5256, %v5252
    %v5258 = vadd.s32 %v5253, %v5257
    %v5259 = vadd.s32 %v5258, 536870912
    %v5260 = vshrl.u32 %v5259, 30
    %v5261 = vshll.u32 %v5260, 30
    %v5262 = vsub.s32 %v5258, %v5261
    %vm5263 = vcmp.lt.s32.totalorder %v5262, 0
    %v5264 = vsub.s32 0, %v5262
    %v5265 = vsel %vm5263, %v5264, %v5262
    %v5266 = vclz %v5265
    %v5267 = vsub.s32 %v5266, 2
    %vm5268 = vcmp.gt.s32.totalorder 0, %v5267
    %v5269 = vsel %vm5268, 0, %v5267
    %v5270 = vsub.s32 32, %v5269
    %v5271 = vshll.u32 %v5262, %v5269
    %v5272 = vshrl.u32 %v5254, %v5270
    %v5273 = vor.u32 %v5271, %v5272
    %v5274 = vsub.s32 4294967266, %v5269
    %v5275 = vadd.s32 %v5274, 127
    %v5276 = vshll.u32 %v5275, 23
    %v5277 = vor.u32 4788187, %v5276
    %v5278 = vand.u32 2147483647, %v5277
    %v5280 = vcvt.s32.f32 %v5273
    %v5281 = vmul.f32 %v5280, %v5278
    %v5282 = vxor.u32 %v5281, 2147483648
    %v5283 = vsel %vm5162, %v5282, %v5281
    %v5284 = vsub.s32 4, %v5260
    %v5285 = vsel %vm5162, %v5284, %v5260
    %v5286 = vsel %vm5161, %v161, %v5283
    %v5287 = vsel %vm5161, 0, %v5285
    %v5288 = vmul.f32 %v5286, %v5286
    %v5289 = vmul.f32 %v5288, -0.001358992
    %v5290 = vadd.f32 %v5289, 0.041655596
    %v5291 = vmul.f32 %v5288, %v5290
    %v5292 = vadd.f32 %v5291, -0.4999988
    %v5293 = vmul.f32 %v5288, %v5292
    %v5294 = vadd.f32 1.0, %v5293
    %v5295 = vmul.f32 %v5286, %v5286
    %v5296 = vmul.f32 %v5295, -0.00019511016
    %v5297 = vadd.f32 %v5296, 0.008332121
    %v5298 = vmul.f32 %v5295, %v5297
    %v5299 = vadd.f32 %v5298, -0.16666654
    %v5300 = vmul.f32 %v5295, %v5299
    %v5301 = vadd.f32 %v5300, 1.0
    %v5302 = vmul.f32 %v5301, %v5286
    %vm5303 = vweird.f32 %v161
    %v5304 = vadd.s32 %v5287, 3
    %v5305 = vand.u32 %v5304, 3
    %vm5306 = vcmp.lt.s32.totalorder %v5305, 2
    %vm5307 = vcmp.eq.s32.totalorder %v5305, 0
    %v5308 = vxor.u32 %v5302, 2147483648
    %v5309 = vsel %vm5307, %v5294, %v5308
    %vm5310 = vcmp.eq.s32.totalorder %v5305, 2
    %v5311 = vxor.u32 %v5294, 2147483648
    %v5312 = vsel %vm5310, %v5311, %v5302
    %v5313 = vsel %vm5306, %v5309, %v5312
    %v5314 = vsel %vm5303, nan, %v5313
    %v5315 = vand.u32 2147483647, %v164
    %vm5316 = vcmp.le.f32.partialorder %v5315, 0.7853982
    %vm5317 = vcmp.lt.s32.totalorder %v164, 0
    %v5318 = vand.u32 %v164, 2139095040
    %v5319 = vshrl.u32 %v5318, 23
    %v5320 = vsub.s32 %v5319, 127
    %v5321 = vand.u32 2147483647, %v164
    %v5322 = vand.u32 %v5321, 8388607
    %v5323 = vor.u32 %v5322, 8388608
    %v5324 = vsub.s32 0, %v5323
    %v5325 = vadd.s32 %v5320, 1
    %vm5326 = vcmp.gt.s32.totalorder %v5325, 0
    %v5327 = vsel %vm5326, %v5325, 0
    %v5328 = vshrl.u32 %v5327, 5
    %v5329 = vand.u32 %v5327, 31
    %v5330 = vsub.s32 32, %v5329
    %v5331 = vshrl.u32 683565275, %v5330
    %v5332 = vshll.u32 683565275, %v5329
    %v5333 = vshrl.u32 2475754826, %v5330
    %v5334 = vor.u32 %v5332, %v5333
    %v5335 = vshll.u32 2475754826, %v5329
    %v5336 = vshrl.u32 2131351028, %v5330
    %v5337 = vor.u32 %v5335, %v5336
    %v5338 = vshll.u32 2131351028, %v5329
    %v5339 = vshrl.u32 2102212464, %v5330
    %v5340 = vor.u32 %v5338, %v5339
    %v5341 = vshll.u32 2102212464, %v5329
    %v5342 = vshrl.u32 920167782, %v5330
    %v5343 = vor.u32 %v5341, %v5342
    %v5344 = vshll.u32 920167782, %v5329
    %v5345 = vshrl.u32 1326507024, %v5330
    %v5346 = vor.u32 %v5344, %v5345
    %vm5347 = vcmp.lt.s32.totalorder %v5328, 1
    %vm5348 = vcmp.lt.s32.totalorder %v5328, 2
    %vm5349 = vcmp.lt.s32.totalorder %v5328, 3
    %vm5350 = vcmp.lt.s32.totalorder %v5328, 4
    %v5351 = vsel %vm5347, %v5331, %v5334
    %v5352 = vsel %vm5350, %v5340, 2102212464
    %v5353 = vsel %vm5349, %v5337, %v5352
    %v5354 = vsel %vm5348, %v5351, %v5353
    %v5355 = vsel %vm5347, %v5334, %v5337
    %v5356 = vsel %vm5350, %v5343, 920167782
    %v5357 = vsel %vm5349, %v5340, %v5356
    %v5358 = vsel %vm5348, %v5355, %v5357
    %v5359 = vsel %vm5347, %v5337, %v5340
    %v5360 = vsel %vm5350, %v5346, 1326507024
    %v5361 = vsel %vm5349, %v5343, %v5360
    %v5362 = vsel %vm5348, %v5359, %v5361
    %v5363 = vshll.u32 %v5323, 8
    %v5364 = vand.u32 %v5363, 65535
    %v5365 = vshrl.u32 %v5363, 16
    %v5366 = vand.u32 %v5362, 65535
    %v5367 = vshrl.u32 %v5362, 16
    %v5368 = vmul.u32 %v5364, %v5366
    %v5369 = vmul.u32 %v5364, %v5367
    %v5370 = vmul.u32 %v5365, %v5366
    %v5371 = vmul.u32 %v5365, %v5367
    %v5372 = vshll.u32 %v5369, 16
    %v5373 = vshrl.u32 %v5369, 16
    %v5374 = vshll.u32 %v5370, 16
    %v5375 = vshrl.u32 %v5370, 16
    %vm5376 = vc.u32 %v5368, %v5372
    %v5377 = vsel %vm5376, 1, 0
    %v5378 = vadd.s32 %v5368, %v5372
    %v5379 = vadd.s32 %v5371, %v5377
    %vm5380 = vc.u32 %v5378, %v5374
    %v5381 = vsel %vm5380, 1, 0
    %v5382 = vadd.s32 %v5378, %v5374
    %v5383 = vadd.s32 %v5379, %v5381
    %v5384 = vadd.s32 %v5383, %v5373
    %v5385 = vadd.s32 %v5384, %v5375
    %v5386 = vand.u32 %v5363, 65535
    %v5387 = vshrl.u32 %v5363, 16
    %v5388 = vand.u32 %v5358, 65535
    %v5389 = vshrl.u32 %v5358, 16
    %v5390 = vmul.u32 %v5386, %v5388
    %v5391 = vmul.u32 %v5386, %v5389
    %v5392 = vmul.u32 %v5387, %v5388
    %v5393 = vmul.u32 %v5387, %v5389
    %v5394 = vshll.u32 %v5391, 16
    %v5395 = vshrl.u32 %v5391, 16
    %v5396 = vshll.u32 %v5392, 16
    %v5397 = vshrl.u32 %v5392, 16
    %vm5398 = vc.u32 %v5390, %v5394
    %v5399 = vsel %vm5398, 1, 0
    %v5400 = vadd.s32 %v5390, %v5394
    %v5401 = vadd.s32 %v5393, %v5399
    %vm5402 = vc.u32 %v5400, %v5396
    %v5403 = vsel %vm5402, 1, 0
    %v5404 = vadd.s32 %v5400, %v5396
    %v5405 = vadd.s32 %v5401, %v5403
    %v5406 = vadd.s32 %v5405, %v5395
    %v5407 = vadd.s32 %v5406, %v5397
    %v5408 = vmul.u32 %v5363, %v5354
    %v5409 = vadd.s32 %v5385, %v5404
    %vm5410 = vc.u32 %v5385, %v5404
    %v5411 = vadd.s32 %v5407, 1
    %v5412 = vsel %vm5410, %v5411, %v5407
    %v5413 = vadd.s32 %v5408, %v5412
    %v5414 = vadd.s32 %v5413, 536870912
    %v5415 = vshrl.u32 %v5414, 30
    %v5416 = vshll.u32 %v5415, 30
    %v5417 = vsub.s32 %v5413, %v5416
    %vm5418 = vcmp.lt.s32.totalorder %v5417, 0
    %v5419 = vsub.s32 0, %v5417
    %v5420 = vsel %vm5418, %v5419, %v5417
    %v5421 = vclz %v5420
    %v5422 = vsub.s32 %v5421, 2
    %vm5423 = vcmp.gt.s32.totalorder 0, %v5422
    %v5424 = vsel %vm5423, 0, %v5422
    %v5425 = vsub.s32 32, %v5424
    %v5426 = vshll.u32 %v5417, %v5424
    %v5427 = vshrl.u32 %v5409, %v5425
    %v5428 = vor.u32 %v5426, %v5427
    %v5429 = vsub.s32 4294967266, %v5424
    %v5430 = vadd.s32 %v5429, 127
    %v5431 = vshll.u32 %v5430, 23
    %v5432 = vor.u32 4788187, %v5431
    %v5433 = vand.u32 2147483647, %v5432
    %v5435 = vcvt.s32.f32 %v5428
    %v5436 = vmul.f32 %v5435, %v5433
    %v5437 = vxor.u32 %v5436, 2147483648
    %v5438 = vsel %vm5317, %v5437, %v5436
    %v5439 = vsub.s32 4, %v5415
    %v5440 = vsel %vm5317, %v5439, %v5415
    %v5441 = vsel %vm5316, %v164, %v5438
    %v5442 = vsel %vm5316, 0, %v5440
    %v5443 = vmul.f32 %v5441, %v5441
    %v5444 = vmul.f32 %v5443, -0.001358992
    %v5445 = vadd.f32 %v5444, 0.041655596
    %v5446 = vmul.f32 %v5443, %v5445
    %v5447 = vadd.f32 %v5446, -0.4999988
    %v5448 = vmul.f32 %v5443, %v5447
    %v5449 = vadd.f32 1.0, %v5448
    %v5450 = vmul.f32 %v5441, %v5441
    %v5451 = vmul.f32 %v5450, -0.00019511016
    %v5452 = vadd.f32 %v5451, 0.008332121
    %v5453 = vmul.f32 %v5450, %v5452
    %v5454 = vadd.f32 %v5453, -0.16666654
    %v5455 = vmul.f32 %v5450, %v5454
    %v5456 = vadd.f32 %v5455, 1.0
    %v5457 = vmul.f32 %v5456, %v5441
    %vm5458 = vweird.f32 %v164
    %v5459 = vadd.s32 %v5442, 3
    %v5460 = vand.u32 %v5459, 3
    %vm5461 = vcmp.lt.s32.totalorder %v5460, 2
    %vm5462 = vcmp.eq.s32.totalorder %v5460, 0
    %v5463 = vxor.u32 %v5457, 2147483648
    %v5464 = vsel %vm5462, %v5449, %v5463
    %vm5465 = vcmp.eq.s32.totalorder %v5460, 2
    %v5466 = vxor.u32 %v5449, 2147483648
    %v5467 = vsel %vm5465, %v5466, %v5457
    %v5468 = vsel %vm5461, %v5464, %v5467
    %v5469 = vsel %vm5458, nan, %v5468
    %v5470 = vand.u32 2147483647, %v167
    %vm5471 = vcmp.le.f32.partialorder %v5470, 0.7853982
    %vm5472 = vcmp.lt.s32.totalorder %v167, 0
    %v5473 = vand.u32 %v167, 2139095040
    %v5474 = vshrl.u32 %v5473, 23
    %v5475 = vsub.s32 %v5474, 127
    %v5476 = vand.u32 2147483647, %v167
    %v5477 = vand.u32 %v5476, 8388607
    %v5478 = vor.u32 %v5477, 8388608
    %v5479 = vsub.s32 0, %v5478
    %v5480 = vadd.s32 %v5475, 1
    %vm5481 = vcmp.gt.s32.totalorder %v5480, 0
    %v5482 = vsel %vm5481, %v5480, 0
    %v5483 = vshrl.u32 %v5482, 5
    %v5484 = vand.u32 %v5482, 31
    %v5485 = vsub.s32 32, %v5484
    %v5486 = vshrl.u32 683565275, %v5485
    %v5487 = vshll.u32 683565275, %v5484
    %v5488 = vshrl.u32 2475754826, %v5485
    %v5489 = vor.u32 %v5487, %v5488
    %v5490 = vshll.u32 2475754826, %v5484
    %v5491 = vshrl.u32 2131351028, %v5485
    %v5492 = vor.u32 %v5490, %v5491
    %v5493 = vshll.u32 2131351028, %v5484
    %v5494 = vshrl.u32 2102212464, %v5485
    %v5495 = vor.u32 %v5493, %v5494
    %v5496 = vshll.u32 2102212464, %v5484
    %v5497 = vshrl.u32 920167782, %v5485
    %v5498 = vor.u32 %v5496, %v5497
    %v5499 = vshll.u32 920167782, %v5484
    %v5500 = vshrl.u32 1326507024, %v5485
    %v5501 = vor.u32 %v5499, %v5500
    %vm5502 = vcmp.lt.s32.totalorder %v5483, 1
    %vm5503 = vcmp.lt.s32.totalorder %v5483, 2
    %vm5504 = vcmp.lt.s32.totalorder %v5483, 3
    %vm5505 = vcmp.lt.s32.totalorder %v5483, 4
    %v5506 = vsel %vm5502, %v5486, %v5489
    %v5507 = vsel %vm5505, %v5495, 2102212464
    %v5508 = vsel %vm5504, %v5492, %v5507
    %v5509 = vsel %vm5503, %v5506, %v5508
    %v5510 = vsel %vm5502, %v5489, %v5492
    %v5511 = vsel %vm5505, %v5498, 920167782
    %v5512 = vsel %vm5504, %v5495, %v5511
    %v5513 = vsel %vm5503, %v5510, %v5512
    %v5514 = vsel %vm5502, %v5492, %v5495
    %v5515 = vsel %vm5505, %v5501, 1326507024
    %v5516 = vsel %vm5504, %v5498, %v5515
    %v5517 = vsel %vm5503, %v5514, %v5516
    %v5518 = vshll.u32 %v5478, 8
    %v5519 = vand.u32 %v5518, 65535
    %v5520 = vshrl.u32 %v5518, 16
    %v5521 = vand.u32 %v5517, 65535
    %v5522 = vshrl.u32 %v5517, 16
    %v5523 = vmul.u32 %v5519, %v5521
    %v5524 = vmul.u32 %v5519, %v5522
    %v5525 = vmul.u32 %v5520, %v5521
    %v5526 = vmul.u32 %v5520, %v5522
    %v5527 = vshll.u32 %v5524, 16
    %v5528 = vshrl.u32 %v5524, 16
    %v5529 = vshll.u32 %v5525, 16
    %v5530 = vshrl.u32 %v5525, 16
    %vm5531 = vc.u32 %v5523, %v5527
    %v5532 = vsel %vm5531, 1, 0
    %v5533 = vadd.s32 %v5523, %v5527
    %v5534 = vadd.s32 %v5526, %v5532
    %vm5535 = vc.u32 %v5533, %v5529
    %v5536 = vsel %vm5535, 1, 0
    %v5537 = vadd.s32 %v5533, %v5529
    %v5538 = vadd.s32 %v5534, %v5536
    %v5539 = vadd.s32 %v5538, %v5528
    %v5540 = vadd.s32 %v5539, %v5530
    %v5541 = vand.u32 %v5518, 65535
    %v5542 = vshrl.u32 %v5518, 16
    %v5543 = vand.u32 %v5513, 65535
    %v5544 = vshrl.u32 %v5513, 16
    %v5545 = vmul.u32 %v5541, %v5543
    %v5546 = vmul.u32 %v5541, %v5544
    %v5547 = vmul.u32 %v5542, %v5543
    %v5548 = vmul.u32 %v5542, %v5544
    %v5549 = vshll.u32 %v5546, 16
    %v5550 = vshrl.u32 %v5546, 16
    %v5551 = vshll.u32 %v5547, 16
    %v5552 = vshrl.u32 %v5547, 16
    %vm5553 = vc.u32 %v5545, %v5549
    %v5554 = vsel %vm5553, 1, 0
    %v5555 = vadd.s32 %v5545, %v5549
    %v5556 = vadd.s32 %v5548, %v5554
    %vm5557 = vc.u32 %v5555, %v5551
    %v5558 = vsel %vm5557, 1, 0
    %v5559 = vadd.s32 %v5555, %v5551
    %v5560 = vadd.s32 %v5556, %v5558
    %v5561 = vadd.s32 %v5560, %v5550
    %v5562 = vadd.s32 %v5561, %v5552
    %v5563 = vmul.u32 %v5518, %v5509
    %v5564 = vadd.s32 %v5540, %v5559
    %vm5565 = vc.u32 %v5540, %v5559
    %v5566 = vadd.s32 %v5562, 1
    %v5567 = vsel %vm5565, %v5566, %v5562
    %v5568 = vadd.s32 %v5563, %v5567
    %v5569 = vadd.s32 %v5568, 536870912
    %v5570 = vshrl.u32 %v5569, 30
    %v5571 = vshll.u32 %v5570, 30
    %v5572 = vsub.s32 %v5568, %v5571
    %vm5573 = vcmp.lt.s32.totalorder %v5572, 0
    %v5574 = vsub.s32 0, %v5572
    %v5575 = vsel %vm5573, %v5574, %v5572
    %v5576 = vclz %v5575
    %v5577 = vsub.s32 %v5576, 2
    %vm5578 = vcmp.gt.s32.totalorder 0, %v5577
    %v5579 = vsel %vm5578, 0, %v5577
    %v5580 = vsub.s32 32, %v5579
    %v5581 = vshll.u32 %v5572, %v5579
    %v5582 = vshrl.u32 %v5564, %v5580
    %v5583 = vor.u32 %v5581, %v5582
    %v5584 = vsub.s32 4294967266, %v5579
    %v5585 = vadd.s32 %v5584, 127
    %v5586 = vshll.u32 %v5585, 23
    %v5587 = vor.u32 4788187, %v5586
    %v5588 = vand.u32 2147483647, %v5587
    %v5590 = vcvt.s32.f32 %v5583
    %v5591 = vmul.f32 %v5590, %v5588
    %v5592 = vxor.u32 %v5591, 2147483648
    %v5593 = vsel %vm5472, %v5592, %v5591
    %v5594 = vsub.s32 4, %v5570
    %v5595 = vsel %vm5472, %v5594, %v5570
    %v5596 = vsel %vm5471, %v167, %v5593
    %v5597 = vsel %vm5471, 0, %v5595
    %v5598 = vmul.f32 %v5596, %v5596
    %v5599 = vmul.f32 %v5598, -0.001358992
    %v5600 = vadd.f32 %v5599, 0.041655596
    %v5601 = vmul.f32 %v5598, %v5600
    %v5602 = vadd.f32 %v5601, -0.4999988
    %v5603 = vmul.f32 %v5598, %v5602
    %v5604 = vadd.f32 1.0, %v5603
    %v5605 = vmul.f32 %v5596, %v5596
    %v5606 = vmul.f32 %v5605, -0.00019511016
    %v5607 = vadd.f32 %v5606, 0.008332121
    %v5608 = vmul.f32 %v5605, %v5607
    %v5609 = vadd.f32 %v5608, -0.16666654
    %v5610 = vmul.f32 %v5605, %v5609
    %v5611 = vadd.f32 %v5610, 1.0
    %v5612 = vmul.f32 %v5611, %v5596
    %vm5613 = vweird.f32 %v167
    %v5614 = vadd.s32 %v5597, 3
    %v5615 = vand.u32 %v5614, 3
    %vm5616 = vcmp.lt.s32.totalorder %v5615, 2
    %vm5617 = vcmp.eq.s32.totalorder %v5615, 0
    %v5618 = vxor.u32 %v5612, 2147483648
    %v5619 = vsel %vm5617, %v5604, %v5618
    %vm5620 = vcmp.eq.s32.totalorder %v5615, 2
    %v5621 = vxor.u32 %v5604, 2147483648
    %v5622 = vsel %vm5620, %v5621, %v5612
    %v5623 = vsel %vm5616, %v5619, %v5622
    %v5624 = vsel %vm5613, nan, %v5623
    %v5625 = vand.u32 2147483647, %v170
    %vm5626 = vcmp.le.f32.partialorder %v5625, 0.7853982
    %vm5627 = vcmp.lt.s32.totalorder %v170, 0
    %v5628 = vand.u32 %v170, 2139095040
    %v5629 = vshrl.u32 %v5628, 23
    %v5630 = vsub.s32 %v5629, 127
    %v5631 = vand.u32 2147483647, %v170
    %v5632 = vand.u32 %v5631, 8388607
    %v5633 = vor.u32 %v5632, 8388608
    %v5634 = vsub.s32 0, %v5633
    %v5635 = vadd.s32 %v5630, 1
    %vm5636 = vcmp.gt.s32.totalorder %v5635, 0
    %v5637 = vsel %vm5636, %v5635, 0
    %v5638 = vshrl.u32 %v5637, 5
    %v5639 = vand.u32 %v5637, 31
    %v5640 = vsub.s32 32, %v5639
    %v5641 = vshrl.u32 683565275, %v5640
    %v5642 = vshll.u32 683565275, %v5639
    %v5643 = vshrl.u32 2475754826, %v5640
    %v5644 = vor.u32 %v5642, %v5643
    %v5645 = vshll.u32 2475754826, %v5639
    %v5646 = vshrl.u32 2131351028, %v5640
    %v5647 = vor.u32 %v5645, %v5646
    %v5648 = vshll.u32 2131351028, %v5639
    %v5649 = vshrl.u32 2102212464, %v5640
    %v5650 = vor.u32 %v5648, %v5649
    %v5651 = vshll.u32 2102212464, %v5639
    %v5652 = vshrl.u32 920167782, %v5640
    %v5653 = vor.u32 %v5651, %v5652
    %v5654 = vshll.u32 920167782, %v5639
    %v5655 = vshrl.u32 1326507024, %v5640
    %v5656 = vor.u32 %v5654, %v5655
    %vm5657 = vcmp.lt.s32.totalorder %v5638, 1
    %vm5658 = vcmp.lt.s32.totalorder %v5638, 2
    %vm5659 = vcmp.lt.s32.totalorder %v5638, 3
    %vm5660 = vcmp.lt.s32.totalorder %v5638, 4
    %v5661 = vsel %vm5657, %v5641, %v5644
    %v5662 = vsel %vm5660, %v5650, 2102212464
    %v5663 = vsel %vm5659, %v5647, %v5662
    %v5664 = vsel %vm5658, %v5661, %v5663
    %v5665 = vsel %vm5657, %v5644, %v5647
    %v5666 = vsel %vm5660, %v5653, 920167782
    %v5667 = vsel %vm5659, %v5650, %v5666
    %v5668 = vsel %vm5658, %v5665, %v5667
    %v5669 = vsel %vm5657, %v5647, %v5650
    %v5670 = vsel %vm5660, %v5656, 1326507024
    %v5671 = vsel %vm5659, %v5653, %v5670
    %v5672 = vsel %vm5658, %v5669, %v5671
    %v5673 = vshll.u32 %v5633, 8
    %v5674 = vand.u32 %v5673, 65535
    %v5675 = vshrl.u32 %v5673, 16
    %v5676 = vand.u32 %v5672, 65535
    %v5677 = vshrl.u32 %v5672, 16
    %v5678 = vmul.u32 %v5674, %v5676
    %v5679 = vmul.u32 %v5674, %v5677
    %v5680 = vmul.u32 %v5675, %v5676
    %v5681 = vmul.u32 %v5675, %v5677
    %v5682 = vshll.u32 %v5679, 16
    %v5683 = vshrl.u32 %v5679, 16
    %v5684 = vshll.u32 %v5680, 16
    %v5685 = vshrl.u32 %v5680, 16
    %vm5686 = vc.u32 %v5678, %v5682
    %v5687 = vsel %vm5686, 1, 0
    %v5688 = vadd.s32 %v5678, %v5682
    %v5689 = vadd.s32 %v5681, %v5687
    %vm5690 = vc.u32 %v5688, %v5684
    %v5691 = vsel %vm5690, 1, 0
    %v5692 = vadd.s32 %v5688, %v5684
    %v5693 = vadd.s32 %v5689, %v5691
    %v5694 = vadd.s32 %v5693, %v5683
    %v5695 = vadd.s32 %v5694, %v5685
    %v5696 = vand.u32 %v5673, 65535
    %v5697 = vshrl.u32 %v5673, 16
    %v5698 = vand.u32 %v5668, 65535
    %v5699 = vshrl.u32 %v5668, 16
    %v5700 = vmul.u32 %v5696, %v5698
    %v5701 = vmul.u32 %v5696, %v5699
    %v5702 = vmul.u32 %v5697, %v5698
    %v5703 = vmul.u32 %v5697, %v5699
    %v5704 = vshll.u32 %v5701, 16
    %v5705 = vshrl.u32 %v5701, 16
    %v5706 = vshll.u32 %v5702, 16
    %v5707 = vshrl.u32 %v5702, 16
    %vm5708 = vc.u32 %v5700, %v5704
    %v5709 = vsel %vm5708, 1, 0
    %v5710 = vadd.s32 %v5700, %v5704
    %v5711 = vadd.s32 %v5703, %v5709
    %vm5712 = vc.u32 %v5710, %v5706
    %v5713 = vsel %vm5712, 1, 0
    %v5714 = vadd.s32 %v5710, %v5706
    %v5715 = vadd.s32 %v5711, %v5713
    %v5716 = vadd.s32 %v5715, %v5705
    %v5717 = vadd.s32 %v5716, %v5707
    %v5718 = vmul.u32 %v5673, %v5664
    %v5719 = vadd.s32 %v5695, %v5714
    %vm5720 = vc.u32 %v5695, %v5714
    %v5721 = vadd.s32 %v5717, 1
    %v5722 = vsel %vm5720, %v5721, %v5717
    %v5723 = vadd.s32 %v5718, %v5722
    %v5724 = vadd.s32 %v5723, 536870912
    %v5725 = vshrl.u32 %v5724, 30
    %v5726 = vshll.u32 %v5725, 30
    %v5727 = vsub.s32 %v5723, %v5726
    %vm5728 = vcmp.lt.s32.totalorder %v5727, 0
    %v5729 = vsub.s32 0, %v5727
    %v5730 = vsel %vm5728, %v5729, %v5727
    %v5731 = vclz %v5730
    %v5732 = vsub.s32 %v5731, 2
    %vm5733 = vcmp.gt.s32.totalorder 0, %v5732
    %v5734 = vsel %vm5733, 0, %v5732
    %v5735 = vsub.s32 32, %v5734
    %v5736 = vshll.u32 %v5727, %v5734
    %v5737 = vshrl.u32 %v5719, %v5735
    %v5738 = vor.u32 %v5736, %v5737
    %v5739 = vsub.s32 4294967266, %v5734
    %v5740 = vadd.s32 %v5739, 127
    %v5741 = vshll.u32 %v5740, 23
    %v5742 = vor.u32 4788187, %v5741
    %v5743 = vand.u32 2147483647, %v5742
    %v5745 = vcvt.s32.f32 %v5738
    %v5746 = vmul.f32 %v5745, %v5743
    %v5747 = vxor.u32 %v5746, 2147483648
    %v5748 = vsel %vm5627, %v5747, %v5746
    %v5749 = vsub.s32 4, %v5725
    %v5750 = vsel %vm5627, %v5749, %v5725
    %v5751 = vsel %vm5626, %v170, %v5748
    %v5752 = vsel %vm5626, 0, %v5750
    %v5753 = vmul.f32 %v5751, %v5751
    %v5754 = vmul.f32 %v5753, -0.001358992
    %v5755 = vadd.f32 %v5754, 0.041655596
    %v5756 = vmul.f32 %v5753, %v5755
    %v5757 = vadd.f32 %v5756, -0.4999988
    %v5758 = vmul.f32 %v5753, %v5757
    %v5759 = vadd.f32 1.0, %v5758
    %v5760 = vmul.f32 %v5751, %v5751
    %v5761 = vmul.f32 %v5760, -0.00019511016
    %v5762 = vadd.f32 %v5761, 0.008332121
    %v5763 = vmul.f32 %v5760, %v5762
    %v5764 = vadd.f32 %v5763, -0.16666654
    %v5765 = vmul.f32 %v5760, %v5764
    %v5766 = vadd.f32 %v5765, 1.0
    %v5767 = vmul.f32 %v5766, %v5751
    %vm5768 = vweird.f32 %v170
    %v5769 = vadd.s32 %v5752, 3
    %v5770 = vand.u32 %v5769, 3
    %vm5771 = vcmp.lt.s32.totalorder %v5770, 2
    %vm5772 = vcmp.eq.s32.totalorder %v5770, 0
    %v5773 = vxor.u32 %v5767, 2147483648
    %v5774 = vsel %vm5772, %v5759, %v5773
    %vm5775 = vcmp.eq.s32.totalorder %v5770, 2
    %v5776 = vxor.u32 %v5759, 2147483648
    %v5777 = vsel %vm5775, %v5776, %v5767
    %v5778 = vsel %vm5771, %v5774, %v5777
    %v5779 = vsel %vm5768, nan, %v5778
    %v5780 = vand.u32 2147483647, %v173
    %vm5781 = vcmp.le.f32.partialorder %v5780, 0.7853982
    %vm5782 = vcmp.lt.s32.totalorder %v173, 0
    %v5783 = vand.u32 %v173, 2139095040
    %v5784 = vshrl.u32 %v5783, 23
    %v5785 = vsub.s32 %v5784, 127
    %v5786 = vand.u32 2147483647, %v173
    %v5787 = vand.u32 %v5786, 8388607
    %v5788 = vor.u32 %v5787, 8388608
    %v5789 = vsub.s32 0, %v5788
    %v5790 = vadd.s32 %v5785, 1
    %vm5791 = vcmp.gt.s32.totalorder %v5790, 0
    %v5792 = vsel %vm5791, %v5790, 0
    %v5793 = vshrl.u32 %v5792, 5
    %v5794 = vand.u32 %v5792, 31
    %v5795 = vsub.s32 32, %v5794
    %v5796 = vshrl.u32 683565275, %v5795
    %v5797 = vshll.u32 683565275, %v5794
    %v5798 = vshrl.u32 2475754826, %v5795
    %v5799 = vor.u32 %v5797, %v5798
    %v5800 = vshll.u32 2475754826, %v5794
    %v5801 = vshrl.u32 2131351028, %v5795
    %v5802 = vor.u32 %v5800, %v5801
    %v5803 = vshll.u32 2131351028, %v5794
    %v5804 = vshrl.u32 2102212464, %v5795
    %v5805 = vor.u32 %v5803, %v5804
    %v5806 = vshll.u32 2102212464, %v5794
    %v5807 = vshrl.u32 920167782, %v5795
    %v5808 = vor.u32 %v5806, %v5807
    %v5809 = vshll.u32 920167782, %v5794
    %v5810 = vshrl.u32 1326507024, %v5795
    %v5811 = vor.u32 %v5809, %v5810
    %vm5812 = vcmp.lt.s32.totalorder %v5793, 1
    %vm5813 = vcmp.lt.s32.totalorder %v5793, 2
    %vm5814 = vcmp.lt.s32.totalorder %v5793, 3
    %vm5815 = vcmp.lt.s32.totalorder %v5793, 4
    %v5816 = vsel %vm5812, %v5796, %v5799
    %v5817 = vsel %vm5815, %v5805, 2102212464
    %v5818 = vsel %vm5814, %v5802, %v5817
    %v5819 = vsel %vm5813, %v5816, %v5818
    %v5820 = vsel %vm5812, %v5799, %v5802
    %v5821 = vsel %vm5815, %v5808, 920167782
    %v5822 = vsel %vm5814, %v5805, %v5821
    %v5823 = vsel %vm5813, %v5820, %v5822
    %v5824 = vsel %vm5812, %v5802, %v5805
    %v5825 = vsel %vm5815, %v5811, 1326507024
    %v5826 = vsel %vm5814, %v5808, %v5825
    %v5827 = vsel %vm5813, %v5824, %v5826
    %v5828 = vshll.u32 %v5788, 8
    %v5829 = vand.u32 %v5828, 65535
    %v5830 = vshrl.u32 %v5828, 16
    %v5831 = vand.u32 %v5827, 65535
    %v5832 = vshrl.u32 %v5827, 16
    %v5833 = vmul.u32 %v5829, %v5831
    %v5834 = vmul.u32 %v5829, %v5832
    %v5835 = vmul.u32 %v5830, %v5831
    %v5836 = vmul.u32 %v5830, %v5832
    %v5837 = vshll.u32 %v5834, 16
    %v5838 = vshrl.u32 %v5834, 16
    %v5839 = vshll.u32 %v5835, 16
    %v5840 = vshrl.u32 %v5835, 16
    %vm5841 = vc.u32 %v5833, %v5837
    %v5842 = vsel %vm5841, 1, 0
    %v5843 = vadd.s32 %v5833, %v5837
    %v5844 = vadd.s32 %v5836, %v5842
    %vm5845 = vc.u32 %v5843, %v5839
    %v5846 = vsel %vm5845, 1, 0
    %v5847 = vadd.s32 %v5843, %v5839
    %v5848 = vadd.s32 %v5844, %v5846
    %v5849 = vadd.s32 %v5848, %v5838
    %v5850 = vadd.s32 %v5849, %v5840
    %v5851 = vand.u32 %v5828, 65535
    %v5852 = vshrl.u32 %v5828, 16
    %v5853 = vand.u32 %v5823, 65535
    %v5854 = vshrl.u32 %v5823, 16
    %v5855 = vmul.u32 %v5851, %v5853
    %v5856 = vmul.u32 %v5851, %v5854
    %v5857 = vmul.u32 %v5852, %v5853
    %v5858 = vmul.u32 %v5852, %v5854
    %v5859 = vshll.u32 %v5856, 16
    %v5860 = vshrl.u32 %v5856, 16
    %v5861 = vshll.u32 %v5857, 16
    %v5862 = vshrl.u32 %v5857, 16
    %vm5863 = vc.u32 %v5855, %v5859
    %v5864 = vsel %vm5863, 1, 0
    %v5865 = vadd.s32 %v5855, %v5859
    %v5866 = vadd.s32 %v5858, %v5864
    %vm5867 = vc.u32 %v5865, %v5861
    %v5868 = vsel %vm5867, 1, 0
    %v5869 = vadd.s32 %v5865, %v5861
    %v5870 = vadd.s32 %v5866, %v5868
    %v5871 = vadd.s32 %v5870, %v5860
    %v5872 = vadd.s32 %v5871, %v5862
    %v5873 = vmul.u32 %v5828, %v5819
    %v5874 = vadd.s32 %v5850, %v5869
    %vm5875 = vc.u32 %v5850, %v5869
    %v5876 = vadd.s32 %v5872, 1
    %v5877 = vsel %vm5875, %v5876, %v5872
    %v5878 = vadd.s32 %v5873, %v5877
    %v5879 = vadd.s32 %v5878, 536870912
    %v5880 = vshrl.u32 %v5879, 30
    %v5881 = vshll.u32 %v5880, 30
    %v5882 = vsub.s32 %v5878, %v5881
    %vm5883 = vcmp.lt.s32.totalorder %v5882, 0
    %v5884 = vsub.s32 0, %v5882
    %v5885 = vsel %vm5883, %v5884, %v5882
    %v5886 = vclz %v5885
    %v5887 = vsub.s32 %v5886, 2
    %vm5888 = vcmp.gt.s32.totalorder 0, %v5887
    %v5889 = vsel %vm5888, 0, %v5887
    %v5890 = vsub.s32 32, %v5889
    %v5891 = vshll.u32 %v5882, %v5889
    %v5892 = vshrl.u32 %v5874, %v5890
    %v5893 = vor.u32 %v5891, %v5892
    %v5894 = vsub.s32 4294967266, %v5889
    %v5895 = vadd.s32 %v5894, 127
    %v5896 = vshll.u32 %v5895, 23
    %v5897 = vor.u32 4788187, %v5896
    %v5898 = vand.u32 2147483647, %v5897
    %v5900 = vcvt.s32.f32 %v5893
    %v5901 = vmul.f32 %v5900, %v5898
    %v5902 = vxor.u32 %v5901, 2147483648
    %v5903 = vsel %vm5782, %v5902, %v5901
    %v5904 = vsub.s32 4, %v5880
    %v5905 = vsel %vm5782, %v5904, %v5880
    %v5906 = vsel %vm5781, %v173, %v5903
    %v5907 = vsel %vm5781, 0, %v5905
    %v5908 = vmul.f32 %v5906, %v5906
    %v5909 = vmul.f32 %v5908, -0.001358992
    %v5910 = vadd.f32 %v5909, 0.041655596
    %v5911 = vmul.f32 %v5908, %v5910
    %v5912 = vadd.f32 %v5911, -0.4999988
    %v5913 = vmul.f32 %v5908, %v5912
    %v5914 = vadd.f32 1.0, %v5913
    %v5915 = vmul.f32 %v5906, %v5906
    %v5916 = vmul.f32 %v5915, -0.00019511016
    %v5917 = vadd.f32 %v5916, 0.008332121
    %v5918 = vmul.f32 %v5915, %v5917
    %v5919 = vadd.f32 %v5918, -0.16666654
    %v5920 = vmul.f32 %v5915, %v5919
    %v5921 = vadd.f32 %v5920, 1.0
    %v5922 = vmul.f32 %v5921, %v5906
    %vm5923 = vweird.f32 %v173
    %v5924 = vadd.s32 %v5907, 3
    %v5925 = vand.u32 %v5924, 3
    %vm5926 = vcmp.lt.s32.totalorder %v5925, 2
    %vm5927 = vcmp.eq.s32.totalorder %v5925, 0
    %v5928 = vxor.u32 %v5922, 2147483648
    %v5929 = vsel %vm5927, %v5914, %v5928
    %vm5930 = vcmp.eq.s32.totalorder %v5925, 2
    %v5931 = vxor.u32 %v5914, 2147483648
    %v5932 = vsel %vm5930, %v5931, %v5922
    %v5933 = vsel %vm5926, %v5929, %v5932
    %v5934 = vsel %vm5923, nan, %v5933
    %v5935 = vand.u32 2147483647, %v176
    %vm5936 = vcmp.le.f32.partialorder %v5935, 0.7853982
    %vm5937 = vcmp.lt.s32.totalorder %v176, 0
    %v5938 = vand.u32 %v176, 2139095040
    %v5939 = vshrl.u32 %v5938, 23
    %v5940 = vsub.s32 %v5939, 127
    %v5941 = vand.u32 2147483647, %v176
    %v5942 = vand.u32 %v5941, 8388607
    %v5943 = vor.u32 %v5942, 8388608
    %v5944 = vsub.s32 0, %v5943
    %v5945 = vadd.s32 %v5940, 1
    %vm5946 = vcmp.gt.s32.totalorder %v5945, 0
    %v5947 = vsel %vm5946, %v5945, 0
    %v5948 = vshrl.u32 %v5947, 5
    %v5949 = vand.u32 %v5947, 31
    %v5950 = vsub.s32 32, %v5949
    %v5951 = vshrl.u32 683565275, %v5950
    %v5952 = vshll.u32 683565275, %v5949
    %v5953 = vshrl.u32 2475754826, %v5950
    %v5954 = vor.u32 %v5952, %v5953
    %v5955 = vshll.u32 2475754826, %v5949
    %v5956 = vshrl.u32 2131351028, %v5950
    %v5957 = vor.u32 %v5955, %v5956
    %v5958 = vshll.u32 2131351028, %v5949
    %v5959 = vshrl.u32 2102212464, %v5950
    %v5960 = vor.u32 %v5958, %v5959
    %v5961 = vshll.u32 2102212464, %v5949
    %v5962 = vshrl.u32 920167782, %v5950
    %v5963 = vor.u32 %v5961, %v5962
    %v5964 = vshll.u32 920167782, %v5949
    %v5965 = vshrl.u32 1326507024, %v5950
    %v5966 = vor.u32 %v5964, %v5965
    %vm5967 = vcmp.lt.s32.totalorder %v5948, 1
    %vm5968 = vcmp.lt.s32.totalorder %v5948, 2
    %vm5969 = vcmp.lt.s32.totalorder %v5948, 3
    %vm5970 = vcmp.lt.s32.totalorder %v5948, 4
    %v5971 = vsel %vm5967, %v5951, %v5954
    %v5972 = vsel %vm5970, %v5960, 2102212464
    %v5973 = vsel %vm5969, %v5957, %v5972
    %v5974 = vsel %vm5968, %v5971, %v5973
    %v5975 = vsel %vm5967, %v5954, %v5957
    %v5976 = vsel %vm5970, %v5963, 920167782
    %v5977 = vsel %vm5969, %v5960, %v5976
    %v5978 = vsel %vm5968, %v5975, %v5977
    %v5979 = vsel %vm5967, %v5957, %v5960
    %v5980 = vsel %vm5970, %v5966, 1326507024
    %v5981 = vsel %vm5969, %v5963, %v5980
    %v5982 = vsel %vm5968, %v5979, %v5981
    %v5983 = vshll.u32 %v5943, 8
    %v5984 = vand.u32 %v5983, 65535
    %v5985 = vshrl.u32 %v5983, 16
    %v5986 = vand.u32 %v5982, 65535
    %v5987 = vshrl.u32 %v5982, 16
    %v5988 = vmul.u32 %v5984, %v5986
    %v5989 = vmul.u32 %v5984, %v5987
    %v5990 = vmul.u32 %v5985, %v5986
    %v5991 = vmul.u32 %v5985, %v5987
    %v5992 = vshll.u32 %v5989, 16
    %v5993 = vshrl.u32 %v5989, 16
    %v5994 = vshll.u32 %v5990, 16
    %v5995 = vshrl.u32 %v5990, 16
    %vm5996 = vc.u32 %v5988, %v5992
    %v5997 = vsel %vm5996, 1, 0
    %v5998 = vadd.s32 %v5988, %v5992
    %v5999 = vadd.s32 %v5991, %v5997
    %vm6000 = vc.u32 %v5998, %v5994
    %v6001 = vsel %vm6000, 1, 0
    %v6002 = vadd.s32 %v5998, %v5994
    %v6003 = vadd.s32 %v5999, %v6001
    %v6004 = vadd.s32 %v6003, %v5993
    %v6005 = vadd.s32 %v6004, %v5995
    %v6006 = vand.u32 %v5983, 65535
    %v6007 = vshrl.u32 %v5983, 16
    %v6008 = vand.u32 %v5978, 65535
    %v6009 = vshrl.u32 %v5978, 16
    %v6010 = vmul.u32 %v6006, %v6008
    %v6011 = vmul.u32 %v6006, %v6009
    %v6012 = vmul.u32 %v6007, %v6008
    %v6013 = vmul.u32 %v6007, %v6009
    %v6014 = vshll.u32 %v6011, 16
    %v6015 = vshrl.u32 %v6011, 16
    %v6016 = vshll.u32 %v6012, 16
    %v6017 = vshrl.u32 %v6012, 16
    %vm6018 = vc.u32 %v6010, %v6014
    %v6019 = vsel %vm6018, 1, 0
    %v6020 = vadd.s32 %v6010, %v6014
    %v6021 = vadd.s32 %v6013, %v6019
    %vm6022 = vc.u32 %v6020, %v6016
    %v6023 = vsel %vm6022, 1, 0
    %v6024 = vadd.s32 %v6020, %v6016
    %v6025 = vadd.s32 %v6021, %v6023
    %v6026 = vadd.s32 %v6025, %v6015
    %v6027 = vadd.s32 %v6026, %v6017
    %v6028 = vmul.u32 %v5983, %v5974
    %v6029 = vadd.s32 %v6005, %v6024
    %vm6030 = vc.u32 %v6005, %v6024
    %v6031 = vadd.s32 %v6027, 1
    %v6032 = vsel %vm6030, %v6031, %v6027
    %v6033 = vadd.s32 %v6028, %v6032
    %v6034 = vadd.s32 %v6033, 536870912
    %v6035 = vshrl.u32 %v6034, 30
    %v6036 = vshll.u32 %v6035, 30
    %v6037 = vsub.s32 %v6033, %v6036
    %vm6038 = vcmp.lt.s32.totalorder %v6037, 0
    %v6039 = vsub.s32 0, %v6037
    %v6040 = vsel %vm6038, %v6039, %v6037
    %v6041 = vclz %v6040
    %v6042 = vsub.s32 %v6041, 2
    %vm6043 = vcmp.gt.s32.totalorder 0, %v6042
    %v6044 = vsel %vm6043, 0, %v6042
    %v6045 = vsub.s32 32, %v6044
    %v6046 = vshll.u32 %v6037, %v6044
    %v6047 = vshrl.u32 %v6029, %v6045
    %v6048 = vor.u32 %v6046, %v6047
    %v6049 = vsub.s32 4294967266, %v6044
    %v6050 = vadd.s32 %v6049, 127
    %v6051 = vshll.u32 %v6050, 23
    %v6052 = vor.u32 4788187, %v6051
    %v6053 = vand.u32 2147483647, %v6052
    %v6055 = vcvt.s32.f32 %v6048
    %v6056 = vmul.f32 %v6055, %v6053
    %v6057 = vxor.u32 %v6056, 2147483648
    %v6058 = vsel %vm5937, %v6057, %v6056
    %v6059 = vsub.s32 4, %v6035
    %v6060 = vsel %vm5937, %v6059, %v6035
    %v6061 = vsel %vm5936, %v176, %v6058
    %v6062 = vsel %vm5936, 0, %v6060
    %v6063 = vmul.f32 %v6061, %v6061
    %v6064 = vmul.f32 %v6063, -0.001358992
    %v6065 = vadd.f32 %v6064, 0.041655596
    %v6066 = vmul.f32 %v6063, %v6065
    %v6067 = vadd.f32 %v6066, -0.4999988
    %v6068 = vmul.f32 %v6063, %v6067
    %v6069 = vadd.f32 1.0, %v6068
    %v6070 = vmul.f32 %v6061, %v6061
    %v6071 = vmul.f32 %v6070, -0.00019511016
    %v6072 = vadd.f32 %v6071, 0.008332121
    %v6073 = vmul.f32 %v6070, %v6072
    %v6074 = vadd.f32 %v6073, -0.16666654
    %v6075 = vmul.f32 %v6070, %v6074
    %v6076 = vadd.f32 %v6075, 1.0
    %v6077 = vmul.f32 %v6076, %v6061
    %vm6078 = vweird.f32 %v176
    %v6079 = vadd.s32 %v6062, 3
    %v6080 = vand.u32 %v6079, 3
    %vm6081 = vcmp.lt.s32.totalorder %v6080, 2
    %vm6082 = vcmp.eq.s32.totalorder %v6080, 0
    %v6083 = vxor.u32 %v6077, 2147483648
    %v6084 = vsel %vm6082, %v6069, %v6083
    %vm6085 = vcmp.eq.s32.totalorder %v6080, 2
    %v6086 = vxor.u32 %v6069, 2147483648
    %v6087 = vsel %vm6085, %v6086, %v6077
    %v6088 = vsel %vm6081, %v6084, %v6087
    %v6089 = vsel %vm6078, nan, %v6088
    %v6090 = vand.u32 2147483647, %v179
    %vm6091 = vcmp.le.f32.partialorder %v6090, 0.7853982
    %vm6092 = vcmp.lt.s32.totalorder %v179, 0
    %v6093 = vand.u32 %v179, 2139095040
    %v6094 = vshrl.u32 %v6093, 23
    %v6095 = vsub.s32 %v6094, 127
    %v6096 = vand.u32 2147483647, %v179
    %v6097 = vand.u32 %v6096, 8388607
    %v6098 = vor.u32 %v6097, 8388608
    %v6099 = vsub.s32 0, %v6098
    %v6100 = vadd.s32 %v6095, 1
    %vm6101 = vcmp.gt.s32.totalorder %v6100, 0
    %v6102 = vsel %vm6101, %v6100, 0
    %v6103 = vshrl.u32 %v6102, 5
    %v6104 = vand.u32 %v6102, 31
    %v6105 = vsub.s32 32, %v6104
    %v6106 = vshrl.u32 683565275, %v6105
    %v6107 = vshll.u32 683565275, %v6104
    %v6108 = vshrl.u32 2475754826, %v6105
    %v6109 = vor.u32 %v6107, %v6108
    %v6110 = vshll.u32 2475754826, %v6104
    %v6111 = vshrl.u32 2131351028, %v6105
    %v6112 = vor.u32 %v6110, %v6111
    %v6113 = vshll.u32 2131351028, %v6104
    %v6114 = vshrl.u32 2102212464, %v6105
    %v6115 = vor.u32 %v6113, %v6114
    %v6116 = vshll.u32 2102212464, %v6104
    %v6117 = vshrl.u32 920167782, %v6105
    %v6118 = vor.u32 %v6116, %v6117
    %v6119 = vshll.u32 920167782, %v6104
    %v6120 = vshrl.u32 1326507024, %v6105
    %v6121 = vor.u32 %v6119, %v6120
    %vm6122 = vcmp.lt.s32.totalorder %v6103, 1
    %vm6123 = vcmp.lt.s32.totalorder %v6103, 2
    %vm6124 = vcmp.lt.s32.totalorder %v6103, 3
    %vm6125 = vcmp.lt.s32.totalorder %v6103, 4
    %v6126 = vsel %vm6122, %v6106, %v6109
    %v6127 = vsel %vm6125, %v6115, 2102212464
    %v6128 = vsel %vm6124, %v6112, %v6127
    %v6129 = vsel %vm6123, %v6126, %v6128
    %v6130 = vsel %vm6122, %v6109, %v6112
    %v6131 = vsel %vm6125, %v6118, 920167782
    %v6132 = vsel %vm6124, %v6115, %v6131
    %v6133 = vsel %vm6123, %v6130, %v6132
    %v6134 = vsel %vm6122, %v6112, %v6115
    %v6135 = vsel %vm6125, %v6121, 1326507024
    %v6136 = vsel %vm6124, %v6118, %v6135
    %v6137 = vsel %vm6123, %v6134, %v6136
    %v6138 = vshll.u32 %v6098, 8
    %v6139 = vand.u32 %v6138, 65535
    %v6140 = vshrl.u32 %v6138, 16
    %v6141 = vand.u32 %v6137, 65535
    %v6142 = vshrl.u32 %v6137, 16
    %v6143 = vmul.u32 %v6139, %v6141
    %v6144 = vmul.u32 %v6139, %v6142
    %v6145 = vmul.u32 %v6140, %v6141
    %v6146 = vmul.u32 %v6140, %v6142
    %v6147 = vshll.u32 %v6144, 16
    %v6148 = vshrl.u32 %v6144, 16
    %v6149 = vshll.u32 %v6145, 16
    %v6150 = vshrl.u32 %v6145, 16
    %vm6151 = vc.u32 %v6143, %v6147
    %v6152 = vsel %vm6151, 1, 0
    %v6153 = vadd.s32 %v6143, %v6147
    %v6154 = vadd.s32 %v6146, %v6152
    %vm6155 = vc.u32 %v6153, %v6149
    %v6156 = vsel %vm6155, 1, 0
    %v6157 = vadd.s32 %v6153, %v6149
    %v6158 = vadd.s32 %v6154, %v6156
    %v6159 = vadd.s32 %v6158, %v6148
    %v6160 = vadd.s32 %v6159, %v6150
    %v6161 = vand.u32 %v6138, 65535
    %v6162 = vshrl.u32 %v6138, 16
    %v6163 = vand.u32 %v6133, 65535
    %v6164 = vshrl.u32 %v6133, 16
    %v6165 = vmul.u32 %v6161, %v6163
    %v6166 = vmul.u32 %v6161, %v6164
    %v6167 = vmul.u32 %v6162, %v6163
    %v6168 = vmul.u32 %v6162, %v6164
    %v6169 = vshll.u32 %v6166, 16
    %v6170 = vshrl.u32 %v6166, 16
    %v6171 = vshll.u32 %v6167, 16
    %v6172 = vshrl.u32 %v6167, 16
    %vm6173 = vc.u32 %v6165, %v6169
    %v6174 = vsel %vm6173, 1, 0
    %v6175 = vadd.s32 %v6165, %v6169
    %v6176 = vadd.s32 %v6168, %v6174
    %vm6177 = vc.u32 %v6175, %v6171
    %v6178 = vsel %vm6177, 1, 0
    %v6179 = vadd.s32 %v6175, %v6171
    %v6180 = vadd.s32 %v6176, %v6178
    %v6181 = vadd.s32 %v6180, %v6170
    %v6182 = vadd.s32 %v6181, %v6172
    %v6183 = vmul.u32 %v6138, %v6129
    %v6184 = vadd.s32 %v6160, %v6179
    %vm6185 = vc.u32 %v6160, %v6179
    %v6186 = vadd.s32 %v6182, 1
    %v6187 = vsel %vm6185, %v6186, %v6182
    %v6188 = vadd.s32 %v6183, %v6187
    %v6189 = vadd.s32 %v6188, 536870912
    %v6190 = vshrl.u32 %v6189, 30
    %v6191 = vshll.u32 %v6190, 30
    %v6192 = vsub.s32 %v6188, %v6191
    %vm6193 = vcmp.lt.s32.totalorder %v6192, 0
    %v6194 = vsub.s32 0, %v6192
    %v6195 = vsel %vm6193, %v6194, %v6192
    %v6196 = vclz %v6195
    %v6197 = vsub.s32 %v6196, 2
    %vm6198 = vcmp.gt.s32.totalorder 0, %v6197
    %v6199 = vsel %vm6198, 0, %v6197
    %v6200 = vsub.s32 32, %v6199
    %v6201 = vshll.u32 %v6192, %v6199
    %v6202 = vshrl.u32 %v6184, %v6200
    %v6203 = vor.u32 %v6201, %v6202
    %v6204 = vsub.s32 4294967266, %v6199
    %v6205 = vadd.s32 %v6204, 127
    %v6206 = vshll.u32 %v6205, 23
    %v6207 = vor.u32 4788187, %v6206
    %v6208 = vand.u32 2147483647, %v6207
    %v6210 = vcvt.s32.f32 %v6203
    %v6211 = vmul.f32 %v6210, %v6208
    %v6212 = vxor.u32 %v6211, 2147483648
    %v6213 = vsel %vm6092, %v6212, %v6211
    %v6214 = vsub.s32 4, %v6190
    %v6215 = vsel %vm6092, %v6214, %v6190
    %v6216 = vsel %vm6091, %v179, %v6213
    %v6217 = vsel %vm6091, 0, %v6215
    %v6218 = vmul.f32 %v6216, %v6216
    %v6219 = vmul.f32 %v6218, -0.001358992
    %v6220 = vadd.f32 %v6219, 0.041655596
    %v6221 = vmul.f32 %v6218, %v6220
    %v6222 = vadd.f32 %v6221, -0.4999988
    %v6223 = vmul.f32 %v6218, %v6222
    %v6224 = vadd.f32 1.0, %v6223
    %v6225 = vmul.f32 %v6216, %v6216
    %v6226 = vmul.f32 %v6225, -0.00019511016
    %v6227 = vadd.f32 %v6226, 0.008332121
    %v6228 = vmul.f32 %v6225, %v6227
    %v6229 = vadd.f32 %v6228, -0.16666654
    %v6230 = vmul.f32 %v6225, %v6229
    %v6231 = vadd.f32 %v6230, 1.0
    %v6232 = vmul.f32 %v6231, %v6216
    %vm6233 = vweird.f32 %v179
    %v6234 = vadd.s32 %v6217, 3
    %v6235 = vand.u32 %v6234, 3
    %vm6236 = vcmp.lt.s32.totalorder %v6235, 2
    %vm6237 = vcmp.eq.s32.totalorder %v6235, 0
    %v6238 = vxor.u32 %v6232, 2147483648
    %v6239 = vsel %vm6237, %v6224, %v6238
    %vm6240 = vcmp.eq.s32.totalorder %v6235, 2
    %v6241 = vxor.u32 %v6224, 2147483648
    %v6242 = vsel %vm6240, %v6241, %v6232
    %v6243 = vsel %vm6236, %v6239, %v6242
    %v6244 = vsel %vm6233, nan, %v6243
    %v6245 = vand.u32 2147483647, %v182
    %vm6246 = vcmp.le.f32.partialorder %v6245, 0.7853982
    %vm6247 = vcmp.lt.s32.totalorder %v182, 0
    %v6248 = vand.u32 %v182, 2139095040
    %v6249 = vshrl.u32 %v6248, 23
    %v6250 = vsub.s32 %v6249, 127
    %v6251 = vand.u32 2147483647, %v182
    %v6252 = vand.u32 %v6251, 8388607
    %v6253 = vor.u32 %v6252, 8388608
    %v6254 = vsub.s32 0, %v6253
    %v6255 = vadd.s32 %v6250, 1
    %vm6256 = vcmp.gt.s32.totalorder %v6255, 0
    %v6257 = vsel %vm6256, %v6255, 0
    %v6258 = vshrl.u32 %v6257, 5
    %v6259 = vand.u32 %v6257, 31
    %v6260 = vsub.s32 32, %v6259
    %v6261 = vshrl.u32 683565275, %v6260
    %v6262 = vshll.u32 683565275, %v6259
    %v6263 = vshrl.u32 2475754826, %v6260
    %v6264 = vor.u32 %v6262, %v6263
    %v6265 = vshll.u32 2475754826, %v6259
    %v6266 = vshrl.u32 2131351028, %v6260
    %v6267 = vor.u32 %v6265, %v6266
    %v6268 = vshll.u32 2131351028, %v6259
    %v6269 = vshrl.u32 2102212464, %v6260
    %v6270 = vor.u32 %v6268, %v6269
    %v6271 = vshll.u32 2102212464, %v6259
    %v6272 = vshrl.u32 920167782, %v6260
    %v6273 = vor.u32 %v6271, %v6272
    %v6274 = vshll.u32 920167782, %v6259
    %v6275 = vshrl.u32 1326507024, %v6260
    %v6276 = vor.u32 %v6274, %v6275
    %vm6277 = vcmp.lt.s32.totalorder %v6258, 1
    %vm6278 = vcmp.lt.s32.totalorder %v6258, 2
    %vm6279 = vcmp.lt.s32.totalorder %v6258, 3
    %vm6280 = vcmp.lt.s32.totalorder %v6258, 4
    %v6281 = vsel %vm6277, %v6261, %v6264
    %v6282 = vsel %vm6280, %v6270, 2102212464
    %v6283 = vsel %vm6279, %v6267, %v6282
    %v6284 = vsel %vm6278, %v6281, %v6283
    %v6285 = vsel %vm6277, %v6264, %v6267
    %v6286 = vsel %vm6280, %v6273, 920167782
    %v6287 = vsel %vm6279, %v6270, %v6286
    %v6288 = vsel %vm6278, %v6285, %v6287
    %v6289 = vsel %vm6277, %v6267, %v6270
    %v6290 = vsel %vm6280, %v6276, 1326507024
    %v6291 = vsel %vm6279, %v6273, %v6290
    %v6292 = vsel %vm6278, %v6289, %v6291
    %v6293 = vshll.u32 %v6253, 8
    %v6294 = vand.u32 %v6293, 65535
    %v6295 = vshrl.u32 %v6293, 16
    %v6296 = vand.u32 %v6292, 65535
    %v6297 = vshrl.u32 %v6292, 16
    %v6298 = vmul.u32 %v6294, %v6296
    %v6299 = vmul.u32 %v6294, %v6297
    %v6300 = vmul.u32 %v6295, %v6296
    %v6301 = vmul.u32 %v6295, %v6297
    %v6302 = vshll.u32 %v6299, 16
    %v6303 = vshrl.u32 %v6299, 16
    %v6304 = vshll.u32 %v6300, 16
    %v6305 = vshrl.u32 %v6300, 16
    %vm6306 = vc.u32 %v6298, %v6302
    %v6307 = vsel %vm6306, 1, 0
    %v6308 = vadd.s32 %v6298, %v6302
    %v6309 = vadd.s32 %v6301, %v6307
    %vm6310 = vc.u32 %v6308, %v6304
    %v6311 = vsel %vm6310, 1, 0
    %v6312 = vadd.s32 %v6308, %v6304
    %v6313 = vadd.s32 %v6309, %v6311
    %v6314 = vadd.s32 %v6313, %v6303
    %v6315 = vadd.s32 %v6314, %v6305
    %v6316 = vand.u32 %v6293, 65535
    %v6317 = vshrl.u32 %v6293, 16
    %v6318 = vand.u32 %v6288, 65535
    %v6319 = vshrl.u32 %v6288, 16
    %v6320 = vmul.u32 %v6316, %v6318
    %v6321 = vmul.u32 %v6316, %v6319
    %v6322 = vmul.u32 %v6317, %v6318
    %v6323 = vmul.u32 %v6317, %v6319
    %v6324 = vshll.u32 %v6321, 16
    %v6325 = vshrl.u32 %v6321, 16
    %v6326 = vshll.u32 %v6322, 16
    %v6327 = vshrl.u32 %v6322, 16
    %vm6328 = vc.u32 %v6320, %v6324
    %v6329 = vsel %vm6328, 1, 0
    %v6330 = vadd.s32 %v6320, %v6324
    %v6331 = vadd.s32 %v6323, %v6329
    %vm6332 = vc.u32 %v6330, %v6326
    %v6333 = vsel %vm6332, 1, 0
    %v6334 = vadd.s32 %v6330, %v6326
    %v6335 = vadd.s32 %v6331, %v6333
    %v6336 = vadd.s32 %v6335, %v6325
    %v6337 = vadd.s32 %v6336, %v6327
    %v6338 = vmul.u32 %v6293, %v6284
    %v6339 = vadd.s32 %v6315, %v6334
    %vm6340 = vc.u32 %v6315, %v6334
    %v6341 = vadd.s32 %v6337, 1
    %v6342 = vsel %vm6340, %v6341, %v6337
    %v6343 = vadd.s32 %v6338, %v6342
    %v6344 = vadd.s32 %v6343, 536870912
    %v6345 = vshrl.u32 %v6344, 30
    %v6346 = vshll.u32 %v6345, 30
    %v6347 = vsub.s32 %v6343, %v6346
    %vm6348 = vcmp.lt.s32.totalorder %v6347, 0
    %v6349 = vsub.s32 0, %v6347
    %v6350 = vsel %vm6348, %v6349, %v6347
    %v6351 = vclz %v6350
    %v6352 = vsub.s32 %v6351, 2
    %vm6353 = vcmp.gt.s32.totalorder 0, %v6352
    %v6354 = vsel %vm6353, 0, %v6352
    %v6355 = vsub.s32 32, %v6354
    %v6356 = vshll.u32 %v6347, %v6354
    %v6357 = vshrl.u32 %v6339, %v6355
    %v6358 = vor.u32 %v6356, %v6357
    %v6359 = vsub.s32 4294967266, %v6354
    %v6360 = vadd.s32 %v6359, 127
    %v6361 = vshll.u32 %v6360, 23
    %v6362 = vor.u32 4788187, %v6361
    %v6363 = vand.u32 2147483647, %v6362
    %v6365 = vcvt.s32.f32 %v6358
    %v6366 = vmul.f32 %v6365, %v6363
    %v6367 = vxor.u32 %v6366, 2147483648
    %v6368 = vsel %vm6247, %v6367, %v6366
    %v6369 = vsub.s32 4, %v6345
    %v6370 = vsel %vm6247, %v6369, %v6345
    %v6371 = vsel %vm6246, %v182, %v6368
    %v6372 = vsel %vm6246, 0, %v6370
    %v6373 = vmul.f32 %v6371, %v6371
    %v6374 = vmul.f32 %v6373, -0.001358992
    %v6375 = vadd.f32 %v6374, 0.041655596
    %v6376 = vmul.f32 %v6373, %v6375
    %v6377 = vadd.f32 %v6376, -0.4999988
    %v6378 = vmul.f32 %v6373, %v6377
    %v6379 = vadd.f32 1.0, %v6378
    %v6380 = vmul.f32 %v6371, %v6371
    %v6381 = vmul.f32 %v6380, -0.00019511016
    %v6382 = vadd.f32 %v6381, 0.008332121
    %v6383 = vmul.f32 %v6380, %v6382
    %v6384 = vadd.f32 %v6383, -0.16666654
    %v6385 = vmul.f32 %v6380, %v6384
    %v6386 = vadd.f32 %v6385, 1.0
    %v6387 = vmul.f32 %v6386, %v6371
    %vm6388 = vweird.f32 %v182
    %v6389 = vadd.s32 %v6372, 3
    %v6390 = vand.u32 %v6389, 3
    %vm6391 = vcmp.lt.s32.totalorder %v6390, 2
    %vm6392 = vcmp.eq.s32.totalorder %v6390, 0
    %v6393 = vxor.u32 %v6387, 2147483648
    %v6394 = vsel %vm6392, %v6379, %v6393
    %vm6395 = vcmp.eq.s32.totalorder %v6390, 2
    %v6396 = vxor.u32 %v6379, 2147483648
    %v6397 = vsel %vm6395, %v6396, %v6387
    %v6398 = vsel %vm6391, %v6394, %v6397
    %v6399 = vsel %vm6388, nan, %v6398
    %v6400 = vand.u32 2147483647, %v185
    %vm6401 = vcmp.le.f32.partialorder %v6400, 0.7853982
    %vm6402 = vcmp.lt.s32.totalorder %v185, 0
    %v6403 = vand.u32 %v185, 2139095040
    %v6404 = vshrl.u32 %v6403, 23
    %v6405 = vsub.s32 %v6404, 127
    %v6406 = vand.u32 2147483647, %v185
    %v6407 = vand.u32 %v6406, 8388607
    %v6408 = vor.u32 %v6407, 8388608
    %v6409 = vsub.s32 0, %v6408
    %v6410 = vadd.s32 %v6405, 1
    %vm6411 = vcmp.gt.s32.totalorder %v6410, 0
    %v6412 = vsel %vm6411, %v6410, 0
    %v6413 = vshrl.u32 %v6412, 5
    %v6414 = vand.u32 %v6412, 31
    %v6415 = vsub.s32 32, %v6414
    %v6416 = vshrl.u32 683565275, %v6415
    %v6417 = vshll.u32 683565275, %v6414
    %v6418 = vshrl.u32 2475754826, %v6415
    %v6419 = vor.u32 %v6417, %v6418
    %v6420 = vshll.u32 2475754826, %v6414
    %v6421 = vshrl.u32 2131351028, %v6415
    %v6422 = vor.u32 %v6420, %v6421
    %v6423 = vshll.u32 2131351028, %v6414
    %v6424 = vshrl.u32 2102212464, %v6415
    %v6425 = vor.u32 %v6423, %v6424
    %v6426 = vshll.u32 2102212464, %v6414
    %v6427 = vshrl.u32 920167782, %v6415
    %v6428 = vor.u32 %v6426, %v6427
    %v6429 = vshll.u32 920167782, %v6414
    %v6430 = vshrl.u32 1326507024, %v6415
    %v6431 = vor.u32 %v6429, %v6430
    %vm6432 = vcmp.lt.s32.totalorder %v6413, 1
    %vm6433 = vcmp.lt.s32.totalorder %v6413, 2
    %vm6434 = vcmp.lt.s32.totalorder %v6413, 3
    %vm6435 = vcmp.lt.s32.totalorder %v6413, 4
    %v6436 = vsel %vm6432, %v6416, %v6419
    %v6437 = vsel %vm6435, %v6425, 2102212464
    %v6438 = vsel %vm6434, %v6422, %v6437
    %v6439 = vsel %vm6433, %v6436, %v6438
    %v6440 = vsel %vm6432, %v6419, %v6422
    %v6441 = vsel %vm6435, %v6428, 920167782
    %v6442 = vsel %vm6434, %v6425, %v6441
    %v6443 = vsel %vm6433, %v6440, %v6442
    %v6444 = vsel %vm6432, %v6422, %v6425
    %v6445 = vsel %vm6435, %v6431, 1326507024
    %v6446 = vsel %vm6434, %v6428, %v6445
    %v6447 = vsel %vm6433, %v6444, %v6446
    %v6448 = vshll.u32 %v6408, 8
    %v6449 = vand.u32 %v6448, 65535
    %v6450 = vshrl.u32 %v6448, 16
    %v6451 = vand.u32 %v6447, 65535
    %v6452 = vshrl.u32 %v6447, 16
    %v6453 = vmul.u32 %v6449, %v6451
    %v6454 = vmul.u32 %v6449, %v6452
    %v6455 = vmul.u32 %v6450, %v6451
    %v6456 = vmul.u32 %v6450, %v6452
    %v6457 = vshll.u32 %v6454, 16
    %v6458 = vshrl.u32 %v6454, 16
    %v6459 = vshll.u32 %v6455, 16
    %v6460 = vshrl.u32 %v6455, 16
    %vm6461 = vc.u32 %v6453, %v6457
    %v6462 = vsel %vm6461, 1, 0
    %v6463 = vadd.s32 %v6453, %v6457
    %v6464 = vadd.s32 %v6456, %v6462
    %vm6465 = vc.u32 %v6463, %v6459
    %v6466 = vsel %vm6465, 1, 0
    %v6467 = vadd.s32 %v6463, %v6459
    %v6468 = vadd.s32 %v6464, %v6466
    %v6469 = vadd.s32 %v6468, %v6458
    %v6470 = vadd.s32 %v6469, %v6460
    %v6471 = vand.u32 %v6448, 65535
    %v6472 = vshrl.u32 %v6448, 16
    %v6473 = vand.u32 %v6443, 65535
    %v6474 = vshrl.u32 %v6443, 16
    %v6475 = vmul.u32 %v6471, %v6473
    %v6476 = vmul.u32 %v6471, %v6474
    %v6477 = vmul.u32 %v6472, %v6473
    %v6478 = vmul.u32 %v6472, %v6474
    %v6479 = vshll.u32 %v6476, 16
    %v6480 = vshrl.u32 %v6476, 16
    %v6481 = vshll.u32 %v6477, 16
    %v6482 = vshrl.u32 %v6477, 16
    %vm6483 = vc.u32 %v6475, %v6479
    %v6484 = vsel %vm6483, 1, 0
    %v6485 = vadd.s32 %v6475, %v6479
    %v6486 = vadd.s32 %v6478, %v6484
    %vm6487 = vc.u32 %v6485, %v6481
    %v6488 = vsel %vm6487, 1, 0
    %v6489 = vadd.s32 %v6485, %v6481
    %v6490 = vadd.s32 %v6486, %v6488
    %v6491 = vadd.s32 %v6490, %v6480
    %v6492 = vadd.s32 %v6491, %v6482
    %v6493 = vmul.u32 %v6448, %v6439
    %v6494 = vadd.s32 %v6470, %v6489
    %vm6495 = vc.u32 %v6470, %v6489
    %v6496 = vadd.s32 %v6492, 1
    %v6497 = vsel %vm6495, %v6496, %v6492
    %v6498 = vadd.s32 %v6493, %v6497
    %v6499 = vadd.s32 %v6498, 536870912
    %v6500 = vshrl.u32 %v6499, 30
    %v6501 = vshll.u32 %v6500, 30
    %v6502 = vsub.s32 %v6498, %v6501
    %vm6503 = vcmp.lt.s32.totalorder %v6502, 0
    %v6504 = vsub.s32 0, %v6502
    %v6505 = vsel %vm6503, %v6504, %v6502
    %v6506 = vclz %v6505
    %v6507 = vsub.s32 %v6506, 2
    %vm6508 = vcmp.gt.s32.totalorder 0, %v6507
    %v6509 = vsel %vm6508, 0, %v6507
    %v6510 = vsub.s32 32, %v6509
    %v6511 = vshll.u32 %v6502, %v6509
    %v6512 = vshrl.u32 %v6494, %v6510
    %v6513 = vor.u32 %v6511, %v6512
    %v6514 = vsub.s32 4294967266, %v6509
    %v6515 = vadd.s32 %v6514, 127
    %v6516 = vshll.u32 %v6515, 23
    %v6517 = vor.u32 4788187, %v6516
    %v6518 = vand.u32 2147483647, %v6517
    %v6520 = vcvt.s32.f32 %v6513
    %v6521 = vmul.f32 %v6520, %v6518
    %v6522 = vxor.u32 %v6521, 2147483648
    %v6523 = vsel %vm6402, %v6522, %v6521
    %v6524 = vsub.s32 4, %v6500
    %v6525 = vsel %vm6402, %v6524, %v6500
    %v6526 = vsel %vm6401, %v185, %v6523
    %v6527 = vsel %vm6401, 0, %v6525
    %v6528 = vmul.f32 %v6526, %v6526
    %v6529 = vmul.f32 %v6528, -0.001358992
    %v6530 = vadd.f32 %v6529, 0.041655596
    %v6531 = vmul.f32 %v6528, %v6530
    %v6532 = vadd.f32 %v6531, -0.4999988
    %v6533 = vmul.f32 %v6528, %v6532
    %v6534 = vadd.f32 1.0, %v6533
    %v6535 = vmul.f32 %v6526, %v6526
    %v6536 = vmul.f32 %v6535, -0.00019511016
    %v6537 = vadd.f32 %v6536, 0.008332121
    %v6538 = vmul.f32 %v6535, %v6537
    %v6539 = vadd.f32 %v6538, -0.16666654
    %v6540 = vmul.f32 %v6535, %v6539
    %v6541 = vadd.f32 %v6540, 1.0
    %v6542 = vmul.f32 %v6541, %v6526
    %vm6543 = vweird.f32 %v185
    %v6544 = vadd.s32 %v6527, 3
    %v6545 = vand.u32 %v6544, 3
    %vm6546 = vcmp.lt.s32.totalorder %v6545, 2
    %vm6547 = vcmp.eq.s32.totalorder %v6545, 0
    %v6548 = vxor.u32 %v6542, 2147483648
    %v6549 = vsel %vm6547, %v6534, %v6548
    %vm6550 = vcmp.eq.s32.totalorder %v6545, 2
    %v6551 = vxor.u32 %v6534, 2147483648
    %v6552 = vsel %vm6550, %v6551, %v6542
    %v6553 = vsel %vm6546, %v6549, %v6552
    %v6554 = vsel %vm6543, nan, %v6553
    %v6555 = vand.u32 2147483647, %v188
    %vm6556 = vcmp.le.f32.partialorder %v6555, 0.7853982
    %vm6557 = vcmp.lt.s32.totalorder %v188, 0
    %v6558 = vand.u32 %v188, 2139095040
    %v6559 = vshrl.u32 %v6558, 23
    %v6560 = vsub.s32 %v6559, 127
    %v6561 = vand.u32 2147483647, %v188
    %v6562 = vand.u32 %v6561, 8388607
    %v6563 = vor.u32 %v6562, 8388608
    %v6564 = vsub.s32 0, %v6563
    %v6565 = vadd.s32 %v6560, 1
    %vm6566 = vcmp.gt.s32.totalorder %v6565, 0
    %v6567 = vsel %vm6566, %v6565, 0
    %v6568 = vshrl.u32 %v6567, 5
    %v6569 = vand.u32 %v6567, 31
    %v6570 = vsub.s32 32, %v6569
    %v6571 = vshrl.u32 683565275, %v6570
    %v6572 = vshll.u32 683565275, %v6569
    %v6573 = vshrl.u32 2475754826, %v6570
    %v6574 = vor.u32 %v6572, %v6573
    %v6575 = vshll.u32 2475754826, %v6569
    %v6576 = vshrl.u32 2131351028, %v6570
    %v6577 = vor.u32 %v6575, %v6576
    %v6578 = vshll.u32 2131351028, %v6569
    %v6579 = vshrl.u32 2102212464, %v6570
    %v6580 = vor.u32 %v6578, %v6579
    %v6581 = vshll.u32 2102212464, %v6569
    %v6582 = vshrl.u32 920167782, %v6570
    %v6583 = vor.u32 %v6581, %v6582
    %v6584 = vshll.u32 920167782, %v6569
    %v6585 = vshrl.u32 1326507024, %v6570
    %v6586 = vor.u32 %v6584, %v6585
    %vm6587 = vcmp.lt.s32.totalorder %v6568, 1
    %vm6588 = vcmp.lt.s32.totalorder %v6568, 2
    %vm6589 = vcmp.lt.s32.totalorder %v6568, 3
    %vm6590 = vcmp.lt.s32.totalorder %v6568, 4
    %v6591 = vsel %vm6587, %v6571, %v6574
    %v6592 = vsel %vm6590, %v6580, 2102212464
    %v6593 = vsel %vm6589, %v6577, %v6592
    %v6594 = vsel %vm6588, %v6591, %v6593
    %v6595 = vsel %vm6587, %v6574, %v6577
    %v6596 = vsel %vm6590, %v6583, 920167782
    %v6597 = vsel %vm6589, %v6580, %v6596
    %v6598 = vsel %vm6588, %v6595, %v6597
    %v6599 = vsel %vm6587, %v6577, %v6580
    %v6600 = vsel %vm6590, %v6586, 1326507024
    %v6601 = vsel %vm6589, %v6583, %v6600
    %v6602 = vsel %vm6588, %v6599, %v6601
    %v6603 = vshll.u32 %v6563, 8
    %v6604 = vand.u32 %v6603, 65535
    %v6605 = vshrl.u32 %v6603, 16
    %v6606 = vand.u32 %v6602, 65535
    %v6607 = vshrl.u32 %v6602, 16
    %v6608 = vmul.u32 %v6604, %v6606
    %v6609 = vmul.u32 %v6604, %v6607
    %v6610 = vmul.u32 %v6605, %v6606
    %v6611 = vmul.u32 %v6605, %v6607
    %v6612 = vshll.u32 %v6609, 16
    %v6613 = vshrl.u32 %v6609, 16
    %v6614 = vshll.u32 %v6610, 16
    %v6615 = vshrl.u32 %v6610, 16
    %vm6616 = vc.u32 %v6608, %v6612
    %v6617 = vsel %vm6616, 1, 0
    %v6618 = vadd.s32 %v6608, %v6612
    %v6619 = vadd.s32 %v6611, %v6617
    %vm6620 = vc.u32 %v6618, %v6614
    %v6621 = vsel %vm6620, 1, 0
    %v6622 = vadd.s32 %v6618, %v6614
    %v6623 = vadd.s32 %v6619, %v6621
    %v6624 = vadd.s32 %v6623, %v6613
    %v6625 = vadd.s32 %v6624, %v6615
    %v6626 = vand.u32 %v6603, 65535
    %v6627 = vshrl.u32 %v6603, 16
    %v6628 = vand.u32 %v6598, 65535
    %v6629 = vshrl.u32 %v6598, 16
    %v6630 = vmul.u32 %v6626, %v6628
    %v6631 = vmul.u32 %v6626, %v6629
    %v6632 = vmul.u32 %v6627, %v6628
    %v6633 = vmul.u32 %v6627, %v6629
    %v6634 = vshll.u32 %v6631, 16
    %v6635 = vshrl.u32 %v6631, 16
    %v6636 = vshll.u32 %v6632, 16
    %v6637 = vshrl.u32 %v6632, 16
    %vm6638 = vc.u32 %v6630, %v6634
    %v6639 = vsel %vm6638, 1, 0
    %v6640 = vadd.s32 %v6630, %v6634
    %v6641 = vadd.s32 %v6633, %v6639
    %vm6642 = vc.u32 %v6640, %v6636
    %v6643 = vsel %vm6642, 1, 0
    %v6644 = vadd.s32 %v6640, %v6636
    %v6645 = vadd.s32 %v6641, %v6643
    %v6646 = vadd.s32 %v6645, %v6635
    %v6647 = vadd.s32 %v6646, %v6637
    %v6648 = vmul.u32 %v6603, %v6594
    %v6649 = vadd.s32 %v6625, %v6644
    %vm6650 = vc.u32 %v6625, %v6644
    %v6651 = vadd.s32 %v6647, 1
    %v6652 = vsel %vm6650, %v6651, %v6647
    %v6653 = vadd.s32 %v6648, %v6652
    %v6654 = vadd.s32 %v6653, 536870912
    %v6655 = vshrl.u32 %v6654, 30
    %v6656 = vshll.u32 %v6655, 30
    %v6657 = vsub.s32 %v6653, %v6656
    %vm6658 = vcmp.lt.s32.totalorder %v6657, 0
    %v6659 = vsub.s32 0, %v6657
    %v6660 = vsel %vm6658, %v6659, %v6657
    %v6661 = vclz %v6660
    %v6662 = vsub.s32 %v6661, 2
    %vm6663 = vcmp.gt.s32.totalorder 0, %v6662
    %v6664 = vsel %vm6663, 0, %v6662
    %v6665 = vsub.s32 32, %v6664
    %v6666 = vshll.u32 %v6657, %v6664
    %v6667 = vshrl.u32 %v6649, %v6665
    %v6668 = vor.u32 %v6666, %v6667
    %v6669 = vsub.s32 4294967266, %v6664
    %v6670 = vadd.s32 %v6669, 127
    %v6671 = vshll.u32 %v6670, 23
    %v6672 = vor.u32 4788187, %v6671
    %v6673 = vand.u32 2147483647, %v6672
    %v6675 = vcvt.s32.f32 %v6668
    %v6676 = vmul.f32 %v6675, %v6673
    %v6677 = vxor.u32 %v6676, 2147483648
    %v6678 = vsel %vm6557, %v6677, %v6676
    %v6679 = vsub.s32 4, %v6655
    %v6680 = vsel %vm6557, %v6679, %v6655
    %v6681 = vsel %vm6556, %v188, %v6678
    %v6682 = vsel %vm6556, 0, %v6680
    %v6683 = vmul.f32 %v6681, %v6681
    %v6684 = vmul.f32 %v6683, -0.001358992
    %v6685 = vadd.f32 %v6684, 0.041655596
    %v6686 = vmul.f32 %v6683, %v6685
    %v6687 = vadd.f32 %v6686, -0.4999988
    %v6688 = vmul.f32 %v6683, %v6687
    %v6689 = vadd.f32 1.0, %v6688
    %v6690 = vmul.f32 %v6681, %v6681
    %v6691 = vmul.f32 %v6690, -0.00019511016
    %v6692 = vadd.f32 %v6691, 0.008332121
    %v6693 = vmul.f32 %v6690, %v6692
    %v6694 = vadd.f32 %v6693, -0.16666654
    %v6695 = vmul.f32 %v6690, %v6694
    %v6696 = vadd.f32 %v6695, 1.0
    %v6697 = vmul.f32 %v6696, %v6681
    %vm6698 = vweird.f32 %v188
    %v6699 = vadd.s32 %v6682, 3
    %v6700 = vand.u32 %v6699, 3
    %vm6701 = vcmp.lt.s32.totalorder %v6700, 2
    %vm6702 = vcmp.eq.s32.totalorder %v6700, 0
    %v6703 = vxor.u32 %v6697, 2147483648
    %v6704 = vsel %vm6702, %v6689, %v6703
    %vm6705 = vcmp.eq.s32.totalorder %v6700, 2
    %v6706 = vxor.u32 %v6689, 2147483648
    %v6707 = vsel %vm6705, %v6706, %v6697
    %v6708 = vsel %vm6701, %v6704, %v6707
    %v6709 = vsel %vm6698, nan, %v6708
    %v6710 = vand.u32 2147483647, %v191
    %vm6711 = vcmp.le.f32.partialorder %v6710, 0.7853982
    %vm6712 = vcmp.lt.s32.totalorder %v191, 0
    %v6713 = vand.u32 %v191, 2139095040
    %v6714 = vshrl.u32 %v6713, 23
    %v6715 = vsub.s32 %v6714, 127
    %v6716 = vand.u32 2147483647, %v191
    %v6717 = vand.u32 %v6716, 8388607
    %v6718 = vor.u32 %v6717, 8388608
    %v6719 = vsub.s32 0, %v6718
    %v6720 = vadd.s32 %v6715, 1
    %vm6721 = vcmp.gt.s32.totalorder %v6720, 0
    %v6722 = vsel %vm6721, %v6720, 0
    %v6723 = vshrl.u32 %v6722, 5
    %v6724 = vand.u32 %v6722, 31
    %v6725 = vsub.s32 32, %v6724
    %v6726 = vshrl.u32 683565275, %v6725
    %v6727 = vshll.u32 683565275, %v6724
    %v6728 = vshrl.u32 2475754826, %v6725
    %v6729 = vor.u32 %v6727, %v6728
    %v6730 = vshll.u32 2475754826, %v6724
    %v6731 = vshrl.u32 2131351028, %v6725
    %v6732 = vor.u32 %v6730, %v6731
    %v6733 = vshll.u32 2131351028, %v6724
    %v6734 = vshrl.u32 2102212464, %v6725
    %v6735 = vor.u32 %v6733, %v6734
    %v6736 = vshll.u32 2102212464, %v6724
    %v6737 = vshrl.u32 920167782, %v6725
    %v6738 = vor.u32 %v6736, %v6737
    %v6739 = vshll.u32 920167782, %v6724
    %v6740 = vshrl.u32 1326507024, %v6725
    %v6741 = vor.u32 %v6739, %v6740
    %vm6742 = vcmp.lt.s32.totalorder %v6723, 1
    %vm6743 = vcmp.lt.s32.totalorder %v6723, 2
    %vm6744 = vcmp.lt.s32.totalorder %v6723, 3
    %vm6745 = vcmp.lt.s32.totalorder %v6723, 4
    %v6746 = vsel %vm6742, %v6726, %v6729
    %v6747 = vsel %vm6745, %v6735, 2102212464
    %v6748 = vsel %vm6744, %v6732, %v6747
    %v6749 = vsel %vm6743, %v6746, %v6748
    %v6750 = vsel %vm6742, %v6729, %v6732
    %v6751 = vsel %vm6745, %v6738, 920167782
    %v6752 = vsel %vm6744, %v6735, %v6751
    %v6753 = vsel %vm6743, %v6750, %v6752
    %v6754 = vsel %vm6742, %v6732, %v6735
    %v6755 = vsel %vm6745, %v6741, 1326507024
    %v6756 = vsel %vm6744, %v6738, %v6755
    %v6757 = vsel %vm6743, %v6754, %v6756
    %v6758 = vshll.u32 %v6718, 8
    %v6759 = vand.u32 %v6758, 65535
    %v6760 = vshrl.u32 %v6758, 16
    %v6761 = vand.u32 %v6757, 65535
    %v6762 = vshrl.u32 %v6757, 16
    %v6763 = vmul.u32 %v6759, %v6761
    %v6764 = vmul.u32 %v6759, %v6762
    %v6765 = vmul.u32 %v6760, %v6761
    %v6766 = vmul.u32 %v6760, %v6762
    %v6767 = vshll.u32 %v6764, 16
    %v6768 = vshrl.u32 %v6764, 16
    %v6769 = vshll.u32 %v6765, 16
    %v6770 = vshrl.u32 %v6765, 16
    %vm6771 = vc.u32 %v6763, %v6767
    %v6772 = vsel %vm6771, 1, 0
    %v6773 = vadd.s32 %v6763, %v6767
    %v6774 = vadd.s32 %v6766, %v6772
    %vm6775 = vc.u32 %v6773, %v6769
    %v6776 = vsel %vm6775, 1, 0
    %v6777 = vadd.s32 %v6773, %v6769
    %v6778 = vadd.s32 %v6774, %v6776
    %v6779 = vadd.s32 %v6778, %v6768
    %v6780 = vadd.s32 %v6779, %v6770
    %v6781 = vand.u32 %v6758, 65535
    %v6782 = vshrl.u32 %v6758, 16
    %v6783 = vand.u32 %v6753, 65535
    %v6784 = vshrl.u32 %v6753, 16
    %v6785 = vmul.u32 %v6781, %v6783
    %v6786 = vmul.u32 %v6781, %v6784
    %v6787 = vmul.u32 %v6782, %v6783
    %v6788 = vmul.u32 %v6782, %v6784
    %v6789 = vshll.u32 %v6786, 16
    %v6790 = vshrl.u32 %v6786, 16
    %v6791 = vshll.u32 %v6787, 16
    %v6792 = vshrl.u32 %v6787, 16
    %vm6793 = vc.u32 %v6785, %v6789
    %v6794 = vsel %vm6793, 1, 0
    %v6795 = vadd.s32 %v6785, %v6789
    %v6796 = vadd.s32 %v6788, %v6794
    %vm6797 = vc.u32 %v6795, %v6791
    %v6798 = vsel %vm6797, 1, 0
    %v6799 = vadd.s32 %v6795, %v6791
    %v6800 = vadd.s32 %v6796, %v6798
    %v6801 = vadd.s32 %v6800, %v6790
    %v6802 = vadd.s32 %v6801, %v6792
    %v6803 = vmul.u32 %v6758, %v6749
    %v6804 = vadd.s32 %v6780, %v6799
    %vm6805 = vc.u32 %v6780, %v6799
    %v6806 = vadd.s32 %v6802, 1
    %v6807 = vsel %vm6805, %v6806, %v6802
    %v6808 = vadd.s32 %v6803, %v6807
    %v6809 = vadd.s32 %v6808, 536870912
    %v6810 = vshrl.u32 %v6809, 30
    %v6811 = vshll.u32 %v6810, 30
    %v6812 = vsub.s32 %v6808, %v6811
    %vm6813 = vcmp.lt.s32.totalorder %v6812, 0
    %v6814 = vsub.s32 0, %v6812
    %v6815 = vsel %vm6813, %v6814, %v6812
    %v6816 = vclz %v6815
    %v6817 = vsub.s32 %v6816, 2
    %vm6818 = vcmp.gt.s32.totalorder 0, %v6817
    %v6819 = vsel %vm6818, 0, %v6817
    %v6820 = vsub.s32 32, %v6819
    %v6821 = vshll.u32 %v6812, %v6819
    %v6822 = vshrl.u32 %v6804, %v6820
    %v6823 = vor.u32 %v6821, %v6822
    %v6824 = vsub.s32 4294967266, %v6819
    %v6825 = vadd.s32 %v6824, 127
    %v6826 = vshll.u32 %v6825, 23
    %v6827 = vor.u32 4788187, %v6826
    %v6828 = vand.u32 2147483647, %v6827
    %v6830 = vcvt.s32.f32 %v6823
    %v6831 = vmul.f32 %v6830, %v6828
    %v6832 = vxor.u32 %v6831, 2147483648
    %v6833 = vsel %vm6712, %v6832, %v6831
    %v6834 = vsub.s32 4, %v6810
    %v6835 = vsel %vm6712, %v6834, %v6810
    %v6836 = vsel %vm6711, %v191, %v6833
    %v6837 = vsel %vm6711, 0, %v6835
    %v6838 = vmul.f32 %v6836, %v6836
    %v6839 = vmul.f32 %v6838, -0.001358992
    %v6840 = vadd.f32 %v6839, 0.041655596
    %v6841 = vmul.f32 %v6838, %v6840
    %v6842 = vadd.f32 %v6841, -0.4999988
    %v6843 = vmul.f32 %v6838, %v6842
    %v6844 = vadd.f32 1.0, %v6843
    %v6845 = vmul.f32 %v6836, %v6836
    %v6846 = vmul.f32 %v6845, -0.00019511016
    %v6847 = vadd.f32 %v6846, 0.008332121
    %v6848 = vmul.f32 %v6845, %v6847
    %v6849 = vadd.f32 %v6848, -0.16666654
    %v6850 = vmul.f32 %v6845, %v6849
    %v6851 = vadd.f32 %v6850, 1.0
    %v6852 = vmul.f32 %v6851, %v6836
    %vm6853 = vweird.f32 %v191
    %v6854 = vadd.s32 %v6837, 3
    %v6855 = vand.u32 %v6854, 3
    %vm6856 = vcmp.lt.s32.totalorder %v6855, 2
    %vm6857 = vcmp.eq.s32.totalorder %v6855, 0
    %v6858 = vxor.u32 %v6852, 2147483648
    %v6859 = vsel %vm6857, %v6844, %v6858
    %vm6860 = vcmp.eq.s32.totalorder %v6855, 2
    %v6861 = vxor.u32 %v6844, 2147483648
    %v6862 = vsel %vm6860, %v6861, %v6852
    %v6863 = vsel %vm6856, %v6859, %v6862
    %v6864 = vsel %vm6853, nan, %v6863
    %v6865 = vand.u32 2147483647, %v194
    %vm6866 = vcmp.le.f32.partialorder %v6865, 0.7853982
    %vm6867 = vcmp.lt.s32.totalorder %v194, 0
    %v6868 = vand.u32 %v194, 2139095040
    %v6869 = vshrl.u32 %v6868, 23
    %v6870 = vsub.s32 %v6869, 127
    %v6871 = vand.u32 2147483647, %v194
    %v6872 = vand.u32 %v6871, 8388607
    %v6873 = vor.u32 %v6872, 8388608
    %v6874 = vsub.s32 0, %v6873
    %v6875 = vadd.s32 %v6870, 1
    %vm6876 = vcmp.gt.s32.totalorder %v6875, 0
    %v6877 = vsel %vm6876, %v6875, 0
    %v6878 = vshrl.u32 %v6877, 5
    %v6879 = vand.u32 %v6877, 31
    %v6880 = vsub.s32 32, %v6879
    %v6881 = vshrl.u32 683565275, %v6880
    %v6882 = vshll.u32 683565275, %v6879
    %v6883 = vshrl.u32 2475754826, %v6880
    %v6884 = vor.u32 %v6882, %v6883
    %v6885 = vshll.u32 2475754826, %v6879
    %v6886 = vshrl.u32 2131351028, %v6880
    %v6887 = vor.u32 %v6885, %v6886
    %v6888 = vshll.u32 2131351028, %v6879
    %v6889 = vshrl.u32 2102212464, %v6880
    %v6890 = vor.u32 %v6888, %v6889
    %v6891 = vshll.u32 2102212464, %v6879
    %v6892 = vshrl.u32 920167782, %v6880
    %v6893 = vor.u32 %v6891, %v6892
    %v6894 = vshll.u32 920167782, %v6879
    %v6895 = vshrl.u32 1326507024, %v6880
    %v6896 = vor.u32 %v6894, %v6895
    %vm6897 = vcmp.lt.s32.totalorder %v6878, 1
    %vm6898 = vcmp.lt.s32.totalorder %v6878, 2
    %vm6899 = vcmp.lt.s32.totalorder %v6878, 3
    %vm6900 = vcmp.lt.s32.totalorder %v6878, 4
    %v6901 = vsel %vm6897, %v6881, %v6884
    %v6902 = vsel %vm6900, %v6890, 2102212464
    %v6903 = vsel %vm6899, %v6887, %v6902
    %v6904 = vsel %vm6898, %v6901, %v6903
    %v6905 = vsel %vm6897, %v6884, %v6887
    %v6906 = vsel %vm6900, %v6893, 920167782
    %v6907 = vsel %vm6899, %v6890, %v6906
    %v6908 = vsel %vm6898, %v6905, %v6907
    %v6909 = vsel %vm6897, %v6887, %v6890
    %v6910 = vsel %vm6900, %v6896, 1326507024
    %v6911 = vsel %vm6899, %v6893, %v6910
    %v6912 = vsel %vm6898, %v6909, %v6911
    %v6913 = vshll.u32 %v6873, 8
    %v6914 = vand.u32 %v6913, 65535
    %v6915 = vshrl.u32 %v6913, 16
    %v6916 = vand.u32 %v6912, 65535
    %v6917 = vshrl.u32 %v6912, 16
    %v6918 = vmul.u32 %v6914, %v6916
    %v6919 = vmul.u32 %v6914, %v6917
    %v6920 = vmul.u32 %v6915, %v6916
    %v6921 = vmul.u32 %v6915, %v6917
    %v6922 = vshll.u32 %v6919, 16
    %v6923 = vshrl.u32 %v6919, 16
    %v6924 = vshll.u32 %v6920, 16
    %v6925 = vshrl.u32 %v6920, 16
    %vm6926 = vc.u32 %v6918, %v6922
    %v6927 = vsel %vm6926, 1, 0
    %v6928 = vadd.s32 %v6918, %v6922
    %v6929 = vadd.s32 %v6921, %v6927
    %vm6930 = vc.u32 %v6928, %v6924
    %v6931 = vsel %vm6930, 1, 0
    %v6932 = vadd.s32 %v6928, %v6924
    %v6933 = vadd.s32 %v6929, %v6931
    %v6934 = vadd.s32 %v6933, %v6923
    %v6935 = vadd.s32 %v6934, %v6925
    %v6936 = vand.u32 %v6913, 65535
    %v6937 = vshrl.u32 %v6913, 16
    %v6938 = vand.u32 %v6908, 65535
    %v6939 = vshrl.u32 %v6908, 16
    %v6940 = vmul.u32 %v6936, %v6938
    %v6941 = vmul.u32 %v6936, %v6939
    %v6942 = vmul.u32 %v6937, %v6938
    %v6943 = vmul.u32 %v6937, %v6939
    %v6944 = vshll.u32 %v6941, 16
    %v6945 = vshrl.u32 %v6941, 16
    %v6946 = vshll.u32 %v6942, 16
    %v6947 = vshrl.u32 %v6942, 16
    %vm6948 = vc.u32 %v6940, %v6944
    %v6949 = vsel %vm6948, 1, 0
    %v6950 = vadd.s32 %v6940, %v6944
    %v6951 = vadd.s32 %v6943, %v6949
    %vm6952 = vc.u32 %v6950, %v6946
    %v6953 = vsel %vm6952, 1, 0
    %v6954 = vadd.s32 %v6950, %v6946
    %v6955 = vadd.s32 %v6951, %v6953
    %v6956 = vadd.s32 %v6955, %v6945
    %v6957 = vadd.s32 %v6956, %v6947
    %v6958 = vmul.u32 %v6913, %v6904
    %v6959 = vadd.s32 %v6935, %v6954
    %vm6960 = vc.u32 %v6935, %v6954
    %v6961 = vadd.s32 %v6957, 1
    %v6962 = vsel %vm6960, %v6961, %v6957
    %v6963 = vadd.s32 %v6958, %v6962
    %v6964 = vadd.s32 %v6963, 536870912
    %v6965 = vshrl.u32 %v6964, 30
    %v6966 = vshll.u32 %v6965, 30
    %v6967 = vsub.s32 %v6963, %v6966
    %vm6968 = vcmp.lt.s32.totalorder %v6967, 0
    %v6969 = vsub.s32 0, %v6967
    %v6970 = vsel %vm6968, %v6969, %v6967
    %v6971 = vclz %v6970
    %v6972 = vsub.s32 %v6971, 2
    %vm6973 = vcmp.gt.s32.totalorder 0, %v6972
    %v6974 = vsel %vm6973, 0, %v6972
    %v6975 = vsub.s32 32, %v6974
    %v6976 = vshll.u32 %v6967, %v6974
    %v6977 = vshrl.u32 %v6959, %v6975
    %v6978 = vor.u32 %v6976, %v6977
    %v6979 = vsub.s32 4294967266, %v6974
    %v6980 = vadd.s32 %v6979, 127
    %v6981 = vshll.u32 %v6980, 23
    %v6982 = vor.u32 4788187, %v6981
    %v6983 = vand.u32 2147483647, %v6982
    %v6985 = vcvt.s32.f32 %v6978
    %v6986 = vmul.f32 %v6985, %v6983
    %v6987 = vxor.u32 %v6986, 2147483648
    %v6988 = vsel %vm6867, %v6987, %v6986
    %v6989 = vsub.s32 4, %v6965
    %v6990 = vsel %vm6867, %v6989, %v6965
    %v6991 = vsel %vm6866, %v194, %v6988
    %v6992 = vsel %vm6866, 0, %v6990
    %v6993 = vmul.f32 %v6991, %v6991
    %v6994 = vmul.f32 %v6993, -0.001358992
    %v6995 = vadd.f32 %v6994, 0.041655596
    %v6996 = vmul.f32 %v6993, %v6995
    %v6997 = vadd.f32 %v6996, -0.4999988
    %v6998 = vmul.f32 %v6993, %v6997
    %v6999 = vadd.f32 1.0, %v6998
    %v7000 = vmul.f32 %v6991, %v6991
    %v7001 = vmul.f32 %v7000, -0.00019511016
    %v7002 = vadd.f32 %v7001, 0.008332121
    %v7003 = vmul.f32 %v7000, %v7002
    %v7004 = vadd.f32 %v7003, -0.16666654
    %v7005 = vmul.f32 %v7000, %v7004
    %v7006 = vadd.f32 %v7005, 1.0
    %v7007 = vmul.f32 %v7006, %v6991
    %vm7008 = vweird.f32 %v194
    %v7009 = vadd.s32 %v6992, 3
    %v7010 = vand.u32 %v7009, 3
    %vm7011 = vcmp.lt.s32.totalorder %v7010, 2
    %vm7012 = vcmp.eq.s32.totalorder %v7010, 0
    %v7013 = vxor.u32 %v7007, 2147483648
    %v7014 = vsel %vm7012, %v6999, %v7013
    %vm7015 = vcmp.eq.s32.totalorder %v7010, 2
    %v7016 = vxor.u32 %v6999, 2147483648
    %v7017 = vsel %vm7015, %v7016, %v7007
    %v7018 = vsel %vm7011, %v7014, %v7017
    %v7019 = vsel %vm7008, nan, %v7018
    %v7020 = vand.u32 2147483647, %v197
    %vm7021 = vcmp.le.f32.partialorder %v7020, 0.7853982
    %vm7022 = vcmp.lt.s32.totalorder %v197, 0
    %v7023 = vand.u32 %v197, 2139095040
    %v7024 = vshrl.u32 %v7023, 23
    %v7025 = vsub.s32 %v7024, 127
    %v7026 = vand.u32 2147483647, %v197
    %v7027 = vand.u32 %v7026, 8388607
    %v7028 = vor.u32 %v7027, 8388608
    %v7029 = vsub.s32 0, %v7028
    %v7030 = vadd.s32 %v7025, 1
    %vm7031 = vcmp.gt.s32.totalorder %v7030, 0
    %v7032 = vsel %vm7031, %v7030, 0
    %v7033 = vshrl.u32 %v7032, 5
    %v7034 = vand.u32 %v7032, 31
    %v7035 = vsub.s32 32, %v7034
    %v7036 = vshrl.u32 683565275, %v7035
    %v7037 = vshll.u32 683565275, %v7034
    %v7038 = vshrl.u32 2475754826, %v7035
    %v7039 = vor.u32 %v7037, %v7038
    %v7040 = vshll.u32 2475754826, %v7034
    %v7041 = vshrl.u32 2131351028, %v7035
    %v7042 = vor.u32 %v7040, %v7041
    %v7043 = vshll.u32 2131351028, %v7034
    %v7044 = vshrl.u32 2102212464, %v7035
    %v7045 = vor.u32 %v7043, %v7044
    %v7046 = vshll.u32 2102212464, %v7034
    %v7047 = vshrl.u32 920167782, %v7035
    %v7048 = vor.u32 %v7046, %v7047
    %v7049 = vshll.u32 920167782, %v7034
    %v7050 = vshrl.u32 1326507024, %v7035
    %v7051 = vor.u32 %v7049, %v7050
    %vm7052 = vcmp.lt.s32.totalorder %v7033, 1
    %vm7053 = vcmp.lt.s32.totalorder %v7033, 2
    %vm7054 = vcmp.lt.s32.totalorder %v7033, 3
    %vm7055 = vcmp.lt.s32.totalorder %v7033, 4
    %v7056 = vsel %vm7052, %v7036, %v7039
    %v7057 = vsel %vm7055, %v7045, 2102212464
    %v7058 = vsel %vm7054, %v7042, %v7057
    %v7059 = vsel %vm7053, %v7056, %v7058
    %v7060 = vsel %vm7052, %v7039, %v7042
    %v7061 = vsel %vm7055, %v7048, 920167782
    %v7062 = vsel %vm7054, %v7045, %v7061
    %v7063 = vsel %vm7053, %v7060, %v7062
    %v7064 = vsel %vm7052, %v7042, %v7045
    %v7065 = vsel %vm7055, %v7051, 1326507024
    %v7066 = vsel %vm7054, %v7048, %v7065
    %v7067 = vsel %vm7053, %v7064, %v7066
    %v7068 = vshll.u32 %v7028, 8
    %v7069 = vand.u32 %v7068, 65535
    %v7070 = vshrl.u32 %v7068, 16
    %v7071 = vand.u32 %v7067, 65535
    %v7072 = vshrl.u32 %v7067, 16
    %v7073 = vmul.u32 %v7069, %v7071
    %v7074 = vmul.u32 %v7069, %v7072
    %v7075 = vmul.u32 %v7070, %v7071
    %v7076 = vmul.u32 %v7070, %v7072
    %v7077 = vshll.u32 %v7074, 16
    %v7078 = vshrl.u32 %v7074, 16
    %v7079 = vshll.u32 %v7075, 16
    %v7080 = vshrl.u32 %v7075, 16
    %vm7081 = vc.u32 %v7073, %v7077
    %v7082 = vsel %vm7081, 1, 0
    %v7083 = vadd.s32 %v7073, %v7077
    %v7084 = vadd.s32 %v7076, %v7082
    %vm7085 = vc.u32 %v7083, %v7079
    %v7086 = vsel %vm7085, 1, 0
    %v7087 = vadd.s32 %v7083, %v7079
    %v7088 = vadd.s32 %v7084, %v7086
    %v7089 = vadd.s32 %v7088, %v7078
    %v7090 = vadd.s32 %v7089, %v7080
    %v7091 = vand.u32 %v7068, 65535
    %v7092 = vshrl.u32 %v7068, 16
    %v7093 = vand.u32 %v7063, 65535
    %v7094 = vshrl.u32 %v7063, 16
    %v7095 = vmul.u32 %v7091, %v7093
    %v7096 = vmul.u32 %v7091, %v7094
    %v7097 = vmul.u32 %v7092, %v7093
    %v7098 = vmul.u32 %v7092, %v7094
    %v7099 = vshll.u32 %v7096, 16
    %v7100 = vshrl.u32 %v7096, 16
    %v7101 = vshll.u32 %v7097, 16
    %v7102 = vshrl.u32 %v7097, 16
    %vm7103 = vc.u32 %v7095, %v7099
    %v7104 = vsel %vm7103, 1, 0
    %v7105 = vadd.s32 %v7095, %v7099
    %v7106 = vadd.s32 %v7098, %v7104
    %vm7107 = vc.u32 %v7105, %v7101
    %v7108 = vsel %vm7107, 1, 0
    %v7109 = vadd.s32 %v7105, %v7101
    %v7110 = vadd.s32 %v7106, %v7108
    %v7111 = vadd.s32 %v7110, %v7100
    %v7112 = vadd.s32 %v7111, %v7102
    %v7113 = vmul.u32 %v7068, %v7059
    %v7114 = vadd.s32 %v7090, %v7109
    %vm7115 = vc.u32 %v7090, %v7109
    %v7116 = vadd.s32 %v7112, 1
    %v7117 = vsel %vm7115, %v7116, %v7112
    %v7118 = vadd.s32 %v7113, %v7117
    %v7119 = vadd.s32 %v7118, 536870912
    %v7120 = vshrl.u32 %v7119, 30
    %v7121 = vshll.u32 %v7120, 30
    %v7122 = vsub.s32 %v7118, %v7121
    %vm7123 = vcmp.lt.s32.totalorder %v7122, 0
    %v7124 = vsub.s32 0, %v7122
    %v7125 = vsel %vm7123, %v7124, %v7122
    %v7126 = vclz %v7125
    %v7127 = vsub.s32 %v7126, 2
    %vm7128 = vcmp.gt.s32.totalorder 0, %v7127
    %v7129 = vsel %vm7128, 0, %v7127
    %v7130 = vsub.s32 32, %v7129
    %v7131 = vshll.u32 %v7122, %v7129
    %v7132 = vshrl.u32 %v7114, %v7130
    %v7133 = vor.u32 %v7131, %v7132
    %v7134 = vsub.s32 4294967266, %v7129
    %v7135 = vadd.s32 %v7134, 127
    %v7136 = vshll.u32 %v7135, 23
    %v7137 = vor.u32 4788187, %v7136
    %v7138 = vand.u32 2147483647, %v7137
    %v7140 = vcvt.s32.f32 %v7133
    %v7141 = vmul.f32 %v7140, %v7138
    %v7142 = vxor.u32 %v7141, 2147483648
    %v7143 = vsel %vm7022, %v7142, %v7141
    %v7144 = vsub.s32 4, %v7120
    %v7145 = vsel %vm7022, %v7144, %v7120
    %v7146 = vsel %vm7021, %v197, %v7143
    %v7147 = vsel %vm7021, 0, %v7145
    %v7148 = vmul.f32 %v7146, %v7146
    %v7149 = vmul.f32 %v7148, -0.001358992
    %v7150 = vadd.f32 %v7149, 0.041655596
    %v7151 = vmul.f32 %v7148, %v7150
    %v7152 = vadd.f32 %v7151, -0.4999988
    %v7153 = vmul.f32 %v7148, %v7152
    %v7154 = vadd.f32 1.0, %v7153
    %v7155 = vmul.f32 %v7146, %v7146
    %v7156 = vmul.f32 %v7155, -0.00019511016
    %v7157 = vadd.f32 %v7156, 0.008332121
    %v7158 = vmul.f32 %v7155, %v7157
    %v7159 = vadd.f32 %v7158, -0.16666654
    %v7160 = vmul.f32 %v7155, %v7159
    %v7161 = vadd.f32 %v7160, 1.0
    %v7162 = vmul.f32 %v7161, %v7146
    %vm7163 = vweird.f32 %v197
    %v7164 = vadd.s32 %v7147, 3
    %v7165 = vand.u32 %v7164, 3
    %vm7166 = vcmp.lt.s32.totalorder %v7165, 2
    %vm7167 = vcmp.eq.s32.totalorder %v7165, 0
    %v7168 = vxor.u32 %v7162, 2147483648
    %v7169 = vsel %vm7167, %v7154, %v7168
    %vm7170 = vcmp.eq.s32.totalorder %v7165, 2
    %v7171 = vxor.u32 %v7154, 2147483648
    %v7172 = vsel %vm7170, %v7171, %v7162
    %v7173 = vsel %vm7166, %v7169, %v7172
    %v7174 = vsel %vm7163, nan, %v7173
    %v7175 = vand.u32 2147483647, %v200
    %vm7176 = vcmp.le.f32.partialorder %v7175, 0.7853982
    %vm7177 = vcmp.lt.s32.totalorder %v200, 0
    %v7178 = vand.u32 %v200, 2139095040
    %v7179 = vshrl.u32 %v7178, 23
    %v7180 = vsub.s32 %v7179, 127
    %v7181 = vand.u32 2147483647, %v200
    %v7182 = vand.u32 %v7181, 8388607
    %v7183 = vor.u32 %v7182, 8388608
    %v7184 = vsub.s32 0, %v7183
    %v7185 = vadd.s32 %v7180, 1
    %vm7186 = vcmp.gt.s32.totalorder %v7185, 0
    %v7187 = vsel %vm7186, %v7185, 0
    %v7188 = vshrl.u32 %v7187, 5
    %v7189 = vand.u32 %v7187, 31
    %v7190 = vsub.s32 32, %v7189
    %v7191 = vshrl.u32 683565275, %v7190
    %v7192 = vshll.u32 683565275, %v7189
    %v7193 = vshrl.u32 2475754826, %v7190
    %v7194 = vor.u32 %v7192, %v7193
    %v7195 = vshll.u32 2475754826, %v7189
    %v7196 = vshrl.u32 2131351028, %v7190
    %v7197 = vor.u32 %v7195, %v7196
    %v7198 = vshll.u32 2131351028, %v7189
    %v7199 = vshrl.u32 2102212464, %v7190
    %v7200 = vor.u32 %v7198, %v7199
    %v7201 = vshll.u32 2102212464, %v7189
    %v7202 = vshrl.u32 920167782, %v7190
    %v7203 = vor.u32 %v7201, %v7202
    %v7204 = vshll.u32 920167782, %v7189
    %v7205 = vshrl.u32 1326507024, %v7190
    %v7206 = vor.u32 %v7204, %v7205
    %vm7207 = vcmp.lt.s32.totalorder %v7188, 1
    %vm7208 = vcmp.lt.s32.totalorder %v7188, 2
    %vm7209 = vcmp.lt.s32.totalorder %v7188, 3
    %vm7210 = vcmp.lt.s32.totalorder %v7188, 4
    %v7211 = vsel %vm7207, %v7191, %v7194
    %v7212 = vsel %vm7210, %v7200, 2102212464
    %v7213 = vsel %vm7209, %v7197, %v7212
    %v7214 = vsel %vm7208, %v7211, %v7213
    %v7215 = vsel %vm7207, %v7194, %v7197
    %v7216 = vsel %vm7210, %v7203, 920167782
    %v7217 = vsel %vm7209, %v7200, %v7216
    %v7218 = vsel %vm7208, %v7215, %v7217
    %v7219 = vsel %vm7207, %v7197, %v7200
    %v7220 = vsel %vm7210, %v7206, 1326507024
    %v7221 = vsel %vm7209, %v7203, %v7220
    %v7222 = vsel %vm7208, %v7219, %v7221
    %v7223 = vshll.u32 %v7183, 8
    %v7224 = vand.u32 %v7223, 65535
    %v7225 = vshrl.u32 %v7223, 16
    %v7226 = vand.u32 %v7222, 65535
    %v7227 = vshrl.u32 %v7222, 16
    %v7228 = vmul.u32 %v7224, %v7226
    %v7229 = vmul.u32 %v7224, %v7227
    %v7230 = vmul.u32 %v7225, %v7226
    %v7231 = vmul.u32 %v7225, %v7227
    %v7232 = vshll.u32 %v7229, 16
    %v7233 = vshrl.u32 %v7229, 16
    %v7234 = vshll.u32 %v7230, 16
    %v7235 = vshrl.u32 %v7230, 16
    %vm7236 = vc.u32 %v7228, %v7232
    %v7237 = vsel %vm7236, 1, 0
    %v7238 = vadd.s32 %v7228, %v7232
    %v7239 = vadd.s32 %v7231, %v7237
    %vm7240 = vc.u32 %v7238, %v7234
    %v7241 = vsel %vm7240, 1, 0
    %v7242 = vadd.s32 %v7238, %v7234
    %v7243 = vadd.s32 %v7239, %v7241
    %v7244 = vadd.s32 %v7243, %v7233
    %v7245 = vadd.s32 %v7244, %v7235
    %v7246 = vand.u32 %v7223, 65535
    %v7247 = vshrl.u32 %v7223, 16
    %v7248 = vand.u32 %v7218, 65535
    %v7249 = vshrl.u32 %v7218, 16
    %v7250 = vmul.u32 %v7246, %v7248
    %v7251 = vmul.u32 %v7246, %v7249
    %v7252 = vmul.u32 %v7247, %v7248
    %v7253 = vmul.u32 %v7247, %v7249
    %v7254 = vshll.u32 %v7251, 16
    %v7255 = vshrl.u32 %v7251, 16
    %v7256 = vshll.u32 %v7252, 16
    %v7257 = vshrl.u32 %v7252, 16
    %vm7258 = vc.u32 %v7250, %v7254
    %v7259 = vsel %vm7258, 1, 0
    %v7260 = vadd.s32 %v7250, %v7254
    %v7261 = vadd.s32 %v7253, %v7259
    %vm7262 = vc.u32 %v7260, %v7256
    %v7263 = vsel %vm7262, 1, 0
    %v7264 = vadd.s32 %v7260, %v7256
    %v7265 = vadd.s32 %v7261, %v7263
    %v7266 = vadd.s32 %v7265, %v7255
    %v7267 = vadd.s32 %v7266, %v7257
    %v7268 = vmul.u32 %v7223, %v7214
    %v7269 = vadd.s32 %v7245, %v7264
    %vm7270 = vc.u32 %v7245, %v7264
    %v7271 = vadd.s32 %v7267, 1
    %v7272 = vsel %vm7270, %v7271, %v7267
    %v7273 = vadd.s32 %v7268, %v7272
    %v7274 = vadd.s32 %v7273, 536870912
    %v7275 = vshrl.u32 %v7274, 30
    %v7276 = vshll.u32 %v7275, 30
    %v7277 = vsub.s32 %v7273, %v7276
    %vm7278 = vcmp.lt.s32.totalorder %v7277, 0
    %v7279 = vsub.s32 0, %v7277
    %v7280 = vsel %vm7278, %v7279, %v7277
    %v7281 = vclz %v7280
    %v7282 = vsub.s32 %v7281, 2
    %vm7283 = vcmp.gt.s32.totalorder 0, %v7282
    %v7284 = vsel %vm7283, 0, %v7282
    %v7285 = vsub.s32 32, %v7284
    %v7286 = vshll.u32 %v7277, %v7284
    %v7287 = vshrl.u32 %v7269, %v7285
    %v7288 = vor.u32 %v7286, %v7287
    %v7289 = vsub.s32 4294967266, %v7284
    %v7290 = vadd.s32 %v7289, 127
    %v7291 = vshll.u32 %v7290, 23
    %v7292 = vor.u32 4788187, %v7291
    %v7293 = vand.u32 2147483647, %v7292
    %v7295 = vcvt.s32.f32 %v7288
    %v7296 = vmul.f32 %v7295, %v7293
    %v7297 = vxor.u32 %v7296, 2147483648
    %v7298 = vsel %vm7177, %v7297, %v7296
    %v7299 = vsub.s32 4, %v7275
    %v7300 = vsel %vm7177, %v7299, %v7275
    %v7301 = vsel %vm7176, %v200, %v7298
    %v7302 = vsel %vm7176, 0, %v7300
    %v7303 = vmul.f32 %v7301, %v7301
    %v7304 = vmul.f32 %v7303, -0.001358992
    %v7305 = vadd.f32 %v7304, 0.041655596
    %v7306 = vmul.f32 %v7303, %v7305
    %v7307 = vadd.f32 %v7306, -0.4999988
    %v7308 = vmul.f32 %v7303, %v7307
    %v7309 = vadd.f32 1.0, %v7308
    %v7310 = vmul.f32 %v7301, %v7301
    %v7311 = vmul.f32 %v7310, -0.00019511016
    %v7312 = vadd.f32 %v7311, 0.008332121
    %v7313 = vmul.f32 %v7310, %v7312
    %v7314 = vadd.f32 %v7313, -0.16666654
    %v7315 = vmul.f32 %v7310, %v7314
    %v7316 = vadd.f32 %v7315, 1.0
    %v7317 = vmul.f32 %v7316, %v7301
    %vm7318 = vweird.f32 %v200
    %v7319 = vadd.s32 %v7302, 3
    %v7320 = vand.u32 %v7319, 3
    %vm7321 = vcmp.lt.s32.totalorder %v7320, 2
    %vm7322 = vcmp.eq.s32.totalorder %v7320, 0
    %v7323 = vxor.u32 %v7317, 2147483648
    %v7324 = vsel %vm7322, %v7309, %v7323
    %vm7325 = vcmp.eq.s32.totalorder %v7320, 2
    %v7326 = vxor.u32 %v7309, 2147483648
    %v7327 = vsel %vm7325, %v7326, %v7317
    %v7328 = vsel %vm7321, %v7324, %v7327
    %v7329 = vsel %vm7318, nan, %v7328
    %v7330 = vand.u32 2147483647, %v203
    %vm7331 = vcmp.le.f32.partialorder %v7330, 0.7853982
    %vm7332 = vcmp.lt.s32.totalorder %v203, 0
    %v7333 = vand.u32 %v203, 2139095040
    %v7334 = vshrl.u32 %v7333, 23
    %v7335 = vsub.s32 %v7334, 127
    %v7336 = vand.u32 2147483647, %v203
    %v7337 = vand.u32 %v7336, 8388607
    %v7338 = vor.u32 %v7337, 8388608
    %v7339 = vsub.s32 0, %v7338
    %v7340 = vadd.s32 %v7335, 1
    %vm7341 = vcmp.gt.s32.totalorder %v7340, 0
    %v7342 = vsel %vm7341, %v7340, 0
    %v7343 = vshrl.u32 %v7342, 5
    %v7344 = vand.u32 %v7342, 31
    %v7345 = vsub.s32 32, %v7344
    %v7346 = vshrl.u32 683565275, %v7345
    %v7347 = vshll.u32 683565275, %v7344
    %v7348 = vshrl.u32 2475754826, %v7345
    %v7349 = vor.u32 %v7347, %v7348
    %v7350 = vshll.u32 2475754826, %v7344
    %v7351 = vshrl.u32 2131351028, %v7345
    %v7352 = vor.u32 %v7350, %v7351
    %v7353 = vshll.u32 2131351028, %v7344
    %v7354 = vshrl.u32 2102212464, %v7345
    %v7355 = vor.u32 %v7353, %v7354
    %v7356 = vshll.u32 2102212464, %v7344
    %v7357 = vshrl.u32 920167782, %v7345
    %v7358 = vor.u32 %v7356, %v7357
    %v7359 = vshll.u32 920167782, %v7344
    %v7360 = vshrl.u32 1326507024, %v7345
    %v7361 = vor.u32 %v7359, %v7360
    %vm7362 = vcmp.lt.s32.totalorder %v7343, 1
    %vm7363 = vcmp.lt.s32.totalorder %v7343, 2
    %vm7364 = vcmp.lt.s32.totalorder %v7343, 3
    %vm7365 = vcmp.lt.s32.totalorder %v7343, 4
    %v7366 = vsel %vm7362, %v7346, %v7349
    %v7367 = vsel %vm7365, %v7355, 2102212464
    %v7368 = vsel %vm7364, %v7352, %v7367
    %v7369 = vsel %vm7363, %v7366, %v7368
    %v7370 = vsel %vm7362, %v7349, %v7352
    %v7371 = vsel %vm7365, %v7358, 920167782
    %v7372 = vsel %vm7364, %v7355, %v7371
    %v7373 = vsel %vm7363, %v7370, %v7372
    %v7374 = vsel %vm7362, %v7352, %v7355
    %v7375 = vsel %vm7365, %v7361, 1326507024
    %v7376 = vsel %vm7364, %v7358, %v7375
    %v7377 = vsel %vm7363, %v7374, %v7376
    %v7378 = vshll.u32 %v7338, 8
    %v7379 = vand.u32 %v7378, 65535
    %v7380 = vshrl.u32 %v7378, 16
    %v7381 = vand.u32 %v7377, 65535
    %v7382 = vshrl.u32 %v7377, 16
    %v7383 = vmul.u32 %v7379, %v7381
    %v7384 = vmul.u32 %v7379, %v7382
    %v7385 = vmul.u32 %v7380, %v7381
    %v7386 = vmul.u32 %v7380, %v7382
    %v7387 = vshll.u32 %v7384, 16
    %v7388 = vshrl.u32 %v7384, 16
    %v7389 = vshll.u32 %v7385, 16
    %v7390 = vshrl.u32 %v7385, 16
    %vm7391 = vc.u32 %v7383, %v7387
    %v7392 = vsel %vm7391, 1, 0
    %v7393 = vadd.s32 %v7383, %v7387
    %v7394 = vadd.s32 %v7386, %v7392
    %vm7395 = vc.u32 %v7393, %v7389
    %v7396 = vsel %vm7395, 1, 0
    %v7397 = vadd.s32 %v7393, %v7389
    %v7398 = vadd.s32 %v7394, %v7396
    %v7399 = vadd.s32 %v7398, %v7388
    %v7400 = vadd.s32 %v7399, %v7390
    %v7401 = vand.u32 %v7378, 65535
    %v7402 = vshrl.u32 %v7378, 16
    %v7403 = vand.u32 %v7373, 65535
    %v7404 = vshrl.u32 %v7373, 16
    %v7405 = vmul.u32 %v7401, %v7403
    %v7406 = vmul.u32 %v7401, %v7404
    %v7407 = vmul.u32 %v7402, %v7403
    %v7408 = vmul.u32 %v7402, %v7404
    %v7409 = vshll.u32 %v7406, 16
    %v7410 = vshrl.u32 %v7406, 16
    %v7411 = vshll.u32 %v7407, 16
    %v7412 = vshrl.u32 %v7407, 16
    %vm7413 = vc.u32 %v7405, %v7409
    %v7414 = vsel %vm7413, 1, 0
    %v7415 = vadd.s32 %v7405, %v7409
    %v7416 = vadd.s32 %v7408, %v7414
    %vm7417 = vc.u32 %v7415, %v7411
    %v7418 = vsel %vm7417, 1, 0
    %v7419 = vadd.s32 %v7415, %v7411
    %v7420 = vadd.s32 %v7416, %v7418
    %v7421 = vadd.s32 %v7420, %v7410
    %v7422 = vadd.s32 %v7421, %v7412
    %v7423 = vmul.u32 %v7378, %v7369
    %v7424 = vadd.s32 %v7400, %v7419
    %vm7425 = vc.u32 %v7400, %v7419
    %v7426 = vadd.s32 %v7422, 1
    %v7427 = vsel %vm7425, %v7426, %v7422
    %v7428 = vadd.s32 %v7423, %v7427
    %v7429 = vadd.s32 %v7428, 536870912
    %v7430 = vshrl.u32 %v7429, 30
    %v7431 = vshll.u32 %v7430, 30
    %v7432 = vsub.s32 %v7428, %v7431
    %vm7433 = vcmp.lt.s32.totalorder %v7432, 0
    %v7434 = vsub.s32 0, %v7432
    %v7435 = vsel %vm7433, %v7434, %v7432
    %v7436 = vclz %v7435
    %v7437 = vsub.s32 %v7436, 2
    %vm7438 = vcmp.gt.s32.totalorder 0, %v7437
    %v7439 = vsel %vm7438, 0, %v7437
    %v7440 = vsub.s32 32, %v7439
    %v7441 = vshll.u32 %v7432, %v7439
    %v7442 = vshrl.u32 %v7424, %v7440
    %v7443 = vor.u32 %v7441, %v7442
    %v7444 = vsub.s32 4294967266, %v7439
    %v7445 = vadd.s32 %v7444, 127
    %v7446 = vshll.u32 %v7445, 23
    %v7447 = vor.u32 4788187, %v7446
    %v7448 = vand.u32 2147483647, %v7447
    %v7450 = vcvt.s32.f32 %v7443
    %v7451 = vmul.f32 %v7450, %v7448
    %v7452 = vxor.u32 %v7451, 2147483648
    %v7453 = vsel %vm7332, %v7452, %v7451
    %v7454 = vsub.s32 4, %v7430
    %v7455 = vsel %vm7332, %v7454, %v7430
    %v7456 = vsel %vm7331, %v203, %v7453
    %v7457 = vsel %vm7331, 0, %v7455
    %v7458 = vmul.f32 %v7456, %v7456
    %v7459 = vmul.f32 %v7458, -0.001358992
    %v7460 = vadd.f32 %v7459, 0.041655596
    %v7461 = vmul.f32 %v7458, %v7460
    %v7462 = vadd.f32 %v7461, -0.4999988
    %v7463 = vmul.f32 %v7458, %v7462
    %v7464 = vadd.f32 1.0, %v7463
    %v7465 = vmul.f32 %v7456, %v7456
    %v7466 = vmul.f32 %v7465, -0.00019511016
    %v7467 = vadd.f32 %v7466, 0.008332121
    %v7468 = vmul.f32 %v7465, %v7467
    %v7469 = vadd.f32 %v7468, -0.16666654
    %v7470 = vmul.f32 %v7465, %v7469
    %v7471 = vadd.f32 %v7470, 1.0
    %v7472 = vmul.f32 %v7471, %v7456
    %vm7473 = vweird.f32 %v203
    %v7474 = vadd.s32 %v7457, 3
    %v7475 = vand.u32 %v7474, 3
    %vm7476 = vcmp.lt.s32.totalorder %v7475, 2
    %vm7477 = vcmp.eq.s32.totalorder %v7475, 0
    %v7478 = vxor.u32 %v7472, 2147483648
    %v7479 = vsel %vm7477, %v7464, %v7478
    %vm7480 = vcmp.eq.s32.totalorder %v7475, 2
    %v7481 = vxor.u32 %v7464, 2147483648
    %v7482 = vsel %vm7480, %v7481, %v7472
    %v7483 = vsel %vm7476, %v7479, %v7482
    %v7484 = vsel %vm7473, nan, %v7483
    %v7485 = vand.u32 2147483647, %v206
    %vm7486 = vcmp.le.f32.partialorder %v7485, 0.7853982
    %vm7487 = vcmp.lt.s32.totalorder %v206, 0
    %v7488 = vand.u32 %v206, 2139095040
    %v7489 = vshrl.u32 %v7488, 23
    %v7490 = vsub.s32 %v7489, 127
    %v7491 = vand.u32 2147483647, %v206
    %v7492 = vand.u32 %v7491, 8388607
    %v7493 = vor.u32 %v7492, 8388608
    %v7494 = vsub.s32 0, %v7493
    %v7495 = vadd.s32 %v7490, 1
    %vm7496 = vcmp.gt.s32.totalorder %v7495, 0
    %v7497 = vsel %vm7496, %v7495, 0
    %v7498 = vshrl.u32 %v7497, 5
    %v7499 = vand.u32 %v7497, 31
    %v7500 = vsub.s32 32, %v7499
    %v7501 = vshrl.u32 683565275, %v7500
    %v7502 = vshll.u32 683565275, %v7499
    %v7503 = vshrl.u32 2475754826, %v7500
    %v7504 = vor.u32 %v7502, %v7503
    %v7505 = vshll.u32 2475754826, %v7499
    %v7506 = vshrl.u32 2131351028, %v7500
    %v7507 = vor.u32 %v7505, %v7506
    %v7508 = vshll.u32 2131351028, %v7499
    %v7509 = vshrl.u32 2102212464, %v7500
    %v7510 = vor.u32 %v7508, %v7509
    %v7511 = vshll.u32 2102212464, %v7499
    %v7512 = vshrl.u32 920167782, %v7500
    %v7513 = vor.u32 %v7511, %v7512
    %v7514 = vshll.u32 920167782, %v7499
    %v7515 = vshrl.u32 1326507024, %v7500
    %v7516 = vor.u32 %v7514, %v7515
    %vm7517 = vcmp.lt.s32.totalorder %v7498, 1
    %vm7518 = vcmp.lt.s32.totalorder %v7498, 2
    %vm7519 = vcmp.lt.s32.totalorder %v7498, 3
    %vm7520 = vcmp.lt.s32.totalorder %v7498, 4
    %v7521 = vsel %vm7517, %v7501, %v7504
    %v7522 = vsel %vm7520, %v7510, 2102212464
    %v7523 = vsel %vm7519, %v7507, %v7522
    %v7524 = vsel %vm7518, %v7521, %v7523
    %v7525 = vsel %vm7517, %v7504, %v7507
    %v7526 = vsel %vm7520, %v7513, 920167782
    %v7527 = vsel %vm7519, %v7510, %v7526
    %v7528 = vsel %vm7518, %v7525, %v7527
    %v7529 = vsel %vm7517, %v7507, %v7510
    %v7530 = vsel %vm7520, %v7516, 1326507024
    %v7531 = vsel %vm7519, %v7513, %v7530
    %v7532 = vsel %vm7518, %v7529, %v7531
    %v7533 = vshll.u32 %v7493, 8
    %v7534 = vand.u32 %v7533, 65535
    %v7535 = vshrl.u32 %v7533, 16
    %v7536 = vand.u32 %v7532, 65535
    %v7537 = vshrl.u32 %v7532, 16
    %v7538 = vmul.u32 %v7534, %v7536
    %v7539 = vmul.u32 %v7534, %v7537
    %v7540 = vmul.u32 %v7535, %v7536
    %v7541 = vmul.u32 %v7535, %v7537
    %v7542 = vshll.u32 %v7539, 16
    %v7543 = vshrl.u32 %v7539, 16
    %v7544 = vshll.u32 %v7540, 16
    %v7545 = vshrl.u32 %v7540, 16
    %vm7546 = vc.u32 %v7538, %v7542
    %v7547 = vsel %vm7546, 1, 0
    %v7548 = vadd.s32 %v7538, %v7542
    %v7549 = vadd.s32 %v7541, %v7547
    %vm7550 = vc.u32 %v7548, %v7544
    %v7551 = vsel %vm7550, 1, 0
    %v7552 = vadd.s32 %v7548, %v7544
    %v7553 = vadd.s32 %v7549, %v7551
    %v7554 = vadd.s32 %v7553, %v7543
    %v7555 = vadd.s32 %v7554, %v7545
    %v7556 = vand.u32 %v7533, 65535
    %v7557 = vshrl.u32 %v7533, 16
    %v7558 = vand.u32 %v7528, 65535
    %v7559 = vshrl.u32 %v7528, 16
    %v7560 = vmul.u32 %v7556, %v7558
    %v7561 = vmul.u32 %v7556, %v7559
    %v7562 = vmul.u32 %v7557, %v7558
    %v7563 = vmul.u32 %v7557, %v7559
    %v7564 = vshll.u32 %v7561, 16
    %v7565 = vshrl.u32 %v7561, 16
    %v7566 = vshll.u32 %v7562, 16
    %v7567 = vshrl.u32 %v7562, 16
    %vm7568 = vc.u32 %v7560, %v7564
    %v7569 = vsel %vm7568, 1, 0
    %v7570 = vadd.s32 %v7560, %v7564
    %v7571 = vadd.s32 %v7563, %v7569
    %vm7572 = vc.u32 %v7570, %v7566
    %v7573 = vsel %vm7572, 1, 0
    %v7574 = vadd.s32 %v7570, %v7566
    %v7575 = vadd.s32 %v7571, %v7573
    %v7576 = vadd.s32 %v7575, %v7565
    %v7577 = vadd.s32 %v7576, %v7567
    %v7578 = vmul.u32 %v7533, %v7524
    %v7579 = vadd.s32 %v7555, %v7574
    %vm7580 = vc.u32 %v7555, %v7574
    %v7581 = vadd.s32 %v7577, 1
    %v7582 = vsel %vm7580, %v7581, %v7577
    %v7583 = vadd.s32 %v7578, %v7582
    %v7584 = vadd.s32 %v7583, 536870912
    %v7585 = vshrl.u32 %v7584, 30
    %v7586 = vshll.u32 %v7585, 30
    %v7587 = vsub.s32 %v7583, %v7586
    %vm7588 = vcmp.lt.s32.totalorder %v7587, 0
    %v7589 = vsub.s32 0, %v7587
    %v7590 = vsel %vm7588, %v7589, %v7587
    %v7591 = vclz %v7590
    %v7592 = vsub.s32 %v7591, 2
    %vm7593 = vcmp.gt.s32.totalorder 0, %v7592
    %v7594 = vsel %vm7593, 0, %v7592
    %v7595 = vsub.s32 32, %v7594
    %v7596 = vshll.u32 %v7587, %v7594
    %v7597 = vshrl.u32 %v7579, %v7595
    %v7598 = vor.u32 %v7596, %v7597
    %v7599 = vsub.s32 4294967266, %v7594
    %v7600 = vadd.s32 %v7599, 127
    %v7601 = vshll.u32 %v7600, 23
    %v7602 = vor.u32 4788187, %v7601
    %v7603 = vand.u32 2147483647, %v7602
    %v7605 = vcvt.s32.f32 %v7598
    %v7606 = vmul.f32 %v7605, %v7603
    %v7607 = vxor.u32 %v7606, 2147483648
    %v7608 = vsel %vm7487, %v7607, %v7606
    %v7609 = vsub.s32 4, %v7585
    %v7610 = vsel %vm7487, %v7609, %v7585
    %v7611 = vsel %vm7486, %v206, %v7608
    %v7612 = vsel %vm7486, 0, %v7610
    %v7613 = vmul.f32 %v7611, %v7611
    %v7614 = vmul.f32 %v7613, -0.001358992
    %v7615 = vadd.f32 %v7614, 0.041655596
    %v7616 = vmul.f32 %v7613, %v7615
    %v7617 = vadd.f32 %v7616, -0.4999988
    %v7618 = vmul.f32 %v7613, %v7617
    %v7619 = vadd.f32 1.0, %v7618
    %v7620 = vmul.f32 %v7611, %v7611
    %v7621 = vmul.f32 %v7620, -0.00019511016
    %v7622 = vadd.f32 %v7621, 0.008332121
    %v7623 = vmul.f32 %v7620, %v7622
    %v7624 = vadd.f32 %v7623, -0.16666654
    %v7625 = vmul.f32 %v7620, %v7624
    %v7626 = vadd.f32 %v7625, 1.0
    %v7627 = vmul.f32 %v7626, %v7611
    %vm7628 = vweird.f32 %v206
    %v7629 = vadd.s32 %v7612, 3
    %v7630 = vand.u32 %v7629, 3
    %vm7631 = vcmp.lt.s32.totalorder %v7630, 2
    %vm7632 = vcmp.eq.s32.totalorder %v7630, 0
    %v7633 = vxor.u32 %v7627, 2147483648
    %v7634 = vsel %vm7632, %v7619, %v7633
    %vm7635 = vcmp.eq.s32.totalorder %v7630, 2
    %v7636 = vxor.u32 %v7619, 2147483648
    %v7637 = vsel %vm7635, %v7636, %v7627
    %v7638 = vsel %vm7631, %v7634, %v7637
    %v7639 = vsel %vm7628, nan, %v7638
    %vm7640 = vcmask 523264
    %v7642 = vsel %vm7640, %v3913, 0
    %v7645 = vsel %vm7640, %v3915, 0
    %v7648 = vsel %vm7640, %v3917, 0
    %v7651 = vsel %vm7640, %v3919, 0
    %7653 = vmatpush.msra.mxu0 %v6399
    %7654 = vmatpush.msra.mxu0 %v6244
    %7655 = vmatpush.msra.mxu0 %v6089
    %7656 = vmatpush.msra.mxu0 %v5934
    %7657 = vmatpush.msra.mxu0 %v5779
    %7658 = vmatpush.msra.mxu0 %v5624
    %7659 = vmatpush.msra.mxu0 %v5469
    %7660 = vmatpush.msra.mxu0 %v5314
    %7661 = vmatpush.msra.mxu0 %v5159
    %7662 = vmatpush.msra.mxu0 %v5004
    %7663 = vmatpush.msra.mxu0 %v4849
    %7664 = vmatpush.msra.mxu0 %v4694
    %7665 = vmatpush.msra.mxu0 %v4539
    %7666 = vmatpush.msra.mxu0 %v4384
    %7667 = vmatpush.msra.mxu0 %v4229
    %7668 = vmatpush.msra.mxu0 %v4074
    %7669 = vmatmul.f32.gmra.mxu0 %v3912
    %v7670 = vpop.f32.mrf.mxu0
    %v7671 = vadd.f32 0.0, %v7670
    %7672 = vmatmul.f32.gmra.mxu0 %v3914
    %v7673 = vpop.f32.mrf.mxu0
    %v7674 = vadd.f32 0.0, %v7673
    %7675 = vmatmul.f32.gmra.mxu0 %v3916
    %v7676 = vpop.f32.mrf.mxu0
    %v7677 = vadd.f32 0.0, %v7676
    %7678 = vmatmul.f32.gmra.mxu0 %v3918
    %v7679 = vpop.f32.mrf.mxu0
    %v7680 = vadd.f32 0.0, %v7679
    %7681 = vdwg.mxu0
    %7682 = vmatpush.msra.mxu0 0.0
    %7683 = vmatpush.msra.mxu0 0.0
    %7684 = vmatpush.msra.mxu0 0.0
    %7685 = vmatpush.msra.mxu0 0.0
    %7686 = vmatpush.msra.mxu0 0.0
    %7687 = vmatpush.msra.mxu0 0.0
    %7688 = vmatpush.msra.mxu0 0.0
    %7689 = vmatpush.msra.mxu0 0.0
    %7690 = vmatpush.msra.mxu0 %v7639
    %7691 = vmatpush.msra.mxu0 %v7484
    %7692 = vmatpush.msra.mxu0 %v7329
    %7693 = vmatpush.msra.mxu0 %v7174
    %7694 = vmatpush.msra.mxu0 %v7019
    %7695 = vmatpush.msra.mxu0 %v6864
    %7696 = vmatpush.msra.mxu0 %v6709
    %7697 = vmatpush.msra.mxu0 %v6554
    %7698 = vmatmul.f32.gmra.mxu0 %v7642
    %v7699 = vpop.f32.mrf.mxu0
    %v7700 = vadd.f32 %v7671, %v7699
    %7701 = vmatmul.f32.gmra.mxu0 %v7645
    %v7702 = vpop.f32.mrf.mxu0
    %v7703 = vadd.f32 %v7674, %v7702
    %7704 = vmatmul.f32.gmra.mxu0 %v7648
    %v7705 = vpop.f32.mrf.mxu0
    %v7706 = vadd.f32 %v7677, %v7705
    %7707 = vmatmul.f32.gmra.mxu0 %v7651
    %v7708 = vpop.f32.mrf.mxu0
    %v7709 = vadd.f32 %v7680, %v7708
    %7710 = vdwg.mxu0
    %v7712 = vsel %vm7640, %v209, 0
    %v7715 = vsel %vm7640, %v211, 0
    %v7718 = vsel %vm7640, %v213, 0
    %v7721 = vsel %vm7640, %v215, 0
    %7723 = vmatpush.msra.mxu0 %v2679
    %7724 = vmatpush.msra.mxu0 %v2525
    %7725 = vmatpush.msra.mxu0 %v2371
    %7726 = vmatpush.msra.mxu0 %v2217
    %7727 = vmatpush.msra.mxu0 %v2063
    %7728 = vmatpush.msra.mxu0 %v1909
    %7729 = vmatpush.msra.mxu0 %v1755
    %7730 = vmatpush.msra.mxu0 %v1601
    %7731 = vmatpush.msra.mxu0 %v1447
    %7732 = vmatpush.msra.mxu0 %v1293
    %7733 = vmatpush.msra.mxu0 %v1139
    %7734 = vmatpush.msra.mxu0 %v985
    %7735 = vmatpush.msra.mxu0 %v831
    %7736 = vmatpush.msra.mxu0 %v677
    %7737 = vmatpush.msra.mxu0 %v523
    %7738 = vmatpush.msra.mxu0 %v369
    %7739 = vmatmul.f32.gmra.mxu0 %v208
    %v7740 = vpop.f32.mrf.mxu0
    %v7741 = vadd.f32 %v7700, %v7740
    %7742 = vmatmul.f32.gmra.mxu0 %v210
    %v7743 = vpop.f32.mrf.mxu0
    %v7744 = vadd.f32 %v7703, %v7743
    %7745 = vmatmul.f32.gmra.mxu0 %v212
    %v7746 = vpop.f32.mrf.mxu0
    %v7747 = vadd.f32 %v7706, %v7746
    %7748 = vmatmul.f32.gmra.mxu0 %v214
    %v7749 = vpop.f32.mrf.mxu0
    %v7750 = vadd.f32 %v7709, %v7749
    %7751 = vdwg.mxu0
    %7752 = vmatpush.msra.mxu0 0.0
    %7753 = vmatpush.msra.mxu0 0.0
    %7754 = vmatpush.msra.mxu0 0.0
    %7755 = vmatpush.msra.mxu0 0.0
    %7756 = vmatpush.msra.mxu0 0.0
    %7757 = vmatpush.msra.mxu0 0.0
    %7758 = vmatpush.msra.mxu0 0.0
    %7759 = vmatpush.msra.mxu0 0.0
    %7760 = vmatpush.msra.mxu0 %v3911
    %7761 = vmatpush.msra.mxu0 %v3757
    %7762 = vmatpush.msra.mxu0 %v3603
    %7763 = vmatpush.msra.mxu0 %v3449
    %7764 = vmatpush.msra.mxu0 %v3295
    %7765 = vmatpush.msra.mxu0 %v3141
    %7766 = vmatpush.msra.mxu0 %v2987
    %7767 = vmatpush.msra.mxu0 %v2833
    %7768 = vmatmul.f32.gmra.mxu0 %v7712
    %v7769 = vpop.f32.mrf.mxu0
    %v7770 = vadd.f32 %v7741, %v7769
    %7771 = vmatmul.f32.gmra.mxu0 %v7715
    %v7772 = vpop.f32.mrf.mxu0
    %v7773 = vadd.f32 %v7744, %v7772
    %7774 = vmatmul.f32.gmra.mxu0 %v7718
    %v7775 = vpop.f32.mrf.mxu0
    %v7776 = vadd.f32 %v7747, %v7775
    %7777 = vmatmul.f32.gmra.mxu0 %v7721
    %v7778 = vpop.f32.mrf.mxu0
    %v7779 = vadd.f32 %v7750, %v7778
    %7780 = vdwg.mxu0
    %v7781 = vld [vmem:[%s4] sm:$0xff]
    %v7782 = vld [vmem:[%s4 + $0x8] sm:$0xff]
    %v7783 = vld [vmem:[%s4 + $0x10] sm:$0xff]
    %v7784 = vld [vmem:[%s4 + $0x18] sm:$0xff]
    %7786 = vset.pattern.permute.xlu0 0
    %7787 = vperm.xlu0 %7786, %v7781
    %v7788 = vpop.permute.xlu0 %7787
    %7791 = vset.pattern.permute.xlu0 0
    %7792 = vperm.xlu0 %7791, %v7782
    %v7793 = vpop.permute.xlu0 %7792
    %7796 = vset.pattern.permute.xlu0 0
    %7797 = vperm.xlu0 %7796, %v7783
    %v7798 = vpop.permute.xlu0 %7797
    %7801 = vset.pattern.permute.xlu0 0
    %7802 = vperm.xlu0 %7801, %v7784
    %v7803 = vpop.permute.xlu0 %7802
    %v7805 = vadd.f32 %v7770, %v7788
    %v7806 = vadd.f32 %v7773, %v7793
    %v7807 = vadd.f32 %v7776, %v7798
    %v7808 = vadd.f32 %v7779, %v7803
    %v7809 = vmax.f32 %v7805, 0.0
    %v7810 = vmax.f32 %v7806, 0.0
    %v7811 = vmax.f32 %v7807, 0.0
    %v7812 = vmax.f32 %v7808, 0.0
    %7813 = vst [vmem:[#allocation2] sm:$0xff] %v7809
    %7814 = vst [vmem:[#allocation2 + $0x8] sm:$0xff] %v7810
    %7815 = vst [vmem:[#allocation2 + $0x10] sm:$0xff] %v7811
    %7816 = vst [vmem:[#allocation2 + $0x18] sm:$0xff] %v7812
    // Predicated region
    $region22: #{tpu_custom_call.1} parent=1 // pred_check
      _
    $region23: #{tpu_custom_call.1} parent=1 // pred_check_branch
      %7818 = sbr.rel (0) target = $region25
    $region24: #{tpu_custom_call.1} parent=1 // pred_region
      %7820 = vsyncadd [#allocation3], 0
      %s7821 = sshll.u32 [#allocation2], 4
      %s7822 = int_to_ptr.vmem [resolvable:$true] %s7821
      %s7823 = sshll.u32 %s5, 4
      %s7824 = int_to_ptr.hbm [resolvable:$true] %s7823
      %7829 = dma.vmem_to_hbm [thread:$0]  %s7822, 512, %s7824, [#allocation3], 128, 128, 8
    $region25: #{tpu_custom_call.1} parent=1 // pred_fallthru
      _
    // Predicated region
    $region26: #{tpu_custom_call.1} parent=1 // pred_check
      _
    $region27: #{tpu_custom_call.1} parent=1 // pred_check_branch
      %7831 = sbr.rel (0) target = $region29
    $region28: #{tpu_custom_call.1} parent=1 // pred_region
      %7833 = dma.done [#allocation3], 512
    $region29: #{tpu_custom_call.1} parent=1 // pred_fallthru
      _
    %7834 = vsyncpa [#allocation3], 1

</llo_original>
